<compile_context>
chip_gen: v7x
topology: tpu7x:2x2x1
jax: 0.10.0
libtpu: 0.0.40
codegen_flags: <defaults>
</compile_context>

<pallas_src>
import functools

import jax
import jax.numpy as jnp
from jax import lax
from jax.experimental import pallas as pl
from jax.experimental.pallas import tpu as pltpu

_PAD_LEFT = 8  # left zero-pad columns in the conv scratch -> sublane-aligned writes


def _bottleneck_kernel(x_ref, xb_ref,
                       sa_ref, ba_ref, w1_ref, w2a_ref,
                       sb1_ref, bb1_ref, w2b1_ref,
                       sb2_ref, bb2_ref, w2b2_ref,
                       *refs, dilation, emit_xbr, use_im2col):
    if emit_xbr:
        out_ref, xbr_ref, pad_ref, carry_ref = refs
    else:
        out_ref, pad_ref, carry_ref = refs
        xbr_ref = None

    d = dilation
    P = _PAD_LEFT
    th, W, Cin = x_ref.shape[1], x_ref.shape[2], x_ref.shape[3]
    C4 = w2a_ref.shape[1]
    C2 = w2b2_ref.shape[0]
    Cout = w1_ref.shape[1]
    i = pl.program_id(1)
    n_h = pl.num_programs(1)

    # Zero only the left/right zero-padding column strips of the conv scratch,
    # once per batch item; they are never overwritten afterwards.  Valid because
    # the row axis is "arbitrary" (sequential per core / per batch item).
    @pl.when(i == 0)
    def _zero_strips():
        strip = jnp.zeros((th + 2 * d, d, C4), pad_ref.dtype)
        pad_ref[:, P - d:P, :] = strip
        pad_ref[:, P + W:P + W + d, :] = strip

    sa = sa_ref[...].reshape(1, 1, Cin)
    ba = ba_ref[...].reshape(1, 1, Cin)

    # ---- BN(2a) + ReLU (f32 VPU math) on main rows + bottom-halo rows -------
    bnr = jnp.maximum(x_ref[0].astype(jnp.float32) * sa + ba, 0.0)       # (th,W,Cin)
    if emit_xbr:
        xbr_ref[0] = bnr.astype(xbr_ref.dtype)
    bnr_bot = jnp.maximum(xb_ref[0].astype(jnp.float32) * sa + ba, 0.0)  # (d,W,Cin)

    # Single bf16 cast of the main rows, reused by branch1 and conv2a.
    bnr_bf = bnr.reshape(th * W, Cin).astype(jnp.bfloat16)
    bot_bf = bnr_bot.reshape(d * W, Cin).astype(jnp.bfloat16)

    # ---- conv2a (1x1) fused over main + bottom-halo rows: one MXU matmul ----
    lhs2a = jnp.concatenate([bnr_bf, bot_bf], axis=0)                # ((th+d)W,Cin)
    t = jnp.dot(lhs2a, w2a_ref[...], preferred_element_type=jnp.float32)
    t = jnp.maximum(t * sb1_ref[...] + bb1_ref[...], 0.0)            # BN(2b1)+ReLU
    t_bf = t.astype(jnp.bfloat16).reshape(th + d, W, C4)
    t_main, t_bot = t_bf[:th], t_bf[th:]

    # ---- assemble the (th+2d)-row window in the scratch ---------------------
    # Interior writes start at sublane offset P=8 -> aligned, unmasked stores.
    zrows = jnp.zeros((d, W, C4), pad_ref.dtype)

    @pl.when(i == 0)                     # rows above the image -> zero padding
    def _top_zero():
        pad_ref[0:d, P:P + W, :] = zrows

    @pl.when(i > 0)                      # carried from the previous row tile
    def _top_carry():
        pad_ref[0:d, P:P + W, :] = carry_ref[...]

    pad_ref[d:d + th, P:P + W, :] = t_main.astype(pad_ref.dtype)

    @pl.when(i == n_h - 1)               # rows below the image -> zero padding
    def _bot_zero():
        pad_ref[th + d:th + 2 * d, P:P + W, :] = zrows

    @pl.when(i < n_h - 1)
    def _bot_halo():
        pad_ref[th + d:th + 2 * d, P:P + W, :] = t_bot.astype(pad_ref.dtype)

    # Carry this tile's last d conv2a rows -> next row tile's top halo.
    carry_ref[...] = t_main[th - d:th].astype(carry_ref.dtype)

    # ---- 3x3 dilated conv straight from the bf16 window ---------------------
    def tap(ky, kx):
        return pad_ref[ky * d:ky * d + th,
                       P - d + kx * d:P - d + kx * d + W, :]

    if use_im2col:
        # Single MXU matmul with K = 9*C4 (best when C4 < 128); cols built
        # directly in bf16 so no f32 im2col buffer ever exists.
        cols = jnp.concatenate(
            [tap(ky, kx).astype(jnp.bfloat16)
             for ky in range(3) for kx in range(3)], axis=-1)        # (th,W,9*C4)
        conv = jnp.dot(cols.reshape(th * W, 9 * C4), w2b1_ref[...],
                       preferred_element_type=jnp.float32)
    else:
        # 9 shifted-tap matmuls (K = C4 per tap) accumulated in f32; preferred
        # when C4 is a multiple of 128 (keeps the MXU K dimension aligned).
        conv = jnp.zeros((th * W, C2), jnp.float32)
        for ky in range(3):
            for kx in range(3):
                base = (ky * 3 + kx) * C4
                lhs = tap(ky, kx).astype(jnp.bfloat16).reshape(th * W, C4)
                conv = conv + jnp.dot(lhs, w2b1_ref[base:base + C4, :],
                                      preferred_element_type=jnp.float32)

    # ---- BN(2b2) + ReLU, final 1x1 conv, branch1, single fused output write -
    t2 = jnp.maximum(conv * sb2_ref[...] + bb2_ref[...], 0.0)
    branch2 = jnp.dot(t2.astype(jnp.bfloat16), w2b2_ref[...],
                      preferred_element_type=jnp.float32)
    branch1 = jnp.dot(bnr_bf, w1_ref[...], preferred_element_type=jnp.float32)
    out_ref[0] = (branch1 + branch2).reshape(th, W, Cout).astype(out_ref.dtype)


def _chip_vmem_caps():
    """(VMEM capacity, base vmem_limit request, tile-picking budget) in bytes."""
    try:
        cap = int(pltpu.get_tpu_info().vmem_capacity_bytes)
    except Exception:
        cap = 64 << 20                                # conservative (v7x per-TC)
    limit = min((cap * 3) // 4, 96 << 20)             # v7x ~48 MiB, v5e/v6e 96 MiB
    budget = max(min(cap // 2 - (4 << 20), 72 << 20), 8 << 20)
    return cap, limit, budget


def _estimate_vmem_bytes(th, W, cin, c4, c2, cout, d, emit_xbr, x_bytes,
                         use_im2col, single_buf_consts):
    f32, bf16 = 4, 2
    wbuf = 1 if single_buf_consts else 2
    blk = 2 * (th + d) * W * cin * x_bytes            # x + bottom-halo (2x buffered)
    blk += 2 * th * W * cout * f32                    # out block (2x buffered)
    if emit_xbr:
        blk += 2 * th * W * cin * f32
    blk += wbuf * (cin * cout + cin * c4 + 9 * c4 * c2 + c2 * cout) * bf16
    scratch = (th + 2 * d) * (_PAD_LEFT + W + d) * c4 * bf16 + d * W * c4 * bf16
    live = (th + d) * W * (cin * (f32 + bf16) + c4 * (f32 + bf16))
    live += th * W * (2 * c2 * f32 + 3 * cout * f32)
    live += th * W * (9 if use_im2col else 1) * c4 * bf16
    return blk + scratch + live


def _pick_tile_h(H, W, cin, c4, c2, cout, d, emit_xbr, x_bytes, use_im2col,
                 budget_bytes):
    """Largest row tile (divisor of H, multiple of d) under the VMEM budget."""
    cands = [t for t in range(H, 0, -1) if H % t == 0 and t % d == 0]
    for t in cands:
        if _estimate_vmem_bytes(t, W, cin, c4, c2, cout, d, emit_xbr, x_bytes,
                                use_im2col, True) <= budget_bytes:
            return t
    return cands[-1]


def bottleneck_block(x, p, *, dilation=1, get_x_bn_relu=False, tile_h=None,
                     conv_mode=None, data_format="NCHW"):
    # TODO(synk): stride != 1 and Dropout2d with p > 0 (training mode) are not
    # implemented; module defaults are stride=1, dropout=0.0 (identity in eval).
    d = int(dilation)
    assert d >= 1
    if data_format == "NCHW":
        x = jnp.transpose(x, (0, 2, 3, 1))            # NCHW -> NHWC (keep dtype)
    N, H, W, Cin = x.shape
    Cout = p["w1"].shape[1]
    C4 = p["w2a"].shape[1]
    C2 = p["w2b2"].shape[0]
    assert H % d == 0, "dilation must divide H"       # TODO(synk): general H vs d

    if conv_mode is None:                             # taps keep K in 128 chunks
        conv_mode = "taps" if (C4 >= 128 and C4 % 128 == 0) else "im2col"
    use_im2col = conv_mode == "im2col"

    cap, vmem_limit, tile_budget = _chip_vmem_caps()
    x_bytes = jnp.dtype(x.dtype).itemsize
    if tile_h is None:
        tile_h = _pick_tile_h(H, W, Cin, C4, C2, Cout, d, get_x_bn_relu,
                              x_bytes, use_im2col, tile_budget)
    th = int(tile_h)
    assert H % th == 0 and th % d == 0, (H, th, d)
    n_h = H // th
    hb = H // d                                       # number of d-row blocks in H
    td = th // d
    est = _estimate_vmem_bytes(th, W, Cin, C4, C2, Cout, d, get_x_bn_relu,
                               x_bytes, use_im2col, True)
    vmem_limit = int(min(max(vmem_limit, (est * 5) // 4), cap - (4 << 20)))

    # bf16 weights for the MXU (accumulation stays f32 inside the kernel).
    # TODO(synk): fp8 weights on v7x would raise MXU throughput if accuracy allows.
    w1 = p["w1"].astype(jnp.bfloat16)
    w2a = p["w2a"].astype(jnp.bfloat16)
    w2b1 = p["w2b1"].astype(jnp.bfloat16)             # (9*C4, C2), (ky,kx,cin) rows
    w2b2 = p["w2b2"].astype(jnp.bfloat16)

    x_spec = pl.BlockSpec((1, th, W, Cin), lambda b, i: (b, i, 0, 0))
    # d-row halo below the tile (clamped at the bottom; its contents are
    # replaced by zero padding inside the kernel on the last row tile).
    xb_spec = pl.BlockSpec(
        (1, d, W, Cin),
        lambda b, i: (b, jnp.minimum((i + 1) * td, hb - 1), 0, 0))

    out_specs = [pl.BlockSpec((1, th, W, Cout), lambda b, i: (b, i, 0, 0))]
    out_shapes = [jax.ShapeDtypeStruct((N, H, W, Cout), jnp.float32)]
    if get_x_bn_relu:
        out_specs.append(pl.BlockSpec((1, th, W, Cin), lambda b, i: (b, i, 0, 0)))
        out_shapes.append(jax.ShapeDtypeStruct((N, H, W, Cin), jnp.float32))

    const_shapes = [(1, Cin), (1, Cin), (Cin, Cout), (Cin, C4),
                    (1, C4), (1, C4), (9 * C4, C2), (1, C2), (1, C2), (C2, Cout)]

    kernel = functools.partial(_bottleneck_kernel, dilation=d,
                               emit_xbr=get_x_bn_relu, use_im2col=use_im2col)

    def _const_spec(shape, single_buffer):
        n = len(shape)
        kwargs = {"pipeline_mode": pl.Buffered(1)} if single_buffer else {}
        return pl.BlockSpec(shape, lambda b, i, _n=n: (0,) * _n, **kwargs)

    def _call(single_buffer_consts, scratch_dtype):
        in_specs = [x_spec, xb_spec] + [_const_spec(s, single_buffer_consts)
                                        for s in const_shapes]
        return pl.pallas_call(
            kernel,
            out_shape=tuple(out_shapes),
            grid=(N, n_h),
            in_specs=in_specs,
            out_specs=tuple(out_specs),
            scratch_shapes=[
                pltpu.VMEM((th + 2 * d, _PAD_LEFT + W + d, C4), scratch_dtype),
                pltpu.VMEM((d, W, C4), scratch_dtype),
            ],
            compiler_params=pltpu.CompilerParams(
                # Batch axis feeds megacore; the row axis must stay sequential
                # ("arbitrary") because of the conv2a top-halo carry.
                # TODO(synk): for N == 1 on v7x a row-parallel variant (halo
                # recompute instead of carry) would use both TensorCores.
                dimension_semantics=("parallel", "arbitrary"),
                vmem_limit_bytes=vmem_limit),
        )(x, x,
          p["scale_a"], p["bias_a"], w1, w2a,
          p["scale_b1"], p["bias_b1"], w2b1,
          p["scale_b2"], p["bias_b2"], w2b2)

    # Preferred config first (single-buffered constants, bf16 conv scratch);
    # fall back gracefully on jax versions without pl.Buffered(1) support etc.
    configs = [(True, jnp.bfloat16), (False, jnp.bfloat16),
               (True, jnp.float32), (False, jnp.float32)]
    outs, last_err = None, None
    for single_buf, sdtype in configs:
        try:
            outs = _call(single_buf, sdtype)
            break
        except Exception as e:                        # pragma: no cover
            last_err = e
    if outs is None:                                  # pragma: no cover
        raise last_err

    out = outs[0]
    xbr = outs[1] if get_x_bn_relu else None
    if data_format == "NCHW":
        out = jnp.transpose(out, (0, 3, 1, 2))
        if xbr is not None:
            xbr = jnp.transpose(xbr, (0, 3, 1, 2))
    # Note: when chaining blocks, call with data_format="NHWC" to avoid the
    # per-block NCHW<->NHWC transposes (full HBM round-trips outside the kernel).
    if get_x_bn_relu:
        return out, xbr
    return out


def _fold_bn(gamma, beta, mean, var, eps=1e-5):
    scale = gamma / jnp.sqrt(var + eps)
    bias = beta - mean * scale
    return scale.reshape(1, -1), bias.reshape(1, -1)


def init_params(key, in_channels, out_channels):
    C4, C2 = out_channels // 4, out_channels // 2
    keys = jax.random.split(key, 16)

    def bn(k, c):
        k1, k2, k3, k4 = jax.random.split(k, 4)
        gamma = 1.0 + 0.1 * jax.random.normal(k1, (c,), jnp.float32)
        beta = 0.1 * jax.random.normal(k2, (c,), jnp.float32)
        mean = 0.1 * jax.random.normal(k3, (c,), jnp.float32)
        var = jax.random.uniform(k4, (c,), jnp.float32, 0.5, 1.5)
        return _fold_bn(gamma, beta, mean, var)

    sa, ba = bn(keys[0], in_channels)
    sb1, bb1 = bn(keys[1], C4)
    sb2, bb2 = bn(keys[2], C2)

    w1 = 0.1 * jax.random.normal(keys[3], (in_channels, out_channels), jnp.float32)
    w2a = 0.1 * jax.random.normal(keys[4], (in_channels, C4), jnp.float32)
    w2b1 = 0.1 * jax.random.normal(keys[5], (3, 3, C4, C2), jnp.float32)   # HWIO
    w2b2 = 0.1 * jax.random.normal(keys[6], (C2, out_channels), jnp.float32)

    return {
        "scale_a": sa, "bias_a": ba,
        "w1": w1, "w2a": w2a,
        "scale_b1": sb1, "bias_b1": bb1,
        "w2b1": w2b1.reshape(9 * C4, C2),
        "scale_b2": sb2, "bias_b2": bb2,
        "w2b2": w2b2,
    }


def reference(x_nchw, p, dilation=1):
    """Pure-JAX f32 reference (mirrors the PyTorch forward, eval mode)."""
    x = jnp.transpose(x_nchw, (0, 2, 3, 1)).astype(jnp.float32)
    Cin = x.shape[-1]
    C4 = p["w2a"].shape[1]

    bnr = jnp.maximum(x * p["scale_a"].reshape(1, 1, 1, Cin)
                      + p["bias_a"].reshape(1, 1, 1, Cin), 0.0)
    branch1 = jnp.einsum("nhwc,co->nhwo", bnr, p["w1"])
    t = jnp.einsum("nhwc,co->nhwo", bnr, p["w2a"])
    t = jnp.maximum(t * p["scale_b1"].reshape(1, 1, 1, -1)
                    + p["bias_b1"].reshape(1, 1, 1, -1), 0.0)
    w_hwio = p["w2b1"].reshape(3, 3, C4, -1)
    t = lax.conv_general_dilated(
        t, w_hwio, window_strides=(1, 1),
        padding=((dilation, dilation), (dilation, dilation)),
        rhs_dilation=(dilation, dilation),
        dimension_numbers=("NHWC", "HWIO", "NHWC"))
    t = jnp.maximum(t * p["scale_b2"].reshape(1, 1, 1, -1)
                    + p["bias_b2"].reshape(1, 1, 1, -1), 0.0)
    branch2 = jnp.einsum("nhwc,co->nhwo", t, p["w2b2"])
    out = branch1 + branch2
    return jnp.transpose(out, (0, 3, 1, 2)), jnp.transpose(bnr, (0, 3, 1, 2))


if __name__ == "__main__":
    key = jax.random.PRNGKey(0)
    k_x, k_p = jax.random.split(key)

    N, Cin, H, W = 2, 4, 16, 16
    Cout = 8                                  # same_shape == False -> conv_branch1
    x = jax.random.normal(k_x, (N, Cin, H, W), jnp.float32)   # PyTorch-style NCHW
    params = init_params(k_p, Cin, Cout)

    def check(out, ref_out, tag):
        rel = jnp.max(jnp.abs(out - ref_out)) / (jnp.max(jnp.abs(ref_out)) + 1e-6)
        assert rel < 2e-2, f"output mismatch ({tag}): rel_err={rel}"

    # tile_h=8 -> 2 row tiles per image so the halo carry + bottom halo paths run.
    for dil in (1, 2):
        out, x_bn_relu = bottleneck_block(x, params, dilation=dil,
                                          get_x_bn_relu=True, tile_h=8)
        out = jax.block_until_ready(out)
        x_bn_relu = jax.block_until_ready(x_bn_relu)
        ref_out, ref_xbr = reference(x, params, dilation=dil)

        assert out.shape == (N, Cout, H, W)
        assert x_bn_relu.shape == (N, Cin, H, W)
        assert jnp.allclose(x_bn_relu, ref_xbr, atol=1e-5, rtol=1e-5), \
            f"x_bn_relu mismatch (dilation={dil})"
        check(out, ref_out, f"dilation={dil}")

    ref_out, _ = reference(x, params, dilation=1)

    # 9-shifted-tap accumulation path (auto-selected when C4 is a multiple of 128).
    out_taps = jax.block_until_ready(
        bottleneck_block(x, params, dilation=1, tile_h=8, conv_mode="taps"))
    check(out_taps, ref_out, "taps")

    # Auto tile_h (single row tile) + no x_bn_relu writeback.
    out_auto = jax.block_until_ready(bottleneck_block(x, params, dilation=1))
    check(out_auto, ref_out, "auto-tile")

    print("KERNEL_OK")
</pallas_src>

<mosaic_0001>
module attributes {stable_mosaic.version = 11 : i64} {
  func.func @_bottleneck_kernel(%arg0: i32, %arg1: i32, %arg2: memref<1x8x16x4xf32, #tpu.memory_space<vmem>>, %arg3: memref<1x1x16x4xf32, #tpu.memory_space<vmem>>, %arg4: memref<1x4xf32, #tpu.memory_space<vmem>>, %arg5: memref<1x4xf32, #tpu.memory_space<vmem>>, %arg6: memref<4x8xbf16, #tpu.memory_space<vmem>>, %arg7: memref<4x2xbf16, #tpu.memory_space<vmem>>, %arg8: memref<1x2xf32, #tpu.memory_space<vmem>>, %arg9: memref<1x2xf32, #tpu.memory_space<vmem>>, %arg10: memref<18x4xbf16, #tpu.memory_space<vmem>>, %arg11: memref<1x4xf32, #tpu.memory_space<vmem>>, %arg12: memref<1x4xf32, #tpu.memory_space<vmem>>, %arg13: memref<4x8xbf16, #tpu.memory_space<vmem>>, %arg14: memref<1x8x16x8xf32, #tpu.memory_space<vmem>>, %arg15: memref<1x8x16x4xf32, #tpu.memory_space<vmem>>, %arg16: memref<10x25x2xbf16, #tpu.memory_space<vmem>>, %arg17: memref<1x16x2xbf16, #tpu.memory_space<vmem>>) attributes {dimension_semantics = [#tpu.dimension_semantics<parallel>, #tpu.dimension_semantics<arbitrary>], iteration_bounds = array<i64: 2, 2>, scalar_prefetch = 0 : i64, scratch_operands = 2 : i64, tpu.core_type = #tpu.core_type<tc>, window_params = [{transform_indices = @transform_0, window_bounds = array<i64: 1, 8, 16, 4>}, {transform_indices = @transform_1, window_bounds = array<i64: 1, 1, 16, 4>}, {pipeline_mode = #tpu.pipeline_mode<synchronous>, transform_indices = @transform_2, window_bounds = array<i64: 1, 4>}, {pipeline_mode = #tpu.pipeline_mode<synchronous>, transform_indices = @transform_3, window_bounds = array<i64: 1, 4>}, {pipeline_mode = #tpu.pipeline_mode<synchronous>, transform_indices = @transform_4, window_bounds = array<i64: 4, 8>}, {pipeline_mode = #tpu.pipeline_mode<synchronous>, transform_indices = @transform_5, window_bounds = array<i64: 4, 2>}, {pipeline_mode = #tpu.pipeline_mode<synchronous>, transform_indices = @transform_6, window_bounds = array<i64: 1, 2>}, {pipeline_mode = #tpu.pipeline_mode<synchronous>, transform_indices = @transform_7, window_bounds = array<i64: 1, 2>}, {pipeline_mode = #tpu.pipeline_mode<synchronous>, transform_indices = @transform_8, window_bounds = array<i64: 18, 4>}, {pipeline_mode = #tpu.pipeline_mode<synchronous>, transform_indices = @transform_9, window_bounds = array<i64: 1, 4>}, {pipeline_mode = #tpu.pipeline_mode<synchronous>, transform_indices = @transform_10, window_bounds = array<i64: 1, 4>}, {pipeline_mode = #tpu.pipeline_mode<synchronous>, transform_indices = @transform_11, window_bounds = array<i64: 4, 8>}, {transform_indices = @transform_12, window_bounds = array<i64: 1, 8, 16, 8>}, {transform_indices = @transform_13, window_bounds = array<i64: 1, 8, 16, 4>}]} {
    %c0_i32 = arith.constant 0 : i32
    %0 = arith.cmpi eq, %arg1, %c0_i32 : i32
    %1 = arith.extui %0 : i1 to i32
    %c0_i32_0 = arith.constant 0 : i32
    %2 = arith.cmpi ne, %1, %c0_i32_0 : i32
    scf.if %2 {
      %cst_79 = arith.constant 0.000000e+00 : bf16
      %92 = vector.broadcast %cst_79 : bf16 to vector<10x1x2xbf16>
      %c0_80 = arith.constant 0 : index
      %c7_81 = arith.constant 7 : index
      %c0_82 = arith.constant 0 : index
      %93 = vector.load %arg16[%c0_80, %c7_81, %c0_82] : memref<10x25x2xbf16, #tpu.memory_space<vmem>>, vector<10x1x2xbf16>
      tpu.vector_store %arg16[%c0_80, %c7_81, %c0_82], %92 {strides = array<i32>} : memref<10x25x2xbf16, #tpu.memory_space<vmem>>, vector<10x1x2xbf16>,
      %c0_83 = arith.constant 0 : index
      %c24 = arith.constant 24 : index
      %c0_84 = arith.constant 0 : index
      %94 = vector.load %arg16[%c0_83, %c24, %c0_84] : memref<10x25x2xbf16, #tpu.memory_space<vmem>>, vector<10x1x2xbf16>
      tpu.vector_store %arg16[%c0_83, %c24, %c0_84], %92 {strides = array<i32>} : memref<10x25x2xbf16, #tpu.memory_space<vmem>>, vector<10x1x2xbf16>,
    } else {
    }
    %c0 = arith.constant 0 : index
    %c0_1 = arith.constant 0 : index
    %3 = vector.load %arg4[%c0, %c0_1] : memref<1x4xf32, #tpu.memory_space<vmem>>, vector<1x4xf32>
    %4 = vector.shape_cast %3 : vector<1x4xf32> to vector<1x1x4xf32>
    %c0_2 = arith.constant 0 : index
    %c0_3 = arith.constant 0 : index
    %5 = vector.load %arg5[%c0_2, %c0_3] : memref<1x4xf32, #tpu.memory_space<vmem>>, vector<1x4xf32>
    %6 = vector.shape_cast %5 : vector<1x4xf32> to vector<1x1x4xf32>
    %c0_4 = arith.constant 0 : index
    %c0_5 = arith.constant 0 : index
    %c0_6 = arith.constant 0 : index
    %c0_7 = arith.constant 0 : index
    %7 = vector.load %arg2[%c0_4, %c0_5, %c0_6, %c0_7] : memref<1x8x16x4xf32, #tpu.memory_space<vmem>>, vector<1x8x16x4xf32>
    %8 = vector.shape_cast %7 : vector<1x8x16x4xf32> to vector<8x16x4xf32>
    %9 = vector.broadcast %4 : vector<1x1x4xf32> to vector<8x16x4xf32>
    %10 = arith.mulf %8, %9 : vector<8x16x4xf32>
    %11 = vector.broadcast %6 : vector<1x1x4xf32> to vector<8x16x4xf32>
    %12 = arith.addf %10, %11 : vector<8x16x4xf32>
    %cst = arith.constant 0.000000e+00 : f32
    %13 = vector.broadcast %cst : f32 to vector<8x16x4xf32>
    %14 = arith.maximumf %12, %13 : vector<8x16x4xf32>
    %c0_8 = arith.constant 0 : index
    %c0_9 = arith.constant 0 : index
    %c0_10 = arith.constant 0 : index
    %c0_11 = arith.constant 0 : index
    %15 = vector.load %arg15[%c0_8, %c0_9, %c0_10, %c0_11] : memref<1x8x16x4xf32, #tpu.memory_space<vmem>>, vector<1x8x16x4xf32>
    %16 = vector.shape_cast %15 : vector<1x8x16x4xf32> to vector<8x16x4xf32>
    %17 = vector.shape_cast %14 : vector<8x16x4xf32> to vector<1x8x16x4xf32>
    tpu.vector_store %arg15[%c0_8, %c0_9, %c0_10, %c0_11], %17 {strides = array<i32>} : memref<1x8x16x4xf32, #tpu.memory_space<vmem>>, vector<1x8x16x4xf32>,
    %c0_12 = arith.constant 0 : index
    %c0_13 = arith.constant 0 : index
    %c0_14 = arith.constant 0 : index
    %c0_15 = arith.constant 0 : index
    %18 = vector.load %arg3[%c0_12, %c0_13, %c0_14, %c0_15] : memref<1x1x16x4xf32, #tpu.memory_space<vmem>>, vector<1x1x16x4xf32>
    %19 = vector.shape_cast %18 : vector<1x1x16x4xf32> to vector<1x16x4xf32>
    %20 = vector.broadcast %4 : vector<1x1x4xf32> to vector<1x16x4xf32>
    %21 = arith.mulf %19, %20 : vector<1x16x4xf32>
    %22 = vector.broadcast %6 : vector<1x1x4xf32> to vector<1x16x4xf32>
    %23 = arith.addf %21, %22 : vector<1x16x4xf32>
    %cst_16 = arith.constant 0.000000e+00 : f32
    %24 = vector.broadcast %cst_16 : f32 to vector<1x16x4xf32>
    %25 = arith.maximumf %23, %24 : vector<1x16x4xf32>
    %26 = vector.shape_cast %14 : vector<8x16x4xf32> to vector<128x4xf32>
    %27 = arith.truncf %26 : vector<128x4xf32> to vector<128x4xbf16>
    %28 = vector.shape_cast %25 : vector<1x16x4xf32> to vector<16x4xf32>
    %29 = arith.truncf %28 : vector<16x4xf32> to vector<16x4xbf16>
    %30 = tpu.concatenate %27, %29 in 0 : vector<128x4xbf16>, vector<16x4xbf16> -> vector<144x4xbf16>
    %c0_17 = arith.constant 0 : index
    %c0_18 = arith.constant 0 : index
    %31 = vector.load %arg7[%c0_17, %c0_18] : memref<4x2xbf16, #tpu.memory_space<vmem>>, vector<4x2xbf16>
    %cst_19 = arith.constant dense<0.000000e+00> : vector<144x2xf32>
    %32 = tpu.matmul %30, %31, %cst_19 {dimension_numbers = #tpu.dot_dimension_numbers<[1], [0], [0], [1], [0, 0, 1, 1], [], []>} : vector<144x4xbf16>, vector<4x2xbf16>, vector<144x2xf32> -> vector<144x2xf32>
    %c0_20 = arith.constant 0 : index
    %c0_21 = arith.constant 0 : index
    %33 = vector.load %arg8[%c0_20, %c0_21] : memref<1x2xf32, #tpu.memory_space<vmem>>, vector<1x2xf32>
    %34 = vector.broadcast %33 : vector<1x2xf32> to vector<144x2xf32>
    %35 = arith.mulf %32, %34 : vector<144x2xf32>
    %c0_22 = arith.constant 0 : index
    %c0_23 = arith.constant 0 : index
    %36 = vector.load %arg9[%c0_22, %c0_23] : memref<1x2xf32, #tpu.memory_space<vmem>>, vector<1x2xf32>
    %37 = vector.broadcast %36 : vector<1x2xf32> to vector<144x2xf32>
    %38 = arith.addf %35, %37 : vector<144x2xf32>
    %cst_24 = arith.constant 0.000000e+00 : f32
    %39 = vector.broadcast %cst_24 : f32 to vector<144x2xf32>
    %40 = arith.maximumf %38, %39 : vector<144x2xf32>
    %41 = arith.truncf %40 : vector<144x2xf32> to vector<144x2xbf16>
    %42 = vector.shape_cast %41 : vector<144x2xbf16> to vector<9x16x2xbf16>
    %43 = vector.extract_strided_slice %42 {offsets = [0, 0, 0], sizes = [8, 16, 2], strides = [1, 1, 1]} : vector<9x16x2xbf16> to vector<8x16x2xbf16>
    %44 = vector.extract_strided_slice %42 {offsets = [8, 0, 0], sizes = [1, 16, 2], strides = [1, 1, 1]} : vector<9x16x2xbf16> to vector<1x16x2xbf16>
    %cst_25 = arith.constant 0.000000e+00 : bf16
    %45 = vector.broadcast %cst_25 : bf16 to vector<1x16x2xbf16>
    %c0_i32_26 = arith.constant 0 : i32
    %46 = arith.cmpi eq, %arg1, %c0_i32_26 : i32
    %47 = arith.extui %46 : i1 to i32
    %c0_i32_27 = arith.constant 0 : i32
    %48 = arith.cmpi ne, %47, %c0_i32_27 : i32
    scf.if %48 {
      %c0_79 = arith.constant 0 : index
      %c8_80 = arith.constant 8 : index
      %c0_81 = arith.constant 0 : index
      %92 = vector.load %arg16[%c0_79, %c8_80, %c0_81] : memref<10x25x2xbf16, #tpu.memory_space<vmem>>, vector<1x16x2xbf16>
      tpu.vector_store %arg16[%c0_79, %c8_80, %c0_81], %45 {strides = array<i32>} : memref<10x25x2xbf16, #tpu.memory_space<vmem>>, vector<1x16x2xbf16>,
    } else {
    }
    %c0_i32_28 = arith.constant 0 : i32
    %49 = arith.cmpi sgt, %arg1, %c0_i32_28 : i32
    %50 = arith.extui %49 : i1 to i32
    %c0_i32_29 = arith.constant 0 : i32
    %51 = arith.cmpi ne, %50, %c0_i32_29 : i32
    scf.if %51 {
      %c0_79 = arith.constant 0 : index
      %c0_80 = arith.constant 0 : index
      %c0_81 = arith.constant 0 : index
      %92 = vector.load %arg17[%c0_79, %c0_80, %c0_81] : memref<1x16x2xbf16, #tpu.memory_space<vmem>>, vector<1x16x2xbf16>
      %c0_82 = arith.constant 0 : index
      %c8_83 = arith.constant 8 : index
      %c0_84 = arith.constant 0 : index
      %93 = vector.load %arg16[%c0_82, %c8_83, %c0_84] : memref<10x25x2xbf16, #tpu.memory_space<vmem>>, vector<1x16x2xbf16>
      tpu.vector_store %arg16[%c0_82, %c8_83, %c0_84], %92 {strides = array<i32>} : memref<10x25x2xbf16, #tpu.memory_space<vmem>>, vector<1x16x2xbf16>,
    } else {
    }
    %c1 = arith.constant 1 : index
    %c8 = arith.constant 8 : index
    %c0_30 = arith.constant 0 : index
    %52 = vector.load %arg16[%c1, %c8, %c0_30] : memref<10x25x2xbf16, #tpu.memory_space<vmem>>, vector<8x16x2xbf16>
    tpu.vector_store %arg16[%c1, %c8, %c0_30], %43 {strides = array<i32>} : memref<10x25x2xbf16, #tpu.memory_space<vmem>>, vector<8x16x2xbf16>,
    %c1_i32 = arith.constant 1 : i32
    %53 = arith.cmpi eq, %arg1, %c1_i32 : i32
    %54 = arith.extui %53 : i1 to i32
    %c0_i32_31 = arith.constant 0 : i32
    %55 = arith.cmpi ne, %54, %c0_i32_31 : i32
    scf.if %55 {
      %c9_79 = arith.constant 9 : index
      %c8_80 = arith.constant 8 : index
      %c0_81 = arith.constant 0 : index
      %92 = vector.load %arg16[%c9_79, %c8_80, %c0_81] : memref<10x25x2xbf16, #tpu.memory_space<vmem>>, vector<1x16x2xbf16>
      tpu.vector_store %arg16[%c9_79, %c8_80, %c0_81], %45 {strides = array<i32>} : memref<10x25x2xbf16, #tpu.memory_space<vmem>>, vector<1x16x2xbf16>,
    } else {
    }
    %c1_i32_32 = arith.constant 1 : i32
    %56 = arith.cmpi slt, %arg1, %c1_i32_32 : i32
    %57 = arith.extui %56 : i1 to i32
    %c0_i32_33 = arith.constant 0 : i32
    %58 = arith.cmpi ne, %57, %c0_i32_33 : i32
    scf.if %58 {
      %c9_79 = arith.constant 9 : index
      %c8_80 = arith.constant 8 : index
      %c0_81 = arith.constant 0 : index
      %92 = vector.load %arg16[%c9_79, %c8_80, %c0_81] : memref<10x25x2xbf16, #tpu.memory_space<vmem>>, vector<1x16x2xbf16>
      tpu.vector_store %arg16[%c9_79, %c8_80, %c0_81], %44 {strides = array<i32>} : memref<10x25x2xbf16, #tpu.memory_space<vmem>>, vector<1x16x2xbf16>,
    } else {
    }
    %59 = vector.extract_strided_slice %43 {offsets = [7, 0, 0], sizes = [1, 16, 2], strides = [1, 1, 1]} : vector<8x16x2xbf16> to vector<1x16x2xbf16>
    %c0_34 = arith.constant 0 : index
    %c0_35 = arith.constant 0 : index
    %c0_36 = arith.constant 0 : index
    %60 = vector.load %arg17[%c0_34, %c0_35, %c0_36] : memref<1x16x2xbf16, #tpu.memory_space<vmem>>, vector<1x16x2xbf16>
    tpu.vector_store %arg17[%c0_34, %c0_35, %c0_36], %59 {strides = array<i32>} : memref<1x16x2xbf16, #tpu.memory_space<vmem>>, vector<1x16x2xbf16>,
    %c0_37 = arith.constant 0 : index
    %c7 = arith.constant 7 : index
    %c0_38 = arith.constant 0 : index
    %61 = vector.load %arg16[%c0_37, %c7, %c0_38] : memref<10x25x2xbf16, #tpu.memory_space<vmem>>, vector<8x16x2xbf16>
    %c0_39 = arith.constant 0 : index
    %c8_40 = arith.constant 8 : index
    %c0_41 = arith.constant 0 : index
    %62 = vector.load %arg16[%c0_39, %c8_40, %c0_41] : memref<10x25x2xbf16, #tpu.memory_space<vmem>>, vector<8x16x2xbf16>
    %c0_42 = arith.constant 0 : index
    %c9 = arith.constant 9 : index
    %c0_43 = arith.constant 0 : index
    %63 = vector.load %arg16[%c0_42, %c9, %c0_43] : memref<10x25x2xbf16, #tpu.memory_space<vmem>>, vector<8x16x2xbf16>
    %c1_44 = arith.constant 1 : index
    %c7_45 = arith.constant 7 : index
    %c0_46 = arith.constant 0 : index
    %64 = vector.load %arg16[%c1_44, %c7_45, %c0_46] : memref<10x25x2xbf16, #tpu.memory_space<vmem>>, vector<8x16x2xbf16>
    %c1_47 = arith.constant 1 : index
    %c8_48 = arith.constant 8 : index
    %c0_49 = arith.constant 0 : index
    %65 = vector.load %arg16[%c1_47, %c8_48, %c0_49] : memref<10x25x2xbf16, #tpu.memory_space<vmem>>, vector<8x16x2xbf16>
    %c1_50 = arith.constant 1 : index
    %c9_51 = arith.constant 9 : index
    %c0_52 = arith.constant 0 : index
    %66 = vector.load %arg16[%c1_50, %c9_51, %c0_52] : memref<10x25x2xbf16, #tpu.memory_space<vmem>>, vector<8x16x2xbf16>
    %c2 = arith.constant 2 : index
    %c7_53 = arith.constant 7 : index
    %c0_54 = arith.constant 0 : index
    %67 = vector.load %arg16[%c2, %c7_53, %c0_54] : memref<10x25x2xbf16, #tpu.memory_space<vmem>>, vector<8x16x2xbf16>
    %c2_55 = arith.constant 2 : index
    %c8_56 = arith.constant 8 : index
    %c0_57 = arith.constant 0 : index
    %68 = vector.load %arg16[%c2_55, %c8_56, %c0_57] : memref<10x25x2xbf16, #tpu.memory_space<vmem>>, vector<8x16x2xbf16>
    %c2_58 = arith.constant 2 : index
    %c9_59 = arith.constant 9 : index
    %c0_60 = arith.constant 0 : index
    %69 = vector.load %arg16[%c2_58, %c9_59, %c0_60] : memref<10x25x2xbf16, #tpu.memory_space<vmem>>, vector<8x16x2xbf16>
    %70 = tpu.concatenate %61, %62, %63, %64, %65, %66, %67, %68, %69 in 2 : vector<8x16x2xbf16>, vector<8x16x2xbf16>, vector<8x16x2xbf16>, vector<8x16x2xbf16>, vector<8x16x2xbf16>, vector<8x16x2xbf16>, vector<8x16x2xbf16>, vector<8x16x2xbf16>, vector<8x16x2xbf16> -> vector<8x16x18xbf16>
    %71 = vector.shape_cast %70 : vector<8x16x18xbf16> to vector<128x18xbf16>
    %c0_61 = arith.constant 0 : index
    %c0_62 = arith.constant 0 : index
    %72 = vector.load %arg10[%c0_61, %c0_62] : memref<18x4xbf16, #tpu.memory_space<vmem>>, vector<18x4xbf16>
    %cst_63 = arith.constant dense<0.000000e+00> : vector<128x4xf32>
    %73 = tpu.matmul %71, %72, %cst_63 {dimension_numbers = #tpu.dot_dimension_numbers<[1], [0], [0], [1], [0, 0, 1, 1], [], []>} : vector<128x18xbf16>, vector<18x4xbf16>, vector<128x4xf32> -> vector<128x4xf32>
    %c0_64 = arith.constant 0 : index
    %c0_65 = arith.constant 0 : index
    %74 = vector.load %arg11[%c0_64, %c0_65] : memref<1x4xf32, #tpu.memory_space<vmem>>, vector<1x4xf32>
    %75 = vector.broadcast %74 : vector<1x4xf32> to vector<128x4xf32>
    %76 = arith.mulf %73, %75 : vector<128x4xf32>
    %c0_66 = arith.constant 0 : index
    %c0_67 = arith.constant 0 : index
    %77 = vector.load %arg12[%c0_66, %c0_67] : memref<1x4xf32, #tpu.memory_space<vmem>>, vector<1x4xf32>
    %78 = vector.broadcast %77 : vector<1x4xf32> to vector<128x4xf32>
    %79 = arith.addf %76, %78 : vector<128x4xf32>
    %cst_68 = arith.constant 0.000000e+00 : f32
    %80 = vector.broadcast %cst_68 : f32 to vector<128x4xf32>
    %81 = arith.maximumf %79, %80 : vector<128x4xf32>
    %82 = arith.truncf %81 : vector<128x4xf32> to vector<128x4xbf16>
    %c0_69 = arith.constant 0 : index
    %c0_70 = arith.constant 0 : index
    %83 = vector.load %arg13[%c0_69, %c0_70] : memref<4x8xbf16, #tpu.memory_space<vmem>>, vector<4x8xbf16>
    %cst_71 = arith.constant dense<0.000000e+00> : vector<128x8xf32>
    %84 = tpu.matmul %82, %83, %cst_71 {dimension_numbers = #tpu.dot_dimension_numbers<[1], [0], [0], [1], [0, 0, 1, 1], [], []>} : vector<128x4xbf16>, vector<4x8xbf16>, vector<128x8xf32> -> vector<128x8xf32>
    %c0_72 = arith.constant 0 : index
    %c0_73 = arith.constant 0 : index
    %85 = vector.load %arg6[%c0_72, %c0_73] : memref<4x8xbf16, #tpu.memory_space<vmem>>, vector<4x8xbf16>
    %cst_74 = arith.constant dense<0.000000e+00> : vector<128x8xf32>
    %86 = tpu.matmul %27, %85, %cst_74 {dimension_numbers = #tpu.dot_dimension_numbers<[1], [0], [0], [1], [0, 0, 1, 1], [], []>} : vector<128x4xbf16>, vector<4x8xbf16>, vector<128x8xf32> -> vector<128x8xf32>
    %87 = arith.addf %86, %84 : vector<128x8xf32>
    %88 = vector.shape_cast %87 : vector<128x8xf32> to vector<8x16x8xf32>
    %c0_75 = arith.constant 0 : index
    %c0_76 = arith.constant 0 : index
    %c0_77 = arith.constant 0 : index
    %c0_78 = arith.constant 0 : index
    %89 = vector.load %arg14[%c0_75, %c0_76, %c0_77, %c0_78] : memref<1x8x16x8xf32, #tpu.memory_space<vmem>>, vector<1x8x16x8xf32>
    %90 = vector.shape_cast %89 : vector<1x8x16x8xf32> to vector<8x16x8xf32>
    %91 = vector.shape_cast %88 : vector<8x16x8xf32> to vector<1x8x16x8xf32>
    tpu.vector_store %arg14[%c0_75, %c0_76, %c0_77, %c0_78], %91 {strides = array<i32>} : memref<1x8x16x8xf32, #tpu.memory_space<vmem>>, vector<1x8x16x8xf32>,
    return
  }
  func.func @transform_0(%arg0: i32, %arg1: i32) -> (i32, i32, i32, i32) {
    %c0_i32 = arith.constant 0 : i32
    %c0_i32_0 = arith.constant 0 : i32
    %c0_i32_1 = arith.constant 0 : i32
    return %arg0, %arg1, %c0_i32, %c0_i32_0 : i32, i32, i32, i32
  }
  func.func @transform_1(%arg0: i32, %arg1: i32) -> (i32, i32, i32, i32) {
    %c1_i32 = arith.constant 1 : i32
    %0 = arith.addi %arg1, %c1_i32 : i32
    %c8_i32 = arith.constant 8 : i32
    %1 = arith.muli %0, %c8_i32 : i32
    %c15_i32 = arith.constant 15 : i32
    %2 = arith.minsi %1, %c15_i32 : i32
    %c0_i32 = arith.constant 0 : i32
    %c0_i32_0 = arith.constant 0 : i32
    %c0_i32_1 = arith.constant 0 : i32
    return %arg0, %2, %c0_i32, %c0_i32_0 : i32, i32, i32, i32
  }
  func.func @transform_2(%arg0: i32, %arg1: i32) -> (i32, i32) {
    %c0_i32 = arith.constant 0 : i32
    %c0_i32_0 = arith.constant 0 : i32
    %c0_i32_1 = arith.constant 0 : i32
    return %c0_i32, %c0_i32_0 : i32, i32
  }
  func.func @transform_3(%arg0: i32, %arg1: i32) -> (i32, i32) {
    %c0_i32 = arith.constant 0 : i32
    %c0_i32_0 = arith.constant 0 : i32
    %c0_i32_1 = arith.constant 0 : i32
    return %c0_i32, %c0_i32_0 : i32, i32
  }
  func.func @transform_4(%arg0: i32, %arg1: i32) -> (i32, i32) {
    %c0_i32 = arith.constant 0 : i32
    %c0_i32_0 = arith.constant 0 : i32
    %c0_i32_1 = arith.constant 0 : i32
    return %c0_i32, %c0_i32_0 : i32, i32
  }
  func.func @transform_5(%arg0: i32, %arg1: i32) -> (i32, i32) {
    %c0_i32 = arith.constant 0 : i32
    %c0_i32_0 = arith.constant 0 : i32
    %c0_i32_1 = arith.constant 0 : i32
    return %c0_i32, %c0_i32_0 : i32, i32
  }
  func.func @transform_6(%arg0: i32, %arg1: i32) -> (i32, i32) {
    %c0_i32 = arith.constant 0 : i32
    %c0_i32_0 = arith.constant 0 : i32
    %c0_i32_1 = arith.constant 0 : i32
    return %c0_i32, %c0_i32_0 : i32, i32
  }
  func.func @transform_7(%arg0: i32, %arg1: i32) -> (i32, i32) {
    %c0_i32 = arith.constant 0 : i32
    %c0_i32_0 = arith.constant 0 : i32
    %c0_i32_1 = arith.constant 0 : i32
    return %c0_i32, %c0_i32_0 : i32, i32
  }
  func.func @transform_8(%arg0: i32, %arg1: i32) -> (i32, i32) {
    %c0_i32 = arith.constant 0 : i32
    %c0_i32_0 = arith.constant 0 : i32
    %c0_i32_1 = arith.constant 0 : i32
    return %c0_i32, %c0_i32_0 : i32, i32
  }
  func.func @transform_9(%arg0: i32, %arg1: i32) -> (i32, i32) {
    %c0_i32 = arith.constant 0 : i32
    %c0_i32_0 = arith.constant 0 : i32
    %c0_i32_1 = arith.constant 0 : i32
    return %c0_i32, %c0_i32_0 : i32, i32
  }
  func.func @transform_10(%arg0: i32, %arg1: i32) -> (i32, i32) {
    %c0_i32 = arith.constant 0 : i32
    %c0_i32_0 = arith.constant 0 : i32
    %c0_i32_1 = arith.constant 0 : i32
    return %c0_i32, %c0_i32_0 : i32, i32
  }
  func.func @transform_11(%arg0: i32, %arg1: i32) -> (i32, i32) {
    %c0_i32 = arith.constant 0 : i32
    %c0_i32_0 = arith.constant 0 : i32
    %c0_i32_1 = arith.constant 0 : i32
    return %c0_i32, %c0_i32_0 : i32, i32
  }
  func.func @transform_12(%arg0: i32, %arg1: i32) -> (i32, i32, i32, i32) {
    %c0_i32 = arith.constant 0 : i32
    %c0_i32_0 = arith.constant 0 : i32
    %c0_i32_1 = arith.constant 0 : i32
    return %arg0, %arg1, %c0_i32, %c0_i32_0 : i32, i32, i32, i32
  }
  func.func @transform_13(%arg0: i32, %arg1: i32) -> (i32, i32, i32, i32) {
    %c0_i32 = arith.constant 0 : i32
    %c0_i32_0 = arith.constant 0 : i32
    %c0_i32_1 = arith.constant 0 : i32
    return %arg0, %arg1, %c0_i32, %c0_i32_0 : i32, i32, i32, i32
  }
}

module attributes {stable_mosaic.version = 11 : i64} {
  func.func @_bottleneck_kernel(%arg0: i32, %arg1: i32, %arg2: memref<1x8x16x4xf32, #tpu.memory_space<vmem>>, %arg3: memref<1x1x16x4xf32, #tpu.memory_space<vmem>>, %arg4: memref<1x4xf32, #tpu.memory_space<vmem>>, %arg5: memref<1x4xf32, #tpu.memory_space<vmem>>, %arg6: memref<4x8xbf16, #tpu.memory_space<vmem>>, %arg7: memref<4x2xbf16, #tpu.memory_space<vmem>>, %arg8: memref<1x2xf32, #tpu.memory_space<vmem>>, %arg9: memref<1x2xf32, #tpu.memory_space<vmem>>, %arg10: memref<18x4xbf16, #tpu.memory_space<vmem>>, %arg11: memref<1x4xf32, #tpu.memory_space<vmem>>, %arg12: memref<1x4xf32, #tpu.memory_space<vmem>>, %arg13: memref<4x8xbf16, #tpu.memory_space<vmem>>, %arg14: memref<1x8x16x8xf32, #tpu.memory_space<vmem>>, %arg15: memref<1x8x16x4xf32, #tpu.memory_space<vmem>>, %arg16: memref<10x25x2xbf16, #tpu.memory_space<vmem>>, %arg17: memref<1x16x2xbf16, #tpu.memory_space<vmem>>) attributes {dimension_semantics = [#tpu.dimension_semantics<parallel>, #tpu.dimension_semantics<arbitrary>], iteration_bounds = array<i64: 2, 2>, scalar_prefetch = 0 : i64, scratch_operands = 2 : i64, tpu.core_type = #tpu.core_type<tc>, window_params = [{transform_indices = @transform_0, window_bounds = array<i64: 1, 8, 16, 4>}, {transform_indices = @transform_1, window_bounds = array<i64: 1, 1, 16, 4>}, {pipeline_mode = #tpu.pipeline_mode<synchronous>, transform_indices = @transform_2, window_bounds = array<i64: 1, 4>}, {pipeline_mode = #tpu.pipeline_mode<synchronous>, transform_indices = @transform_3, window_bounds = array<i64: 1, 4>}, {pipeline_mode = #tpu.pipeline_mode<synchronous>, transform_indices = @transform_4, window_bounds = array<i64: 4, 8>}, {pipeline_mode = #tpu.pipeline_mode<synchronous>, transform_indices = @transform_5, window_bounds = array<i64: 4, 2>}, {pipeline_mode = #tpu.pipeline_mode<synchronous>, transform_indices = @transform_6, window_bounds = array<i64: 1, 2>}, {pipeline_mode = #tpu.pipeline_mode<synchronous>, transform_indices = @transform_7, window_bounds = array<i64: 1, 2>}, {pipeline_mode = #tpu.pipeline_mode<synchronous>, transform_indices = @transform_8, window_bounds = array<i64: 18, 4>}, {pipeline_mode = #tpu.pipeline_mode<synchronous>, transform_indices = @transform_9, window_bounds = array<i64: 1, 4>}, {pipeline_mode = #tpu.pipeline_mode<synchronous>, transform_indices = @transform_10, window_bounds = array<i64: 1, 4>}, {pipeline_mode = #tpu.pipeline_mode<synchronous>, transform_indices = @transform_11, window_bounds = array<i64: 4, 8>}, {transform_indices = @transform_12, window_bounds = array<i64: 1, 8, 16, 8>}, {transform_indices = @transform_13, window_bounds = array<i64: 1, 8, 16, 4>}]} {
    %c0_i32 = arith.constant 0 : i32
    %0 = arith.cmpi eq, %arg1, %c0_i32 : i32
    %1 = arith.extui %0 : i1 to i32
    %c0_i32_0 = arith.constant 0 : i32
    %2 = arith.cmpi ne, %1, %c0_i32_0 : i32
    scf.if %2 {
      %cst_79 = arith.constant 0.000000e+00 : bf16
      %92 = vector.broadcast %cst_79 : bf16 to vector<10x1x2xbf16>
      %c0_80 = arith.constant 0 : index
      %c7_81 = arith.constant 7 : index
      %c0_82 = arith.constant 0 : index
      %93 = vector.load %arg16[%c0_80, %c7_81, %c0_82] : memref<10x25x2xbf16, #tpu.memory_space<vmem>>, vector<10x1x2xbf16>
      tpu.vector_store %arg16[%c0_80, %c7_81, %c0_82], %92 {strides = array<i32>} : memref<10x25x2xbf16, #tpu.memory_space<vmem>>, vector<10x1x2xbf16>,
      %c0_83 = arith.constant 0 : index
      %c24 = arith.constant 24 : index
      %c0_84 = arith.constant 0 : index
      %94 = vector.load %arg16[%c0_83, %c24, %c0_84] : memref<10x25x2xbf16, #tpu.memory_space<vmem>>, vector<10x1x2xbf16>
      tpu.vector_store %arg16[%c0_83, %c24, %c0_84], %92 {strides = array<i32>} : memref<10x25x2xbf16, #tpu.memory_space<vmem>>, vector<10x1x2xbf16>,
    } else {
    }
    %c0 = arith.constant 0 : index
    %c0_1 = arith.constant 0 : index
    %3 = vector.load %arg4[%c0, %c0_1] : memref<1x4xf32, #tpu.memory_space<vmem>>, vector<1x4xf32>
    %4 = vector.shape_cast %3 : vector<1x4xf32> to vector<1x1x4xf32>
    %c0_2 = arith.constant 0 : index
    %c0_3 = arith.constant 0 : index
    %5 = vector.load %arg5[%c0_2, %c0_3] : memref<1x4xf32, #tpu.memory_space<vmem>>, vector<1x4xf32>
    %6 = vector.shape_cast %5 : vector<1x4xf32> to vector<1x1x4xf32>
    %c0_4 = arith.constant 0 : index
    %c0_5 = arith.constant 0 : index
    %c0_6 = arith.constant 0 : index
    %c0_7 = arith.constant 0 : index
    %7 = vector.load %arg2[%c0_4, %c0_5, %c0_6, %c0_7] : memref<1x8x16x4xf32, #tpu.memory_space<vmem>>, vector<1x8x16x4xf32>
    %8 = vector.shape_cast %7 : vector<1x8x16x4xf32> to vector<8x16x4xf32>
    %9 = vector.broadcast %4 : vector<1x1x4xf32> to vector<8x16x4xf32>
    %10 = arith.mulf %8, %9 : vector<8x16x4xf32>
    %11 = vector.broadcast %6 : vector<1x1x4xf32> to vector<8x16x4xf32>
    %12 = arith.addf %10, %11 : vector<8x16x4xf32>
    %cst = arith.constant 0.000000e+00 : f32
    %13 = vector.broadcast %cst : f32 to vector<8x16x4xf32>
    %14 = arith.maximumf %12, %13 : vector<8x16x4xf32>
    %c0_8 = arith.constant 0 : index
    %c0_9 = arith.constant 0 : index
    %c0_10 = arith.constant 0 : index
    %c0_11 = arith.constant 0 : index
    %15 = vector.load %arg15[%c0_8, %c0_9, %c0_10, %c0_11] : memref<1x8x16x4xf32, #tpu.memory_space<vmem>>, vector<1x8x16x4xf32>
    %16 = vector.shape_cast %15 : vector<1x8x16x4xf32> to vector<8x16x4xf32>
    %17 = vector.shape_cast %14 : vector<8x16x4xf32> to vector<1x8x16x4xf32>
    tpu.vector_store %arg15[%c0_8, %c0_9, %c0_10, %c0_11], %17 {strides = array<i32>} : memref<1x8x16x4xf32, #tpu.memory_space<vmem>>, vector<1x8x16x4xf32>,
    %c0_12 = arith.constant 0 : index
    %c0_13 = arith.constant 0 : index
    %c0_14 = arith.constant 0 : index
    %c0_15 = arith.constant 0 : index
    %18 = vector.load %arg3[%c0_12, %c0_13, %c0_14, %c0_15] : memref<1x1x16x4xf32, #tpu.memory_space<vmem>>, vector<1x1x16x4xf32>
    %19 = vector.shape_cast %18 : vector<1x1x16x4xf32> to vector<1x16x4xf32>
    %20 = vector.broadcast %4 : vector<1x1x4xf32> to vector<1x16x4xf32>
    %21 = arith.mulf %19, %20 : vector<1x16x4xf32>
    %22 = vector.broadcast %6 : vector<1x1x4xf32> to vector<1x16x4xf32>
    %23 = arith.addf %21, %22 : vector<1x16x4xf32>
    %cst_16 = arith.constant 0.000000e+00 : f32
    %24 = vector.broadcast %cst_16 : f32 to vector<1x16x4xf32>
    %25 = arith.maximumf %23, %24 : vector<1x16x4xf32>
    %26 = vector.shape_cast %14 : vector<8x16x4xf32> to vector<128x4xf32>
    %27 = arith.truncf %26 : vector<128x4xf32> to vector<128x4xbf16>
    %28 = vector.shape_cast %25 : vector<1x16x4xf32> to vector<16x4xf32>
    %29 = arith.truncf %28 : vector<16x4xf32> to vector<16x4xbf16>
    %30 = tpu.concatenate %27, %29 in 0 : vector<128x4xbf16>, vector<16x4xbf16> -> vector<144x4xbf16>
    %c0_17 = arith.constant 0 : index
    %c0_18 = arith.constant 0 : index
    %31 = vector.load %arg7[%c0_17, %c0_18] : memref<4x2xbf16, #tpu.memory_space<vmem>>, vector<4x2xbf16>
    %cst_19 = arith.constant dense<0.000000e+00> : vector<144x2xf32>
    %32 = tpu.matmul %30, %31, %cst_19 {dimension_numbers = #tpu.dot_dimension_numbers<[1], [0], [0], [1], [0, 0, 1, 1], [], []>} : vector<144x4xbf16>, vector<4x2xbf16>, vector<144x2xf32> -> vector<144x2xf32>
    %c0_20 = arith.constant 0 : index
    %c0_21 = arith.constant 0 : index
    %33 = vector.load %arg8[%c0_20, %c0_21] : memref<1x2xf32, #tpu.memory_space<vmem>>, vector<1x2xf32>
    %34 = vector.broadcast %33 : vector<1x2xf32> to vector<144x2xf32>
    %35 = arith.mulf %32, %34 : vector<144x2xf32>
    %c0_22 = arith.constant 0 : index
    %c0_23 = arith.constant 0 : index
    %36 = vector.load %arg9[%c0_22, %c0_23] : memref<1x2xf32, #tpu.memory_space<vmem>>, vector<1x2xf32>
    %37 = vector.broadcast %36 : vector<1x2xf32> to vector<144x2xf32>
    %38 = arith.addf %35, %37 : vector<144x2xf32>
    %cst_24 = arith.constant 0.000000e+00 : f32
    %39 = vector.broadcast %cst_24 : f32 to vector<144x2xf32>
    %40 = arith.maximumf %38, %39 : vector<144x2xf32>
    %41 = arith.truncf %40 : vector<144x2xf32> to vector<144x2xbf16>
    %42 = vector.shape_cast %41 : vector<144x2xbf16> to vector<9x16x2xbf16>
    %43 = vector.extract_strided_slice %42 {offsets = [0, 0, 0], sizes = [8, 16, 2], strides = [1, 1, 1]} : vector<9x16x2xbf16> to vector<8x16x2xbf16>
    %44 = vector.extract_strided_slice %42 {offsets = [8, 0, 0], sizes = [1, 16, 2], strides = [1, 1, 1]} : vector<9x16x2xbf16> to vector<1x16x2xbf16>
    %cst_25 = arith.constant 0.000000e+00 : bf16
    %45 = vector.broadcast %cst_25 : bf16 to vector<1x16x2xbf16>
    %c0_i32_26 = arith.constant 0 : i32
    %46 = arith.cmpi eq, %arg1, %c0_i32_26 : i32
    %47 = arith.extui %46 : i1 to i32
    %c0_i32_27 = arith.constant 0 : i32
    %48 = arith.cmpi ne, %47, %c0_i32_27 : i32
    scf.if %48 {
      %c0_79 = arith.constant 0 : index
      %c8_80 = arith.constant 8 : index
      %c0_81 = arith.constant 0 : index
      %92 = vector.load %arg16[%c0_79, %c8_80, %c0_81] : memref<10x25x2xbf16, #tpu.memory_space<vmem>>, vector<1x16x2xbf16>
      tpu.vector_store %arg16[%c0_79, %c8_80, %c0_81], %45 {strides = array<i32>} : memref<10x25x2xbf16, #tpu.memory_space<vmem>>, vector<1x16x2xbf16>,
    } else {
    }
    %c0_i32_28 = arith.constant 0 : i32
    %49 = arith.cmpi sgt, %arg1, %c0_i32_28 : i32
    %50 = arith.extui %49 : i1 to i32
    %c0_i32_29 = arith.constant 0 : i32
    %51 = arith.cmpi ne, %50, %c0_i32_29 : i32
    scf.if %51 {
      %c0_79 = arith.constant 0 : index
      %c0_80 = arith.constant 0 : index
      %c0_81 = arith.constant 0 : index
      %92 = vector.load %arg17[%c0_79, %c0_80, %c0_81] : memref<1x16x2xbf16, #tpu.memory_space<vmem>>, vector<1x16x2xbf16>
      %c0_82 = arith.constant 0 : index
      %c8_83 = arith.constant 8 : index
      %c0_84 = arith.constant 0 : index
      %93 = vector.load %arg16[%c0_82, %c8_83, %c0_84] : memref<10x25x2xbf16, #tpu.memory_space<vmem>>, vector<1x16x2xbf16>
      tpu.vector_store %arg16[%c0_82, %c8_83, %c0_84], %92 {strides = array<i32>} : memref<10x25x2xbf16, #tpu.memory_space<vmem>>, vector<1x16x2xbf16>,
    } else {
    }
    %c1 = arith.constant 1 : index
    %c8 = arith.constant 8 : index
    %c0_30 = arith.constant 0 : index
    %52 = vector.load %arg16[%c1, %c8, %c0_30] : memref<10x25x2xbf16, #tpu.memory_space<vmem>>, vector<8x16x2xbf16>
    tpu.vector_store %arg16[%c1, %c8, %c0_30], %43 {strides = array<i32>} : memref<10x25x2xbf16, #tpu.memory_space<vmem>>, vector<8x16x2xbf16>,
    %c1_i32 = arith.constant 1 : i32
    %53 = arith.cmpi eq, %arg1, %c1_i32 : i32
    %54 = arith.extui %53 : i1 to i32
    %c0_i32_31 = arith.constant 0 : i32
    %55 = arith.cmpi ne, %54, %c0_i32_31 : i32
    scf.if %55 {
      %c9_79 = arith.constant 9 : index
      %c8_80 = arith.constant 8 : index
      %c0_81 = arith.constant 0 : index
      %92 = vector.load %arg16[%c9_79, %c8_80, %c0_81] : memref<10x25x2xbf16, #tpu.memory_space<vmem>>, vector<1x16x2xbf16>
      tpu.vector_store %arg16[%c9_79, %c8_80, %c0_81], %45 {strides = array<i32>} : memref<10x25x2xbf16, #tpu.memory_space<vmem>>, vector<1x16x2xbf16>,
    } else {
    }
    %c1_i32_32 = arith.constant 1 : i32
    %56 = arith.cmpi slt, %arg1, %c1_i32_32 : i32
    %57 = arith.extui %56 : i1 to i32
    %c0_i32_33 = arith.constant 0 : i32
    %58 = arith.cmpi ne, %57, %c0_i32_33 : i32
    scf.if %58 {
      %c9_79 = arith.constant 9 : index
      %c8_80 = arith.constant 8 : index
      %c0_81 = arith.constant 0 : index
      %92 = vector.load %arg16[%c9_79, %c8_80, %c0_81] : memref<10x25x2xbf16, #tpu.memory_space<vmem>>, vector<1x16x2xbf16>
      tpu.vector_store %arg16[%c9_79, %c8_80, %c0_81], %44 {strides = array<i32>} : memref<10x25x2xbf16, #tpu.memory_space<vmem>>, vector<1x16x2xbf16>,
    } else {
    }
    %59 = vector.extract_strided_slice %43 {offsets = [7, 0, 0], sizes = [1, 16, 2], strides = [1, 1, 1]} : vector<8x16x2xbf16> to vector<1x16x2xbf16>
    %c0_34 = arith.constant 0 : index
    %c0_35 = arith.constant 0 : index
    %c0_36 = arith.constant 0 : index
    %60 = vector.load %arg17[%c0_34, %c0_35, %c0_36] : memref<1x16x2xbf16, #tpu.memory_space<vmem>>, vector<1x16x2xbf16>
    tpu.vector_store %arg17[%c0_34, %c0_35, %c0_36], %59 {strides = array<i32>} : memref<1x16x2xbf16, #tpu.memory_space<vmem>>, vector<1x16x2xbf16>,
    %c0_37 = arith.constant 0 : index
    %c7 = arith.constant 7 : index
    %c0_38 = arith.constant 0 : index
    %61 = vector.load %arg16[%c0_37, %c7, %c0_38] : memref<10x25x2xbf16, #tpu.memory_space<vmem>>, vector<8x16x2xbf16>
    %c0_39 = arith.constant 0 : index
    %c8_40 = arith.constant 8 : index
    %c0_41 = arith.constant 0 : index
    %62 = vector.load %arg16[%c0_39, %c8_40, %c0_41] : memref<10x25x2xbf16, #tpu.memory_space<vmem>>, vector<8x16x2xbf16>
    %c0_42 = arith.constant 0 : index
    %c9 = arith.constant 9 : index
    %c0_43 = arith.constant 0 : index
    %63 = vector.load %arg16[%c0_42, %c9, %c0_43] : memref<10x25x2xbf16, #tpu.memory_space<vmem>>, vector<8x16x2xbf16>
    %c1_44 = arith.constant 1 : index
    %c7_45 = arith.constant 7 : index
    %c0_46 = arith.constant 0 : index
    %64 = vector.load %arg16[%c1_44, %c7_45, %c0_46] : memref<10x25x2xbf16, #tpu.memory_space<vmem>>, vector<8x16x2xbf16>
    %c1_47 = arith.constant 1 : index
    %c8_48 = arith.constant 8 : index
    %c0_49 = arith.constant 0 : index
    %65 = vector.load %arg16[%c1_47, %c8_48, %c0_49] : memref<10x25x2xbf16, #tpu.memory_space<vmem>>, vector<8x16x2xbf16>
    %c1_50 = arith.constant 1 : index
    %c9_51 = arith.constant 9 : index
    %c0_52 = arith.constant 0 : index
    %66 = vector.load %arg16[%c1_50, %c9_51, %c0_52] : memref<10x25x2xbf16, #tpu.memory_space<vmem>>, vector<8x16x2xbf16>
    %c2 = arith.constant 2 : index
    %c7_53 = arith.constant 7 : index
    %c0_54 = arith.constant 0 : index
    %67 = vector.load %arg16[%c2, %c7_53, %c0_54] : memref<10x25x2xbf16, #tpu.memory_space<vmem>>, vector<8x16x2xbf16>
    %c2_55 = arith.constant 2 : index
    %c8_56 = arith.constant 8 : index
    %c0_57 = arith.constant 0 : index
    %68 = vector.load %arg16[%c2_55, %c8_56, %c0_57] : memref<10x25x2xbf16, #tpu.memory_space<vmem>>, vector<8x16x2xbf16>
    %c2_58 = arith.constant 2 : index
    %c9_59 = arith.constant 9 : index
    %c0_60 = arith.constant 0 : index
    %69 = vector.load %arg16[%c2_58, %c9_59, %c0_60] : memref<10x25x2xbf16, #tpu.memory_space<vmem>>, vector<8x16x2xbf16>
    %70 = tpu.concatenate %61, %62, %63, %64, %65, %66, %67, %68, %69 in 2 : vector<8x16x2xbf16>, vector<8x16x2xbf16>, vector<8x16x2xbf16>, vector<8x16x2xbf16>, vector<8x16x2xbf16>, vector<8x16x2xbf16>, vector<8x16x2xbf16>, vector<8x16x2xbf16>, vector<8x16x2xbf16> -> vector<8x16x18xbf16>
    %71 = vector.shape_cast %70 : vector<8x16x18xbf16> to vector<128x18xbf16>
    %c0_61 = arith.constant 0 : index
    %c0_62 = arith.constant 0 : index
    %72 = vector.load %arg10[%c0_61, %c0_62] : memref<18x4xbf16, #tpu.memory_space<vmem>>, vector<18x4xbf16>
    %cst_63 = arith.constant dense<0.000000e+00> : vector<128x4xf32>
    %73 = tpu.matmul %71, %72, %cst_63 {dimension_numbers = #tpu.dot_dimension_numbers<[1], [0], [0], [1], [0, 0, 1, 1], [], []>} : vector<128x18xbf16>, vector<18x4xbf16>, vector<128x4xf32> -> vector<128x4xf32>
    %c0_64 = arith.constant 0 : index
    %c0_65 = arith.constant 0 : index
    %74 = vector.load %arg11[%c0_64, %c0_65] : memref<1x4xf32, #tpu.memory_space<vmem>>, vector<1x4xf32>
    %75 = vector.broadcast %74 : vector<1x4xf32> to vector<128x4xf32>
    %76 = arith.mulf %73, %75 : vector<128x4xf32>
    %c0_66 = arith.constant 0 : index
    %c0_67 = arith.constant 0 : index
    %77 = vector.load %arg12[%c0_66, %c0_67] : memref<1x4xf32, #tpu.memory_space<vmem>>, vector<1x4xf32>
    %78 = vector.broadcast %77 : vector<1x4xf32> to vector<128x4xf32>
    %79 = arith.addf %76, %78 : vector<128x4xf32>
    %cst_68 = arith.constant 0.000000e+00 : f32
    %80 = vector.broadcast %cst_68 : f32 to vector<128x4xf32>
    %81 = arith.maximumf %79, %80 : vector<128x4xf32>
    %82 = arith.truncf %81 : vector<128x4xf32> to vector<128x4xbf16>
    %c0_69 = arith.constant 0 : index
    %c0_70 = arith.constant 0 : index
    %83 = vector.load %arg13[%c0_69, %c0_70] : memref<4x8xbf16, #tpu.memory_space<vmem>>, vector<4x8xbf16>
    %cst_71 = arith.constant dense<0.000000e+00> : vector<128x8xf32>
    %84 = tpu.matmul %82, %83, %cst_71 {dimension_numbers = #tpu.dot_dimension_numbers<[1], [0], [0], [1], [0, 0, 1, 1], [], []>} : vector<128x4xbf16>, vector<4x8xbf16>, vector<128x8xf32> -> vector<128x8xf32>
    %c0_72 = arith.constant 0 : index
    %c0_73 = arith.constant 0 : index
    %85 = vector.load %arg6[%c0_72, %c0_73] : memref<4x8xbf16, #tpu.memory_space<vmem>>, vector<4x8xbf16>
    %cst_74 = arith.constant dense<0.000000e+00> : vector<128x8xf32>
    %86 = tpu.matmul %27, %85, %cst_74 {dimension_numbers = #tpu.dot_dimension_numbers<[1], [0], [0], [1], [0, 0, 1, 1], [], []>} : vector<128x4xbf16>, vector<4x8xbf16>, vector<128x8xf32> -> vector<128x8xf32>
    %87 = arith.addf %86, %84 : vector<128x8xf32>
    %88 = vector.shape_cast %87 : vector<128x8xf32> to vector<8x16x8xf32>
    %c0_75 = arith.constant 0 : index
    %c0_76 = arith.constant 0 : index
    %c0_77 = arith.constant 0 : index
    %c0_78 = arith.constant 0 : index
    %89 = vector.load %arg14[%c0_75, %c0_76, %c0_77, %c0_78] : memref<1x8x16x8xf32, #tpu.memory_space<vmem>>, vector<1x8x16x8xf32>
    %90 = vector.shape_cast %89 : vector<1x8x16x8xf32> to vector<8x16x8xf32>
    %91 = vector.shape_cast %88 : vector<8x16x8xf32> to vector<1x8x16x8xf32>
    tpu.vector_store %arg14[%c0_75, %c0_76, %c0_77, %c0_78], %91 {strides = array<i32>} : memref<1x8x16x8xf32, #tpu.memory_space<vmem>>, vector<1x8x16x8xf32>,
    return
  }
  func.func @transform_0(%arg0: i32, %arg1: i32) -> (i32, i32, i32, i32) {
    %c0_i32 = arith.constant 0 : i32
    %c0_i32_0 = arith.constant 0 : i32
    %c0_i32_1 = arith.constant 0 : i32
    return %arg0, %arg1, %c0_i32, %c0_i32_0 : i32, i32, i32, i32
  }
  func.func @transform_1(%arg0: i32, %arg1: i32) -> (i32, i32, i32, i32) {
    %c1_i32 = arith.constant 1 : i32
    %0 = arith.addi %arg1, %c1_i32 : i32
    %c8_i32 = arith.constant 8 : i32
    %1 = arith.muli %0, %c8_i32 : i32
    %c15_i32 = arith.constant 15 : i32
    %2 = arith.minsi %1, %c15_i32 : i32
    %c0_i32 = arith.constant 0 : i32
    %c0_i32_0 = arith.constant 0 : i32
    %c0_i32_1 = arith.constant 0 : i32
    return %arg0, %2, %c0_i32, %c0_i32_0 : i32, i32, i32, i32
  }
  func.func @transform_2(%arg0: i32, %arg1: i32) -> (i32, i32) {
    %c0_i32 = arith.constant 0 : i32
    %c0_i32_0 = arith.constant 0 : i32
    %c0_i32_1 = arith.constant 0 : i32
    return %c0_i32, %c0_i32_0 : i32, i32
  }
  func.func @transform_3(%arg0: i32, %arg1: i32) -> (i32, i32) {
    %c0_i32 = arith.constant 0 : i32
    %c0_i32_0 = arith.constant 0 : i32
    %c0_i32_1 = arith.constant 0 : i32
    return %c0_i32, %c0_i32_0 : i32, i32
  }
  func.func @transform_4(%arg0: i32, %arg1: i32) -> (i32, i32) {
    %c0_i32 = arith.constant 0 : i32
    %c0_i32_0 = arith.constant 0 : i32
    %c0_i32_1 = arith.constant 0 : i32
    return %c0_i32, %c0_i32_0 : i32, i32
  }
  func.func @transform_5(%arg0: i32, %arg1: i32) -> (i32, i32) {
    %c0_i32 = arith.constant 0 : i32
    %c0_i32_0 = arith.constant 0 : i32
    %c0_i32_1 = arith.constant 0 : i32
    return %c0_i32, %c0_i32_0 : i32, i32
  }
  func.func @transform_6(%arg0: i32, %arg1: i32) -> (i32, i32) {
    %c0_i32 = arith.constant 0 : i32
    %c0_i32_0 = arith.constant 0 : i32
    %c0_i32_1 = arith.constant 0 : i32
    return %c0_i32, %c0_i32_0 : i32, i32
  }
  func.func @transform_7(%arg0: i32, %arg1: i32) -> (i32, i32) {
    %c0_i32 = arith.constant 0 : i32
    %c0_i32_0 = arith.constant 0 : i32
    %c0_i32_1 = arith.constant 0 : i32
    return %c0_i32, %c0_i32_0 : i32, i32
  }
  func.func @transform_8(%arg0: i32, %arg1: i32) -> (i32, i32) {
    %c0_i32 = arith.constant 0 : i32
    %c0_i32_0 = arith.constant 0 : i32
    %c0_i32_1 = arith.constant 0 : i32
    return %c0_i32, %c0_i32_0 : i32, i32
  }
  func.func @transform_9(%arg0: i32, %arg1: i32) -> (i32, i32) {
    %c0_i32 = arith.constant 0 : i32
    %c0_i32_0 = arith.constant 0 : i32
    %c0_i32_1 = arith.constant 0 : i32
    return %c0_i32, %c0_i32_0 : i32, i32
  }
  func.func @transform_10(%arg0: i32, %arg1: i32) -> (i32, i32) {
    %c0_i32 = arith.constant 0 : i32
    %c0_i32_0 = arith.constant 0 : i32
    %c0_i32_1 = arith.constant 0 : i32
    return %c0_i32, %c0_i32_0 : i32, i32
  }
  func.func @transform_11(%arg0: i32, %arg1: i32) -> (i32, i32) {
    %c0_i32 = arith.constant 0 : i32
    %c0_i32_0 = arith.constant 0 : i32
    %c0_i32_1 = arith.constant 0 : i32
    return %c0_i32, %c0_i32_0 : i32, i32
  }
  func.func @transform_12(%arg0: i32, %arg1: i32) -> (i32, i32, i32, i32) {
    %c0_i32 = arith.constant 0 : i32
    %c0_i32_0 = arith.constant 0 : i32
    %c0_i32_1 = arith.constant 0 : i32
    return %arg0, %arg1, %c0_i32, %c0_i32_0 : i32, i32, i32, i32
  }
  func.func @transform_13(%arg0: i32, %arg1: i32) -> (i32, i32, i32, i32) {
    %c0_i32 = arith.constant 0 : i32
    %c0_i32_0 = arith.constant 0 : i32
    %c0_i32_1 = arith.constant 0 : i32
    return %arg0, %arg1, %c0_i32, %c0_i32_0 : i32, i32, i32, i32
  }
}

module attributes {stable_mosaic.version = 11 : i64} {
  func.func @_bottleneck_kernel(%arg0: i32, %arg1: i32, %arg2: memref<1x8x16x4xf32, #tpu.memory_space<vmem>>, %arg3: memref<1x1x16x4xf32, #tpu.memory_space<vmem>>, %arg4: memref<1x4xf32, #tpu.memory_space<vmem>>, %arg5: memref<1x4xf32, #tpu.memory_space<vmem>>, %arg6: memref<4x8xbf16, #tpu.memory_space<vmem>>, %arg7: memref<4x2xbf16, #tpu.memory_space<vmem>>, %arg8: memref<1x2xf32, #tpu.memory_space<vmem>>, %arg9: memref<1x2xf32, #tpu.memory_space<vmem>>, %arg10: memref<18x4xbf16, #tpu.memory_space<vmem>>, %arg11: memref<1x4xf32, #tpu.memory_space<vmem>>, %arg12: memref<1x4xf32, #tpu.memory_space<vmem>>, %arg13: memref<4x8xbf16, #tpu.memory_space<vmem>>, %arg14: memref<1x8x16x8xf32, #tpu.memory_space<vmem>>, %arg15: memref<1x8x16x4xf32, #tpu.memory_space<vmem>>, %arg16: memref<10x25x2xf32, #tpu.memory_space<vmem>>, %arg17: memref<1x16x2xf32, #tpu.memory_space<vmem>>) attributes {dimension_semantics = [#tpu.dimension_semantics<parallel>, #tpu.dimension_semantics<arbitrary>], iteration_bounds = array<i64: 2, 2>, scalar_prefetch = 0 : i64, scratch_operands = 2 : i64, tpu.core_type = #tpu.core_type<tc>, window_params = [{transform_indices = @transform_0, window_bounds = array<i64: 1, 8, 16, 4>}, {transform_indices = @transform_1, window_bounds = array<i64: 1, 1, 16, 4>}, {pipeline_mode = #tpu.pipeline_mode<synchronous>, transform_indices = @transform_2, window_bounds = array<i64: 1, 4>}, {pipeline_mode = #tpu.pipeline_mode<synchronous>, transform_indices = @transform_3, window_bounds = array<i64: 1, 4>}, {pipeline_mode = #tpu.pipeline_mode<synchronous>, transform_indices = @transform_4, window_bounds = array<i64: 4, 8>}, {pipeline_mode = #tpu.pipeline_mode<synchronous>, transform_indices = @transform_5, window_bounds = array<i64: 4, 2>}, {pipeline_mode = #tpu.pipeline_mode<synchronous>, transform_indices = @transform_6, window_bounds = array<i64: 1, 2>}, {pipeline_mode = #tpu.pipeline_mode<synchronous>, transform_indices = @transform_7, window_bounds = array<i64: 1, 2>}, {pipeline_mode = #tpu.pipeline_mode<synchronous>, transform_indices = @transform_8, window_bounds = array<i64: 18, 4>}, {pipeline_mode = #tpu.pipeline_mode<synchronous>, transform_indices = @transform_9, window_bounds = array<i64: 1, 4>}, {pipeline_mode = #tpu.pipeline_mode<synchronous>, transform_indices = @transform_10, window_bounds = array<i64: 1, 4>}, {pipeline_mode = #tpu.pipeline_mode<synchronous>, transform_indices = @transform_11, window_bounds = array<i64: 4, 8>}, {transform_indices = @transform_12, window_bounds = array<i64: 1, 8, 16, 8>}, {transform_indices = @transform_13, window_bounds = array<i64: 1, 8, 16, 4>}]} {
    %c0_i32 = arith.constant 0 : i32
    %0 = arith.cmpi eq, %arg1, %c0_i32 : i32
    %1 = arith.extui %0 : i1 to i32
    %c0_i32_0 = arith.constant 0 : i32
    %2 = arith.cmpi ne, %1, %c0_i32_0 : i32
    scf.if %2 {
      %cst_79 = arith.constant 0.000000e+00 : f32
      %103 = vector.broadcast %cst_79 : f32 to vector<10x1x2xf32>
      %c0_80 = arith.constant 0 : index
      %c7_81 = arith.constant 7 : index
      %c0_82 = arith.constant 0 : index
      %104 = vector.load %arg16[%c0_80, %c7_81, %c0_82] : memref<10x25x2xf32, #tpu.memory_space<vmem>>, vector<10x1x2xf32>
      tpu.vector_store %arg16[%c0_80, %c7_81, %c0_82], %103 {strides = array<i32>} : memref<10x25x2xf32, #tpu.memory_space<vmem>>, vector<10x1x2xf32>,
      %c0_83 = arith.constant 0 : index
      %c24 = arith.constant 24 : index
      %c0_84 = arith.constant 0 : index
      %105 = vector.load %arg16[%c0_83, %c24, %c0_84] : memref<10x25x2xf32, #tpu.memory_space<vmem>>, vector<10x1x2xf32>
      tpu.vector_store %arg16[%c0_83, %c24, %c0_84], %103 {strides = array<i32>} : memref<10x25x2xf32, #tpu.memory_space<vmem>>, vector<10x1x2xf32>,
    } else {
    }
    %c0 = arith.constant 0 : index
    %c0_1 = arith.constant 0 : index
    %3 = vector.load %arg4[%c0, %c0_1] : memref<1x4xf32, #tpu.memory_space<vmem>>, vector<1x4xf32>
    %4 = vector.shape_cast %3 : vector<1x4xf32> to vector<1x1x4xf32>
    %c0_2 = arith.constant 0 : index
    %c0_3 = arith.constant 0 : index
    %5 = vector.load %arg5[%c0_2, %c0_3] : memref<1x4xf32, #tpu.memory_space<vmem>>, vector<1x4xf32>
    %6 = vector.shape_cast %5 : vector<1x4xf32> to vector<1x1x4xf32>
    %c0_4 = arith.constant 0 : index
    %c0_5 = arith.constant 0 : index
    %c0_6 = arith.constant 0 : index
    %c0_7 = arith.constant 0 : index
    %7 = vector.load %arg2[%c0_4, %c0_5, %c0_6, %c0_7] : memref<1x8x16x4xf32, #tpu.memory_space<vmem>>, vector<1x8x16x4xf32>
    %8 = vector.shape_cast %7 : vector<1x8x16x4xf32> to vector<8x16x4xf32>
    %9 = vector.broadcast %4 : vector<1x1x4xf32> to vector<8x16x4xf32>
    %10 = arith.mulf %8, %9 : vector<8x16x4xf32>
    %11 = vector.broadcast %6 : vector<1x1x4xf32> to vector<8x16x4xf32>
    %12 = arith.addf %10, %11 : vector<8x16x4xf32>
    %cst = arith.constant 0.000000e+00 : f32
    %13 = vector.broadcast %cst : f32 to vector<8x16x4xf32>
    %14 = arith.maximumf %12, %13 : vector<8x16x4xf32>
    %c0_8 = arith.constant 0 : index
    %c0_9 = arith.constant 0 : index
    %c0_10 = arith.constant 0 : index
    %c0_11 = arith.constant 0 : index
    %15 = vector.load %arg15[%c0_8, %c0_9, %c0_10, %c0_11] : memref<1x8x16x4xf32, #tpu.memory_space<vmem>>, vector<1x8x16x4xf32>
    %16 = vector.shape_cast %15 : vector<1x8x16x4xf32> to vector<8x16x4xf32>
    %17 = vector.shape_cast %14 : vector<8x16x4xf32> to vector<1x8x16x4xf32>
    tpu.vector_store %arg15[%c0_8, %c0_9, %c0_10, %c0_11], %17 {strides = array<i32>} : memref<1x8x16x4xf32, #tpu.memory_space<vmem>>, vector<1x8x16x4xf32>,
    %c0_12 = arith.constant 0 : index
    %c0_13 = arith.constant 0 : index
    %c0_14 = arith.constant 0 : index
    %c0_15 = arith.constant 0 : index
    %18 = vector.load %arg3[%c0_12, %c0_13, %c0_14, %c0_15] : memref<1x1x16x4xf32, #tpu.memory_space<vmem>>, vector<1x1x16x4xf32>
    %19 = vector.shape_cast %18 : vector<1x1x16x4xf32> to vector<1x16x4xf32>
    %20 = vector.broadcast %4 : vector<1x1x4xf32> to vector<1x16x4xf32>
    %21 = arith.mulf %19, %20 : vector<1x16x4xf32>
    %22 = vector.broadcast %6 : vector<1x1x4xf32> to vector<1x16x4xf32>
    %23 = arith.addf %21, %22 : vector<1x16x4xf32>
    %cst_16 = arith.constant 0.000000e+00 : f32
    %24 = vector.broadcast %cst_16 : f32 to vector<1x16x4xf32>
    %25 = arith.maximumf %23, %24 : vector<1x16x4xf32>
    %26 = vector.shape_cast %14 : vector<8x16x4xf32> to vector<128x4xf32>
    %27 = arith.truncf %26 : vector<128x4xf32> to vector<128x4xbf16>
    %28 = vector.shape_cast %25 : vector<1x16x4xf32> to vector<16x4xf32>
    %29 = arith.truncf %28 : vector<16x4xf32> to vector<16x4xbf16>
    %30 = tpu.concatenate %27, %29 in 0 : vector<128x4xbf16>, vector<16x4xbf16> -> vector<144x4xbf16>
    %c0_17 = arith.constant 0 : index
    %c0_18 = arith.constant 0 : index
    %31 = vector.load %arg7[%c0_17, %c0_18] : memref<4x2xbf16, #tpu.memory_space<vmem>>, vector<4x2xbf16>
    %cst_19 = arith.constant dense<0.000000e+00> : vector<144x2xf32>
    %32 = tpu.matmul %30, %31, %cst_19 {dimension_numbers = #tpu.dot_dimension_numbers<[1], [0], [0], [1], [0, 0, 1, 1], [], []>} : vector<144x4xbf16>, vector<4x2xbf16>, vector<144x2xf32> -> vector<144x2xf32>
    %c0_20 = arith.constant 0 : index
    %c0_21 = arith.constant 0 : index
    %33 = vector.load %arg8[%c0_20, %c0_21] : memref<1x2xf32, #tpu.memory_space<vmem>>, vector<1x2xf32>
    %34 = vector.broadcast %33 : vector<1x2xf32> to vector<144x2xf32>
    %35 = arith.mulf %32, %34 : vector<144x2xf32>
    %c0_22 = arith.constant 0 : index
    %c0_23 = arith.constant 0 : index
    %36 = vector.load %arg9[%c0_22, %c0_23] : memref<1x2xf32, #tpu.memory_space<vmem>>, vector<1x2xf32>
    %37 = vector.broadcast %36 : vector<1x2xf32> to vector<144x2xf32>
    %38 = arith.addf %35, %37 : vector<144x2xf32>
    %cst_24 = arith.constant 0.000000e+00 : f32
    %39 = vector.broadcast %cst_24 : f32 to vector<144x2xf32>
    %40 = arith.maximumf %38, %39 : vector<144x2xf32>
    %41 = arith.truncf %40 : vector<144x2xf32> to vector<144x2xbf16>
    %42 = vector.shape_cast %41 : vector<144x2xbf16> to vector<9x16x2xbf16>
    %43 = vector.extract_strided_slice %42 {offsets = [0, 0, 0], sizes = [8, 16, 2], strides = [1, 1, 1]} : vector<9x16x2xbf16> to vector<8x16x2xbf16>
    %44 = vector.extract_strided_slice %42 {offsets = [8, 0, 0], sizes = [1, 16, 2], strides = [1, 1, 1]} : vector<9x16x2xbf16> to vector<1x16x2xbf16>
    %cst_25 = arith.constant 0.000000e+00 : f32
    %45 = vector.broadcast %cst_25 : f32 to vector<1x16x2xf32>
    %c0_i32_26 = arith.constant 0 : i32
    %46 = arith.cmpi eq, %arg1, %c0_i32_26 : i32
    %47 = arith.extui %46 : i1 to i32
    %c0_i32_27 = arith.constant 0 : i32
    %48 = arith.cmpi ne, %47, %c0_i32_27 : i32
    scf.if %48 {
      %c0_79 = arith.constant 0 : index
      %c8_80 = arith.constant 8 : index
      %c0_81 = arith.constant 0 : index
      %103 = vector.load %arg16[%c0_79, %c8_80, %c0_81] : memref<10x25x2xf32, #tpu.memory_space<vmem>>, vector<1x16x2xf32>
      tpu.vector_store %arg16[%c0_79, %c8_80, %c0_81], %45 {strides = array<i32>} : memref<10x25x2xf32, #tpu.memory_space<vmem>>, vector<1x16x2xf32>,
    } else {
    }
    %c0_i32_28 = arith.constant 0 : i32
    %49 = arith.cmpi sgt, %arg1, %c0_i32_28 : i32
    %50 = arith.extui %49 : i1 to i32
    %c0_i32_29 = arith.constant 0 : i32
    %51 = arith.cmpi ne, %50, %c0_i32_29 : i32
    scf.if %51 {
      %c0_79 = arith.constant 0 : index
      %c0_80 = arith.constant 0 : index
      %c0_81 = arith.constant 0 : index
      %103 = vector.load %arg17[%c0_79, %c0_80, %c0_81] : memref<1x16x2xf32, #tpu.memory_space<vmem>>, vector<1x16x2xf32>
      %c0_82 = arith.constant 0 : index
      %c8_83 = arith.constant 8 : index
      %c0_84 = arith.constant 0 : index
      %104 = vector.load %arg16[%c0_82, %c8_83, %c0_84] : memref<10x25x2xf32, #tpu.memory_space<vmem>>, vector<1x16x2xf32>
      tpu.vector_store %arg16[%c0_82, %c8_83, %c0_84], %103 {strides = array<i32>} : memref<10x25x2xf32, #tpu.memory_space<vmem>>, vector<1x16x2xf32>,
    } else {
    }
    %52 = arith.extf %43 : vector<8x16x2xbf16> to vector<8x16x2xf32>
    %c1 = arith.constant 1 : index
    %c8 = arith.constant 8 : index
    %c0_30 = arith.constant 0 : index
    %53 = vector.load %arg16[%c1, %c8, %c0_30] : memref<10x25x2xf32, #tpu.memory_space<vmem>>, vector<8x16x2xf32>
    tpu.vector_store %arg16[%c1, %c8, %c0_30], %52 {strides = array<i32>} : memref<10x25x2xf32, #tpu.memory_space<vmem>>, vector<8x16x2xf32>,
    %c1_i32 = arith.constant 1 : i32
    %54 = arith.cmpi eq, %arg1, %c1_i32 : i32
    %55 = arith.extui %54 : i1 to i32
    %c0_i32_31 = arith.constant 0 : i32
    %56 = arith.cmpi ne, %55, %c0_i32_31 : i32
    scf.if %56 {
      %c9_79 = arith.constant 9 : index
      %c8_80 = arith.constant 8 : index
      %c0_81 = arith.constant 0 : index
      %103 = vector.load %arg16[%c9_79, %c8_80, %c0_81] : memref<10x25x2xf32, #tpu.memory_space<vmem>>, vector<1x16x2xf32>
      tpu.vector_store %arg16[%c9_79, %c8_80, %c0_81], %45 {strides = array<i32>} : memref<10x25x2xf32, #tpu.memory_space<vmem>>, vector<1x16x2xf32>,
    } else {
    }
    %c1_i32_32 = arith.constant 1 : i32
    %57 = arith.cmpi slt, %arg1, %c1_i32_32 : i32
    %58 = arith.extui %57 : i1 to i32
    %c0_i32_33 = arith.constant 0 : i32
    %59 = arith.cmpi ne, %58, %c0_i32_33 : i32
    scf.if %59 {
      %103 = arith.extf %44 : vector<1x16x2xbf16> to vector<1x16x2xf32>
      %c9_79 = arith.constant 9 : index
      %c8_80 = arith.constant 8 : index
      %c0_81 = arith.constant 0 : index
      %104 = vector.load %arg16[%c9_79, %c8_80, %c0_81] : memref<10x25x2xf32, #tpu.memory_space<vmem>>, vector<1x16x2xf32>
      tpu.vector_store %arg16[%c9_79, %c8_80, %c0_81], %103 {strides = array<i32>} : memref<10x25x2xf32, #tpu.memory_space<vmem>>, vector<1x16x2xf32>,
    } else {
    }
    %60 = vector.extract_strided_slice %43 {offsets = [7, 0, 0], sizes = [1, 16, 2], strides = [1, 1, 1]} : vector<8x16x2xbf16> to vector<1x16x2xbf16>
    %61 = arith.extf %60 : vector<1x16x2xbf16> to vector<1x16x2xf32>
    %c0_34 = arith.constant 0 : index
    %c0_35 = arith.constant 0 : index
    %c0_36 = arith.constant 0 : index
    %62 = vector.load %arg17[%c0_34, %c0_35, %c0_36] : memref<1x16x2xf32, #tpu.memory_space<vmem>>, vector<1x16x2xf32>
    tpu.vector_store %arg17[%c0_34, %c0_35, %c0_36], %61 {strides = array<i32>} : memref<1x16x2xf32, #tpu.memory_space<vmem>>, vector<1x16x2xf32>,
    %c0_37 = arith.constant 0 : index
    %c7 = arith.constant 7 : index
    %c0_38 = arith.constant 0 : index
    %63 = vector.load %arg16[%c0_37, %c7, %c0_38] : memref<10x25x2xf32, #tpu.memory_space<vmem>>, vector<8x16x2xf32>
    %64 = arith.truncf %63 : vector<8x16x2xf32> to vector<8x16x2xbf16>
    %c0_39 = arith.constant 0 : index
    %c8_40 = arith.constant 8 : index
    %c0_41 = arith.constant 0 : index
    %65 = vector.load %arg16[%c0_39, %c8_40, %c0_41] : memref<10x25x2xf32, #tpu.memory_space<vmem>>, vector<8x16x2xf32>
    %66 = arith.truncf %65 : vector<8x16x2xf32> to vector<8x16x2xbf16>
    %c0_42 = arith.constant 0 : index
    %c9 = arith.constant 9 : index
    %c0_43 = arith.constant 0 : index
    %67 = vector.load %arg16[%c0_42, %c9, %c0_43] : memref<10x25x2xf32, #tpu.memory_space<vmem>>, vector<8x16x2xf32>
    %68 = arith.truncf %67 : vector<8x16x2xf32> to vector<8x16x2xbf16>
    %c1_44 = arith.constant 1 : index
    %c7_45 = arith.constant 7 : index
    %c0_46 = arith.constant 0 : index
    %69 = vector.load %arg16[%c1_44, %c7_45, %c0_46] : memref<10x25x2xf32, #tpu.memory_space<vmem>>, vector<8x16x2xf32>
    %70 = arith.truncf %69 : vector<8x16x2xf32> to vector<8x16x2xbf16>
    %c1_47 = arith.constant 1 : index
    %c8_48 = arith.constant 8 : index
    %c0_49 = arith.constant 0 : index
    %71 = vector.load %arg16[%c1_47, %c8_48, %c0_49] : memref<10x25x2xf32, #tpu.memory_space<vmem>>, vector<8x16x2xf32>
    %72 = arith.truncf %71 : vector<8x16x2xf32> to vector<8x16x2xbf16>
    %c1_50 = arith.constant 1 : index
    %c9_51 = arith.constant 9 : index
    %c0_52 = arith.constant 0 : index
    %73 = vector.load %arg16[%c1_50, %c9_51, %c0_52] : memref<10x25x2xf32, #tpu.memory_space<vmem>>, vector<8x16x2xf32>
    %74 = arith.truncf %73 : vector<8x16x2xf32> to vector<8x16x2xbf16>
    %c2 = arith.constant 2 : index
    %c7_53 = arith.constant 7 : index
    %c0_54 = arith.constant 0 : index
    %75 = vector.load %arg16[%c2, %c7_53, %c0_54] : memref<10x25x2xf32, #tpu.memory_space<vmem>>, vector<8x16x2xf32>
    %76 = arith.truncf %75 : vector<8x16x2xf32> to vector<8x16x2xbf16>
    %c2_55 = arith.constant 2 : index
    %c8_56 = arith.constant 8 : index
    %c0_57 = arith.constant 0 : index
    %77 = vector.load %arg16[%c2_55, %c8_56, %c0_57] : memref<10x25x2xf32, #tpu.memory_space<vmem>>, vector<8x16x2xf32>
    %78 = arith.truncf %77 : vector<8x16x2xf32> to vector<8x16x2xbf16>
    %c2_58 = arith.constant 2 : index
    %c9_59 = arith.constant 9 : index
    %c0_60 = arith.constant 0 : index
    %79 = vector.load %arg16[%c2_58, %c9_59, %c0_60] : memref<10x25x2xf32, #tpu.memory_space<vmem>>, vector<8x16x2xf32>
    %80 = arith.truncf %79 : vector<8x16x2xf32> to vector<8x16x2xbf16>
    %81 = tpu.concatenate %64, %66, %68, %70, %72, %74, %76, %78, %80 in 2 : vector<8x16x2xbf16>, vector<8x16x2xbf16>, vector<8x16x2xbf16>, vector<8x16x2xbf16>, vector<8x16x2xbf16>, vector<8x16x2xbf16>, vector<8x16x2xbf16>, vector<8x16x2xbf16>, vector<8x16x2xbf16> -> vector<8x16x18xbf16>
    %82 = vector.shape_cast %81 : vector<8x16x18xbf16> to vector<128x18xbf16>
    %c0_61 = arith.constant 0 : index
    %c0_62 = arith.constant 0 : index
    %83 = vector.load %arg10[%c0_61, %c0_62] : memref<18x4xbf16, #tpu.memory_space<vmem>>, vector<18x4xbf16>
    %cst_63 = arith.constant dense<0.000000e+00> : vector<128x4xf32>
    %84 = tpu.matmul %82, %83, %cst_63 {dimension_numbers = #tpu.dot_dimension_numbers<[1], [0], [0], [1], [0, 0, 1, 1], [], []>} : vector<128x18xbf16>, vector<18x4xbf16>, vector<128x4xf32> -> vector<128x4xf32>
    %c0_64 = arith.constant 0 : index
    %c0_65 = arith.constant 0 : index
    %85 = vector.load %arg11[%c0_64, %c0_65] : memref<1x4xf32, #tpu.memory_space<vmem>>, vector<1x4xf32>
    %86 = vector.broadcast %85 : vector<1x4xf32> to vector<128x4xf32>
    %87 = arith.mulf %84, %86 : vector<128x4xf32>
    %c0_66 = arith.constant 0 : index
    %c0_67 = arith.constant 0 : index
    %88 = vector.load %arg12[%c0_66, %c0_67] : memref<1x4xf32, #tpu.memory_space<vmem>>, vector<1x4xf32>
    %89 = vector.broadcast %88 : vector<1x4xf32> to vector<128x4xf32>
    %90 = arith.addf %87, %89 : vector<128x4xf32>
    %cst_68 = arith.constant 0.000000e+00 : f32
    %91 = vector.broadcast %cst_68 : f32 to vector<128x4xf32>
    %92 = arith.maximumf %90, %91 : vector<128x4xf32>
    %93 = arith.truncf %92 : vector<128x4xf32> to vector<128x4xbf16>
    %c0_69 = arith.constant 0 : index
    %c0_70 = arith.constant 0 : index
    %94 = vector.load %arg13[%c0_69, %c0_70] : memref<4x8xbf16, #tpu.memory_space<vmem>>, vector<4x8xbf16>
    %cst_71 = arith.constant dense<0.000000e+00> : vector<128x8xf32>
    %95 = tpu.matmul %93, %94, %cst_71 {dimension_numbers = #tpu.dot_dimension_numbers<[1], [0], [0], [1], [0, 0, 1, 1], [], []>} : vector<128x4xbf16>, vector<4x8xbf16>, vector<128x8xf32> -> vector<128x8xf32>
    %c0_72 = arith.constant 0 : index
    %c0_73 = arith.constant 0 : index
    %96 = vector.load %arg6[%c0_72, %c0_73] : memref<4x8xbf16, #tpu.memory_space<vmem>>, vector<4x8xbf16>
    %cst_74 = arith.constant dense<0.000000e+00> : vector<128x8xf32>
    %97 = tpu.matmul %27, %96, %cst_74 {dimension_numbers = #tpu.dot_dimension_numbers<[1], [0], [0], [1], [0, 0, 1, 1], [], []>} : vector<128x4xbf16>, vector<4x8xbf16>, vector<128x8xf32> -> vector<128x8xf32>
    %98 = arith.addf %97, %95 : vector<128x8xf32>
    %99 = vector.shape_cast %98 : vector<128x8xf32> to vector<8x16x8xf32>
    %c0_75 = arith.constant 0 : index
    %c0_76 = arith.constant 0 : index
    %c0_77 = arith.constant 0 : index
    %c0_78 = arith.constant 0 : index
    %100 = vector.load %arg14[%c0_75, %c0_76, %c0_77, %c0_78] : memref<1x8x16x8xf32, #tpu.memory_space<vmem>>, vector<1x8x16x8xf32>
    %101 = vector.shape_cast %100 : vector<1x8x16x8xf32> to vector<8x16x8xf32>
    %102 = vector.shape_cast %99 : vector<8x16x8xf32> to vector<1x8x16x8xf32>
    tpu.vector_store %arg14[%c0_75, %c0_76, %c0_77, %c0_78], %102 {strides = array<i32>} : memref<1x8x16x8xf32, #tpu.memory_space<vmem>>, vector<1x8x16x8xf32>,
    return
  }
  func.func @transform_0(%arg0: i32, %arg1: i32) -> (i32, i32, i32, i32) {
    %c0_i32 = arith.constant 0 : i32
    %c0_i32_0 = arith.constant 0 : i32
    %c0_i32_1 = arith.constant 0 : i32
    return %arg0, %arg1, %c0_i32, %c0_i32_0 : i32, i32, i32, i32
  }
  func.func @transform_1(%arg0: i32, %arg1: i32) -> (i32, i32, i32, i32) {
    %c1_i32 = arith.constant 1 : i32
    %0 = arith.addi %arg1, %c1_i32 : i32
    %c8_i32 = arith.constant 8 : i32
    %1 = arith.muli %0, %c8_i32 : i32
    %c15_i32 = arith.constant 15 : i32
    %2 = arith.minsi %1, %c15_i32 : i32
    %c0_i32 = arith.constant 0 : i32
    %c0_i32_0 = arith.constant 0 : i32
    %c0_i32_1 = arith.constant 0 : i32
    return %arg0, %2, %c0_i32, %c0_i32_0 : i32, i32, i32, i32
  }
  func.func @transform_2(%arg0: i32, %arg1: i32) -> (i32, i32) {
    %c0_i32 = arith.constant 0 : i32
    %c0_i32_0 = arith.constant 0 : i32
    %c0_i32_1 = arith.constant 0 : i32
    return %c0_i32, %c0_i32_0 : i32, i32
  }
  func.func @transform_3(%arg0: i32, %arg1: i32) -> (i32, i32) {
    %c0_i32 = arith.constant 0 : i32
    %c0_i32_0 = arith.constant 0 : i32
    %c0_i32_1 = arith.constant 0 : i32
    return %c0_i32, %c0_i32_0 : i32, i32
  }
  func.func @transform_4(%arg0: i32, %arg1: i32) -> (i32, i32) {
    %c0_i32 = arith.constant 0 : i32
    %c0_i32_0 = arith.constant 0 : i32
    %c0_i32_1 = arith.constant 0 : i32
    return %c0_i32, %c0_i32_0 : i32, i32
  }
  func.func @transform_5(%arg0: i32, %arg1: i32) -> (i32, i32) {
    %c0_i32 = arith.constant 0 : i32
    %c0_i32_0 = arith.constant 0 : i32
    %c0_i32_1 = arith.constant 0 : i32
    return %c0_i32, %c0_i32_0 : i32, i32
  }
  func.func @transform_6(%arg0: i32, %arg1: i32) -> (i32, i32) {
    %c0_i32 = arith.constant 0 : i32
    %c0_i32_0 = arith.constant 0 : i32
    %c0_i32_1 = arith.constant 0 : i32
    return %c0_i32, %c0_i32_0 : i32, i32
  }
  func.func @transform_7(%arg0: i32, %arg1: i32) -> (i32, i32) {
    %c0_i32 = arith.constant 0 : i32
    %c0_i32_0 = arith.constant 0 : i32
    %c0_i32_1 = arith.constant 0 : i32
    return %c0_i32, %c0_i32_0 : i32, i32
  }
  func.func @transform_8(%arg0: i32, %arg1: i32) -> (i32, i32) {
    %c0_i32 = arith.constant 0 : i32
    %c0_i32_0 = arith.constant 0 : i32
    %c0_i32_1 = arith.constant 0 : i32
    return %c0_i32, %c0_i32_0 : i32, i32
  }
  func.func @transform_9(%arg0: i32, %arg1: i32) -> (i32, i32) {
    %c0_i32 = arith.constant 0 : i32
    %c0_i32_0 = arith.constant 0 : i32
    %c0_i32_1 = arith.constant 0 : i32
    return %c0_i32, %c0_i32_0 : i32, i32
  }
  func.func @transform_10(%arg0: i32, %arg1: i32) -> (i32, i32) {
    %c0_i32 = arith.constant 0 : i32
    %c0_i32_0 = arith.constant 0 : i32
    %c0_i32_1 = arith.constant 0 : i32
    return %c0_i32, %c0_i32_0 : i32, i32
  }
  func.func @transform_11(%arg0: i32, %arg1: i32) -> (i32, i32) {
    %c0_i32 = arith.constant 0 : i32
    %c0_i32_0 = arith.constant 0 : i32
    %c0_i32_1 = arith.constant 0 : i32
    return %c0_i32, %c0_i32_0 : i32, i32
  }
  func.func @transform_12(%arg0: i32, %arg1: i32) -> (i32, i32, i32, i32) {
    %c0_i32 = arith.constant 0 : i32
    %c0_i32_0 = arith.constant 0 : i32
    %c0_i32_1 = arith.constant 0 : i32
    return %arg0, %arg1, %c0_i32, %c0_i32_0 : i32, i32, i32, i32
  }
  func.func @transform_13(%arg0: i32, %arg1: i32) -> (i32, i32, i32, i32) {
    %c0_i32 = arith.constant 0 : i32
    %c0_i32_0 = arith.constant 0 : i32
    %c0_i32_1 = arith.constant 0 : i32
    return %arg0, %arg1, %c0_i32, %c0_i32_0 : i32, i32, i32, i32
  }
}

module attributes {stable_mosaic.version = 11 : i64} {
  func.func @_bottleneck_kernel(%arg0: i32, %arg1: i32, %arg2: memref<1x8x16x4xf32, #tpu.memory_space<vmem>>, %arg3: memref<1x1x16x4xf32, #tpu.memory_space<vmem>>, %arg4: memref<1x4xf32, #tpu.memory_space<vmem>>, %arg5: memref<1x4xf32, #tpu.memory_space<vmem>>, %arg6: memref<4x8xbf16, #tpu.memory_space<vmem>>, %arg7: memref<4x2xbf16, #tpu.memory_space<vmem>>, %arg8: memref<1x2xf32, #tpu.memory_space<vmem>>, %arg9: memref<1x2xf32, #tpu.memory_space<vmem>>, %arg10: memref<18x4xbf16, #tpu.memory_space<vmem>>, %arg11: memref<1x4xf32, #tpu.memory_space<vmem>>, %arg12: memref<1x4xf32, #tpu.memory_space<vmem>>, %arg13: memref<4x8xbf16, #tpu.memory_space<vmem>>, %arg14: memref<1x8x16x8xf32, #tpu.memory_space<vmem>>, %arg15: memref<1x8x16x4xf32, #tpu.memory_space<vmem>>, %arg16: memref<10x25x2xf32, #tpu.memory_space<vmem>>, %arg17: memref<1x16x2xf32, #tpu.memory_space<vmem>>) attributes {dimension_semantics = [#tpu.dimension_semantics<parallel>, #tpu.dimension_semantics<arbitrary>], iteration_bounds = array<i64: 2, 2>, scalar_prefetch = 0 : i64, scratch_operands = 2 : i64, tpu.core_type = #tpu.core_type<tc>, window_params = [{transform_indices = @transform_0, window_bounds = array<i64: 1, 8, 16, 4>}, {transform_indices = @transform_1, window_bounds = array<i64: 1, 1, 16, 4>}, {pipeline_mode = #tpu.pipeline_mode<synchronous>, transform_indices = @transform_2, window_bounds = array<i64: 1, 4>}, {pipeline_mode = #tpu.pipeline_mode<synchronous>, transform_indices = @transform_3, window_bounds = array<i64: 1, 4>}, {pipeline_mode = #tpu.pipeline_mode<synchronous>, transform_indices = @transform_4, window_bounds = array<i64: 4, 8>}, {pipeline_mode = #tpu.pipeline_mode<synchronous>, transform_indices = @transform_5, window_bounds = array<i64: 4, 2>}, {pipeline_mode = #tpu.pipeline_mode<synchronous>, transform_indices = @transform_6, window_bounds = array<i64: 1, 2>}, {pipeline_mode = #tpu.pipeline_mode<synchronous>, transform_indices = @transform_7, window_bounds = array<i64: 1, 2>}, {pipeline_mode = #tpu.pipeline_mode<synchronous>, transform_indices = @transform_8, window_bounds = array<i64: 18, 4>}, {pipeline_mode = #tpu.pipeline_mode<synchronous>, transform_indices = @transform_9, window_bounds = array<i64: 1, 4>}, {pipeline_mode = #tpu.pipeline_mode<synchronous>, transform_indices = @transform_10, window_bounds = array<i64: 1, 4>}, {pipeline_mode = #tpu.pipeline_mode<synchronous>, transform_indices = @transform_11, window_bounds = array<i64: 4, 8>}, {transform_indices = @transform_12, window_bounds = array<i64: 1, 8, 16, 8>}, {transform_indices = @transform_13, window_bounds = array<i64: 1, 8, 16, 4>}]} {
    %c0_i32 = arith.constant 0 : i32
    %0 = arith.cmpi eq, %arg1, %c0_i32 : i32
    %1 = arith.extui %0 : i1 to i32
    %c0_i32_0 = arith.constant 0 : i32
    %2 = arith.cmpi ne, %1, %c0_i32_0 : i32
    scf.if %2 {
      %cst_79 = arith.constant 0.000000e+00 : f32
      %103 = vector.broadcast %cst_79 : f32 to vector<10x1x2xf32>
      %c0_80 = arith.constant 0 : index
      %c7_81 = arith.constant 7 : index
      %c0_82 = arith.constant 0 : index
      %104 = vector.load %arg16[%c0_80, %c7_81, %c0_82] : memref<10x25x2xf32, #tpu.memory_space<vmem>>, vector<10x1x2xf32>
      tpu.vector_store %arg16[%c0_80, %c7_81, %c0_82], %103 {strides = array<i32>} : memref<10x25x2xf32, #tpu.memory_space<vmem>>, vector<10x1x2xf32>,
      %c0_83 = arith.constant 0 : index
      %c24 = arith.constant 24 : index
      %c0_84 = arith.constant 0 : index
      %105 = vector.load %arg16[%c0_83, %c24, %c0_84] : memref<10x25x2xf32, #tpu.memory_space<vmem>>, vector<10x1x2xf32>
      tpu.vector_store %arg16[%c0_83, %c24, %c0_84], %103 {strides = array<i32>} : memref<10x25x2xf32, #tpu.memory_space<vmem>>, vector<10x1x2xf32>,
    } else {
    }
    %c0 = arith.constant 0 : index
    %c0_1 = arith.constant 0 : index
    %3 = vector.load %arg4[%c0, %c0_1] : memref<1x4xf32, #tpu.memory_space<vmem>>, vector<1x4xf32>
    %4 = vector.shape_cast %3 : vector<1x4xf32> to vector<1x1x4xf32>
    %c0_2 = arith.constant 0 : index
    %c0_3 = arith.constant 0 : index
    %5 = vector.load %arg5[%c0_2, %c0_3] : memref<1x4xf32, #tpu.memory_space<vmem>>, vector<1x4xf32>
    %6 = vector.shape_cast %5 : vector<1x4xf32> to vector<1x1x4xf32>
    %c0_4 = arith.constant 0 : index
    %c0_5 = arith.constant 0 : index
    %c0_6 = arith.constant 0 : index
    %c0_7 = arith.constant 0 : index
    %7 = vector.load %arg2[%c0_4, %c0_5, %c0_6, %c0_7] : memref<1x8x16x4xf32, #tpu.memory_space<vmem>>, vector<1x8x16x4xf32>
    %8 = vector.shape_cast %7 : vector<1x8x16x4xf32> to vector<8x16x4xf32>
    %9 = vector.broadcast %4 : vector<1x1x4xf32> to vector<8x16x4xf32>
    %10 = arith.mulf %8, %9 : vector<8x16x4xf32>
    %11 = vector.broadcast %6 : vector<1x1x4xf32> to vector<8x16x4xf32>
    %12 = arith.addf %10, %11 : vector<8x16x4xf32>
    %cst = arith.constant 0.000000e+00 : f32
    %13 = vector.broadcast %cst : f32 to vector<8x16x4xf32>
    %14 = arith.maximumf %12, %13 : vector<8x16x4xf32>
    %c0_8 = arith.constant 0 : index
    %c0_9 = arith.constant 0 : index
    %c0_10 = arith.constant 0 : index
    %c0_11 = arith.constant 0 : index
    %15 = vector.load %arg15[%c0_8, %c0_9, %c0_10, %c0_11] : memref<1x8x16x4xf32, #tpu.memory_space<vmem>>, vector<1x8x16x4xf32>
    %16 = vector.shape_cast %15 : vector<1x8x16x4xf32> to vector<8x16x4xf32>
    %17 = vector.shape_cast %14 : vector<8x16x4xf32> to vector<1x8x16x4xf32>
    tpu.vector_store %arg15[%c0_8, %c0_9, %c0_10, %c0_11], %17 {strides = array<i32>} : memref<1x8x16x4xf32, #tpu.memory_space<vmem>>, vector<1x8x16x4xf32>,
    %c0_12 = arith.constant 0 : index
    %c0_13 = arith.constant 0 : index
    %c0_14 = arith.constant 0 : index
    %c0_15 = arith.constant 0 : index
    %18 = vector.load %arg3[%c0_12, %c0_13, %c0_14, %c0_15] : memref<1x1x16x4xf32, #tpu.memory_space<vmem>>, vector<1x1x16x4xf32>
    %19 = vector.shape_cast %18 : vector<1x1x16x4xf32> to vector<1x16x4xf32>
    %20 = vector.broadcast %4 : vector<1x1x4xf32> to vector<1x16x4xf32>
    %21 = arith.mulf %19, %20 : vector<1x16x4xf32>
    %22 = vector.broadcast %6 : vector<1x1x4xf32> to vector<1x16x4xf32>
    %23 = arith.addf %21, %22 : vector<1x16x4xf32>
    %cst_16 = arith.constant 0.000000e+00 : f32
    %24 = vector.broadcast %cst_16 : f32 to vector<1x16x4xf32>
    %25 = arith.maximumf %23, %24 : vector<1x16x4xf32>
    %26 = vector.shape_cast %14 : vector<8x16x4xf32> to vector<128x4xf32>
    %27 = arith.truncf %26 : vector<128x4xf32> to vector<128x4xbf16>
    %28 = vector.shape_cast %25 : vector<1x16x4xf32> to vector<16x4xf32>
    %29 = arith.truncf %28 : vector<16x4xf32> to vector<16x4xbf16>
    %30 = tpu.concatenate %27, %29 in 0 : vector<128x4xbf16>, vector<16x4xbf16> -> vector<144x4xbf16>
    %c0_17 = arith.constant 0 : index
    %c0_18 = arith.constant 0 : index
    %31 = vector.load %arg7[%c0_17, %c0_18] : memref<4x2xbf16, #tpu.memory_space<vmem>>, vector<4x2xbf16>
    %cst_19 = arith.constant dense<0.000000e+00> : vector<144x2xf32>
    %32 = tpu.matmul %30, %31, %cst_19 {dimension_numbers = #tpu.dot_dimension_numbers<[1], [0], [0], [1], [0, 0, 1, 1], [], []>} : vector<144x4xbf16>, vector<4x2xbf16>, vector<144x2xf32> -> vector<144x2xf32>
    %c0_20 = arith.constant 0 : index
    %c0_21 = arith.constant 0 : index
    %33 = vector.load %arg8[%c0_20, %c0_21] : memref<1x2xf32, #tpu.memory_space<vmem>>, vector<1x2xf32>
    %34 = vector.broadcast %33 : vector<1x2xf32> to vector<144x2xf32>
    %35 = arith.mulf %32, %34 : vector<144x2xf32>
    %c0_22 = arith.constant 0 : index
    %c0_23 = arith.constant 0 : index
    %36 = vector.load %arg9[%c0_22, %c0_23] : memref<1x2xf32, #tpu.memory_space<vmem>>, vector<1x2xf32>
    %37 = vector.broadcast %36 : vector<1x2xf32> to vector<144x2xf32>
    %38 = arith.addf %35, %37 : vector<144x2xf32>
    %cst_24 = arith.constant 0.000000e+00 : f32
    %39 = vector.broadcast %cst_24 : f32 to vector<144x2xf32>
    %40 = arith.maximumf %38, %39 : vector<144x2xf32>
    %41 = arith.truncf %40 : vector<144x2xf32> to vector<144x2xbf16>
    %42 = vector.shape_cast %41 : vector<144x2xbf16> to vector<9x16x2xbf16>
    %43 = vector.extract_strided_slice %42 {offsets = [0, 0, 0], sizes = [8, 16, 2], strides = [1, 1, 1]} : vector<9x16x2xbf16> to vector<8x16x2xbf16>
    %44 = vector.extract_strided_slice %42 {offsets = [8, 0, 0], sizes = [1, 16, 2], strides = [1, 1, 1]} : vector<9x16x2xbf16> to vector<1x16x2xbf16>
    %cst_25 = arith.constant 0.000000e+00 : f32
    %45 = vector.broadcast %cst_25 : f32 to vector<1x16x2xf32>
    %c0_i32_26 = arith.constant 0 : i32
    %46 = arith.cmpi eq, %arg1, %c0_i32_26 : i32
    %47 = arith.extui %46 : i1 to i32
    %c0_i32_27 = arith.constant 0 : i32
    %48 = arith.cmpi ne, %47, %c0_i32_27 : i32
    scf.if %48 {
      %c0_79 = arith.constant 0 : index
      %c8_80 = arith.constant 8 : index
      %c0_81 = arith.constant 0 : index
      %103 = vector.load %arg16[%c0_79, %c8_80, %c0_81] : memref<10x25x2xf32, #tpu.memory_space<vmem>>, vector<1x16x2xf32>
      tpu.vector_store %arg16[%c0_79, %c8_80, %c0_81], %45 {strides = array<i32>} : memref<10x25x2xf32, #tpu.memory_space<vmem>>, vector<1x16x2xf32>,
    } else {
    }
    %c0_i32_28 = arith.constant 0 : i32
    %49 = arith.cmpi sgt, %arg1, %c0_i32_28 : i32
    %50 = arith.extui %49 : i1 to i32
    %c0_i32_29 = arith.constant 0 : i32
    %51 = arith.cmpi ne, %50, %c0_i32_29 : i32
    scf.if %51 {
      %c0_79 = arith.constant 0 : index
      %c0_80 = arith.constant 0 : index
      %c0_81 = arith.constant 0 : index
      %103 = vector.load %arg17[%c0_79, %c0_80, %c0_81] : memref<1x16x2xf32, #tpu.memory_space<vmem>>, vector<1x16x2xf32>
      %c0_82 = arith.constant 0 : index
      %c8_83 = arith.constant 8 : index
      %c0_84 = arith.constant 0 : index
      %104 = vector.load %arg16[%c0_82, %c8_83, %c0_84] : memref<10x25x2xf32, #tpu.memory_space<vmem>>, vector<1x16x2xf32>
      tpu.vector_store %arg16[%c0_82, %c8_83, %c0_84], %103 {strides = array<i32>} : memref<10x25x2xf32, #tpu.memory_space<vmem>>, vector<1x16x2xf32>,
    } else {
    }
    %52 = arith.extf %43 : vector<8x16x2xbf16> to vector<8x16x2xf32>
    %c1 = arith.constant 1 : index
    %c8 = arith.constant 8 : index
    %c0_30 = arith.constant 0 : index
    %53 = vector.load %arg16[%c1, %c8, %c0_30] : memref<10x25x2xf32, #tpu.memory_space<vmem>>, vector<8x16x2xf32>
    tpu.vector_store %arg16[%c1, %c8, %c0_30], %52 {strides = array<i32>} : memref<10x25x2xf32, #tpu.memory_space<vmem>>, vector<8x16x2xf32>,
    %c1_i32 = arith.constant 1 : i32
    %54 = arith.cmpi eq, %arg1, %c1_i32 : i32
    %55 = arith.extui %54 : i1 to i32
    %c0_i32_31 = arith.constant 0 : i32
    %56 = arith.cmpi ne, %55, %c0_i32_31 : i32
    scf.if %56 {
      %c9_79 = arith.constant 9 : index
      %c8_80 = arith.constant 8 : index
      %c0_81 = arith.constant 0 : index
      %103 = vector.load %arg16[%c9_79, %c8_80, %c0_81] : memref<10x25x2xf32, #tpu.memory_space<vmem>>, vector<1x16x2xf32>
      tpu.vector_store %arg16[%c9_79, %c8_80, %c0_81], %45 {strides = array<i32>} : memref<10x25x2xf32, #tpu.memory_space<vmem>>, vector<1x16x2xf32>,
    } else {
    }
    %c1_i32_32 = arith.constant 1 : i32
    %57 = arith.cmpi slt, %arg1, %c1_i32_32 : i32
    %58 = arith.extui %57 : i1 to i32
    %c0_i32_33 = arith.constant 0 : i32
    %59 = arith.cmpi ne, %58, %c0_i32_33 : i32
    scf.if %59 {
      %103 = arith.extf %44 : vector<1x16x2xbf16> to vector<1x16x2xf32>
      %c9_79 = arith.constant 9 : index
      %c8_80 = arith.constant 8 : index
      %c0_81 = arith.constant 0 : index
      %104 = vector.load %arg16[%c9_79, %c8_80, %c0_81] : memref<10x25x2xf32, #tpu.memory_space<vmem>>, vector<1x16x2xf32>
      tpu.vector_store %arg16[%c9_79, %c8_80, %c0_81], %103 {strides = array<i32>} : memref<10x25x2xf32, #tpu.memory_space<vmem>>, vector<1x16x2xf32>,
    } else {
    }
    %60 = vector.extract_strided_slice %43 {offsets = [7, 0, 0], sizes = [1, 16, 2], strides = [1, 1, 1]} : vector<8x16x2xbf16> to vector<1x16x2xbf16>
    %61 = arith.extf %60 : vector<1x16x2xbf16> to vector<1x16x2xf32>
    %c0_34 = arith.constant 0 : index
    %c0_35 = arith.constant 0 : index
    %c0_36 = arith.constant 0 : index
    %62 = vector.load %arg17[%c0_34, %c0_35, %c0_36] : memref<1x16x2xf32, #tpu.memory_space<vmem>>, vector<1x16x2xf32>
    tpu.vector_store %arg17[%c0_34, %c0_35, %c0_36], %61 {strides = array<i32>} : memref<1x16x2xf32, #tpu.memory_space<vmem>>, vector<1x16x2xf32>,
    %c0_37 = arith.constant 0 : index
    %c7 = arith.constant 7 : index
    %c0_38 = arith.constant 0 : index
    %63 = vector.load %arg16[%c0_37, %c7, %c0_38] : memref<10x25x2xf32, #tpu.memory_space<vmem>>, vector<8x16x2xf32>
    %64 = arith.truncf %63 : vector<8x16x2xf32> to vector<8x16x2xbf16>
    %c0_39 = arith.constant 0 : index
    %c8_40 = arith.constant 8 : index
    %c0_41 = arith.constant 0 : index
    %65 = vector.load %arg16[%c0_39, %c8_40, %c0_41] : memref<10x25x2xf32, #tpu.memory_space<vmem>>, vector<8x16x2xf32>
    %66 = arith.truncf %65 : vector<8x16x2xf32> to vector<8x16x2xbf16>
    %c0_42 = arith.constant 0 : index
    %c9 = arith.constant 9 : index
    %c0_43 = arith.constant 0 : index
    %67 = vector.load %arg16[%c0_42, %c9, %c0_43] : memref<10x25x2xf32, #tpu.memory_space<vmem>>, vector<8x16x2xf32>
    %68 = arith.truncf %67 : vector<8x16x2xf32> to vector<8x16x2xbf16>
    %c1_44 = arith.constant 1 : index
    %c7_45 = arith.constant 7 : index
    %c0_46 = arith.constant 0 : index
    %69 = vector.load %arg16[%c1_44, %c7_45, %c0_46] : memref<10x25x2xf32, #tpu.memory_space<vmem>>, vector<8x16x2xf32>
    %70 = arith.truncf %69 : vector<8x16x2xf32> to vector<8x16x2xbf16>
    %c1_47 = arith.constant 1 : index
    %c8_48 = arith.constant 8 : index
    %c0_49 = arith.constant 0 : index
    %71 = vector.load %arg16[%c1_47, %c8_48, %c0_49] : memref<10x25x2xf32, #tpu.memory_space<vmem>>, vector<8x16x2xf32>
    %72 = arith.truncf %71 : vector<8x16x2xf32> to vector<8x16x2xbf16>
    %c1_50 = arith.constant 1 : index
    %c9_51 = arith.constant 9 : index
    %c0_52 = arith.constant 0 : index
    %73 = vector.load %arg16[%c1_50, %c9_51, %c0_52] : memref<10x25x2xf32, #tpu.memory_space<vmem>>, vector<8x16x2xf32>
    %74 = arith.truncf %73 : vector<8x16x2xf32> to vector<8x16x2xbf16>
    %c2 = arith.constant 2 : index
    %c7_53 = arith.constant 7 : index
    %c0_54 = arith.constant 0 : index
    %75 = vector.load %arg16[%c2, %c7_53, %c0_54] : memref<10x25x2xf32, #tpu.memory_space<vmem>>, vector<8x16x2xf32>
    %76 = arith.truncf %75 : vector<8x16x2xf32> to vector<8x16x2xbf16>
    %c2_55 = arith.constant 2 : index
    %c8_56 = arith.constant 8 : index
    %c0_57 = arith.constant 0 : index
    %77 = vector.load %arg16[%c2_55, %c8_56, %c0_57] : memref<10x25x2xf32, #tpu.memory_space<vmem>>, vector<8x16x2xf32>
    %78 = arith.truncf %77 : vector<8x16x2xf32> to vector<8x16x2xbf16>
    %c2_58 = arith.constant 2 : index
    %c9_59 = arith.constant 9 : index
    %c0_60 = arith.constant 0 : index
    %79 = vector.load %arg16[%c2_58, %c9_59, %c0_60] : memref<10x25x2xf32, #tpu.memory_space<vmem>>, vector<8x16x2xf32>
    %80 = arith.truncf %79 : vector<8x16x2xf32> to vector<8x16x2xbf16>
    %81 = tpu.concatenate %64, %66, %68, %70, %72, %74, %76, %78, %80 in 2 : vector<8x16x2xbf16>, vector<8x16x2xbf16>, vector<8x16x2xbf16>, vector<8x16x2xbf16>, vector<8x16x2xbf16>, vector<8x16x2xbf16>, vector<8x16x2xbf16>, vector<8x16x2xbf16>, vector<8x16x2xbf16> -> vector<8x16x18xbf16>
    %82 = vector.shape_cast %81 : vector<8x16x18xbf16> to vector<128x18xbf16>
    %c0_61 = arith.constant 0 : index
    %c0_62 = arith.constant 0 : index
    %83 = vector.load %arg10[%c0_61, %c0_62] : memref<18x4xbf16, #tpu.memory_space<vmem>>, vector<18x4xbf16>
    %cst_63 = arith.constant dense<0.000000e+00> : vector<128x4xf32>
    %84 = tpu.matmul %82, %83, %cst_63 {dimension_numbers = #tpu.dot_dimension_numbers<[1], [0], [0], [1], [0, 0, 1, 1], [], []>} : vector<128x18xbf16>, vector<18x4xbf16>, vector<128x4xf32> -> vector<128x4xf32>
    %c0_64 = arith.constant 0 : index
    %c0_65 = arith.constant 0 : index
    %85 = vector.load %arg11[%c0_64, %c0_65] : memref<1x4xf32, #tpu.memory_space<vmem>>, vector<1x4xf32>
    %86 = vector.broadcast %85 : vector<1x4xf32> to vector<128x4xf32>
    %87 = arith.mulf %84, %86 : vector<128x4xf32>
    %c0_66 = arith.constant 0 : index
    %c0_67 = arith.constant 0 : index
    %88 = vector.load %arg12[%c0_66, %c0_67] : memref<1x4xf32, #tpu.memory_space<vmem>>, vector<1x4xf32>
    %89 = vector.broadcast %88 : vector<1x4xf32> to vector<128x4xf32>
    %90 = arith.addf %87, %89 : vector<128x4xf32>
    %cst_68 = arith.constant 0.000000e+00 : f32
    %91 = vector.broadcast %cst_68 : f32 to vector<128x4xf32>
    %92 = arith.maximumf %90, %91 : vector<128x4xf32>
    %93 = arith.truncf %92 : vector<128x4xf32> to vector<128x4xbf16>
    %c0_69 = arith.constant 0 : index
    %c0_70 = arith.constant 0 : index
    %94 = vector.load %arg13[%c0_69, %c0_70] : memref<4x8xbf16, #tpu.memory_space<vmem>>, vector<4x8xbf16>
    %cst_71 = arith.constant dense<0.000000e+00> : vector<128x8xf32>
    %95 = tpu.matmul %93, %94, %cst_71 {dimension_numbers = #tpu.dot_dimension_numbers<[1], [0], [0], [1], [0, 0, 1, 1], [], []>} : vector<128x4xbf16>, vector<4x8xbf16>, vector<128x8xf32> -> vector<128x8xf32>
    %c0_72 = arith.constant 0 : index
    %c0_73 = arith.constant 0 : index
    %96 = vector.load %arg6[%c0_72, %c0_73] : memref<4x8xbf16, #tpu.memory_space<vmem>>, vector<4x8xbf16>
    %cst_74 = arith.constant dense<0.000000e+00> : vector<128x8xf32>
    %97 = tpu.matmul %27, %96, %cst_74 {dimension_numbers = #tpu.dot_dimension_numbers<[1], [0], [0], [1], [0, 0, 1, 1], [], []>} : vector<128x4xbf16>, vector<4x8xbf16>, vector<128x8xf32> -> vector<128x8xf32>
    %98 = arith.addf %97, %95 : vector<128x8xf32>
    %99 = vector.shape_cast %98 : vector<128x8xf32> to vector<8x16x8xf32>
    %c0_75 = arith.constant 0 : index
    %c0_76 = arith.constant 0 : index
    %c0_77 = arith.constant 0 : index
    %c0_78 = arith.constant 0 : index
    %100 = vector.load %arg14[%c0_75, %c0_76, %c0_77, %c0_78] : memref<1x8x16x8xf32, #tpu.memory_space<vmem>>, vector<1x8x16x8xf32>
    %101 = vector.shape_cast %100 : vector<1x8x16x8xf32> to vector<8x16x8xf32>
    %102 = vector.shape_cast %99 : vector<8x16x8xf32> to vector<1x8x16x8xf32>
    tpu.vector_store %arg14[%c0_75, %c0_76, %c0_77, %c0_78], %102 {strides = array<i32>} : memref<1x8x16x8xf32, #tpu.memory_space<vmem>>, vector<1x8x16x8xf32>,
    return
  }
  func.func @transform_0(%arg0: i32, %arg1: i32) -> (i32, i32, i32, i32) {
    %c0_i32 = arith.constant 0 : i32
    %c0_i32_0 = arith.constant 0 : i32
    %c0_i32_1 = arith.constant 0 : i32
    return %arg0, %arg1, %c0_i32, %c0_i32_0 : i32, i32, i32, i32
  }
  func.func @transform_1(%arg0: i32, %arg1: i32) -> (i32, i32, i32, i32) {
    %c1_i32 = arith.constant 1 : i32
    %0 = arith.addi %arg1, %c1_i32 : i32
    %c8_i32 = arith.constant 8 : i32
    %1 = arith.muli %0, %c8_i32 : i32
    %c15_i32 = arith.constant 15 : i32
    %2 = arith.minsi %1, %c15_i32 : i32
    %c0_i32 = arith.constant 0 : i32
    %c0_i32_0 = arith.constant 0 : i32
    %c0_i32_1 = arith.constant 0 : i32
    return %arg0, %2, %c0_i32, %c0_i32_0 : i32, i32, i32, i32
  }
  func.func @transform_2(%arg0: i32, %arg1: i32) -> (i32, i32) {
    %c0_i32 = arith.constant 0 : i32
    %c0_i32_0 = arith.constant 0 : i32
    %c0_i32_1 = arith.constant 0 : i32
    return %c0_i32, %c0_i32_0 : i32, i32
  }
  func.func @transform_3(%arg0: i32, %arg1: i32) -> (i32, i32) {
    %c0_i32 = arith.constant 0 : i32
    %c0_i32_0 = arith.constant 0 : i32
    %c0_i32_1 = arith.constant 0 : i32
    return %c0_i32, %c0_i32_0 : i32, i32
  }
  func.func @transform_4(%arg0: i32, %arg1: i32) -> (i32, i32) {
    %c0_i32 = arith.constant 0 : i32
    %c0_i32_0 = arith.constant 0 : i32
    %c0_i32_1 = arith.constant 0 : i32
    return %c0_i32, %c0_i32_0 : i32, i32
  }
  func.func @transform_5(%arg0: i32, %arg1: i32) -> (i32, i32) {
    %c0_i32 = arith.constant 0 : i32
    %c0_i32_0 = arith.constant 0 : i32
    %c0_i32_1 = arith.constant 0 : i32
    return %c0_i32, %c0_i32_0 : i32, i32
  }
  func.func @transform_6(%arg0: i32, %arg1: i32) -> (i32, i32) {
    %c0_i32 = arith.constant 0 : i32
    %c0_i32_0 = arith.constant 0 : i32
    %c0_i32_1 = arith.constant 0 : i32
    return %c0_i32, %c0_i32_0 : i32, i32
  }
  func.func @transform_7(%arg0: i32, %arg1: i32) -> (i32, i32) {
    %c0_i32 = arith.constant 0 : i32
    %c0_i32_0 = arith.constant 0 : i32
    %c0_i32_1 = arith.constant 0 : i32
    return %c0_i32, %c0_i32_0 : i32, i32
  }
  func.func @transform_8(%arg0: i32, %arg1: i32) -> (i32, i32) {
    %c0_i32 = arith.constant 0 : i32
    %c0_i32_0 = arith.constant 0 : i32
    %c0_i32_1 = arith.constant 0 : i32
    return %c0_i32, %c0_i32_0 : i32, i32
  }
  func.func @transform_9(%arg0: i32, %arg1: i32) -> (i32, i32) {
    %c0_i32 = arith.constant 0 : i32
    %c0_i32_0 = arith.constant 0 : i32
    %c0_i32_1 = arith.constant 0 : i32
    return %c0_i32, %c0_i32_0 : i32, i32
  }
  func.func @transform_10(%arg0: i32, %arg1: i32) -> (i32, i32) {
    %c0_i32 = arith.constant 0 : i32
    %c0_i32_0 = arith.constant 0 : i32
    %c0_i32_1 = arith.constant 0 : i32
    return %c0_i32, %c0_i32_0 : i32, i32
  }
  func.func @transform_11(%arg0: i32, %arg1: i32) -> (i32, i32) {
    %c0_i32 = arith.constant 0 : i32
    %c0_i32_0 = arith.constant 0 : i32
    %c0_i32_1 = arith.constant 0 : i32
    return %c0_i32, %c0_i32_0 : i32, i32
  }
  func.func @transform_12(%arg0: i32, %arg1: i32) -> (i32, i32, i32, i32) {
    %c0_i32 = arith.constant 0 : i32
    %c0_i32_0 = arith.constant 0 : i32
    %c0_i32_1 = arith.constant 0 : i32
    return %arg0, %arg1, %c0_i32, %c0_i32_0 : i32, i32, i32, i32
  }
  func.func @transform_13(%arg0: i32, %arg1: i32) -> (i32, i32, i32, i32) {
    %c0_i32 = arith.constant 0 : i32
    %c0_i32_0 = arith.constant 0 : i32
    %c0_i32_1 = arith.constant 0 : i32
    return %arg0, %arg1, %c0_i32, %c0_i32_0 : i32, i32, i32, i32
  }
}

</mosaic_0001>

<llo_original>
// kernel: tpu_custom_call.1
$region0: #{tpu_custom_call.1}
  #allocation0 [shape = 'u32[]', space=smem, size = 0x4, offset = 0x4, fixed_abs, tag = 'smem constant byte address 0x4 - core index']
  #allocation1 [shape = 'u32[144,128]{1,0:T(1,128)}', space=vmem, size = 0x12000, scoped, tag = 'internal scratch']
  #allocation2 [shape = 'bf16[10,25,2]{2,1,0:T(8,128)(2,1)}', space=vmem, size = 0x14000, scoped, tag = 'scratch operand']
  #allocation3 [shape = 'bf16[1,16,2]{2,1,0:T(16,128)(2,1)}', space=vmem, size = 0x1000, scoped, tag = 'scratch operand']
  %s0 = inlined_call_operand.vmem [shape: f32[2,16,16,4], index: 0, kind: input, shape index: {}]
  %s1 = inlined_call_operand.vmem [shape: f32[2,16,16,4], index: 1, kind: input, shape index: {}]
  %s2 = inlined_call_operand.vmem [shape: f32[1,4], index: 2, kind: input, shape index: {}]
  %s3 = inlined_call_operand.vmem [shape: f32[1,4], index: 3, kind: input, shape index: {}]
  %s4 = inlined_call_operand.vmem [shape: bf16[4,8], index: 4, kind: input, shape index: {}]
  %s5 = inlined_call_operand.vmem [shape: bf16[4,2], index: 5, kind: input, shape index: {}]
  %s6 = inlined_call_operand.vmem [shape: f32[1,2], index: 6, kind: input, shape index: {}]
  %s7 = inlined_call_operand.vmem [shape: f32[1,2], index: 7, kind: input, shape index: {}]
  %s8 = inlined_call_operand.vmem [shape: bf16[18,4], index: 8, kind: input, shape index: {}]
  %s9 = inlined_call_operand.vmem [shape: f32[1,4], index: 9, kind: input, shape index: {}]
  %s10 = inlined_call_operand.vmem [shape: f32[1,4], index: 10, kind: input, shape index: {}]
  %s11 = inlined_call_operand.vmem [shape: bf16[4,8], index: 11, kind: input, shape index: {}]
  %s12 = inlined_call_operand.vmem [shape: f32[2,16,16,8], index: 12, kind: output, shape index: {0}]
  %s13 = inlined_call_operand.vmem [shape: f32[2,16,16,4], index: 13, kind: output, shape index: {1}]
  %14 = xla_tuple %s12, %s13
  %s15 = sld [smem:[#allocation0]]
  $region109: #{tpu_custom_call.1} parent=0
    _
  %s17 = ssub.s32 1, %s15
  %s18 = scalar_select 0, %s17, %s15
  loop: start=0, step=1, limit=6
  $region2: #{tpu_custom_call.1} parent=0 // loop_pre_header
    _
  $region3: #{tpu_custom_call.1} parent=0 // loop_header
    %s20 = sphi 0, %s24
    %p21 = scmp.ge.s32.totalorder %s20, 6
    %s27 = sphi 0, %s39
    %s28 = sphi 0, %s35
    %s29 = sphi 0, %s27
    %s30 = sphi 0, %s28
    %s31 = sphi 0, %s29
    %s32 = sphi 0, %s30
    %s44 = sphi 0, %s46
    %s47 = sphi 0, %s44
    %s48 = sphi 0, %s47
    %s64 = sphi 0, %s48
    %s80 = sphi 0, %s82
    %s83 = sphi 0, %s80
    %s84 = sphi 0, %s83
    %s100 = sphi 0, %s84
    %s104 = sphi 0, %s104
    %s106 = sphi 0, %s104
    %s107 = sphi 0, %s106
    %s121 = sphi 0, %s107
    %s125 = sphi 0, %s125
    %s127 = sphi 0, %s125
    %s128 = sphi 0, %s127
    %s142 = sphi 0, %s128
    %s146 = sphi 0, %s146
    %s148 = sphi 0, %s146
    %s149 = sphi 0, %s148
    %s163 = sphi 0, %s149
    %s167 = sphi 0, %s167
    %s169 = sphi 0, %s167
    %s170 = sphi 0, %s169
    %s184 = sphi 0, %s170
    %s188 = sphi 0, %s188
    %s190 = sphi 0, %s188
    %s191 = sphi 0, %s190
    %s205 = sphi 0, %s191
    %s209 = sphi 0, %s209
    %s211 = sphi 0, %s209
    %s212 = sphi 0, %s211
    %s226 = sphi 0, %s212
    %s230 = sphi 0, %s230
    %s232 = sphi 0, %s230
    %s233 = sphi 0, %s232
    %s247 = sphi 0, %s233
    %s251 = sphi 0, %s251
    %s253 = sphi 0, %s251
    %s254 = sphi 0, %s253
    %s268 = sphi 0, %s254
    %s272 = sphi 0, %s272
    %s274 = sphi 0, %s272
    %s275 = sphi 0, %s274
    %s289 = sphi 0, %s275
    %s293 = sphi 0, %s293
    %s295 = sphi 0, %s293
    %s296 = sphi 0, %s295
    %s310 = sphi 0, %s296
    %s318 = sphi 0, %s320
    %s321 = sphi 0, %s318
    %s322 = sphi 0, %s321
    %s338 = sphi 0, %s322
    %s346 = sphi 0, %s348
    %s349 = sphi 0, %s346
    %s350 = sphi 0, %s349
    %s366 = sphi 0, %s350
  $region4: #{tpu_custom_call.1} parent=0 // loop_header_branch
    %23 = sbr.rel (%p21) target = $region8
  $region5: #{tpu_custom_call.1} parent=0 // loop_body
    %s25 = ssub.s32 %s20, 1
    %s26 = ssub.s32 %s20, 2
    %s33 = sadd.s32 1, %s28
    %p34 = scmp.ge.s32.totalorder %s33, 2
    %s35 = scalar_select %p34, 0, %s33
    %s36 = sadd.s32 1, %s27
    %s37 = scalar_select %p34, %s36, %s27
    %p38 = scmp.ge.s32.totalorder %s37, 2
    %s39 = scalar_select %p38, 0, %s37
    %s40 = ssub.s32 %s27, %s39
    %s41 = ssub.s32 %s28, %s35
    %s42 = sor.u32 %s40, %s41
    %p43 = scmp.eq.s32.totalorder %s42, 0
    %s45 = sadd.s32 %s44, 1
    %s46 = scalar_select %p43, %s44, %s45
    %p49 = pneg %p43
    %p50 = scmp.eq.s32.totalorder %s20, 3
    %p51 = por %p49, %p50
    %p52 = scmp.ne.s32.totalorder %s44, %s47
    %p53 = scmp.eq.s32.totalorder %s20, 0
    %p54 = por %p52, %p53
    %p55 = scmp.ne.s32.totalorder %s44, %s47
    %p56 = scmp.eq.s32.totalorder %s25, 3
    %p57 = por %p55, %p56
    %p58 = scmp.ne.s32.totalorder %s47, %s48
    %p59 = scmp.eq.s32.totalorder %s25, 0
    %p60 = por %p58, %p59
    %p61 = scmp.ne.s32.totalorder %s47, %s48
    %p62 = scmp.eq.s32.totalorder %s26, 3
    %p63 = por %p61, %p62
    %p65 = scmp.ne.s32.totalorder %s48, %s64
    %p66 = scmp.eq.s32.totalorder %s26, 0
    %p67 = por %p65, %p66
    %s68 = sadd.s32 %s28, 1
    %s69 = smul.u32 %s68, 8
    %p70 = scmp.lt.s32.totalorder %s69, 15
    %s71 = scalar_select %p70, %s69, 15
    %s72 = sadd.s32 %s35, 1
    %s73 = smul.u32 %s72, 8
    %p74 = scmp.lt.s32.totalorder %s73, 15
    %s75 = scalar_select %p74, %s73, 15
    %s76 = ssub.s32 %s27, %s39
    %s77 = ssub.s32 %s71, %s75
    %s78 = sor.u32 %s76, %s77
    %p79 = scmp.eq.s32.totalorder %s78, 0
    %s81 = sadd.s32 %s80, 1
    %s82 = scalar_select %p79, %s80, %s81
    %p85 = pneg %p79
    %p86 = scmp.eq.s32.totalorder %s20, 3
    %p87 = por %p85, %p86
    %p88 = scmp.ne.s32.totalorder %s80, %s83
    %p89 = scmp.eq.s32.totalorder %s20, 0
    %p90 = por %p88, %p89
    %p91 = scmp.ne.s32.totalorder %s80, %s83
    %p92 = scmp.eq.s32.totalorder %s25, 3
    %p93 = por %p91, %p92
    %p94 = scmp.ne.s32.totalorder %s83, %s84
    %p95 = scmp.eq.s32.totalorder %s25, 0
    %p96 = por %p94, %p95
    %p97 = scmp.ne.s32.totalorder %s83, %s84
    %p98 = scmp.eq.s32.totalorder %s26, 3
    %p99 = por %p97, %p98
    %p101 = scmp.ne.s32.totalorder %s84, %s100
    %p102 = scmp.eq.s32.totalorder %s26, 0
    %p103 = por %p101, %p102
    %s105 = sadd.s32 %s104, 1
    %p108 = scmp.eq.s32.totalorder %s20, 3
    %p109 = scmp.ne.s32.totalorder %s104, %s106
    %p110 = scmp.eq.s32.totalorder %s20, 0
    %p111 = por %p109, %p110
    %p112 = scmp.ne.s32.totalorder %s104, %s106
    %p113 = scmp.eq.s32.totalorder %s25, 3
    %p114 = por %p112, %p113
    %p115 = scmp.ne.s32.totalorder %s106, %s107
    %p116 = scmp.eq.s32.totalorder %s25, 0
    %p117 = por %p115, %p116
    %p118 = scmp.ne.s32.totalorder %s106, %s107
    %p119 = scmp.eq.s32.totalorder %s26, 3
    %p120 = por %p118, %p119
    %p122 = scmp.ne.s32.totalorder %s107, %s121
    %p123 = scmp.eq.s32.totalorder %s26, 0
    %p124 = por %p122, %p123
    %s126 = sadd.s32 %s125, 1
    %p129 = scmp.eq.s32.totalorder %s20, 3
    %p130 = scmp.ne.s32.totalorder %s125, %s127
    %p131 = scmp.eq.s32.totalorder %s20, 0
    %p132 = por %p130, %p131
    %p133 = scmp.ne.s32.totalorder %s125, %s127
    %p134 = scmp.eq.s32.totalorder %s25, 3
    %p135 = por %p133, %p134
    %p136 = scmp.ne.s32.totalorder %s127, %s128
    %p137 = scmp.eq.s32.totalorder %s25, 0
    %p138 = por %p136, %p137
    %p139 = scmp.ne.s32.totalorder %s127, %s128
    %p140 = scmp.eq.s32.totalorder %s26, 3
    %p141 = por %p139, %p140
    %p143 = scmp.ne.s32.totalorder %s128, %s142
    %p144 = scmp.eq.s32.totalorder %s26, 0
    %p145 = por %p143, %p144
    %s147 = sadd.s32 %s146, 1
    %p150 = scmp.eq.s32.totalorder %s20, 3
    %p151 = scmp.ne.s32.totalorder %s146, %s148
    %p152 = scmp.eq.s32.totalorder %s20, 0
    %p153 = por %p151, %p152
    %p154 = scmp.ne.s32.totalorder %s146, %s148
    %p155 = scmp.eq.s32.totalorder %s25, 3
    %p156 = por %p154, %p155
    %p157 = scmp.ne.s32.totalorder %s148, %s149
    %p158 = scmp.eq.s32.totalorder %s25, 0
    %p159 = por %p157, %p158
    %p160 = scmp.ne.s32.totalorder %s148, %s149
    %p161 = scmp.eq.s32.totalorder %s26, 3
    %p162 = por %p160, %p161
    %p164 = scmp.ne.s32.totalorder %s149, %s163
    %p165 = scmp.eq.s32.totalorder %s26, 0
    %p166 = por %p164, %p165
    %s168 = sadd.s32 %s167, 1
    %p171 = scmp.eq.s32.totalorder %s20, 3
    %p172 = scmp.ne.s32.totalorder %s167, %s169
    %p173 = scmp.eq.s32.totalorder %s20, 0
    %p174 = por %p172, %p173
    %p175 = scmp.ne.s32.totalorder %s167, %s169
    %p176 = scmp.eq.s32.totalorder %s25, 3
    %p177 = por %p175, %p176
    %p178 = scmp.ne.s32.totalorder %s169, %s170
    %p179 = scmp.eq.s32.totalorder %s25, 0
    %p180 = por %p178, %p179
    %p181 = scmp.ne.s32.totalorder %s169, %s170
    %p182 = scmp.eq.s32.totalorder %s26, 3
    %p183 = por %p181, %p182
    %p185 = scmp.ne.s32.totalorder %s170, %s184
    %p186 = scmp.eq.s32.totalorder %s26, 0
    %p187 = por %p185, %p186
    %s189 = sadd.s32 %s188, 1
    %p192 = scmp.eq.s32.totalorder %s20, 3
    %p193 = scmp.ne.s32.totalorder %s188, %s190
    %p194 = scmp.eq.s32.totalorder %s20, 0
    %p195 = por %p193, %p194
    %p196 = scmp.ne.s32.totalorder %s188, %s190
    %p197 = scmp.eq.s32.totalorder %s25, 3
    %p198 = por %p196, %p197
    %p199 = scmp.ne.s32.totalorder %s190, %s191
    %p200 = scmp.eq.s32.totalorder %s25, 0
    %p201 = por %p199, %p200
    %p202 = scmp.ne.s32.totalorder %s190, %s191
    %p203 = scmp.eq.s32.totalorder %s26, 3
    %p204 = por %p202, %p203
    %p206 = scmp.ne.s32.totalorder %s191, %s205
    %p207 = scmp.eq.s32.totalorder %s26, 0
    %p208 = por %p206, %p207
    %s210 = sadd.s32 %s209, 1
    %p213 = scmp.eq.s32.totalorder %s20, 3
    %p214 = scmp.ne.s32.totalorder %s209, %s211
    %p215 = scmp.eq.s32.totalorder %s20, 0
    %p216 = por %p214, %p215
    %p217 = scmp.ne.s32.totalorder %s209, %s211
    %p218 = scmp.eq.s32.totalorder %s25, 3
    %p219 = por %p217, %p218
    %p220 = scmp.ne.s32.totalorder %s211, %s212
    %p221 = scmp.eq.s32.totalorder %s25, 0
    %p222 = por %p220, %p221
    %p223 = scmp.ne.s32.totalorder %s211, %s212
    %p224 = scmp.eq.s32.totalorder %s26, 3
    %p225 = por %p223, %p224
    %p227 = scmp.ne.s32.totalorder %s212, %s226
    %p228 = scmp.eq.s32.totalorder %s26, 0
    %p229 = por %p227, %p228
    %s231 = sadd.s32 %s230, 1
    %p234 = scmp.eq.s32.totalorder %s20, 3
    %p235 = scmp.ne.s32.totalorder %s230, %s232
    %p236 = scmp.eq.s32.totalorder %s20, 0
    %p237 = por %p235, %p236
    %p238 = scmp.ne.s32.totalorder %s230, %s232
    %p239 = scmp.eq.s32.totalorder %s25, 3
    %p240 = por %p238, %p239
    %p241 = scmp.ne.s32.totalorder %s232, %s233
    %p242 = scmp.eq.s32.totalorder %s25, 0
    %p243 = por %p241, %p242
    %p244 = scmp.ne.s32.totalorder %s232, %s233
    %p245 = scmp.eq.s32.totalorder %s26, 3
    %p246 = por %p244, %p245
    %p248 = scmp.ne.s32.totalorder %s233, %s247
    %p249 = scmp.eq.s32.totalorder %s26, 0
    %p250 = por %p248, %p249
    %s252 = sadd.s32 %s251, 1
    %p255 = scmp.eq.s32.totalorder %s20, 3
    %p256 = scmp.ne.s32.totalorder %s251, %s253
    %p257 = scmp.eq.s32.totalorder %s20, 0
    %p258 = por %p256, %p257
    %p259 = scmp.ne.s32.totalorder %s251, %s253
    %p260 = scmp.eq.s32.totalorder %s25, 3
    %p261 = por %p259, %p260
    %p262 = scmp.ne.s32.totalorder %s253, %s254
    %p263 = scmp.eq.s32.totalorder %s25, 0
    %p264 = por %p262, %p263
    %p265 = scmp.ne.s32.totalorder %s253, %s254
    %p266 = scmp.eq.s32.totalorder %s26, 3
    %p267 = por %p265, %p266
    %p269 = scmp.ne.s32.totalorder %s254, %s268
    %p270 = scmp.eq.s32.totalorder %s26, 0
    %p271 = por %p269, %p270
    %s273 = sadd.s32 %s272, 1
    %p276 = scmp.eq.s32.totalorder %s20, 3
    %p277 = scmp.ne.s32.totalorder %s272, %s274
    %p278 = scmp.eq.s32.totalorder %s20, 0
    %p279 = por %p277, %p278
    %p280 = scmp.ne.s32.totalorder %s272, %s274
    %p281 = scmp.eq.s32.totalorder %s25, 3
    %p282 = por %p280, %p281
    %p283 = scmp.ne.s32.totalorder %s274, %s275
    %p284 = scmp.eq.s32.totalorder %s25, 0
    %p285 = por %p283, %p284
    %p286 = scmp.ne.s32.totalorder %s274, %s275
    %p287 = scmp.eq.s32.totalorder %s26, 3
    %p288 = por %p286, %p287
    %p290 = scmp.ne.s32.totalorder %s275, %s289
    %p291 = scmp.eq.s32.totalorder %s26, 0
    %p292 = por %p290, %p291
    %s294 = sadd.s32 %s293, 1
    %p297 = scmp.eq.s32.totalorder %s20, 3
    %p298 = scmp.ne.s32.totalorder %s293, %s295
    %p299 = scmp.eq.s32.totalorder %s20, 0
    %p300 = por %p298, %p299
    %p301 = scmp.ne.s32.totalorder %s293, %s295
    %p302 = scmp.eq.s32.totalorder %s25, 3
    %p303 = por %p301, %p302
    %p304 = scmp.ne.s32.totalorder %s295, %s296
    %p305 = scmp.eq.s32.totalorder %s25, 0
    %p306 = por %p304, %p305
    %p307 = scmp.ne.s32.totalorder %s295, %s296
    %p308 = scmp.eq.s32.totalorder %s26, 3
    %p309 = por %p307, %p308
    %p311 = scmp.ne.s32.totalorder %s296, %s310
    %p312 = scmp.eq.s32.totalorder %s26, 0
    %p313 = por %p311, %p312
    %s314 = ssub.s32 %s27, %s39
    %s315 = ssub.s32 %s28, %s35
    %s316 = sor.u32 %s314, %s315
    %p317 = scmp.eq.s32.totalorder %s316, 0
    %s319 = sadd.s32 %s318, 1
    %s320 = scalar_select %p317, %s318, %s319
    %p323 = pneg %p317
    %p324 = scmp.eq.s32.totalorder %s20, 3
    %p325 = por %p323, %p324
    %p326 = scmp.ne.s32.totalorder %s318, %s321
    %p327 = scmp.eq.s32.totalorder %s20, 0
    %p328 = por %p326, %p327
    %p329 = scmp.ne.s32.totalorder %s318, %s321
    %p330 = scmp.eq.s32.totalorder %s25, 3
    %p331 = por %p329, %p330
    %p332 = scmp.ne.s32.totalorder %s321, %s322
    %p333 = scmp.eq.s32.totalorder %s25, 0
    %p334 = por %p332, %p333
    %p335 = scmp.ne.s32.totalorder %s321, %s322
    %p336 = scmp.eq.s32.totalorder %s26, 3
    %p337 = por %p335, %p336
    %p339 = scmp.ne.s32.totalorder %s322, %s338
    %p340 = scmp.eq.s32.totalorder %s26, 0
    %p341 = por %p339, %p340
    %s342 = ssub.s32 %s27, %s39
    %s343 = ssub.s32 %s28, %s35
    %s344 = sor.u32 %s342, %s343
    %p345 = scmp.eq.s32.totalorder %s344, 0
    %s347 = sadd.s32 %s346, 1
    %s348 = scalar_select %p345, %s346, %s347
    %p351 = pneg %p345
    %p352 = scmp.eq.s32.totalorder %s20, 3
    %p353 = por %p351, %p352
    %p354 = scmp.ne.s32.totalorder %s346, %s349
    %p355 = scmp.eq.s32.totalorder %s20, 0
    %p356 = por %p354, %p355
    %p357 = scmp.ne.s32.totalorder %s346, %s349
    %p358 = scmp.eq.s32.totalorder %s25, 3
    %p359 = por %p357, %p358
    %p360 = scmp.ne.s32.totalorder %s349, %s350
    %p361 = scmp.eq.s32.totalorder %s25, 0
    %p362 = por %p360, %p361
    %p363 = scmp.ne.s32.totalorder %s349, %s350
    %p364 = scmp.eq.s32.totalorder %s26, 3
    %p365 = por %p363, %p364
    %p367 = scmp.ne.s32.totalorder %s350, %s366
    %p368 = scmp.eq.s32.totalorder %s26, 0
    %p369 = por %p367, %p368
    %p370 = scmp.le.s32.totalorder 1, %s20
    %p371 = scmp.lt.s32.totalorder %s20, 5
    %p372 = pnand %p370, %p371
    %p373 = pneg %p372
    // Predicated region
    $region9: #{tpu_custom_call.1} parent=5 // pred_check
      _
    $region10: #{tpu_custom_call.1} parent=5 // pred_check_branch
      %375 = sbr.rel (%p372) target = $region12
    $region11: #{tpu_custom_call.1} parent=5 // pred_region
      %s376 = ssub.s32 %s20, 1
      // Predicated region
      $region13: #{tpu_custom_call.1} parent=11 // pred_check
        %p377 = pneg %p117
      $region14: #{tpu_custom_call.1} parent=11 // pred_check_branch
        %379 = sbr.rel (%p377) target = $region16
      $region15: #{tpu_custom_call.1} parent=11 // pred_region
        _
      $region16: #{tpu_custom_call.1} parent=11 // pred_fallthru
        _
      // Predicated region
      $region17: #{tpu_custom_call.1} parent=11 // pred_check
        %p380 = pneg %p138
      $region18: #{tpu_custom_call.1} parent=11 // pred_check_branch
        %382 = sbr.rel (%p380) target = $region20
      $region19: #{tpu_custom_call.1} parent=11 // pred_region
        _
      $region20: #{tpu_custom_call.1} parent=11 // pred_fallthru
        _
      // Predicated region
      $region21: #{tpu_custom_call.1} parent=11 // pred_check
        %p383 = pneg %p159
      $region22: #{tpu_custom_call.1} parent=11 // pred_check_branch
        %385 = sbr.rel (%p383) target = $region24
      $region23: #{tpu_custom_call.1} parent=11 // pred_region
        _
      $region24: #{tpu_custom_call.1} parent=11 // pred_fallthru
        _
      // Predicated region
      $region25: #{tpu_custom_call.1} parent=11 // pred_check
        %p386 = pneg %p180
      $region26: #{tpu_custom_call.1} parent=11 // pred_check_branch
        %388 = sbr.rel (%p386) target = $region28
      $region27: #{tpu_custom_call.1} parent=11 // pred_region
        _
      $region28: #{tpu_custom_call.1} parent=11 // pred_fallthru
        _
      // Predicated region
      $region29: #{tpu_custom_call.1} parent=11 // pred_check
        %p389 = pneg %p201
      $region30: #{tpu_custom_call.1} parent=11 // pred_check_branch
        %391 = sbr.rel (%p389) target = $region32
      $region31: #{tpu_custom_call.1} parent=11 // pred_region
        _
      $region32: #{tpu_custom_call.1} parent=11 // pred_fallthru
        _
      // Predicated region
      $region33: #{tpu_custom_call.1} parent=11 // pred_check
        %p392 = pneg %p222
      $region34: #{tpu_custom_call.1} parent=11 // pred_check_branch
        %394 = sbr.rel (%p392) target = $region36
      $region35: #{tpu_custom_call.1} parent=11 // pred_region
        _
      $region36: #{tpu_custom_call.1} parent=11 // pred_fallthru
        _
      // Predicated region
      $region37: #{tpu_custom_call.1} parent=11 // pred_check
        %p395 = pneg %p243
      $region38: #{tpu_custom_call.1} parent=11 // pred_check_branch
        %397 = sbr.rel (%p395) target = $region40
      $region39: #{tpu_custom_call.1} parent=11 // pred_region
        _
      $region40: #{tpu_custom_call.1} parent=11 // pred_fallthru
        _
      // Predicated region
      $region41: #{tpu_custom_call.1} parent=11 // pred_check
        %p398 = pneg %p264
      $region42: #{tpu_custom_call.1} parent=11 // pred_check_branch
        %400 = sbr.rel (%p398) target = $region44
      $region43: #{tpu_custom_call.1} parent=11 // pred_region
        _
      $region44: #{tpu_custom_call.1} parent=11 // pred_fallthru
        _
      // Predicated region
      $region45: #{tpu_custom_call.1} parent=11 // pred_check
        %p401 = pneg %p285
      $region46: #{tpu_custom_call.1} parent=11 // pred_check_branch
        %403 = sbr.rel (%p401) target = $region48
      $region47: #{tpu_custom_call.1} parent=11 // pred_region
        _
      $region48: #{tpu_custom_call.1} parent=11 // pred_fallthru
        _
      // Predicated region
      $region49: #{tpu_custom_call.1} parent=11 // pred_check
        %p404 = pneg %p306
      $region50: #{tpu_custom_call.1} parent=11 // pred_check_branch
        %406 = sbr.rel (%p404) target = $region52
      $region51: #{tpu_custom_call.1} parent=11 // pred_region
        _
      $region52: #{tpu_custom_call.1} parent=11 // pred_fallthru
        _
    $region12: #{tpu_custom_call.1} parent=5 // pred_fallthru
      _
    %p407 = scmp.lt.s32.totalorder %s20, 4
    // Predicated region
    $region53: #{tpu_custom_call.1} parent=5 // pred_check
      %p408 = pneg %p407
    $region54: #{tpu_custom_call.1} parent=5 // pred_check_branch
      %410 = sbr.rel (%p408) target = $region56
    $region55: #{tpu_custom_call.1} parent=5 // pred_region
      // Predicated region
      $region57: #{tpu_custom_call.1} parent=55 // pred_check
        %p411 = pneg %p54
      $region58: #{tpu_custom_call.1} parent=55 // pred_check_branch
        %413 = sbr.rel (%p411) target = $region60
      $region59: #{tpu_custom_call.1} parent=55 // pred_region
        %s414 = smul.u32 8, %s28
        %p415 = scmp.lt.s32.totalorder %s27, 1
        %s416 = scalar_select %p415, %s27, 1
        %p417 = scmp.lt.s32.totalorder %s414, 15
        %s418 = scalar_select %p417, %s414, 15
        %s419 = smul.addr %s418, 2
        %s420 = smul.addr %s416, 32
        %s421 = sadd.s32 %s419, %s420
        %s422 = smul.addr %s421, 8
        %s423 = scalar_lea.vmem %s0, %s422
        %s424 = smul.u32 8, %s28
      $region60: #{tpu_custom_call.1} parent=55 // pred_fallthru
        _
      // Predicated region
      $region61: #{tpu_custom_call.1} parent=55 // pred_check
        %p425 = pneg %p90
      $region62: #{tpu_custom_call.1} parent=55 // pred_check_branch
        %427 = sbr.rel (%p425) target = $region64
      $region63: #{tpu_custom_call.1} parent=55 // pred_region
        %s428 = sadd.s32 %s28, 1
        %s429 = smul.u32 %s428, 8
        %p430 = scmp.lt.s32.totalorder %s429, 15
        %s431 = scalar_select %p430, %s429, 15
        %p432 = scmp.lt.s32.totalorder %s27, 1
        %s433 = scalar_select %p432, %s27, 1
        %p434 = scmp.lt.s32.totalorder %s431, 15
        %s435 = scalar_select %p434, %s431, 15
        %s436 = smul.addr %s435, 2
        %s437 = smul.addr %s433, 32
        %s438 = sadd.s32 %s436, %s437
        %s439 = smul.addr %s438, 8
        %s440 = scalar_lea.vmem %s1, %s439
        %s441 = sadd.s32 %s28, 1
        %s442 = smul.u32 %s441, 8
        %p443 = scmp.lt.s32.totalorder %s442, 15
        %s444 = scalar_select %p443, %s442, 15
      $region64: #{tpu_custom_call.1} parent=55 // pred_fallthru
        _
    $region56: #{tpu_custom_call.1} parent=5 // pred_fallthru
      _
    %p445 = scmp.le.s32.totalorder 1, %s20
    %p446 = scmp.lt.s32.totalorder %s20, 5
    %p447 = pnand %p445, %p446
    %p448 = pneg %p447
    // Predicated region
    $region65: #{tpu_custom_call.1} parent=5 // pred_check
      _
    $region66: #{tpu_custom_call.1} parent=5 // pred_check_branch
      %450 = sbr.rel (%p447) target = $region68
    $region67: #{tpu_custom_call.1} parent=5 // pred_region
      %s451 = ssub.s32 %s20, 1
      %s452 = smul.u32 8, %s30
      %p453 = scmp.lt.s32.totalorder %s29, 1
      %s454 = scalar_select %p453, %s29, 1
      %p455 = scmp.lt.s32.totalorder %s452, 15
      %s456 = scalar_select %p455, %s452, 15
      %s457 = smul.addr %s456, 2
      %s458 = smul.addr %s454, 32
      %s459 = sadd.s32 %s457, %s458
      %s460 = smul.addr %s459, 8
      %s461 = scalar_lea.vmem %s0, %s460
      %p462 = pneg %p60
      %p463 = pneg %p57
      %s464 = sadd.s32 %s30, 1
      %s465 = smul.u32 %s464, 8
      %p466 = scmp.lt.s32.totalorder %s465, 15
      %s467 = scalar_select %p466, %s465, 15
      %p468 = scmp.lt.s32.totalorder %s29, 1
      %s469 = scalar_select %p468, %s29, 1
      %p470 = scmp.lt.s32.totalorder %s467, 15
      %s471 = scalar_select %p470, %s467, 15
      %s472 = smul.addr %s471, 2
      %s473 = smul.addr %s469, 32
      %s474 = sadd.s32 %s472, %s473
      %s475 = smul.addr %s474, 8
      %s476 = scalar_lea.vmem %s1, %s475
      %p477 = pneg %p96
      %p478 = pneg %p93
      %p479 = pneg %p117
      %p480 = pneg %p114
      %p481 = pneg %p138
      %p482 = pneg %p135
      %p483 = pneg %p159
      %p484 = pneg %p156
      %p485 = pneg %p180
      %p486 = pneg %p177
      %p487 = pneg %p201
      %p488 = pneg %p198
      %p489 = pneg %p222
      %p490 = pneg %p219
      %p491 = pneg %p243
      %p492 = pneg %p240
      %p493 = pneg %p264
      %p494 = pneg %p261
      %p495 = pneg %p285
      %p496 = pneg %p282
      %p497 = pneg %p306
      %p498 = pneg %p303
      %p499 = pneg %p334
      %p500 = pneg %p331
      %s501 = smul.u32 8, %s30
      %p502 = scmp.lt.s32.totalorder %s29, 1
      %s503 = scalar_select %p502, %s29, 1
      %p504 = scmp.lt.s32.totalorder %s501, 15
      %s505 = scalar_select %p504, %s501, 15
      %s506 = smul.addr %s505, 2
      %s507 = smul.addr %s503, 32
      %s508 = sadd.s32 %s506, %s507
      %s509 = smul.addr %s508, 8
      %s510 = scalar_lea.vmem %s12, %s509
      %p511 = pneg %p362
      %p512 = pneg %p359
      %s513 = smul.u32 8, %s30
      %p514 = scmp.lt.s32.totalorder %s29, 1
      %s515 = scalar_select %p514, %s29, 1
      %p516 = scmp.lt.s32.totalorder %s513, 15
      %s517 = scalar_select %p516, %s513, 15
      %s518 = smul.addr %s517, 2
      %s519 = smul.addr %s515, 32
      %s520 = sadd.s32 %s518, %s519
      %s521 = smul.addr %s520, 8
      %s522 = scalar_lea.vmem %s13, %s521
      %s523 = smul.u32 8, %s30
      %p524 = scmp.lt.s32.totalorder %s29, 1
      %s525 = scalar_select %p524, %s29, 1
      %p526 = scmp.lt.s32.totalorder %s523, 15
      %s527 = scalar_select %p526, %s523, 15
      %s528 = smul.addr %s527, 2
      %s529 = smul.addr %s525, 32
      %s530 = sadd.s32 %s528, %s529
      %s531 = smul.addr %s530, 8
      %s532 = scalar_lea.vmem %s0, %s531
      %s533 = smul.u32 8, %s30
      %s534 = sadd.s32 %s30, 1
      %s535 = smul.u32 %s534, 8
      %p536 = scmp.lt.s32.totalorder %s535, 15
      %s537 = scalar_select %p536, %s535, 15
      %p538 = scmp.lt.s32.totalorder %s29, 1
      %s539 = scalar_select %p538, %s29, 1
      %p540 = scmp.lt.s32.totalorder %s537, 15
      %s541 = scalar_select %p540, %s537, 15
      %s542 = smul.addr %s541, 2
      %s543 = smul.addr %s539, 32
      %s544 = sadd.s32 %s542, %s543
      %s545 = smul.addr %s544, 8
      %s546 = scalar_lea.vmem %s1, %s545
      %s547 = sadd.s32 %s30, 1
      %s548 = smul.u32 %s547, 8
      %p549 = scmp.lt.s32.totalorder %s548, 15
      %s550 = scalar_select %p549, %s548, 15
      %s551 = smul.u32 8, %s30
      %p552 = scmp.lt.s32.totalorder %s29, 1
      %s553 = scalar_select %p552, %s29, 1
      %p554 = scmp.lt.s32.totalorder %s551, 15
      %s555 = scalar_select %p554, %s551, 15
      %s556 = smul.addr %s555, 2
      %s557 = smul.addr %s553, 32
      %s558 = sadd.s32 %s556, %s557
      %s559 = smul.addr %s558, 8
      %s560 = scalar_lea.vmem %s12, %s559
      %s561 = smul.u32 8, %s30
      %s562 = smul.u32 8, %s30
      %p563 = scmp.lt.s32.totalorder %s29, 1
      %s564 = scalar_select %p563, %s29, 1
      %p565 = scmp.lt.s32.totalorder %s562, 15
      %s566 = scalar_select %p565, %s562, 15
      %s567 = smul.addr %s566, 2
      %s568 = smul.addr %s564, 32
      %s569 = sadd.s32 %s567, %s568
      %s570 = smul.addr %s569, 8
      %s571 = scalar_lea.vmem %s13, %s570
      %s572 = smul.u32 8, %s30
      %p574 = scmp.eq.s32.totalorder %s30, 0
      // Predicated region
      $region69: #{tpu_custom_call.1} parent=67 // pred_check
        %p575 = pneg %p574
      $region70: #{tpu_custom_call.1} parent=67 // pred_check_branch
        %577 = sbr.rel (%p575) target = $region72
      $region71: #{tpu_custom_call.1} parent=67 // pred_region
        %vm578 = vcmask 11267
        %vm579 = vsmask.f32 7950
        %vm580 = vmand %vm578, %vm579
        %v581 = vld [vmem:[#allocation2] sm:$0x8]
        %v582 = vsel %vm580, 0, %v581
        %583 = vst [vmem:[#allocation2] sm:$0x8] %v582
        %v584 = vld [vmem:[#allocation2 + $0x10] sm:$0x8]
        %v585 = vsel %vm580, 0, %v584
        %586 = vst [vmem:[#allocation2 + $0x10] sm:$0x8] %v585
        %v587 = vld [vmem:[#allocation2 + $0x20] sm:$0x8]
        %v588 = vsel %vm580, 0, %v587
        %589 = vst [vmem:[#allocation2 + $0x20] sm:$0x8] %v588
        %v590 = vld [vmem:[#allocation2 + $0x30] sm:$0x8]
        %v591 = vsel %vm580, 0, %v590
        %592 = vst [vmem:[#allocation2 + $0x30] sm:$0x8] %v591
        %v593 = vld [vmem:[#allocation2 + $0x40] sm:$0x8]
        %v594 = vsel %vm580, 0, %v593
        %595 = vst [vmem:[#allocation2 + $0x40] sm:$0x8] %v594
        %v596 = vld [vmem:[#allocation2 + $0x50] sm:$0x8]
        %v597 = vsel %vm580, 0, %v596
        %598 = vst [vmem:[#allocation2 + $0x50] sm:$0x8] %v597
        %v599 = vld [vmem:[#allocation2 + $0x60] sm:$0x8]
        %v600 = vsel %vm580, 0, %v599
        %601 = vst [vmem:[#allocation2 + $0x60] sm:$0x8] %v600
        %v602 = vld [vmem:[#allocation2 + $0x70] sm:$0x8]
        %v603 = vsel %vm580, 0, %v602
        %604 = vst [vmem:[#allocation2 + $0x70] sm:$0x8] %v603
        %v605 = vld [vmem:[#allocation2 + $0x80] sm:$0x8]
        %v606 = vsel %vm580, 0, %v605
        %607 = vst [vmem:[#allocation2 + $0x80] sm:$0x8] %v606
        %v608 = vld [vmem:[#allocation2 + $0x90] sm:$0x8]
        %v609 = vsel %vm580, 0, %v608
        %610 = vst [vmem:[#allocation2 + $0x90] sm:$0x8] %v609
        %vm611 = vcmask 8192
        %vm612 = vsmask.f32 256
        %vm613 = vmand %vm611, %vm612
        %v614 = vld [vmem:[#allocation2 + $0xc] sm:$0x1]
        %v615 = vsel %vm613, 0, %v614
        %616 = vst [vmem:[#allocation2 + $0xc] sm:$0x1] %v615
        %v617 = vld [vmem:[#allocation2 + $0x1c] sm:$0x1]
        %v618 = vsel %vm613, 0, %v617
        %619 = vst [vmem:[#allocation2 + $0x1c] sm:$0x1] %v618
        %v620 = vld [vmem:[#allocation2 + $0x2c] sm:$0x1]
        %v621 = vsel %vm613, 0, %v620
        %622 = vst [vmem:[#allocation2 + $0x2c] sm:$0x1] %v621
        %v623 = vld [vmem:[#allocation2 + $0x3c] sm:$0x1]
        %v624 = vsel %vm613, 0, %v623
        %625 = vst [vmem:[#allocation2 + $0x3c] sm:$0x1] %v624
        %v626 = vld [vmem:[#allocation2 + $0x4c] sm:$0x1]
        %v627 = vsel %vm613, 0, %v626
        %628 = vst [vmem:[#allocation2 + $0x4c] sm:$0x1] %v627
        %v629 = vld [vmem:[#allocation2 + $0x5c] sm:$0x1]
        %v630 = vsel %vm613, 0, %v629
        %631 = vst [vmem:[#allocation2 + $0x5c] sm:$0x1] %v630
        %v632 = vld [vmem:[#allocation2 + $0x6c] sm:$0x1]
        %v633 = vsel %vm613, 0, %v632
        %634 = vst [vmem:[#allocation2 + $0x6c] sm:$0x1] %v633
        %v635 = vld [vmem:[#allocation2 + $0x7c] sm:$0x1]
        %v636 = vsel %vm613, 0, %v635
        %637 = vst [vmem:[#allocation2 + $0x7c] sm:$0x1] %v636
        %v638 = vld [vmem:[#allocation2 + $0x8c] sm:$0x1]
        %v639 = vsel %vm613, 0, %v638
        %640 = vst [vmem:[#allocation2 + $0x8c] sm:$0x1] %v639
        %v641 = vld [vmem:[#allocation2 + $0x9c] sm:$0x1]
        %v642 = vsel %vm613, 0, %v641
        %643 = vst [vmem:[#allocation2 + $0x9c] sm:$0x1] %v642
      $region72: #{tpu_custom_call.1} parent=67 // pred_fallthru
        _
      %v644 = vld [vmem:[%s2] sm:$0x1]
      %v645 = vld [vmem:[%s3] sm:$0x1]
      %v646 = vld [vmem:[%s532] sm:$0xff]
      %v647 = vld [vmem:[%s532 + $0x8] sm:$0xff]
      %v648 = vld [vmem:[%s532 + $0x10] sm:$0xff]
      %v649 = vld [vmem:[%s532 + $0x18] sm:$0xff]
      %v650 = vld [vmem:[%s532 + $0x20] sm:$0xff]
      %v651 = vld [vmem:[%s532 + $0x28] sm:$0xff]
      %v652 = vld [vmem:[%s532 + $0x30] sm:$0xff]
      %v653 = vld [vmem:[%s532 + $0x38] sm:$0xff]
      %v654 = vld [vmem:[%s532 + $0x40] sm:$0xff]
      %v655 = vld [vmem:[%s532 + $0x48] sm:$0xff]
      %v656 = vld [vmem:[%s532 + $0x50] sm:$0xff]
      %v657 = vld [vmem:[%s532 + $0x58] sm:$0xff]
      %v658 = vld [vmem:[%s532 + $0x60] sm:$0xff]
      %v659 = vld [vmem:[%s532 + $0x68] sm:$0xff]
      %v660 = vld [vmem:[%s532 + $0x70] sm:$0xff]
      %v661 = vld [vmem:[%s532 + $0x78] sm:$0xff]
      %v663 = vlaneseq
      %v664 = vshrl.u32 %v663, 7
      %v665 = vsub.s32 0, %v664
      %v666 = vrot.slane %v644, %v665
      %v668 = vmul.f32 %v646, %v666
      %v669 = vmul.f32 %v647, %v666
      %v670 = vmul.f32 %v648, %v666
      %v671 = vmul.f32 %v649, %v666
      %v672 = vmul.f32 %v650, %v666
      %v673 = vmul.f32 %v651, %v666
      %v674 = vmul.f32 %v652, %v666
      %v675 = vmul.f32 %v653, %v666
      %v676 = vmul.f32 %v654, %v666
      %v677 = vmul.f32 %v655, %v666
      %v678 = vmul.f32 %v656, %v666
      %v679 = vmul.f32 %v657, %v666
      %v680 = vmul.f32 %v658, %v666
      %v681 = vmul.f32 %v659, %v666
      %v682 = vmul.f32 %v660, %v666
      %v683 = vmul.f32 %v661, %v666
      %v685 = vlaneseq
      %v686 = vshrl.u32 %v685, 7
      %v687 = vsub.s32 0, %v686
      %v688 = vrot.slane %v645, %v687
      %v690 = vadd.f32 %v668, %v688
      %v691 = vadd.f32 %v669, %v688
      %v692 = vadd.f32 %v670, %v688
      %v693 = vadd.f32 %v671, %v688
      %v694 = vadd.f32 %v672, %v688
      %v695 = vadd.f32 %v673, %v688
      %v696 = vadd.f32 %v674, %v688
      %v697 = vadd.f32 %v675, %v688
      %v698 = vadd.f32 %v676, %v688
      %v699 = vadd.f32 %v677, %v688
      %v700 = vadd.f32 %v678, %v688
      %v701 = vadd.f32 %v679, %v688
      %v702 = vadd.f32 %v680, %v688
      %v703 = vadd.f32 %v681, %v688
      %v704 = vadd.f32 %v682, %v688
      %v705 = vadd.f32 %v683, %v688
      %v706 = vmax.f32 %v690, 0.0
      %v707 = vmax.f32 %v691, 0.0
      %v708 = vmax.f32 %v692, 0.0
      %v709 = vmax.f32 %v693, 0.0
      %v710 = vmax.f32 %v694, 0.0
      %v711 = vmax.f32 %v695, 0.0
      %v712 = vmax.f32 %v696, 0.0
      %v713 = vmax.f32 %v697, 0.0
      %v714 = vmax.f32 %v698, 0.0
      %v715 = vmax.f32 %v699, 0.0
      %v716 = vmax.f32 %v700, 0.0
      %v717 = vmax.f32 %v701, 0.0
      %v718 = vmax.f32 %v702, 0.0
      %v719 = vmax.f32 %v703, 0.0
      %v720 = vmax.f32 %v704, 0.0
      %v721 = vmax.f32 %v705, 0.0
      %vm722 = vcmask 31744
      %723 = vst.msk [vmem:[%s571] sm:$0xff] %vm722, %v706
      %724 = vst.msk [vmem:[%s571 + $0x8] sm:$0xff] %vm722, %v707
      %725 = vst.msk [vmem:[%s571 + $0x10] sm:$0xff] %vm722, %v708
      %726 = vst.msk [vmem:[%s571 + $0x18] sm:$0xff] %vm722, %v709
      %727 = vst.msk [vmem:[%s571 + $0x20] sm:$0xff] %vm722, %v710
      %728 = vst.msk [vmem:[%s571 + $0x28] sm:$0xff] %vm722, %v711
      %729 = vst.msk [vmem:[%s571 + $0x30] sm:$0xff] %vm722, %v712
      %730 = vst.msk [vmem:[%s571 + $0x38] sm:$0xff] %vm722, %v713
      %731 = vst.msk [vmem:[%s571 + $0x40] sm:$0xff] %vm722, %v714
      %732 = vst.msk [vmem:[%s571 + $0x48] sm:$0xff] %vm722, %v715
      %733 = vst.msk [vmem:[%s571 + $0x50] sm:$0xff] %vm722, %v716
      %734 = vst.msk [vmem:[%s571 + $0x58] sm:$0xff] %vm722, %v717
      %735 = vst.msk [vmem:[%s571 + $0x60] sm:$0xff] %vm722, %v718
      %736 = vst.msk [vmem:[%s571 + $0x68] sm:$0xff] %vm722, %v719
      %737 = vst.msk [vmem:[%s571 + $0x70] sm:$0xff] %vm722, %v720
      %738 = vst.msk [vmem:[%s571 + $0x78] sm:$0xff] %vm722, %v721
      %v739 = vld [vmem:[%s546] sm:$0xff]
      %v740 = vld [vmem:[%s546 + $0x8] sm:$0xff]
      %v741 = vmul.f32 %v739, %v666
      %v742 = vmul.f32 %v740, %v666
      %v743 = vadd.f32 %v741, %v688
      %v744 = vadd.f32 %v742, %v688
      %v745 = vmax.f32 %v743, 0.0
      %v746 = vmax.f32 %v744, 0.0
      %v747 = vpack.c.bf16 %v707, %v706
      %v748 = vpack.c.bf16 %v709, %v708
      %v749 = vpack.c.bf16 %v711, %v710
      %v750 = vpack.c.bf16 %v713, %v712
      %v751 = vpack.c.bf16 %v715, %v714
      %v752 = vpack.c.bf16 %v717, %v716
      %v753 = vpack.c.bf16 %v719, %v718
      %v754 = vpack.c.bf16 %v721, %v720
      %v755 = vpack.c.bf16 %v746, %v745
      %v756 = vld [vmem:[%s5] sm:$0x3]
      %v758 = vsel %vm722, %v747, 0
      %v761 = vsel %vm722, %v748, 0
      %v764 = vsel %vm722, %v749, 0
      %v767 = vsel %vm722, %v750, 0
      %v770 = vsel %vm722, %v751, 0
      %v773 = vsel %vm722, %v752, 0
      %v776 = vsel %vm722, %v753, 0
      %v779 = vsel %vm722, %v754, 0
      %v782 = vsel %vm722, %v755, 0
      %vm784 = vcmask 1041408
      %v786 = vsel %vm784, %v756, 0
      %788 = vmatprep.subr.bf16.mxu0 0
      %789 = vmatpush1.bf16.msra.mxu0 %v786
      %790 = vmatprep.subr.bf16.mxu0 0
      %791 = vmatpush1.bf16.msra.mxu0 0
      %792 = vmatprep.subr.bf16.mxu0 0
      %793 = vmatpush1.bf16.msra.mxu0 0
      %794 = vmatprep.subr.bf16.mxu0 0
      %795 = vmatpush1.bf16.msra.mxu0 0
      %796 = vmatprep.subr.bf16.mxu0 0
      %797 = vmatpush1.bf16.msra.mxu0 0
      %798 = vmatprep.subr.bf16.mxu0 0
      %799 = vmatpush1.bf16.msra.mxu0 0
      %800 = vmatprep.subr.bf16.mxu0 0
      %801 = vmatpush1.bf16.msra.mxu0 0
      %802 = vmatprep.subr.bf16.mxu0 0
      %803 = vmatpush1.bf16.msra.mxu0 0
      %804 = vmatprep.subr.bf16.mxu0 0
      %805 = vmatpush1.bf16.msra.mxu0 0
      %806 = vmatprep.subr.bf16.mxu0 0
      %807 = vmatpush1.bf16.msra.mxu0 0
      %808 = vmatprep.subr.bf16.mxu0 0
      %809 = vmatpush1.bf16.msra.mxu0 0
      %810 = vmatprep.subr.bf16.mxu0 0
      %811 = vmatpush1.bf16.msra.mxu0 0
      %812 = vmatprep.subr.bf16.mxu0 0
      %813 = vmatpush1.bf16.msra.mxu0 0
      %814 = vmatprep.subr.bf16.mxu0 0
      %815 = vmatpush1.bf16.msra.mxu0 0
      %816 = vmatprep.subr.bf16.mxu0 0
      %817 = vmatpush1.bf16.msra.mxu0 0
      %818 = vmatprep.subr.bf16.mxu0 0
      %819 = vmatpush1.bf16.msra.mxu0 0
      %820 = vmatprep.mubr.bf16.mxu0 0
      %821 = vmatmul.mubr.bf16.gmra.mrb[0].mxu0 %v758
      %v822 = vpop.f32.mrb[0].mxu0
      %v823 = vadd.f32 0.0, %v822
      %v824 = vpop.f32.mrb[0].mxu0
      %v825 = vpop.f32.mrb[0].mxu0
      %v826 = vadd.f32 0.0, %v825
      %v827 = vpop.f32.mrb[0].mxu0
      %828 = vmatprep.mubr.bf16.mxu0 0
      %829 = vmatmul.mubr.bf16.gmra.mrb[0].mxu0 %v761
      %v830 = vpop.f32.mrb[0].mxu0
      %v831 = vadd.f32 0.0, %v830
      %v832 = vpop.f32.mrb[0].mxu0
      %v833 = vpop.f32.mrb[0].mxu0
      %v834 = vadd.f32 0.0, %v833
      %v835 = vpop.f32.mrb[0].mxu0
      %836 = vmatprep.mubr.bf16.mxu0 0
      %837 = vmatmul.mubr.bf16.gmra.mrb[0].mxu0 %v764
      %v838 = vpop.f32.mrb[0].mxu0
      %v839 = vadd.f32 0.0, %v838
      %v840 = vpop.f32.mrb[0].mxu0
      %v841 = vpop.f32.mrb[0].mxu0
      %v842 = vadd.f32 0.0, %v841
      %v843 = vpop.f32.mrb[0].mxu0
      %844 = vmatprep.mubr.bf16.mxu0 0
      %845 = vmatmul.mubr.bf16.gmra.mrb[0].mxu0 %v767
      %v846 = vpop.f32.mrb[0].mxu0
      %v847 = vadd.f32 0.0, %v846
      %v848 = vpop.f32.mrb[0].mxu0
      %v849 = vpop.f32.mrb[0].mxu0
      %v850 = vadd.f32 0.0, %v849
      %v851 = vpop.f32.mrb[0].mxu0
      %852 = vmatprep.mubr.bf16.mxu0 0
      %853 = vmatmul.mubr.bf16.gmra.mrb[0].mxu0 %v770
      %v854 = vpop.f32.mrb[0].mxu0
      %v855 = vadd.f32 0.0, %v854
      %v856 = vpop.f32.mrb[0].mxu0
      %v857 = vpop.f32.mrb[0].mxu0
      %v858 = vadd.f32 0.0, %v857
      %v859 = vpop.f32.mrb[0].mxu0
      %860 = vmatprep.mubr.bf16.mxu0 0
      %861 = vmatmul.mubr.bf16.gmra.mrb[0].mxu0 %v773
      %v862 = vpop.f32.mrb[0].mxu0
      %v863 = vadd.f32 0.0, %v862
      %v864 = vpop.f32.mrb[0].mxu0
      %v865 = vpop.f32.mrb[0].mxu0
      %v866 = vadd.f32 0.0, %v865
      %v867 = vpop.f32.mrb[0].mxu0
      %868 = vmatprep.mubr.bf16.mxu0 0
      %869 = vmatmul.mubr.bf16.gmra.mrb[0].mxu0 %v776
      %v870 = vpop.f32.mrb[0].mxu0
      %v871 = vadd.f32 0.0, %v870
      %v872 = vpop.f32.mrb[0].mxu0
      %v873 = vpop.f32.mrb[0].mxu0
      %v874 = vadd.f32 0.0, %v873
      %v875 = vpop.f32.mrb[0].mxu0
      %876 = vmatprep.mubr.bf16.mxu0 0
      %877 = vmatmul.mubr.bf16.gmra.mrb[0].mxu0 %v779
      %v878 = vpop.f32.mrb[0].mxu0
      %v879 = vadd.f32 0.0, %v878
      %v880 = vpop.f32.mrb[0].mxu0
      %v881 = vpop.f32.mrb[0].mxu0
      %v882 = vadd.f32 0.0, %v881
      %v883 = vpop.f32.mrb[0].mxu0
      %884 = vmatprep.mubr.bf16.mxu0 0
      %885 = vmatmul.mubr.bf16.gmra.mrb[0].mxu0 %v782
      %v886 = vpop.f32.mrb[0].mxu0
      %v887 = vadd.f32 0.0, %v886
      %v888 = vpop.f32.mrb[0].mxu0
      %v889 = vpop.f32.mrb[0].mxu0
      %v890 = vadd.f32 0.0, %v889
      %v891 = vpop.f32.mrb[0].mxu0
      %892 = vdwg.mxu0
      %v893 = vld [vmem:[%s6] sm:$0x1]
      %v895 = vlaneseq
      %v896 = vshrl.u32 %v895, 7
      %v897 = vsub.s32 0, %v896
      %v898 = vrot.slane %v893, %v897
      %v900 = vmul.f32 %v823, %v898
      %v901 = vmul.f32 %v826, %v898
      %v902 = vmul.f32 %v831, %v898
      %v903 = vmul.f32 %v834, %v898
      %v904 = vmul.f32 %v839, %v898
      %v905 = vmul.f32 %v842, %v898
      %v906 = vmul.f32 %v847, %v898
      %v907 = vmul.f32 %v850, %v898
      %v908 = vmul.f32 %v855, %v898
      %v909 = vmul.f32 %v858, %v898
      %v910 = vmul.f32 %v863, %v898
      %v911 = vmul.f32 %v866, %v898
      %v912 = vmul.f32 %v871, %v898
      %v913 = vmul.f32 %v874, %v898
      %v914 = vmul.f32 %v879, %v898
      %v915 = vmul.f32 %v882, %v898
      %v916 = vmul.f32 %v887, %v898
      %v917 = vmul.f32 %v890, %v898
      %v918 = vld [vmem:[%s7] sm:$0x1]
      %v920 = vlaneseq
      %v921 = vshrl.u32 %v920, 7
      %v922 = vsub.s32 0, %v921
      %v923 = vrot.slane %v918, %v922
      %v925 = vadd.f32 %v900, %v923
      %v926 = vadd.f32 %v901, %v923
      %v927 = vadd.f32 %v902, %v923
      %v928 = vadd.f32 %v903, %v923
      %v929 = vadd.f32 %v904, %v923
      %v930 = vadd.f32 %v905, %v923
      %v931 = vadd.f32 %v906, %v923
      %v932 = vadd.f32 %v907, %v923
      %v933 = vadd.f32 %v908, %v923
      %v934 = vadd.f32 %v909, %v923
      %v935 = vadd.f32 %v910, %v923
      %v936 = vadd.f32 %v911, %v923
      %v937 = vadd.f32 %v912, %v923
      %v938 = vadd.f32 %v913, %v923
      %v939 = vadd.f32 %v914, %v923
      %v940 = vadd.f32 %v915, %v923
      %v941 = vadd.f32 %v916, %v923
      %v942 = vadd.f32 %v917, %v923
      %v943 = vmax.f32 %v925, 0.0
      %v944 = vmax.f32 %v926, 0.0
      %v945 = vmax.f32 %v927, 0.0
      %v946 = vmax.f32 %v928, 0.0
      %v947 = vmax.f32 %v929, 0.0
      %v948 = vmax.f32 %v930, 0.0
      %v949 = vmax.f32 %v931, 0.0
      %v950 = vmax.f32 %v932, 0.0
      %v951 = vmax.f32 %v933, 0.0
      %v952 = vmax.f32 %v934, 0.0
      %v953 = vmax.f32 %v935, 0.0
      %v954 = vmax.f32 %v936, 0.0
      %v955 = vmax.f32 %v937, 0.0
      %v956 = vmax.f32 %v938, 0.0
      %v957 = vmax.f32 %v939, 0.0
      %v958 = vmax.f32 %v940, 0.0
      %v959 = vmax.f32 %v941, 0.0
      %v960 = vmax.f32 %v942, 0.0
      %v961 = vpack.c.bf16 %v944, %v943
      %v962 = vpack.c.bf16 %v946, %v945
      %v963 = vpack.c.bf16 %v948, %v947
      %v964 = vpack.c.bf16 %v950, %v949
      %v965 = vpack.c.bf16 %v952, %v951
      %v966 = vpack.c.bf16 %v954, %v953
      %v967 = vpack.c.bf16 %v956, %v955
      %v968 = vpack.c.bf16 %v958, %v957
      %v969 = vpack.c.bf16 %v960, %v959
      // Predicated region
      $region73: #{tpu_custom_call.1} parent=67 // pred_check
        %p970 = pneg %p574
      $region74: #{tpu_custom_call.1} parent=67 // pred_check_branch
        %972 = sbr.rel (%p970) target = $region76
      $region75: #{tpu_custom_call.1} parent=67 // pred_region
        %vm973 = vcmask 11264
        %974 = vst.msk [vmem:[#allocation2 + $0x4] sm:$0xf] %vm973, 0
        %975 = vst.msk [vmem:[#allocation2 + $0x8] sm:$0xf] %vm973, 0
      $region76: #{tpu_custom_call.1} parent=67 // pred_fallthru
        _
      %p976 = scmp.gt.s32.totalorder %s30, 0
      // Predicated region
      $region77: #{tpu_custom_call.1} parent=67 // pred_check
        %p977 = pneg %p976
      $region78: #{tpu_custom_call.1} parent=67 // pred_check_branch
        %979 = sbr.rel (%p977) target = $region80
      $region79: #{tpu_custom_call.1} parent=67 // pred_region
        %v980 = vld [vmem:[#allocation3] sm:$0xff]
        %v982 = vunpack.c.l.b16 %v980
        %v983 = vunpack.c.h.b16 %v980
        %v984 = vpack.c.b16 %v982, %v982
        %v985 = vpack.c.b16 %v983, %v983
        %vm988 = vcmask 11264
        %989 = vst.msk [vmem:[#allocation2 + $0x4] sm:$0xf] %vm988, %v984
        %990 = vst.msk [vmem:[#allocation2 + $0x8] sm:$0xf] %vm988, %v985
      $region80: #{tpu_custom_call.1} parent=67 // pred_fallthru
        _
      %v999 = vunpack.c.l.b16 %v961
      %v1000 = vunpack.c.h.b16 %v961
      %v1001 = vunpack.c.l.b16 %v962
      %v1002 = vunpack.c.h.b16 %v962
      %v1003 = vunpack.c.l.b16 %v963
      %v1004 = vunpack.c.h.b16 %v963
      %v1005 = vunpack.c.l.b16 %v964
      %v1006 = vunpack.c.h.b16 %v964
      %v1007 = vunpack.c.l.b16 %v965
      %v1008 = vunpack.c.h.b16 %v965
      %v1009 = vunpack.c.l.b16 %v966
      %v1010 = vunpack.c.h.b16 %v966
      %v1011 = vunpack.c.l.b16 %v967
      %v1012 = vunpack.c.h.b16 %v967
      %v1013 = vunpack.c.l.b16 %v968
      %v1014 = vunpack.c.h.b16 %v968
      %v1015 = vpack.c.b16 %v999, %v999
      %v1016 = vpack.c.b16 %v1000, %v1000
      %v1017 = vpack.c.b16 %v1001, %v1001
      %v1018 = vpack.c.b16 %v1002, %v1002
      %v1019 = vpack.c.b16 %v1003, %v1003
      %v1020 = vpack.c.b16 %v1004, %v1004
      %v1021 = vpack.c.b16 %v1005, %v1005
      %v1022 = vpack.c.b16 %v1006, %v1006
      %v1023 = vpack.c.b16 %v1007, %v1007
      %v1024 = vpack.c.b16 %v1008, %v1008
      %v1025 = vpack.c.b16 %v1009, %v1009
      %v1026 = vpack.c.b16 %v1010, %v1010
      %v1027 = vpack.c.b16 %v1011, %v1011
      %v1028 = vpack.c.b16 %v1012, %v1012
      %v1029 = vpack.c.b16 %v1013, %v1013
      %v1030 = vpack.c.b16 %v1014, %v1014
      %s1047 = scalar_lea.vmem [#allocation2], 16
      %vm1048 = vcmask 11264
      %1049 = vst.msk [vmem:[%s1047 + $0x4] sm:$0xf] %vm1048, %v1015
      %1050 = vst.msk [vmem:[%s1047 + $0x8] sm:$0xf] %vm1048, %v1016
      %1051 = vst.msk [vmem:[%s1047 + $0x14] sm:$0xf] %vm1048, %v1017
      %1052 = vst.msk [vmem:[%s1047 + $0x18] sm:$0xf] %vm1048, %v1018
      %1053 = vst.msk [vmem:[%s1047 + $0x24] sm:$0xf] %vm1048, %v1019
      %1054 = vst.msk [vmem:[%s1047 + $0x28] sm:$0xf] %vm1048, %v1020
      %1055 = vst.msk [vmem:[%s1047 + $0x34] sm:$0xf] %vm1048, %v1021
      %1056 = vst.msk [vmem:[%s1047 + $0x38] sm:$0xf] %vm1048, %v1022
      %1057 = vst.msk [vmem:[%s1047 + $0x44] sm:$0xf] %vm1048, %v1023
      %1058 = vst.msk [vmem:[%s1047 + $0x48] sm:$0xf] %vm1048, %v1024
      %1059 = vst.msk [vmem:[%s1047 + $0x54] sm:$0xf] %vm1048, %v1025
      %1060 = vst.msk [vmem:[%s1047 + $0x58] sm:$0xf] %vm1048, %v1026
      %1061 = vst.msk [vmem:[%s1047 + $0x64] sm:$0xf] %vm1048, %v1027
      %1062 = vst.msk [vmem:[%s1047 + $0x68] sm:$0xf] %vm1048, %v1028
      %1063 = vst.msk [vmem:[%s1047 + $0x74] sm:$0xf] %vm1048, %v1029
      %1064 = vst.msk [vmem:[%s1047 + $0x78] sm:$0xf] %vm1048, %v1030
      %p1065 = scmp.eq.s32.totalorder %s30, 1
      // Predicated region
      $region81: #{tpu_custom_call.1} parent=67 // pred_check
        %p1066 = pneg %p1065
      $region82: #{tpu_custom_call.1} parent=67 // pred_check_branch
        %1068 = sbr.rel (%p1066) target = $region84
      $region83: #{tpu_custom_call.1} parent=67 // pred_region
        %s1069 = scalar_lea.vmem [#allocation2], 144
        %1070 = vst.msk [vmem:[%s1069 + $0x4] sm:$0xf] %vm1048, 0
        %1071 = vst.msk [vmem:[%s1069 + $0x8] sm:$0xf] %vm1048, 0
      $region84: #{tpu_custom_call.1} parent=67 // pred_fallthru
        _
      %p1072 = scmp.lt.s32.totalorder %s30, 1
      // Predicated region
      $region85: #{tpu_custom_call.1} parent=67 // pred_check
        %p1073 = pneg %p1072
      $region86: #{tpu_custom_call.1} parent=67 // pred_check_branch
        %1075 = sbr.rel (%p1073) target = $region88
      $region87: #{tpu_custom_call.1} parent=67 // pred_region
        %v1077 = vunpack.c.l.b16 %v969
        %v1078 = vunpack.c.h.b16 %v969
        %v1079 = vpack.c.b16 %v1077, %v1077
        %v1080 = vpack.c.b16 %v1078, %v1078
        %s1083 = scalar_lea.vmem [#allocation2], 144
        %1084 = vst.msk [vmem:[%s1083 + $0x4] sm:$0xf] %vm1048, %v1079
        %1085 = vst.msk [vmem:[%s1083 + $0x8] sm:$0xf] %vm1048, %v1080
      $region88: #{tpu_custom_call.1} parent=67 // pred_fallthru
        _
      %vm1086 = vcmask 15360
      %1087 = vst.msk [vmem:[#allocation3] sm:$0xff] %vm1086, %v968
      %v1088 = vld [vmem:[#allocation2] sm:$0x8]
      %v1089 = vld [vmem:[#allocation2 + $0x4] sm:$0xf]
      %v1090 = vld [vmem:[#allocation2 + $0x8] sm:$0xf]
      %v1091 = vld [vmem:[#allocation2 + $0x10] sm:$0x8]
      %v1092 = vld [vmem:[#allocation2 + $0x14] sm:$0xf]
      %v1093 = vld [vmem:[#allocation2 + $0x18] sm:$0xf]
      %v1094 = vld [vmem:[#allocation2 + $0x20] sm:$0x8]
      %v1095 = vld [vmem:[#allocation2 + $0x24] sm:$0xf]
      %v1096 = vld [vmem:[#allocation2 + $0x28] sm:$0xf]
      %v1097 = vld [vmem:[#allocation2 + $0x30] sm:$0x8]
      %v1098 = vld [vmem:[#allocation2 + $0x34] sm:$0xf]
      %v1099 = vld [vmem:[#allocation2 + $0x38] sm:$0xf]
      %v1100 = vld [vmem:[#allocation2 + $0x40] sm:$0x8]
      %v1101 = vld [vmem:[#allocation2 + $0x44] sm:$0xf]
      %v1102 = vld [vmem:[#allocation2 + $0x48] sm:$0xf]
      %v1103 = vld [vmem:[#allocation2 + $0x50] sm:$0x8]
      %v1104 = vld [vmem:[#allocation2 + $0x54] sm:$0xf]
      %v1105 = vld [vmem:[#allocation2 + $0x58] sm:$0xf]
      %v1106 = vld [vmem:[#allocation2 + $0x60] sm:$0x8]
      %v1107 = vld [vmem:[#allocation2 + $0x64] sm:$0xf]
      %v1108 = vld [vmem:[#allocation2 + $0x68] sm:$0xf]
      %v1109 = vld [vmem:[#allocation2 + $0x70] sm:$0x8]
      %v1110 = vld [vmem:[#allocation2 + $0x74] sm:$0xf]
      %v1111 = vld [vmem:[#allocation2 + $0x78] sm:$0xf]
      %v1112 = vld [vmem:[#allocation2 + $0xc] sm:$0x1]
      %v1113 = vld [vmem:[#allocation2 + $0x1c] sm:$0x1]
      %v1114 = vld [vmem:[#allocation2 + $0x2c] sm:$0x1]
      %v1115 = vld [vmem:[#allocation2 + $0x3c] sm:$0x1]
      %v1116 = vld [vmem:[#allocation2 + $0x4c] sm:$0x1]
      %v1117 = vld [vmem:[#allocation2 + $0x5c] sm:$0x1]
      %v1118 = vld [vmem:[#allocation2 + $0x6c] sm:$0x1]
      %v1119 = vld [vmem:[#allocation2 + $0x7c] sm:$0x1]
      %v1120 = vld [vmem:[%s1047] sm:$0x8]
      %v1121 = vld [vmem:[%s1047 + $0x4] sm:$0xf]
      %v1122 = vld [vmem:[%s1047 + $0x8] sm:$0xf]
      %v1123 = vld [vmem:[%s1047 + $0x10] sm:$0x8]
      %v1124 = vld [vmem:[%s1047 + $0x14] sm:$0xf]
      %v1125 = vld [vmem:[%s1047 + $0x18] sm:$0xf]
      %v1126 = vld [vmem:[%s1047 + $0x20] sm:$0x8]
      %v1127 = vld [vmem:[%s1047 + $0x24] sm:$0xf]
      %v1128 = vld [vmem:[%s1047 + $0x28] sm:$0xf]
      %v1129 = vld [vmem:[%s1047 + $0x30] sm:$0x8]
      %v1130 = vld [vmem:[%s1047 + $0x34] sm:$0xf]
      %v1131 = vld [vmem:[%s1047 + $0x38] sm:$0xf]
      %v1132 = vld [vmem:[%s1047 + $0x40] sm:$0x8]
      %v1133 = vld [vmem:[%s1047 + $0x44] sm:$0xf]
      %v1134 = vld [vmem:[%s1047 + $0x48] sm:$0xf]
      %v1135 = vld [vmem:[%s1047 + $0x50] sm:$0x8]
      %v1136 = vld [vmem:[%s1047 + $0x54] sm:$0xf]
      %v1137 = vld [vmem:[%s1047 + $0x58] sm:$0xf]
      %v1138 = vld [vmem:[%s1047 + $0x60] sm:$0x8]
      %v1139 = vld [vmem:[%s1047 + $0x64] sm:$0xf]
      %v1140 = vld [vmem:[%s1047 + $0x68] sm:$0xf]
      %v1141 = vld [vmem:[%s1047 + $0x70] sm:$0x8]
      %v1142 = vld [vmem:[%s1047 + $0x74] sm:$0xf]
      %v1143 = vld [vmem:[%s1047 + $0x78] sm:$0xf]
      %v1144 = vld [vmem:[%s1047 + $0xc] sm:$0x1]
      %v1145 = vld [vmem:[%s1047 + $0x1c] sm:$0x1]
      %v1146 = vld [vmem:[%s1047 + $0x2c] sm:$0x1]
      %v1147 = vld [vmem:[%s1047 + $0x3c] sm:$0x1]
      %v1148 = vld [vmem:[%s1047 + $0x4c] sm:$0x1]
      %v1149 = vld [vmem:[%s1047 + $0x5c] sm:$0x1]
      %v1150 = vld [vmem:[%s1047 + $0x6c] sm:$0x1]
      %v1151 = vld [vmem:[%s1047 + $0x7c] sm:$0x1]
      %s1152 = scalar_lea.vmem [#allocation2], 32
      %v1153 = vld [vmem:[%s1152] sm:$0x8]
      %v1154 = vld [vmem:[%s1152 + $0x4] sm:$0xf]
      %v1155 = vld [vmem:[%s1152 + $0x8] sm:$0xf]
      %v1156 = vld [vmem:[%s1152 + $0x10] sm:$0x8]
      %v1157 = vld [vmem:[%s1152 + $0x14] sm:$0xf]
      %v1158 = vld [vmem:[%s1152 + $0x18] sm:$0xf]
      %v1159 = vld [vmem:[%s1152 + $0x20] sm:$0x8]
      %v1160 = vld [vmem:[%s1152 + $0x24] sm:$0xf]
      %v1161 = vld [vmem:[%s1152 + $0x28] sm:$0xf]
      %v1162 = vld [vmem:[%s1152 + $0x30] sm:$0x8]
      %v1163 = vld [vmem:[%s1152 + $0x34] sm:$0xf]
      %v1164 = vld [vmem:[%s1152 + $0x38] sm:$0xf]
      %v1165 = vld [vmem:[%s1152 + $0x40] sm:$0x8]
      %v1166 = vld [vmem:[%s1152 + $0x44] sm:$0xf]
      %v1167 = vld [vmem:[%s1152 + $0x48] sm:$0xf]
      %v1168 = vld [vmem:[%s1152 + $0x50] sm:$0x8]
      %v1169 = vld [vmem:[%s1152 + $0x54] sm:$0xf]
      %v1170 = vld [vmem:[%s1152 + $0x58] sm:$0xf]
      %v1171 = vld [vmem:[%s1152 + $0x60] sm:$0x8]
      %v1172 = vld [vmem:[%s1152 + $0x64] sm:$0xf]
      %v1173 = vld [vmem:[%s1152 + $0x68] sm:$0xf]
      %v1174 = vld [vmem:[%s1152 + $0x70] sm:$0x8]
      %v1175 = vld [vmem:[%s1152 + $0x74] sm:$0xf]
      %v1176 = vld [vmem:[%s1152 + $0x78] sm:$0xf]
      %v1177 = vld [vmem:[%s1152 + $0xc] sm:$0x1]
      %v1178 = vld [vmem:[%s1152 + $0x1c] sm:$0x1]
      %v1179 = vld [vmem:[%s1152 + $0x2c] sm:$0x1]
      %v1180 = vld [vmem:[%s1152 + $0x3c] sm:$0x1]
      %v1181 = vld [vmem:[%s1152 + $0x4c] sm:$0x1]
      %v1182 = vld [vmem:[%s1152 + $0x5c] sm:$0x1]
      %v1183 = vld [vmem:[%s1152 + $0x6c] sm:$0x1]
      %v1184 = vld [vmem:[%s1152 + $0x7c] sm:$0x1]
      %v1209 = vunpack.c.l.b16 %v1088
      %v1210 = vunpack.c.l.b16 %v1089
      %v1211 = vunpack.c.l.b16 %v1090
      %v1212 = vunpack.c.l.b16 %v1091
      %v1213 = vunpack.c.l.b16 %v1092
      %v1214 = vunpack.c.l.b16 %v1093
      %v1215 = vunpack.c.l.b16 %v1094
      %v1216 = vunpack.c.l.b16 %v1095
      %v1217 = vunpack.c.l.b16 %v1096
      %v1218 = vunpack.c.l.b16 %v1097
      %v1219 = vunpack.c.l.b16 %v1098
      %v1220 = vunpack.c.l.b16 %v1099
      %v1221 = vunpack.c.l.b16 %v1100
      %v1222 = vunpack.c.l.b16 %v1101
      %v1223 = vunpack.c.l.b16 %v1102
      %v1224 = vunpack.c.l.b16 %v1103
      %v1225 = vunpack.c.l.b16 %v1104
      %v1226 = vunpack.c.l.b16 %v1105
      %v1227 = vunpack.c.l.b16 %v1106
      %v1228 = vunpack.c.l.b16 %v1107
      %v1229 = vunpack.c.l.b16 %v1108
      %v1230 = vunpack.c.l.b16 %v1109
      %v1231 = vunpack.c.l.b16 %v1110
      %v1232 = vunpack.c.l.b16 %v1111
      %v1233 = vpack.c.b16 %v1210, %v1209
      %v1234 = vpack.c.b16 %v1211, %v1211
      %v1235 = vpack.c.b16 %v1213, %v1212
      %v1236 = vpack.c.b16 %v1214, %v1214
      %v1237 = vpack.c.b16 %v1216, %v1215
      %v1238 = vpack.c.b16 %v1217, %v1217
      %v1239 = vpack.c.b16 %v1219, %v1218
      %v1240 = vpack.c.b16 %v1220, %v1220
      %v1241 = vpack.c.b16 %v1222, %v1221
      %v1242 = vpack.c.b16 %v1223, %v1223
      %v1243 = vpack.c.b16 %v1225, %v1224
      %v1244 = vpack.c.b16 %v1226, %v1226
      %v1245 = vpack.c.b16 %v1228, %v1227
      %v1246 = vpack.c.b16 %v1229, %v1229
      %v1247 = vpack.c.b16 %v1231, %v1230
      %v1248 = vpack.c.b16 %v1232, %v1232
      %v1249 = vpack.c.b16 %v1211, %v1210
      %v1250 = vpack.c.b16 %v1214, %v1213
      %v1251 = vpack.c.b16 %v1217, %v1216
      %v1252 = vpack.c.b16 %v1220, %v1219
      %v1253 = vpack.c.b16 %v1223, %v1222
      %v1254 = vpack.c.b16 %v1226, %v1225
      %v1255 = vpack.c.b16 %v1229, %v1228
      %v1256 = vpack.c.b16 %v1232, %v1231
      %v1258 = vshrl.u32 %v1249, 16
      %v1260 = vrot.slane %v1258, 4
      %v1261 = vshll.u32 %v1249, 16
      %v1263 = vrot.slane %v1261, 5
      %v1264 = vor.u32 %v1260, %v1263
      %v1266 = vshrl.u32 %v1250, 16
      %v1268 = vrot.slane %v1266, 4
      %v1269 = vshll.u32 %v1250, 16
      %v1271 = vrot.slane %v1269, 5
      %v1272 = vor.u32 %v1268, %v1271
      %v1274 = vshrl.u32 %v1251, 16
      %v1276 = vrot.slane %v1274, 4
      %v1277 = vshll.u32 %v1251, 16
      %v1279 = vrot.slane %v1277, 5
      %v1280 = vor.u32 %v1276, %v1279
      %v1282 = vshrl.u32 %v1252, 16
      %v1284 = vrot.slane %v1282, 4
      %v1285 = vshll.u32 %v1252, 16
      %v1287 = vrot.slane %v1285, 5
      %v1288 = vor.u32 %v1284, %v1287
      %v1290 = vshrl.u32 %v1253, 16
      %v1292 = vrot.slane %v1290, 4
      %v1293 = vshll.u32 %v1253, 16
      %v1295 = vrot.slane %v1293, 5
      %v1296 = vor.u32 %v1292, %v1295
      %v1298 = vshrl.u32 %v1254, 16
      %v1300 = vrot.slane %v1298, 4
      %v1301 = vshll.u32 %v1254, 16
      %v1303 = vrot.slane %v1301, 5
      %v1304 = vor.u32 %v1300, %v1303
      %v1306 = vshrl.u32 %v1255, 16
      %v1308 = vrot.slane %v1306, 4
      %v1309 = vshll.u32 %v1255, 16
      %v1311 = vrot.slane %v1309, 5
      %v1312 = vor.u32 %v1308, %v1311
      %v1314 = vshrl.u32 %v1256, 16
      %v1316 = vrot.slane %v1314, 4
      %v1317 = vshll.u32 %v1256, 16
      %v1319 = vrot.slane %v1317, 5
      %v1320 = vor.u32 %v1316, %v1319
      %1321 = vrot.lane.b32.xlu0 %v1264, 2
      %v1322 = vpop.permute.xlu0 %1321
      %1323 = vrot.lane.b32.xlu0 %v1272, 2
      %v1324 = vpop.permute.xlu0 %1323
      %1325 = vrot.lane.b32.xlu0 %v1280, 2
      %v1326 = vpop.permute.xlu0 %1325
      %1327 = vrot.lane.b32.xlu0 %v1288, 2
      %v1328 = vpop.permute.xlu0 %1327
      %1329 = vrot.lane.b32.xlu0 %v1296, 2
      %v1330 = vpop.permute.xlu0 %1329
      %1331 = vrot.lane.b32.xlu0 %v1304, 2
      %v1332 = vpop.permute.xlu0 %1331
      %1333 = vrot.lane.b32.xlu0 %v1312, 2
      %v1334 = vpop.permute.xlu0 %1333
      %1335 = vrot.lane.b32.xlu0 %v1320, 2
      %v1336 = vpop.permute.xlu0 %1335
      %v1345 = vunpack.c.l.b16 %v1112
      %v1346 = vunpack.c.l.b16 %v1113
      %v1347 = vunpack.c.l.b16 %v1114
      %v1348 = vunpack.c.l.b16 %v1115
      %v1349 = vunpack.c.l.b16 %v1116
      %v1350 = vunpack.c.l.b16 %v1117
      %v1351 = vunpack.c.l.b16 %v1118
      %v1352 = vunpack.c.l.b16 %v1119
      %v1353 = vpack.c.b16 %v1345, %v1345
      %v1354 = vpack.c.b16 %v1346, %v1346
      %v1355 = vpack.c.b16 %v1347, %v1347
      %v1356 = vpack.c.b16 %v1348, %v1348
      %v1357 = vpack.c.b16 %v1349, %v1349
      %v1358 = vpack.c.b16 %v1350, %v1350
      %v1359 = vpack.c.b16 %v1351, %v1351
      %v1360 = vpack.c.b16 %v1352, %v1352
      %vm1361 = vcmask 1042432
      %v1362 = vrot.slane %v1249, 5
      %v1363 = vrot.slane %v1353, 5
      %v1364 = vsel %vm1361, %v1362, %v1363
      %v1365 = vrot.slane %v1250, 5
      %v1366 = vrot.slane %v1354, 5
      %v1367 = vsel %vm1361, %v1365, %v1366
      %v1368 = vrot.slane %v1251, 5
      %v1369 = vrot.slane %v1355, 5
      %v1370 = vsel %vm1361, %v1368, %v1369
      %v1371 = vrot.slane %v1252, 5
      %v1372 = vrot.slane %v1356, 5
      %v1373 = vsel %vm1361, %v1371, %v1372
      %v1374 = vrot.slane %v1253, 5
      %v1375 = vrot.slane %v1357, 5
      %v1376 = vsel %vm1361, %v1374, %v1375
      %v1377 = vrot.slane %v1254, 5
      %v1378 = vrot.slane %v1358, 5
      %v1379 = vsel %vm1361, %v1377, %v1378
      %v1380 = vrot.slane %v1255, 5
      %v1381 = vrot.slane %v1359, 5
      %v1382 = vsel %vm1361, %v1380, %v1381
      %v1383 = vrot.slane %v1256, 5
      %v1384 = vrot.slane %v1360, 5
      %v1385 = vsel %vm1361, %v1383, %v1384
      %1386 = vrot.lane.b32.xlu0 %v1362, 4
      %v1387 = vpop.permute.xlu0 %1386
      %1388 = vrot.lane.b32.xlu0 %v1364, 4
      %v1389 = vpop.permute.xlu0 %1388
      %1390 = vrot.lane.b32.xlu0 %v1365, 4
      %v1391 = vpop.permute.xlu0 %1390
      %1392 = vrot.lane.b32.xlu0 %v1367, 4
      %v1393 = vpop.permute.xlu0 %1392
      %1394 = vrot.lane.b32.xlu0 %v1368, 4
      %v1395 = vpop.permute.xlu0 %1394
      %1396 = vrot.lane.b32.xlu0 %v1370, 4
      %v1397 = vpop.permute.xlu0 %1396
      %1398 = vrot.lane.b32.xlu0 %v1371, 4
      %v1399 = vpop.permute.xlu0 %1398
      %1400 = vrot.lane.b32.xlu0 %v1373, 4
      %v1401 = vpop.permute.xlu0 %1400
      %1402 = vrot.lane.b32.xlu0 %v1374, 4
      %v1403 = vpop.permute.xlu0 %1402
      %1404 = vrot.lane.b32.xlu0 %v1376, 4
      %v1405 = vpop.permute.xlu0 %1404
      %1406 = vrot.lane.b32.xlu0 %v1377, 4
      %v1407 = vpop.permute.xlu0 %1406
      %1408 = vrot.lane.b32.xlu0 %v1379, 4
      %v1409 = vpop.permute.xlu0 %1408
      %1410 = vrot.lane.b32.xlu0 %v1380, 4
      %v1411 = vpop.permute.xlu0 %1410
      %1412 = vrot.lane.b32.xlu0 %v1382, 4
      %v1413 = vpop.permute.xlu0 %1412
      %1414 = vrot.lane.b32.xlu0 %v1383, 4
      %v1415 = vpop.permute.xlu0 %1414
      %1416 = vrot.lane.b32.xlu0 %v1385, 4
      %v1417 = vpop.permute.xlu0 %1416
      %v1442 = vunpack.c.l.b16 %v1120
      %v1443 = vunpack.c.l.b16 %v1121
      %v1444 = vunpack.c.l.b16 %v1122
      %v1445 = vunpack.c.l.b16 %v1123
      %v1446 = vunpack.c.l.b16 %v1124
      %v1447 = vunpack.c.l.b16 %v1125
      %v1448 = vunpack.c.l.b16 %v1126
      %v1449 = vunpack.c.l.b16 %v1127
      %v1450 = vunpack.c.l.b16 %v1128
      %v1451 = vunpack.c.l.b16 %v1129
      %v1452 = vunpack.c.l.b16 %v1130
      %v1453 = vunpack.c.l.b16 %v1131
      %v1454 = vunpack.c.l.b16 %v1132
      %v1455 = vunpack.c.l.b16 %v1133
      %v1456 = vunpack.c.l.b16 %v1134
      %v1457 = vunpack.c.l.b16 %v1135
      %v1458 = vunpack.c.l.b16 %v1136
      %v1459 = vunpack.c.l.b16 %v1137
      %v1460 = vunpack.c.l.b16 %v1138
      %v1461 = vunpack.c.l.b16 %v1139
      %v1462 = vunpack.c.l.b16 %v1140
      %v1463 = vunpack.c.l.b16 %v1141
      %v1464 = vunpack.c.l.b16 %v1142
      %v1465 = vunpack.c.l.b16 %v1143
      %v1466 = vpack.c.b16 %v1443, %v1442
      %v1467 = vpack.c.b16 %v1444, %v1444
      %v1468 = vpack.c.b16 %v1446, %v1445
      %v1469 = vpack.c.b16 %v1447, %v1447
      %v1470 = vpack.c.b16 %v1449, %v1448
      %v1471 = vpack.c.b16 %v1450, %v1450
      %v1472 = vpack.c.b16 %v1452, %v1451
      %v1473 = vpack.c.b16 %v1453, %v1453
      %v1474 = vpack.c.b16 %v1455, %v1454
      %v1475 = vpack.c.b16 %v1456, %v1456
      %v1476 = vpack.c.b16 %v1458, %v1457
      %v1477 = vpack.c.b16 %v1459, %v1459
      %v1478 = vpack.c.b16 %v1461, %v1460
      %v1479 = vpack.c.b16 %v1462, %v1462
      %v1480 = vpack.c.b16 %v1464, %v1463
      %v1481 = vpack.c.b16 %v1465, %v1465
      %1482 = vrot.lane.b32.xlu0 %v1466, 6
      %v1483 = vpop.permute.xlu0 %1482
      %1484 = vrot.lane.b32.xlu0 %v1467, 6
      %v1485 = vpop.permute.xlu0 %1484
      %1486 = vrot.lane.b32.xlu0 %v1468, 6
      %v1487 = vpop.permute.xlu0 %1486
      %1488 = vrot.lane.b32.xlu0 %v1469, 6
      %v1489 = vpop.permute.xlu0 %1488
      %1490 = vrot.lane.b32.xlu0 %v1470, 6
      %v1491 = vpop.permute.xlu0 %1490
      %1492 = vrot.lane.b32.xlu0 %v1471, 6
      %v1493 = vpop.permute.xlu0 %1492
      %1494 = vrot.lane.b32.xlu0 %v1472, 6
      %v1495 = vpop.permute.xlu0 %1494
      %1496 = vrot.lane.b32.xlu0 %v1473, 6
      %v1497 = vpop.permute.xlu0 %1496
      %1498 = vrot.lane.b32.xlu0 %v1474, 6
      %v1499 = vpop.permute.xlu0 %1498
      %1500 = vrot.lane.b32.xlu0 %v1475, 6
      %v1501 = vpop.permute.xlu0 %1500
      %1502 = vrot.lane.b32.xlu0 %v1476, 6
      %v1503 = vpop.permute.xlu0 %1502
      %1504 = vrot.lane.b32.xlu0 %v1477, 6
      %v1505 = vpop.permute.xlu0 %1504
      %1506 = vrot.lane.b32.xlu0 %v1478, 6
      %v1507 = vpop.permute.xlu0 %1506
      %1508 = vrot.lane.b32.xlu0 %v1479, 6
      %v1509 = vpop.permute.xlu0 %1508
      %1510 = vrot.lane.b32.xlu0 %v1480, 6
      %v1511 = vpop.permute.xlu0 %1510
      %1512 = vrot.lane.b32.xlu0 %v1481, 6
      %v1513 = vpop.permute.xlu0 %1512
      %v1514 = vpack.c.b16 %v1444, %v1443
      %v1515 = vpack.c.b16 %v1447, %v1446
      %v1516 = vpack.c.b16 %v1450, %v1449
      %v1517 = vpack.c.b16 %v1453, %v1452
      %v1518 = vpack.c.b16 %v1456, %v1455
      %v1519 = vpack.c.b16 %v1459, %v1458
      %v1520 = vpack.c.b16 %v1462, %v1461
      %v1521 = vpack.c.b16 %v1465, %v1464
      %v1523 = vshrl.u32 %v1514, 16
      %v1525 = vrot.slane %v1523, 4
      %v1526 = vshll.u32 %v1514, 16
      %v1528 = vrot.slane %v1526, 5
      %v1529 = vor.u32 %v1525, %v1528
      %v1531 = vshrl.u32 %v1515, 16
      %v1533 = vrot.slane %v1531, 4
      %v1534 = vshll.u32 %v1515, 16
      %v1536 = vrot.slane %v1534, 5
      %v1537 = vor.u32 %v1533, %v1536
      %v1539 = vshrl.u32 %v1516, 16
      %v1541 = vrot.slane %v1539, 4
      %v1542 = vshll.u32 %v1516, 16
      %v1544 = vrot.slane %v1542, 5
      %v1545 = vor.u32 %v1541, %v1544
      %v1547 = vshrl.u32 %v1517, 16
      %v1549 = vrot.slane %v1547, 4
      %v1550 = vshll.u32 %v1517, 16
      %v1552 = vrot.slane %v1550, 5
      %v1553 = vor.u32 %v1549, %v1552
      %v1555 = vshrl.u32 %v1518, 16
      %v1557 = vrot.slane %v1555, 4
      %v1558 = vshll.u32 %v1518, 16
      %v1560 = vrot.slane %v1558, 5
      %v1561 = vor.u32 %v1557, %v1560
      %v1563 = vshrl.u32 %v1519, 16
      %v1565 = vrot.slane %v1563, 4
      %v1566 = vshll.u32 %v1519, 16
      %v1568 = vrot.slane %v1566, 5
      %v1569 = vor.u32 %v1565, %v1568
      %v1571 = vshrl.u32 %v1520, 16
      %v1573 = vrot.slane %v1571, 4
      %v1574 = vshll.u32 %v1520, 16
      %v1576 = vrot.slane %v1574, 5
      %v1577 = vor.u32 %v1573, %v1576
      %v1579 = vshrl.u32 %v1521, 16
      %v1581 = vrot.slane %v1579, 4
      %v1582 = vshll.u32 %v1521, 16
      %v1584 = vrot.slane %v1582, 5
      %v1585 = vor.u32 %v1581, %v1584
      %1586 = vrot.lane.b32.xlu0 %v1529, 8
      %v1587 = vpop.permute.xlu0 %1586
      %1588 = vrot.lane.b32.xlu0 %v1537, 8
      %v1589 = vpop.permute.xlu0 %1588
      %1590 = vrot.lane.b32.xlu0 %v1545, 8
      %v1591 = vpop.permute.xlu0 %1590
      %1592 = vrot.lane.b32.xlu0 %v1553, 8
      %v1593 = vpop.permute.xlu0 %1592
      %1594 = vrot.lane.b32.xlu0 %v1561, 8
      %v1595 = vpop.permute.xlu0 %1594
      %1596 = vrot.lane.b32.xlu0 %v1569, 8
      %v1597 = vpop.permute.xlu0 %1596
      %1598 = vrot.lane.b32.xlu0 %v1577, 8
      %v1599 = vpop.permute.xlu0 %1598
      %1600 = vrot.lane.b32.xlu0 %v1585, 8
      %v1601 = vpop.permute.xlu0 %1600
      %v1610 = vunpack.c.l.b16 %v1144
      %v1611 = vunpack.c.l.b16 %v1145
      %v1612 = vunpack.c.l.b16 %v1146
      %v1613 = vunpack.c.l.b16 %v1147
      %v1614 = vunpack.c.l.b16 %v1148
      %v1615 = vunpack.c.l.b16 %v1149
      %v1616 = vunpack.c.l.b16 %v1150
      %v1617 = vunpack.c.l.b16 %v1151
      %v1618 = vpack.c.b16 %v1610, %v1610
      %v1619 = vpack.c.b16 %v1611, %v1611
      %v1620 = vpack.c.b16 %v1612, %v1612
      %v1621 = vpack.c.b16 %v1613, %v1613
      %v1622 = vpack.c.b16 %v1614, %v1614
      %v1623 = vpack.c.b16 %v1615, %v1615
      %v1624 = vpack.c.b16 %v1616, %v1616
      %v1625 = vpack.c.b16 %v1617, %v1617
      %v1626 = vrot.slane %v1514, 5
      %v1627 = vrot.slane %v1618, 5
      %v1628 = vsel %vm1361, %v1626, %v1627
      %v1629 = vrot.slane %v1515, 5
      %v1630 = vrot.slane %v1619, 5
      %v1631 = vsel %vm1361, %v1629, %v1630
      %v1632 = vrot.slane %v1516, 5
      %v1633 = vrot.slane %v1620, 5
      %v1634 = vsel %vm1361, %v1632, %v1633
      %v1635 = vrot.slane %v1517, 5
      %v1636 = vrot.slane %v1621, 5
      %v1637 = vsel %vm1361, %v1635, %v1636
      %v1638 = vrot.slane %v1518, 5
      %v1639 = vrot.slane %v1622, 5
      %v1640 = vsel %vm1361, %v1638, %v1639
      %v1641 = vrot.slane %v1519, 5
      %v1642 = vrot.slane %v1623, 5
      %v1643 = vsel %vm1361, %v1641, %v1642
      %v1644 = vrot.slane %v1520, 5
      %v1645 = vrot.slane %v1624, 5
      %v1646 = vsel %vm1361, %v1644, %v1645
      %v1647 = vrot.slane %v1521, 5
      %v1648 = vrot.slane %v1625, 5
      %v1649 = vsel %vm1361, %v1647, %v1648
      %1650 = vrot.lane.b32.xlu0 %v1626, 10
      %v1651 = vpop.permute.xlu0 %1650
      %1652 = vrot.lane.b32.xlu0 %v1628, 10
      %v1653 = vpop.permute.xlu0 %1652
      %1654 = vrot.lane.b32.xlu0 %v1629, 10
      %v1655 = vpop.permute.xlu0 %1654
      %1656 = vrot.lane.b32.xlu0 %v1631, 10
      %v1657 = vpop.permute.xlu0 %1656
      %1658 = vrot.lane.b32.xlu0 %v1632, 10
      %v1659 = vpop.permute.xlu0 %1658
      %1660 = vrot.lane.b32.xlu0 %v1634, 10
      %v1661 = vpop.permute.xlu0 %1660
      %1662 = vrot.lane.b32.xlu0 %v1635, 10
      %v1663 = vpop.permute.xlu0 %1662
      %1664 = vrot.lane.b32.xlu0 %v1637, 10
      %v1665 = vpop.permute.xlu0 %1664
      %1666 = vrot.lane.b32.xlu0 %v1638, 10
      %v1667 = vpop.permute.xlu0 %1666
      %1668 = vrot.lane.b32.xlu0 %v1640, 10
      %v1669 = vpop.permute.xlu0 %1668
      %1670 = vrot.lane.b32.xlu0 %v1641, 10
      %v1671 = vpop.permute.xlu0 %1670
      %1672 = vrot.lane.b32.xlu0 %v1643, 10
      %v1673 = vpop.permute.xlu0 %1672
      %1674 = vrot.lane.b32.xlu0 %v1644, 10
      %v1675 = vpop.permute.xlu0 %1674
      %1676 = vrot.lane.b32.xlu0 %v1646, 10
      %v1677 = vpop.permute.xlu0 %1676
      %1678 = vrot.lane.b32.xlu0 %v1647, 10
      %v1679 = vpop.permute.xlu0 %1678
      %1680 = vrot.lane.b32.xlu0 %v1649, 10
      %v1681 = vpop.permute.xlu0 %1680
      %v1706 = vunpack.c.l.b16 %v1153
      %v1707 = vunpack.c.l.b16 %v1154
      %v1708 = vunpack.c.l.b16 %v1155
      %v1709 = vunpack.c.l.b16 %v1156
      %v1710 = vunpack.c.l.b16 %v1157
      %v1711 = vunpack.c.l.b16 %v1158
      %v1712 = vunpack.c.l.b16 %v1159
      %v1713 = vunpack.c.l.b16 %v1160
      %v1714 = vunpack.c.l.b16 %v1161
      %v1715 = vunpack.c.l.b16 %v1162
      %v1716 = vunpack.c.l.b16 %v1163
      %v1717 = vunpack.c.l.b16 %v1164
      %v1718 = vunpack.c.l.b16 %v1165
      %v1719 = vunpack.c.l.b16 %v1166
      %v1720 = vunpack.c.l.b16 %v1167
      %v1721 = vunpack.c.l.b16 %v1168
      %v1722 = vunpack.c.l.b16 %v1169
      %v1723 = vunpack.c.l.b16 %v1170
      %v1724 = vunpack.c.l.b16 %v1171
      %v1725 = vunpack.c.l.b16 %v1172
      %v1726 = vunpack.c.l.b16 %v1173
      %v1727 = vunpack.c.l.b16 %v1174
      %v1728 = vunpack.c.l.b16 %v1175
      %v1729 = vunpack.c.l.b16 %v1176
      %v1730 = vpack.c.b16 %v1707, %v1706
      %v1731 = vpack.c.b16 %v1708, %v1708
      %v1732 = vpack.c.b16 %v1710, %v1709
      %v1733 = vpack.c.b16 %v1711, %v1711
      %v1734 = vpack.c.b16 %v1713, %v1712
      %v1735 = vpack.c.b16 %v1714, %v1714
      %v1736 = vpack.c.b16 %v1716, %v1715
      %v1737 = vpack.c.b16 %v1717, %v1717
      %v1738 = vpack.c.b16 %v1719, %v1718
      %v1739 = vpack.c.b16 %v1720, %v1720
      %v1740 = vpack.c.b16 %v1722, %v1721
      %v1741 = vpack.c.b16 %v1723, %v1723
      %v1742 = vpack.c.b16 %v1725, %v1724
      %v1743 = vpack.c.b16 %v1726, %v1726
      %v1744 = vpack.c.b16 %v1728, %v1727
      %v1745 = vpack.c.b16 %v1729, %v1729
      %1746 = vrot.lane.b32.xlu0 %v1730, 12
      %v1747 = vpop.permute.xlu0 %1746
      %1748 = vrot.lane.b32.xlu0 %v1731, 12
      %v1749 = vpop.permute.xlu0 %1748
      %1750 = vrot.lane.b32.xlu0 %v1732, 12
      %v1751 = vpop.permute.xlu0 %1750
      %1752 = vrot.lane.b32.xlu0 %v1733, 12
      %v1753 = vpop.permute.xlu0 %1752
      %1754 = vrot.lane.b32.xlu0 %v1734, 12
      %v1755 = vpop.permute.xlu0 %1754
      %1756 = vrot.lane.b32.xlu0 %v1735, 12
      %v1757 = vpop.permute.xlu0 %1756
      %1758 = vrot.lane.b32.xlu0 %v1736, 12
      %v1759 = vpop.permute.xlu0 %1758
      %1760 = vrot.lane.b32.xlu0 %v1737, 12
      %v1761 = vpop.permute.xlu0 %1760
      %1762 = vrot.lane.b32.xlu0 %v1738, 12
      %v1763 = vpop.permute.xlu0 %1762
      %1764 = vrot.lane.b32.xlu0 %v1739, 12
      %v1765 = vpop.permute.xlu0 %1764
      %1766 = vrot.lane.b32.xlu0 %v1740, 12
      %v1767 = vpop.permute.xlu0 %1766
      %1768 = vrot.lane.b32.xlu0 %v1741, 12
      %v1769 = vpop.permute.xlu0 %1768
      %1770 = vrot.lane.b32.xlu0 %v1742, 12
      %v1771 = vpop.permute.xlu0 %1770
      %1772 = vrot.lane.b32.xlu0 %v1743, 12
      %v1773 = vpop.permute.xlu0 %1772
      %1774 = vrot.lane.b32.xlu0 %v1744, 12
      %v1775 = vpop.permute.xlu0 %1774
      %1776 = vrot.lane.b32.xlu0 %v1745, 12
      %v1777 = vpop.permute.xlu0 %1776
      %v1778 = vpack.c.b16 %v1708, %v1707
      %v1779 = vpack.c.b16 %v1711, %v1710
      %v1780 = vpack.c.b16 %v1714, %v1713
      %v1781 = vpack.c.b16 %v1717, %v1716
      %v1782 = vpack.c.b16 %v1720, %v1719
      %v1783 = vpack.c.b16 %v1723, %v1722
      %v1784 = vpack.c.b16 %v1726, %v1725
      %v1785 = vpack.c.b16 %v1729, %v1728
      %v1787 = vshrl.u32 %v1778, 16
      %v1789 = vrot.slane %v1787, 4
      %v1790 = vshll.u32 %v1778, 16
      %v1792 = vrot.slane %v1790, 5
      %v1793 = vor.u32 %v1789, %v1792
      %v1795 = vshrl.u32 %v1779, 16
      %v1797 = vrot.slane %v1795, 4
      %v1798 = vshll.u32 %v1779, 16
      %v1800 = vrot.slane %v1798, 5
      %v1801 = vor.u32 %v1797, %v1800
      %v1803 = vshrl.u32 %v1780, 16
      %v1805 = vrot.slane %v1803, 4
      %v1806 = vshll.u32 %v1780, 16
      %v1808 = vrot.slane %v1806, 5
      %v1809 = vor.u32 %v1805, %v1808
      %v1811 = vshrl.u32 %v1781, 16
      %v1813 = vrot.slane %v1811, 4
      %v1814 = vshll.u32 %v1781, 16
      %v1816 = vrot.slane %v1814, 5
      %v1817 = vor.u32 %v1813, %v1816
      %v1819 = vshrl.u32 %v1782, 16
      %v1821 = vrot.slane %v1819, 4
      %v1822 = vshll.u32 %v1782, 16
      %v1824 = vrot.slane %v1822, 5
      %v1825 = vor.u32 %v1821, %v1824
      %v1827 = vshrl.u32 %v1783, 16
      %v1829 = vrot.slane %v1827, 4
      %v1830 = vshll.u32 %v1783, 16
      %v1832 = vrot.slane %v1830, 5
      %v1833 = vor.u32 %v1829, %v1832
      %v1835 = vshrl.u32 %v1784, 16
      %v1837 = vrot.slane %v1835, 4
      %v1838 = vshll.u32 %v1784, 16
      %v1840 = vrot.slane %v1838, 5
      %v1841 = vor.u32 %v1837, %v1840
      %v1843 = vshrl.u32 %v1785, 16
      %v1845 = vrot.slane %v1843, 4
      %v1846 = vshll.u32 %v1785, 16
      %v1848 = vrot.slane %v1846, 5
      %v1849 = vor.u32 %v1845, %v1848
      %1850 = vrot.lane.b32.xlu0 %v1793, 14
      %v1851 = vpop.permute.xlu0 %1850
      %1852 = vrot.lane.b32.xlu0 %v1801, 14
      %v1853 = vpop.permute.xlu0 %1852
      %1854 = vrot.lane.b32.xlu0 %v1809, 14
      %v1855 = vpop.permute.xlu0 %1854
      %1856 = vrot.lane.b32.xlu0 %v1817, 14
      %v1857 = vpop.permute.xlu0 %1856
      %1858 = vrot.lane.b32.xlu0 %v1825, 14
      %v1859 = vpop.permute.xlu0 %1858
      %1860 = vrot.lane.b32.xlu0 %v1833, 14
      %v1861 = vpop.permute.xlu0 %1860
      %1862 = vrot.lane.b32.xlu0 %v1841, 14
      %v1863 = vpop.permute.xlu0 %1862
      %1864 = vrot.lane.b32.xlu0 %v1849, 14
      %v1865 = vpop.permute.xlu0 %1864
      %v1874 = vunpack.c.l.b16 %v1177
      %v1875 = vunpack.c.l.b16 %v1178
      %v1876 = vunpack.c.l.b16 %v1179
      %v1877 = vunpack.c.l.b16 %v1180
      %v1878 = vunpack.c.l.b16 %v1181
      %v1879 = vunpack.c.l.b16 %v1182
      %v1880 = vunpack.c.l.b16 %v1183
      %v1881 = vunpack.c.l.b16 %v1184
      %v1882 = vpack.c.b16 %v1874, %v1874
      %v1883 = vpack.c.b16 %v1875, %v1875
      %v1884 = vpack.c.b16 %v1876, %v1876
      %v1885 = vpack.c.b16 %v1877, %v1877
      %v1886 = vpack.c.b16 %v1878, %v1878
      %v1887 = vpack.c.b16 %v1879, %v1879
      %v1888 = vpack.c.b16 %v1880, %v1880
      %v1889 = vpack.c.b16 %v1881, %v1881
      %v1890 = vrot.slane %v1778, 5
      %v1891 = vrot.slane %v1882, 5
      %v1892 = vsel %vm1361, %v1890, %v1891
      %v1893 = vrot.slane %v1779, 5
      %v1894 = vrot.slane %v1883, 5
      %v1895 = vsel %vm1361, %v1893, %v1894
      %v1896 = vrot.slane %v1780, 5
      %v1897 = vrot.slane %v1884, 5
      %v1898 = vsel %vm1361, %v1896, %v1897
      %v1899 = vrot.slane %v1781, 5
      %v1900 = vrot.slane %v1885, 5
      %v1901 = vsel %vm1361, %v1899, %v1900
      %v1902 = vrot.slane %v1782, 5
      %v1903 = vrot.slane %v1886, 5
      %v1904 = vsel %vm1361, %v1902, %v1903
      %v1905 = vrot.slane %v1783, 5
      %v1906 = vrot.slane %v1887, 5
      %v1907 = vsel %vm1361, %v1905, %v1906
      %v1908 = vrot.slane %v1784, 5
      %v1909 = vrot.slane %v1888, 5
      %v1910 = vsel %vm1361, %v1908, %v1909
      %v1911 = vrot.slane %v1785, 5
      %v1912 = vrot.slane %v1889, 5
      %v1913 = vsel %vm1361, %v1911, %v1912
      %1914 = vrot.lane.b32.xlu0 %v1890, 16
      %v1915 = vpop.permute.xlu0 %1914
      %1916 = vrot.lane.b32.xlu0 %v1892, 16
      %v1917 = vpop.permute.xlu0 %1916
      %1918 = vrot.lane.b32.xlu0 %v1893, 16
      %v1919 = vpop.permute.xlu0 %1918
      %1920 = vrot.lane.b32.xlu0 %v1895, 16
      %v1921 = vpop.permute.xlu0 %1920
      %1922 = vrot.lane.b32.xlu0 %v1896, 16
      %v1923 = vpop.permute.xlu0 %1922
      %1924 = vrot.lane.b32.xlu0 %v1898, 16
      %v1925 = vpop.permute.xlu0 %1924
      %1926 = vrot.lane.b32.xlu0 %v1899, 16
      %v1927 = vpop.permute.xlu0 %1926
      %1928 = vrot.lane.b32.xlu0 %v1901, 16
      %v1929 = vpop.permute.xlu0 %1928
      %1930 = vrot.lane.b32.xlu0 %v1902, 16
      %v1931 = vpop.permute.xlu0 %1930
      %1932 = vrot.lane.b32.xlu0 %v1904, 16
      %v1933 = vpop.permute.xlu0 %1932
      %1934 = vrot.lane.b32.xlu0 %v1905, 16
      %v1935 = vpop.permute.xlu0 %1934
      %1936 = vrot.lane.b32.xlu0 %v1907, 16
      %v1937 = vpop.permute.xlu0 %1936
      %1938 = vrot.lane.b32.xlu0 %v1908, 16
      %v1939 = vpop.permute.xlu0 %1938
      %1940 = vrot.lane.b32.xlu0 %v1910, 16
      %v1941 = vpop.permute.xlu0 %1940
      %1942 = vrot.lane.b32.xlu0 %v1911, 16
      %v1943 = vpop.permute.xlu0 %1942
      %1944 = vrot.lane.b32.xlu0 %v1913, 16
      %v1945 = vpop.permute.xlu0 %1944
      %v1948 = vsel %vm1086, %v1233, %v1322
      %v1950 = vsel %vm1086, %v1234, %v1322
      %v1953 = vsel %vm1086, %v1235, %v1324
      %v1955 = vsel %vm1086, %v1236, %v1324
      %v1958 = vsel %vm1086, %v1237, %v1326
      %v1960 = vsel %vm1086, %v1238, %v1326
      %v1963 = vsel %vm1086, %v1239, %v1328
      %v1965 = vsel %vm1086, %v1240, %v1328
      %v1968 = vsel %vm1086, %v1241, %v1330
      %v1970 = vsel %vm1086, %v1242, %v1330
      %v1973 = vsel %vm1086, %v1243, %v1332
      %v1975 = vsel %vm1086, %v1244, %v1332
      %v1978 = vsel %vm1086, %v1245, %v1334
      %v1980 = vsel %vm1086, %v1246, %v1334
      %v1983 = vsel %vm1086, %v1247, %v1336
      %v1985 = vsel %vm1086, %v1248, %v1336
      %v1987 = vsel %vm722, %v1948, %v1387
      %v1989 = vsel %vm722, %v1950, %v1389
      %v1991 = vsel %vm722, %v1953, %v1391
      %v1993 = vsel %vm722, %v1955, %v1393
      %v1995 = vsel %vm722, %v1958, %v1395
      %v1997 = vsel %vm722, %v1960, %v1397
      %v1999 = vsel %vm722, %v1963, %v1399
      %v2001 = vsel %vm722, %v1965, %v1401
      %v2003 = vsel %vm722, %v1968, %v1403
      %v2005 = vsel %vm722, %v1970, %v1405
      %v2007 = vsel %vm722, %v1973, %v1407
      %v2009 = vsel %vm722, %v1975, %v1409
      %v2011 = vsel %vm722, %v1978, %v1411
      %v2013 = vsel %vm722, %v1980, %v1413
      %v2015 = vsel %vm722, %v1983, %v1415
      %v2017 = vsel %vm722, %v1985, %v1417
      %vm2018 = vcmask 48128
      %v2020 = vsel %vm2018, %v1987, %v1483
      %v2022 = vsel %vm2018, %v1989, %v1485
      %v2024 = vsel %vm2018, %v1991, %v1487
      %v2026 = vsel %vm2018, %v1993, %v1489
      %v2028 = vsel %vm2018, %v1995, %v1491
      %v2030 = vsel %vm2018, %v1997, %v1493
      %v2032 = vsel %vm2018, %v1999, %v1495
      %v2034 = vsel %vm2018, %v2001, %v1497
      %v2036 = vsel %vm2018, %v2003, %v1499
      %v2038 = vsel %vm2018, %v2005, %v1501
      %v2040 = vsel %vm2018, %v2007, %v1503
      %v2042 = vsel %vm2018, %v2009, %v1505
      %v2044 = vsel %vm2018, %v2011, %v1507
      %v2046 = vsel %vm2018, %v2013, %v1509
      %v2048 = vsel %vm2018, %v2015, %v1511
      %v2050 = vsel %vm2018, %v2017, %v1513
      %vm2051 = vcmask 64512
      %v2053 = vsel %vm2051, %v2020, %v1587
      %v2054 = vsel %vm2051, %v2022, %v1587
      %v2056 = vsel %vm2051, %v2024, %v1589
      %v2057 = vsel %vm2051, %v2026, %v1589
      %v2059 = vsel %vm2051, %v2028, %v1591
      %v2060 = vsel %vm2051, %v2030, %v1591
      %v2062 = vsel %vm2051, %v2032, %v1593
      %v2063 = vsel %vm2051, %v2034, %v1593
      %v2065 = vsel %vm2051, %v2036, %v1595
      %v2066 = vsel %vm2051, %v2038, %v1595
      %v2068 = vsel %vm2051, %v2040, %v1597
      %v2069 = vsel %vm2051, %v2042, %v1597
      %v2071 = vsel %vm2051, %v2044, %v1599
      %v2072 = vsel %vm2051, %v2046, %v1599
      %v2074 = vsel %vm2051, %v2048, %v1601
      %v2075 = vsel %vm2051, %v2050, %v1601
      %vm2076 = vcmask 80896
      %v2078 = vsel %vm2076, %v2053, %v1651
      %v2080 = vsel %vm2076, %v2054, %v1653
      %v2082 = vsel %vm2076, %v2056, %v1655
      %v2084 = vsel %vm2076, %v2057, %v1657
      %v2086 = vsel %vm2076, %v2059, %v1659
      %v2088 = vsel %vm2076, %v2060, %v1661
      %v2090 = vsel %vm2076, %v2062, %v1663
      %v2092 = vsel %vm2076, %v2063, %v1665
      %v2094 = vsel %vm2076, %v2065, %v1667
      %v2096 = vsel %vm2076, %v2066, %v1669
      %v2098 = vsel %vm2076, %v2068, %v1671
      %v2100 = vsel %vm2076, %v2069, %v1673
      %v2102 = vsel %vm2076, %v2071, %v1675
      %v2104 = vsel %vm2076, %v2072, %v1677
      %v2106 = vsel %vm2076, %v2074, %v1679
      %v2108 = vsel %vm2076, %v2075, %v1681
      %vm2109 = vcmask 97280
      %v2111 = vsel %vm2109, %v2078, %v1747
      %v2113 = vsel %vm2109, %v2080, %v1749
      %v2115 = vsel %vm2109, %v2082, %v1751
      %v2117 = vsel %vm2109, %v2084, %v1753
      %v2119 = vsel %vm2109, %v2086, %v1755
      %v2121 = vsel %vm2109, %v2088, %v1757
      %v2123 = vsel %vm2109, %v2090, %v1759
      %v2125 = vsel %vm2109, %v2092, %v1761
      %v2127 = vsel %vm2109, %v2094, %v1763
      %v2129 = vsel %vm2109, %v2096, %v1765
      %v2131 = vsel %vm2109, %v2098, %v1767
      %v2133 = vsel %vm2109, %v2100, %v1769
      %v2135 = vsel %vm2109, %v2102, %v1771
      %v2137 = vsel %vm2109, %v2104, %v1773
      %v2139 = vsel %vm2109, %v2106, %v1775
      %v2141 = vsel %vm2109, %v2108, %v1777
      %vm2142 = vcmask 113664
      %v2144 = vsel %vm2142, %v2111, %v1851
      %v2145 = vsel %vm2142, %v2113, %v1851
      %v2147 = vsel %vm2142, %v2115, %v1853
      %v2148 = vsel %vm2142, %v2117, %v1853
      %v2150 = vsel %vm2142, %v2119, %v1855
      %v2151 = vsel %vm2142, %v2121, %v1855
      %v2153 = vsel %vm2142, %v2123, %v1857
      %v2154 = vsel %vm2142, %v2125, %v1857
      %v2156 = vsel %vm2142, %v2127, %v1859
      %v2157 = vsel %vm2142, %v2129, %v1859
      %v2159 = vsel %vm2142, %v2131, %v1861
      %v2160 = vsel %vm2142, %v2133, %v1861
      %v2162 = vsel %vm2142, %v2135, %v1863
      %v2163 = vsel %vm2142, %v2137, %v1863
      %v2165 = vsel %vm2142, %v2139, %v1865
      %v2166 = vsel %vm2142, %v2141, %v1865
      %vm2167 = vcmask 130048
      %v2169 = vsel %vm2167, %v2144, %v1915
      %v2171 = vsel %vm2167, %v2145, %v1917
      %v2173 = vsel %vm2167, %v2147, %v1919
      %v2175 = vsel %vm2167, %v2148, %v1921
      %v2177 = vsel %vm2167, %v2150, %v1923
      %v2179 = vsel %vm2167, %v2151, %v1925
      %v2181 = vsel %vm2167, %v2153, %v1927
      %v2183 = vsel %vm2167, %v2154, %v1929
      %v2185 = vsel %vm2167, %v2156, %v1931
      %v2187 = vsel %vm2167, %v2157, %v1933
      %v2189 = vsel %vm2167, %v2159, %v1935
      %v2191 = vsel %vm2167, %v2160, %v1937
      %v2193 = vsel %vm2167, %v2162, %v1939
      %v2195 = vsel %vm2167, %v2163, %v1941
      %v2197 = vsel %vm2167, %v2165, %v1943
      %v2199 = vsel %vm2167, %v2166, %v1945
      %vm2200 = vsmask.f32 4352
      %v2201 = vshrl.u32 %v2169, 16
      %v2203 = vrot.slane %v2201, 3
      %v2204 = vshll.u32 %v2169, 16
      %v2206 = vrot.slane %v2204, 4
      %v2207 = vor.u32 %v2203, %v2206
      %v2208 = vshrl.u32 %v2171, 16
      %v2210 = vrot.slane %v2208, 3
      %v2211 = vshll.u32 %v2171, 16
      %v2213 = vrot.slane %v2211, 4
      %v2214 = vor.u32 %v2210, %v2213
      %v2215 = vsel %vm2200, %v2207, %v2214
      %v2216 = vshrl.u32 %v2173, 16
      %v2218 = vrot.slane %v2216, 3
      %v2219 = vshll.u32 %v2173, 16
      %v2221 = vrot.slane %v2219, 4
      %v2222 = vor.u32 %v2218, %v2221
      %v2223 = vshrl.u32 %v2175, 16
      %v2225 = vrot.slane %v2223, 3
      %v2226 = vshll.u32 %v2175, 16
      %v2228 = vrot.slane %v2226, 4
      %v2229 = vor.u32 %v2225, %v2228
      %v2230 = vsel %vm2200, %v2222, %v2229
      %v2231 = vshrl.u32 %v2177, 16
      %v2233 = vrot.slane %v2231, 3
      %v2234 = vshll.u32 %v2177, 16
      %v2236 = vrot.slane %v2234, 4
      %v2237 = vor.u32 %v2233, %v2236
      %v2238 = vshrl.u32 %v2179, 16
      %v2240 = vrot.slane %v2238, 3
      %v2241 = vshll.u32 %v2179, 16
      %v2243 = vrot.slane %v2241, 4
      %v2244 = vor.u32 %v2240, %v2243
      %v2245 = vsel %vm2200, %v2237, %v2244
      %v2246 = vshrl.u32 %v2181, 16
      %v2248 = vrot.slane %v2246, 3
      %v2249 = vshll.u32 %v2181, 16
      %v2251 = vrot.slane %v2249, 4
      %v2252 = vor.u32 %v2248, %v2251
      %v2253 = vshrl.u32 %v2183, 16
      %v2255 = vrot.slane %v2253, 3
      %v2256 = vshll.u32 %v2183, 16
      %v2258 = vrot.slane %v2256, 4
      %v2259 = vor.u32 %v2255, %v2258
      %v2260 = vsel %vm2200, %v2252, %v2259
      %v2261 = vshrl.u32 %v2185, 16
      %v2263 = vrot.slane %v2261, 3
      %v2264 = vshll.u32 %v2185, 16
      %v2266 = vrot.slane %v2264, 4
      %v2267 = vor.u32 %v2263, %v2266
      %v2268 = vshrl.u32 %v2187, 16
      %v2270 = vrot.slane %v2268, 3
      %v2271 = vshll.u32 %v2187, 16
      %v2273 = vrot.slane %v2271, 4
      %v2274 = vor.u32 %v2270, %v2273
      %v2275 = vsel %vm2200, %v2267, %v2274
      %v2276 = vshrl.u32 %v2189, 16
      %v2278 = vrot.slane %v2276, 3
      %v2279 = vshll.u32 %v2189, 16
      %v2281 = vrot.slane %v2279, 4
      %v2282 = vor.u32 %v2278, %v2281
      %v2283 = vshrl.u32 %v2191, 16
      %v2285 = vrot.slane %v2283, 3
      %v2286 = vshll.u32 %v2191, 16
      %v2288 = vrot.slane %v2286, 4
      %v2289 = vor.u32 %v2285, %v2288
      %v2290 = vsel %vm2200, %v2282, %v2289
      %v2291 = vshrl.u32 %v2193, 16
      %v2293 = vrot.slane %v2291, 3
      %v2294 = vshll.u32 %v2193, 16
      %v2296 = vrot.slane %v2294, 4
      %v2297 = vor.u32 %v2293, %v2296
      %v2298 = vshrl.u32 %v2195, 16
      %v2300 = vrot.slane %v2298, 3
      %v2301 = vshll.u32 %v2195, 16
      %v2303 = vrot.slane %v2301, 4
      %v2304 = vor.u32 %v2300, %v2303
      %v2305 = vsel %vm2200, %v2297, %v2304
      %v2306 = vshrl.u32 %v2197, 16
      %v2308 = vrot.slane %v2306, 3
      %v2309 = vshll.u32 %v2197, 16
      %v2311 = vrot.slane %v2309, 4
      %v2312 = vor.u32 %v2308, %v2311
      %v2313 = vshrl.u32 %v2199, 16
      %v2315 = vrot.slane %v2313, 3
      %v2316 = vshll.u32 %v2199, 16
      %v2318 = vrot.slane %v2316, 4
      %v2319 = vor.u32 %v2315, %v2318
      %v2320 = vsel %vm2200, %v2312, %v2319
      %v2321 = vld [vmem:[%s8] sm:$0xf]
      %v2322 = vld [vmem:[%s8 + $0x4] sm:$0xf]
      %v2323 = vld [vmem:[%s8 + $0x8] sm:$0x1]
      %v2327 = vunpack.c.l.b16 %v2321
      %v2328 = vunpack.c.l.b16 %v2322
      %v2329 = vunpack.c.l.b16 %v2323
      %v2330 = vpack.c.b16 %v2328, %v2327
      %v2331 = vpack.c.b16 %v2329, %v2329
      %vm2333 = vcmask 146432
      %v2335 = vsel %vm2333, %v2215, 0
      %v2338 = vsel %vm2333, %v2230, 0
      %v2341 = vsel %vm2333, %v2245, 0
      %v2344 = vsel %vm2333, %v2260, 0
      %v2347 = vsel %vm2333, %v2275, 0
      %v2350 = vsel %vm2333, %v2290, 0
      %v2353 = vsel %vm2333, %v2305, 0
      %v2356 = vsel %vm2333, %v2320, 0
      %vm2358 = vcmask 1040384
      %v2360 = vsel %vm2358, %v2331, 0
      %2362 = vmatprep.subr.bf16.mxu0 0
      %2363 = vmatpush1.bf16.msra.mxu0 %v2330
      %2364 = vmatprep.subr.bf16.mxu0 0
      %2365 = vmatpush1.bf16.msra.mxu0 %v2360
      %2366 = vmatprep.subr.bf16.mxu0 0
      %2367 = vmatpush1.bf16.msra.mxu0 0
      %2368 = vmatprep.subr.bf16.mxu0 0
      %2369 = vmatpush1.bf16.msra.mxu0 0
      %2370 = vmatprep.subr.bf16.mxu0 0
      %2371 = vmatpush1.bf16.msra.mxu0 0
      %2372 = vmatprep.subr.bf16.mxu0 0
      %2373 = vmatpush1.bf16.msra.mxu0 0
      %2374 = vmatprep.subr.bf16.mxu0 0
      %2375 = vmatpush1.bf16.msra.mxu0 0
      %2376 = vmatprep.subr.bf16.mxu0 0
      %2377 = vmatpush1.bf16.msra.mxu0 0
      %2378 = vmatprep.subr.bf16.mxu0 0
      %2379 = vmatpush1.bf16.msra.mxu0 0
      %2380 = vmatprep.subr.bf16.mxu0 0
      %2381 = vmatpush1.bf16.msra.mxu0 0
      %2382 = vmatprep.subr.bf16.mxu0 0
      %2383 = vmatpush1.bf16.msra.mxu0 0
      %2384 = vmatprep.subr.bf16.mxu0 0
      %2385 = vmatpush1.bf16.msra.mxu0 0
      %2386 = vmatprep.subr.bf16.mxu0 0
      %2387 = vmatpush1.bf16.msra.mxu0 0
      %2388 = vmatprep.subr.bf16.mxu0 0
      %2389 = vmatpush1.bf16.msra.mxu0 0
      %2390 = vmatprep.subr.bf16.mxu0 0
      %2391 = vmatpush1.bf16.msra.mxu0 0
      %2392 = vmatprep.subr.bf16.mxu0 0
      %2393 = vmatpush1.bf16.msra.mxu0 0
      %2394 = vmatprep.mubr.bf16.mxu0 0
      %2395 = vmatmul.mubr.bf16.gmra.mrb[0].mxu0 %v2335
      %v2396 = vpop.f32.mrb[0].mxu0
      %v2397 = vadd.f32 0.0, %v2396
      %v2398 = vpop.f32.mrb[0].mxu0
      %v2399 = vpop.f32.mrb[0].mxu0
      %v2400 = vadd.f32 0.0, %v2399
      %v2401 = vpop.f32.mrb[0].mxu0
      %2402 = vmatprep.mubr.bf16.mxu0 0
      %2403 = vmatmul.mubr.bf16.gmra.mrb[0].mxu0 %v2338
      %v2404 = vpop.f32.mrb[0].mxu0
      %v2405 = vadd.f32 0.0, %v2404
      %v2406 = vpop.f32.mrb[0].mxu0
      %v2407 = vpop.f32.mrb[0].mxu0
      %v2408 = vadd.f32 0.0, %v2407
      %v2409 = vpop.f32.mrb[0].mxu0
      %2410 = vmatprep.mubr.bf16.mxu0 0
      %2411 = vmatmul.mubr.bf16.gmra.mrb[0].mxu0 %v2341
      %v2412 = vpop.f32.mrb[0].mxu0
      %v2413 = vadd.f32 0.0, %v2412
      %v2414 = vpop.f32.mrb[0].mxu0
      %v2415 = vpop.f32.mrb[0].mxu0
      %v2416 = vadd.f32 0.0, %v2415
      %v2417 = vpop.f32.mrb[0].mxu0
      %2418 = vmatprep.mubr.bf16.mxu0 0
      %2419 = vmatmul.mubr.bf16.gmra.mrb[0].mxu0 %v2344
      %v2420 = vpop.f32.mrb[0].mxu0
      %v2421 = vadd.f32 0.0, %v2420
      %v2422 = vpop.f32.mrb[0].mxu0
      %v2423 = vpop.f32.mrb[0].mxu0
      %v2424 = vadd.f32 0.0, %v2423
      %v2425 = vpop.f32.mrb[0].mxu0
      %2426 = vmatprep.mubr.bf16.mxu0 0
      %2427 = vmatmul.mubr.bf16.gmra.mrb[0].mxu0 %v2347
      %v2428 = vpop.f32.mrb[0].mxu0
      %v2429 = vadd.f32 0.0, %v2428
      %v2430 = vpop.f32.mrb[0].mxu0
      %v2431 = vpop.f32.mrb[0].mxu0
      %v2432 = vadd.f32 0.0, %v2431
      %v2433 = vpop.f32.mrb[0].mxu0
      %2434 = vmatprep.mubr.bf16.mxu0 0
      %2435 = vmatmul.mubr.bf16.gmra.mrb[0].mxu0 %v2350
      %v2436 = vpop.f32.mrb[0].mxu0
      %v2437 = vadd.f32 0.0, %v2436
      %v2438 = vpop.f32.mrb[0].mxu0
      %v2439 = vpop.f32.mrb[0].mxu0
      %v2440 = vadd.f32 0.0, %v2439
      %v2441 = vpop.f32.mrb[0].mxu0
      %2442 = vmatprep.mubr.bf16.mxu0 0
      %2443 = vmatmul.mubr.bf16.gmra.mrb[0].mxu0 %v2353
      %v2444 = vpop.f32.mrb[0].mxu0
      %v2445 = vadd.f32 0.0, %v2444
      %v2446 = vpop.f32.mrb[0].mxu0
      %v2447 = vpop.f32.mrb[0].mxu0
      %v2448 = vadd.f32 0.0, %v2447
      %v2449 = vpop.f32.mrb[0].mxu0
      %2450 = vmatprep.mubr.bf16.mxu0 0
      %2451 = vmatmul.mubr.bf16.gmra.mrb[0].mxu0 %v2356
      %v2452 = vpop.f32.mrb[0].mxu0
      %v2453 = vadd.f32 0.0, %v2452
      %v2454 = vpop.f32.mrb[0].mxu0
      %v2455 = vpop.f32.mrb[0].mxu0
      %v2456 = vadd.f32 0.0, %v2455
      %v2457 = vpop.f32.mrb[0].mxu0
      %2458 = vdwg.mxu0
      %v2459 = vld [vmem:[%s9] sm:$0x1]
      %v2461 = vlaneseq
      %v2462 = vshrl.u32 %v2461, 7
      %v2463 = vsub.s32 0, %v2462
      %v2464 = vrot.slane %v2459, %v2463
      %v2466 = vmul.f32 %v2397, %v2464
      %v2467 = vmul.f32 %v2400, %v2464
      %v2468 = vmul.f32 %v2405, %v2464
      %v2469 = vmul.f32 %v2408, %v2464
      %v2470 = vmul.f32 %v2413, %v2464
      %v2471 = vmul.f32 %v2416, %v2464
      %v2472 = vmul.f32 %v2421, %v2464
      %v2473 = vmul.f32 %v2424, %v2464
      %v2474 = vmul.f32 %v2429, %v2464
      %v2475 = vmul.f32 %v2432, %v2464
      %v2476 = vmul.f32 %v2437, %v2464
      %v2477 = vmul.f32 %v2440, %v2464
      %v2478 = vmul.f32 %v2445, %v2464
      %v2479 = vmul.f32 %v2448, %v2464
      %v2480 = vmul.f32 %v2453, %v2464
      %v2481 = vmul.f32 %v2456, %v2464
      %v2482 = vld [vmem:[%s10] sm:$0x1]
      %v2484 = vlaneseq
      %v2485 = vshrl.u32 %v2484, 7
      %v2486 = vsub.s32 0, %v2485
      %v2487 = vrot.slane %v2482, %v2486
      %v2489 = vadd.f32 %v2466, %v2487
      %v2490 = vadd.f32 %v2467, %v2487
      %v2491 = vadd.f32 %v2468, %v2487
      %v2492 = vadd.f32 %v2469, %v2487
      %v2493 = vadd.f32 %v2470, %v2487
      %v2494 = vadd.f32 %v2471, %v2487
      %v2495 = vadd.f32 %v2472, %v2487
      %v2496 = vadd.f32 %v2473, %v2487
      %v2497 = vadd.f32 %v2474, %v2487
      %v2498 = vadd.f32 %v2475, %v2487
      %v2499 = vadd.f32 %v2476, %v2487
      %v2500 = vadd.f32 %v2477, %v2487
      %v2501 = vadd.f32 %v2478, %v2487
      %v2502 = vadd.f32 %v2479, %v2487
      %v2503 = vadd.f32 %v2480, %v2487
      %v2504 = vadd.f32 %v2481, %v2487
      %v2505 = vmax.f32 %v2489, 0.0
      %v2506 = vmax.f32 %v2490, 0.0
      %v2507 = vmax.f32 %v2491, 0.0
      %v2508 = vmax.f32 %v2492, 0.0
      %v2509 = vmax.f32 %v2493, 0.0
      %v2510 = vmax.f32 %v2494, 0.0
      %v2511 = vmax.f32 %v2495, 0.0
      %v2512 = vmax.f32 %v2496, 0.0
      %v2513 = vmax.f32 %v2497, 0.0
      %v2514 = vmax.f32 %v2498, 0.0
      %v2515 = vmax.f32 %v2499, 0.0
      %v2516 = vmax.f32 %v2500, 0.0
      %v2517 = vmax.f32 %v2501, 0.0
      %v2518 = vmax.f32 %v2502, 0.0
      %v2519 = vmax.f32 %v2503, 0.0
      %v2520 = vmax.f32 %v2504, 0.0
      %v2521 = vpack.c.bf16 %v2506, %v2505
      %v2522 = vpack.c.bf16 %v2508, %v2507
      %v2523 = vpack.c.bf16 %v2510, %v2509
      %v2524 = vpack.c.bf16 %v2512, %v2511
      %v2525 = vpack.c.bf16 %v2514, %v2513
      %v2526 = vpack.c.bf16 %v2516, %v2515
      %v2527 = vpack.c.bf16 %v2518, %v2517
      %v2528 = vpack.c.bf16 %v2520, %v2519
      %v2529 = vld [vmem:[%s11] sm:$0x3]
      %v2531 = vsel %vm722, %v2521, 0
      %v2534 = vsel %vm722, %v2522, 0
      %v2537 = vsel %vm722, %v2523, 0
      %v2540 = vsel %vm722, %v2524, 0
      %v2543 = vsel %vm722, %v2525, 0
      %v2546 = vsel %vm722, %v2526, 0
      %v2549 = vsel %vm722, %v2527, 0
      %v2552 = vsel %vm722, %v2528, 0
      %v2555 = vsel %vm784, %v2529, 0
      %2557 = vmatprep.subr.bf16.mxu0 0
      %2558 = vmatpush1.bf16.msra.mxu0 %v2555
      %2559 = vmatprep.subr.bf16.mxu0 0
      %2560 = vmatpush1.bf16.msra.mxu0 0
      %2561 = vmatprep.subr.bf16.mxu0 0
      %2562 = vmatpush1.bf16.msra.mxu0 0
      %2563 = vmatprep.subr.bf16.mxu0 0
      %2564 = vmatpush1.bf16.msra.mxu0 0
      %2565 = vmatprep.subr.bf16.mxu0 0
      %2566 = vmatpush1.bf16.msra.mxu0 0
      %2567 = vmatprep.subr.bf16.mxu0 0
      %2568 = vmatpush1.bf16.msra.mxu0 0
      %2569 = vmatprep.subr.bf16.mxu0 0
      %2570 = vmatpush1.bf16.msra.mxu0 0
      %2571 = vmatprep.subr.bf16.mxu0 0
      %2572 = vmatpush1.bf16.msra.mxu0 0
      %2573 = vmatprep.subr.bf16.mxu0 0
      %2574 = vmatpush1.bf16.msra.mxu0 0
      %2575 = vmatprep.subr.bf16.mxu0 0
      %2576 = vmatpush1.bf16.msra.mxu0 0
      %2577 = vmatprep.subr.bf16.mxu0 0
      %2578 = vmatpush1.bf16.msra.mxu0 0
      %2579 = vmatprep.subr.bf16.mxu0 0
      %2580 = vmatpush1.bf16.msra.mxu0 0
      %2581 = vmatprep.subr.bf16.mxu0 0
      %2582 = vmatpush1.bf16.msra.mxu0 0
      %2583 = vmatprep.subr.bf16.mxu0 0
      %2584 = vmatpush1.bf16.msra.mxu0 0
      %2585 = vmatprep.subr.bf16.mxu0 0
      %2586 = vmatpush1.bf16.msra.mxu0 0
      %2587 = vmatprep.subr.bf16.mxu0 0
      %2588 = vmatpush1.bf16.msra.mxu0 0
      %2589 = vmatprep.mubr.bf16.mxu0 0
      %2590 = vmatmul.mubr.bf16.gmra.mrb[0].mxu0 %v2531
      %v2591 = vpop.f32.mrb[0].mxu0
      %v2592 = vadd.f32 0.0, %v2591
      %v2593 = vpop.f32.mrb[0].mxu0
      %v2594 = vpop.f32.mrb[0].mxu0
      %v2595 = vadd.f32 0.0, %v2594
      %v2596 = vpop.f32.mrb[0].mxu0
      %2597 = vmatprep.mubr.bf16.mxu0 0
      %2598 = vmatmul.mubr.bf16.gmra.mrb[0].mxu0 %v2534
      %v2599 = vpop.f32.mrb[0].mxu0
      %v2600 = vadd.f32 0.0, %v2599
      %v2601 = vpop.f32.mrb[0].mxu0
      %v2602 = vpop.f32.mrb[0].mxu0
      %v2603 = vadd.f32 0.0, %v2602
      %v2604 = vpop.f32.mrb[0].mxu0
      %2605 = vmatprep.mubr.bf16.mxu0 0
      %2606 = vmatmul.mubr.bf16.gmra.mrb[0].mxu0 %v2537
      %v2607 = vpop.f32.mrb[0].mxu0
      %v2608 = vadd.f32 0.0, %v2607
      %v2609 = vpop.f32.mrb[0].mxu0
      %v2610 = vpop.f32.mrb[0].mxu0
      %v2611 = vadd.f32 0.0, %v2610
      %v2612 = vpop.f32.mrb[0].mxu0
      %2613 = vmatprep.mubr.bf16.mxu0 0
      %2614 = vmatmul.mubr.bf16.gmra.mrb[0].mxu0 %v2540
      %v2615 = vpop.f32.mrb[0].mxu0
      %v2616 = vadd.f32 0.0, %v2615
      %v2617 = vpop.f32.mrb[0].mxu0
      %v2618 = vpop.f32.mrb[0].mxu0
      %v2619 = vadd.f32 0.0, %v2618
      %v2620 = vpop.f32.mrb[0].mxu0
      %2621 = vmatprep.mubr.bf16.mxu0 0
      %2622 = vmatmul.mubr.bf16.gmra.mrb[0].mxu0 %v2543
      %v2623 = vpop.f32.mrb[0].mxu0
      %v2624 = vadd.f32 0.0, %v2623
      %v2625 = vpop.f32.mrb[0].mxu0
      %v2626 = vpop.f32.mrb[0].mxu0
      %v2627 = vadd.f32 0.0, %v2626
      %v2628 = vpop.f32.mrb[0].mxu0
      %2629 = vmatprep.mubr.bf16.mxu0 0
      %2630 = vmatmul.mubr.bf16.gmra.mrb[0].mxu0 %v2546
      %v2631 = vpop.f32.mrb[0].mxu0
      %v2632 = vadd.f32 0.0, %v2631
      %v2633 = vpop.f32.mrb[0].mxu0
      %v2634 = vpop.f32.mrb[0].mxu0
      %v2635 = vadd.f32 0.0, %v2634
      %v2636 = vpop.f32.mrb[0].mxu0
      %2637 = vmatprep.mubr.bf16.mxu0 0
      %2638 = vmatmul.mubr.bf16.gmra.mrb[0].mxu0 %v2549
      %v2639 = vpop.f32.mrb[0].mxu0
      %v2640 = vadd.f32 0.0, %v2639
      %v2641 = vpop.f32.mrb[0].mxu0
      %v2642 = vpop.f32.mrb[0].mxu0
      %v2643 = vadd.f32 0.0, %v2642
      %v2644 = vpop.f32.mrb[0].mxu0
      %2645 = vmatprep.mubr.bf16.mxu0 0
      %2646 = vmatmul.mubr.bf16.gmra.mrb[0].mxu0 %v2552
      %v2647 = vpop.f32.mrb[0].mxu0
      %v2648 = vadd.f32 0.0, %v2647
      %v2649 = vpop.f32.mrb[0].mxu0
      %v2650 = vpop.f32.mrb[0].mxu0
      %v2651 = vadd.f32 0.0, %v2650
      %v2652 = vpop.f32.mrb[0].mxu0
      %2653 = vdwg.mxu0
      %v2654 = vld [vmem:[%s4] sm:$0x3]
      %v2656 = vsel %vm784, %v2654, 0
      %2658 = vmatprep.subr.bf16.mxu0 0
      %2659 = vmatpush1.bf16.msra.mxu0 %v2656
      %2660 = vmatprep.subr.bf16.mxu0 0
      %2661 = vmatpush1.bf16.msra.mxu0 0
      %2662 = vmatprep.subr.bf16.mxu0 0
      %2663 = vmatpush1.bf16.msra.mxu0 0
      %2664 = vmatprep.subr.bf16.mxu0 0
      %2665 = vmatpush1.bf16.msra.mxu0 0
      %2666 = vmatprep.subr.bf16.mxu0 0
      %2667 = vmatpush1.bf16.msra.mxu0 0
      %2668 = vmatprep.subr.bf16.mxu0 0
      %2669 = vmatpush1.bf16.msra.mxu0 0
      %2670 = vmatprep.subr.bf16.mxu0 0
      %2671 = vmatpush1.bf16.msra.mxu0 0
      %2672 = vmatprep.subr.bf16.mxu0 0
      %2673 = vmatpush1.bf16.msra.mxu0 0
      %2674 = vmatprep.subr.bf16.mxu0 0
      %2675 = vmatpush1.bf16.msra.mxu0 0
      %2676 = vmatprep.subr.bf16.mxu0 0
      %2677 = vmatpush1.bf16.msra.mxu0 0
      %2678 = vmatprep.subr.bf16.mxu0 0
      %2679 = vmatpush1.bf16.msra.mxu0 0
      %2680 = vmatprep.subr.bf16.mxu0 0
      %2681 = vmatpush1.bf16.msra.mxu0 0
      %2682 = vmatprep.subr.bf16.mxu0 0
      %2683 = vmatpush1.bf16.msra.mxu0 0
      %2684 = vmatprep.subr.bf16.mxu0 0
      %2685 = vmatpush1.bf16.msra.mxu0 0
      %2686 = vmatprep.subr.bf16.mxu0 0
      %2687 = vmatpush1.bf16.msra.mxu0 0
      %2688 = vmatprep.subr.bf16.mxu0 0
      %2689 = vmatpush1.bf16.msra.mxu0 0
      %2690 = vmatprep.mubr.bf16.mxu0 0
      %2691 = vmatmul.mubr.bf16.gmra.mrb[0].mxu0 %v758
      %v2692 = vpop.f32.mrb[0].mxu0
      %v2693 = vadd.f32 %v2592, %v2692
      %v2694 = vpop.f32.mrb[0].mxu0
      %v2695 = vpop.f32.mrb[0].mxu0
      %v2696 = vadd.f32 %v2595, %v2695
      %v2697 = vpop.f32.mrb[0].mxu0
      %2698 = vmatprep.mubr.bf16.mxu0 0
      %2699 = vmatmul.mubr.bf16.gmra.mrb[0].mxu0 %v761
      %v2700 = vpop.f32.mrb[0].mxu0
      %v2701 = vadd.f32 %v2600, %v2700
      %v2702 = vpop.f32.mrb[0].mxu0
      %v2703 = vpop.f32.mrb[0].mxu0
      %v2704 = vadd.f32 %v2603, %v2703
      %v2705 = vpop.f32.mrb[0].mxu0
      %2706 = vmatprep.mubr.bf16.mxu0 0
      %2707 = vmatmul.mubr.bf16.gmra.mrb[0].mxu0 %v764
      %v2708 = vpop.f32.mrb[0].mxu0
      %v2709 = vadd.f32 %v2608, %v2708
      %v2710 = vpop.f32.mrb[0].mxu0
      %v2711 = vpop.f32.mrb[0].mxu0
      %v2712 = vadd.f32 %v2611, %v2711
      %v2713 = vpop.f32.mrb[0].mxu0
      %2714 = vmatprep.mubr.bf16.mxu0 0
      %2715 = vmatmul.mubr.bf16.gmra.mrb[0].mxu0 %v767
      %v2716 = vpop.f32.mrb[0].mxu0
      %v2717 = vadd.f32 %v2616, %v2716
      %v2718 = vpop.f32.mrb[0].mxu0
      %v2719 = vpop.f32.mrb[0].mxu0
      %v2720 = vadd.f32 %v2619, %v2719
      %v2721 = vpop.f32.mrb[0].mxu0
      %2722 = vmatprep.mubr.bf16.mxu0 0
      %2723 = vmatmul.mubr.bf16.gmra.mrb[0].mxu0 %v770
      %v2724 = vpop.f32.mrb[0].mxu0
      %v2725 = vadd.f32 %v2624, %v2724
      %v2726 = vpop.f32.mrb[0].mxu0
      %v2727 = vpop.f32.mrb[0].mxu0
      %v2728 = vadd.f32 %v2627, %v2727
      %v2729 = vpop.f32.mrb[0].mxu0
      %2730 = vmatprep.mubr.bf16.mxu0 0
      %2731 = vmatmul.mubr.bf16.gmra.mrb[0].mxu0 %v773
      %v2732 = vpop.f32.mrb[0].mxu0
      %v2733 = vadd.f32 %v2632, %v2732
      %v2734 = vpop.f32.mrb[0].mxu0
      %v2735 = vpop.f32.mrb[0].mxu0
      %v2736 = vadd.f32 %v2635, %v2735
      %v2737 = vpop.f32.mrb[0].mxu0
      %2738 = vmatprep.mubr.bf16.mxu0 0
      %2739 = vmatmul.mubr.bf16.gmra.mrb[0].mxu0 %v776
      %v2740 = vpop.f32.mrb[0].mxu0
      %v2741 = vadd.f32 %v2640, %v2740
      %v2742 = vpop.f32.mrb[0].mxu0
      %v2743 = vpop.f32.mrb[0].mxu0
      %v2744 = vadd.f32 %v2643, %v2743
      %v2745 = vpop.f32.mrb[0].mxu0
      %2746 = vmatprep.mubr.bf16.mxu0 0
      %2747 = vmatmul.mubr.bf16.gmra.mrb[0].mxu0 %v779
      %v2748 = vpop.f32.mrb[0].mxu0
      %v2749 = vadd.f32 %v2648, %v2748
      %v2750 = vpop.f32.mrb[0].mxu0
      %v2751 = vpop.f32.mrb[0].mxu0
      %v2752 = vadd.f32 %v2651, %v2751
      %v2753 = vpop.f32.mrb[0].mxu0
      %2754 = vdwg.mxu0
      %2755 = vst.msk [vmem:[%s560] sm:$0xff] %vm2051, %v2693
      %2756 = vst.msk [vmem:[%s560 + $0x8] sm:$0xff] %vm2051, %v2696
      %2757 = vst.msk [vmem:[%s560 + $0x10] sm:$0xff] %vm2051, %v2701
      %2758 = vst.msk [vmem:[%s560 + $0x18] sm:$0xff] %vm2051, %v2704
      %2759 = vst.msk [vmem:[%s560 + $0x20] sm:$0xff] %vm2051, %v2709
      %2760 = vst.msk [vmem:[%s560 + $0x28] sm:$0xff] %vm2051, %v2712
      %2761 = vst.msk [vmem:[%s560 + $0x30] sm:$0xff] %vm2051, %v2717
      %2762 = vst.msk [vmem:[%s560 + $0x38] sm:$0xff] %vm2051, %v2720
      %2763 = vst.msk [vmem:[%s560 + $0x40] sm:$0xff] %vm2051, %v2725
      %2764 = vst.msk [vmem:[%s560 + $0x48] sm:$0xff] %vm2051, %v2728
      %2765 = vst.msk [vmem:[%s560 + $0x50] sm:$0xff] %vm2051, %v2733
      %2766 = vst.msk [vmem:[%s560 + $0x58] sm:$0xff] %vm2051, %v2736
      %2767 = vst.msk [vmem:[%s560 + $0x60] sm:$0xff] %vm2051, %v2741
      %2768 = vst.msk [vmem:[%s560 + $0x68] sm:$0xff] %vm2051, %v2744
      %2769 = vst.msk [vmem:[%s560 + $0x70] sm:$0xff] %vm2051, %v2749
      %2770 = vst.msk [vmem:[%s560 + $0x78] sm:$0xff] %vm2051, %v2752
      %s2771 = smul.u32 8, %s30
      %p2772 = scmp.lt.s32.totalorder %s29, 1
      %s2773 = scalar_select %p2772, %s29, 1
      %p2774 = scmp.lt.s32.totalorder %s2771, 15
      %s2775 = scalar_select %p2774, %s2771, 15
      %s2776 = smul.addr %s2775, 2
      %s2777 = smul.addr %s2773, 32
      %s2778 = sadd.s32 %s2776, %s2777
      %s2779 = smul.addr %s2778, 8
      %s2780 = scalar_lea.vmem %s12, %s2779
      %s2781 = smul.u32 8, %s30
      %p2782 = scmp.lt.s32.totalorder %s29, 1
      %s2783 = scalar_select %p2782, %s29, 1
      %p2784 = scmp.lt.s32.totalorder %s2781, 15
      %s2785 = scalar_select %p2784, %s2781, 15
      %s2786 = smul.addr %s2785, 2
      %s2787 = smul.addr %s2783, 32
      %s2788 = sadd.s32 %s2786, %s2787
      %s2789 = smul.addr %s2788, 8
      %s2790 = scalar_lea.vmem %s13, %s2789
      // Predicated region
      $region89: #{tpu_custom_call.1} parent=67 // pred_check
        %p2791 = pneg %p331
      $region90: #{tpu_custom_call.1} parent=67 // pred_check_branch
        %2793 = sbr.rel (%p2791) target = $region92
      $region91: #{tpu_custom_call.1} parent=67 // pred_region
        %s2794 = smul.u32 8, %s30
      $region92: #{tpu_custom_call.1} parent=67 // pred_fallthru
        _
      // Predicated region
      $region93: #{tpu_custom_call.1} parent=67 // pred_check
        %p2795 = pneg %p359
      $region94: #{tpu_custom_call.1} parent=67 // pred_check_branch
        %2797 = sbr.rel (%p2795) target = $region96
      $region95: #{tpu_custom_call.1} parent=67 // pred_region
        %s2798 = smul.u32 8, %s30
      $region96: #{tpu_custom_call.1} parent=67 // pred_fallthru
        _
    $region68: #{tpu_custom_call.1} parent=5 // pred_fallthru
      _
    %p2799 = scmp.le.s32.totalorder 2, %s20
    // Predicated region
    $region97: #{tpu_custom_call.1} parent=5 // pred_check
      %p2800 = pneg %p2799
    $region98: #{tpu_custom_call.1} parent=5 // pred_check_branch
      %2802 = sbr.rel (%p2800) target = $region100
    $region99: #{tpu_custom_call.1} parent=5 // pred_region
      %s2803 = ssub.s32 %s20, 2
      // Predicated region
      $region101: #{tpu_custom_call.1} parent=99 // pred_check
        %p2804 = pneg %p337
      $region102: #{tpu_custom_call.1} parent=99 // pred_check_branch
        %2806 = sbr.rel (%p2804) target = $region104
      $region103: #{tpu_custom_call.1} parent=99 // pred_region
        %s2807 = smul.u32 8, %s32
        %p2808 = scmp.lt.s32.totalorder %s31, 1
        %s2809 = scalar_select %p2808, %s31, 1
        %p2810 = scmp.lt.s32.totalorder %s2807, 15
        %s2811 = scalar_select %p2810, %s2807, 15
        %s2812 = smul.addr %s2811, 2
        %s2813 = smul.addr %s2809, 32
        %s2814 = sadd.s32 %s2812, %s2813
        %s2815 = smul.addr %s2814, 8
        %s2816 = scalar_lea.vmem %s12, %s2815
      $region104: #{tpu_custom_call.1} parent=99 // pred_fallthru
        _
      // Predicated region
      $region105: #{tpu_custom_call.1} parent=99 // pred_check
        %p2817 = pneg %p365
      $region106: #{tpu_custom_call.1} parent=99 // pred_check_branch
        %2819 = sbr.rel (%p2817) target = $region108
      $region107: #{tpu_custom_call.1} parent=99 // pred_region
        %s2820 = smul.u32 8, %s32
        %p2821 = scmp.lt.s32.totalorder %s31, 1
        %s2822 = scalar_select %p2821, %s31, 1
        %p2823 = scmp.lt.s32.totalorder %s2820, 15
        %s2824 = scalar_select %p2823, %s2820, 15
        %s2825 = smul.addr %s2824, 2
        %s2826 = smul.addr %s2822, 32
        %s2827 = sadd.s32 %s2825, %s2826
        %s2828 = smul.addr %s2827, 8
        %s2829 = scalar_lea.vmem %s13, %s2828
      $region108: #{tpu_custom_call.1} parent=99 // pred_fallthru
        _
    $region100: #{tpu_custom_call.1} parent=5 // pred_fallthru
      _
  $region6: #{tpu_custom_call.1} parent=0 // loop_footer
    %s24 = sadd.s32 1, %s20
  $region7: #{tpu_custom_call.1} parent=0 // loop_footer_branch
    %19 = sbr.rel target = $region3
  $region8: #{tpu_custom_call.1} parent=0 // loop_exit
    _

// kernel: tpu_custom_call.1
$region0: #{tpu_custom_call.1}
  #allocation0 [shape = 'u32[]', space=smem, size = 0x4, offset = 0x4, fixed_abs, tag = 'smem constant byte address 0x4 - core index']
  #allocation1 [shape = 'u32[144,128]{1,0:T(1,128)}', space=vmem, size = 0x12000, scoped, tag = 'internal scratch']
  #allocation2 [shape = 'bf16[10,25,2]{2,1,0:T(8,128)(2,1)}', space=vmem, size = 0x14000, scoped, tag = 'scratch operand']
  #allocation3 [shape = 'bf16[1,16,2]{2,1,0:T(16,128)(2,1)}', space=vmem, size = 0x1000, scoped, tag = 'scratch operand']
  %s0 = inlined_call_operand.vmem [shape: f32[2,16,16,4], index: 0, kind: input, shape index: {}]
  %s1 = inlined_call_operand.vmem [shape: f32[2,16,16,4], index: 1, kind: input, shape index: {}]
  %s2 = inlined_call_operand.vmem [shape: f32[1,4], index: 2, kind: input, shape index: {}]
  %s3 = inlined_call_operand.vmem [shape: f32[1,4], index: 3, kind: input, shape index: {}]
  %s4 = inlined_call_operand.vmem [shape: bf16[4,8], index: 4, kind: input, shape index: {}]
  %s5 = inlined_call_operand.vmem [shape: bf16[4,2], index: 5, kind: input, shape index: {}]
  %s6 = inlined_call_operand.vmem [shape: f32[1,2], index: 6, kind: input, shape index: {}]
  %s7 = inlined_call_operand.vmem [shape: f32[1,2], index: 7, kind: input, shape index: {}]
  %s8 = inlined_call_operand.vmem [shape: bf16[18,4], index: 8, kind: input, shape index: {}]
  %s9 = inlined_call_operand.vmem [shape: f32[1,4], index: 9, kind: input, shape index: {}]
  %s10 = inlined_call_operand.vmem [shape: f32[1,4], index: 10, kind: input, shape index: {}]
  %s11 = inlined_call_operand.vmem [shape: bf16[4,8], index: 11, kind: input, shape index: {}]
  %s12 = inlined_call_operand.vmem [shape: f32[2,16,16,8], index: 12, kind: output, shape index: {0}]
  %s13 = inlined_call_operand.vmem [shape: f32[2,16,16,4], index: 13, kind: output, shape index: {1}]
  %14 = xla_tuple %s12, %s13
  %s15 = sld [smem:[#allocation0]]
  $region109: #{tpu_custom_call.1} parent=0
    _
  %s17 = ssub.s32 1, %s15
  %s18 = scalar_select 0, %s17, %s15
  loop: start=0, step=1, limit=6
  $region2: #{tpu_custom_call.1} parent=0 // loop_pre_header
    _
  $region3: #{tpu_custom_call.1} parent=0 // loop_header
    %s20 = sphi 0, %s24
    %p21 = scmp.ge.s32.totalorder %s20, 6
    %s27 = sphi 0, %s39
    %s28 = sphi 0, %s35
    %s29 = sphi 0, %s27
    %s30 = sphi 0, %s28
    %s31 = sphi 0, %s29
    %s32 = sphi 0, %s30
    %s44 = sphi 0, %s46
    %s47 = sphi 0, %s44
    %s48 = sphi 0, %s47
    %s64 = sphi 0, %s48
    %s80 = sphi 0, %s82
    %s83 = sphi 0, %s80
    %s84 = sphi 0, %s83
    %s100 = sphi 0, %s84
    %s104 = sphi 0, %s104
    %s106 = sphi 0, %s104
    %s107 = sphi 0, %s106
    %s121 = sphi 0, %s107
    %s125 = sphi 0, %s125
    %s127 = sphi 0, %s125
    %s128 = sphi 0, %s127
    %s142 = sphi 0, %s128
    %s146 = sphi 0, %s146
    %s148 = sphi 0, %s146
    %s149 = sphi 0, %s148
    %s163 = sphi 0, %s149
    %s167 = sphi 0, %s167
    %s169 = sphi 0, %s167
    %s170 = sphi 0, %s169
    %s184 = sphi 0, %s170
    %s188 = sphi 0, %s188
    %s190 = sphi 0, %s188
    %s191 = sphi 0, %s190
    %s205 = sphi 0, %s191
    %s209 = sphi 0, %s209
    %s211 = sphi 0, %s209
    %s212 = sphi 0, %s211
    %s226 = sphi 0, %s212
    %s230 = sphi 0, %s230
    %s232 = sphi 0, %s230
    %s233 = sphi 0, %s232
    %s247 = sphi 0, %s233
    %s251 = sphi 0, %s251
    %s253 = sphi 0, %s251
    %s254 = sphi 0, %s253
    %s268 = sphi 0, %s254
    %s272 = sphi 0, %s272
    %s274 = sphi 0, %s272
    %s275 = sphi 0, %s274
    %s289 = sphi 0, %s275
    %s293 = sphi 0, %s293
    %s295 = sphi 0, %s293
    %s296 = sphi 0, %s295
    %s310 = sphi 0, %s296
    %s318 = sphi 0, %s320
    %s321 = sphi 0, %s318
    %s322 = sphi 0, %s321
    %s338 = sphi 0, %s322
    %s346 = sphi 0, %s348
    %s349 = sphi 0, %s346
    %s350 = sphi 0, %s349
    %s366 = sphi 0, %s350
  $region4: #{tpu_custom_call.1} parent=0 // loop_header_branch
    %23 = sbr.rel (%p21) target = $region8
  $region5: #{tpu_custom_call.1} parent=0 // loop_body
    %s25 = ssub.s32 %s20, 1
    %s26 = ssub.s32 %s20, 2
    %s33 = sadd.s32 1, %s28
    %p34 = scmp.ge.s32.totalorder %s33, 2
    %s35 = scalar_select %p34, 0, %s33
    %s36 = sadd.s32 1, %s27
    %s37 = scalar_select %p34, %s36, %s27
    %p38 = scmp.ge.s32.totalorder %s37, 2
    %s39 = scalar_select %p38, 0, %s37
    %s40 = ssub.s32 %s27, %s39
    %s41 = ssub.s32 %s28, %s35
    %s42 = sor.u32 %s40, %s41
    %p43 = scmp.eq.s32.totalorder %s42, 0
    %s45 = sadd.s32 %s44, 1
    %s46 = scalar_select %p43, %s44, %s45
    %p49 = pneg %p43
    %p50 = scmp.eq.s32.totalorder %s20, 3
    %p51 = por %p49, %p50
    %p52 = scmp.ne.s32.totalorder %s44, %s47
    %p53 = scmp.eq.s32.totalorder %s20, 0
    %p54 = por %p52, %p53
    %p55 = scmp.ne.s32.totalorder %s44, %s47
    %p56 = scmp.eq.s32.totalorder %s25, 3
    %p57 = por %p55, %p56
    %p58 = scmp.ne.s32.totalorder %s47, %s48
    %p59 = scmp.eq.s32.totalorder %s25, 0
    %p60 = por %p58, %p59
    %p61 = scmp.ne.s32.totalorder %s47, %s48
    %p62 = scmp.eq.s32.totalorder %s26, 3
    %p63 = por %p61, %p62
    %p65 = scmp.ne.s32.totalorder %s48, %s64
    %p66 = scmp.eq.s32.totalorder %s26, 0
    %p67 = por %p65, %p66
    %s68 = sadd.s32 %s28, 1
    %s69 = smul.u32 %s68, 8
    %p70 = scmp.lt.s32.totalorder %s69, 15
    %s71 = scalar_select %p70, %s69, 15
    %s72 = sadd.s32 %s35, 1
    %s73 = smul.u32 %s72, 8
    %p74 = scmp.lt.s32.totalorder %s73, 15
    %s75 = scalar_select %p74, %s73, 15
    %s76 = ssub.s32 %s27, %s39
    %s77 = ssub.s32 %s71, %s75
    %s78 = sor.u32 %s76, %s77
    %p79 = scmp.eq.s32.totalorder %s78, 0
    %s81 = sadd.s32 %s80, 1
    %s82 = scalar_select %p79, %s80, %s81
    %p85 = pneg %p79
    %p86 = scmp.eq.s32.totalorder %s20, 3
    %p87 = por %p85, %p86
    %p88 = scmp.ne.s32.totalorder %s80, %s83
    %p89 = scmp.eq.s32.totalorder %s20, 0
    %p90 = por %p88, %p89
    %p91 = scmp.ne.s32.totalorder %s80, %s83
    %p92 = scmp.eq.s32.totalorder %s25, 3
    %p93 = por %p91, %p92
    %p94 = scmp.ne.s32.totalorder %s83, %s84
    %p95 = scmp.eq.s32.totalorder %s25, 0
    %p96 = por %p94, %p95
    %p97 = scmp.ne.s32.totalorder %s83, %s84
    %p98 = scmp.eq.s32.totalorder %s26, 3
    %p99 = por %p97, %p98
    %p101 = scmp.ne.s32.totalorder %s84, %s100
    %p102 = scmp.eq.s32.totalorder %s26, 0
    %p103 = por %p101, %p102
    %s105 = sadd.s32 %s104, 1
    %p108 = scmp.eq.s32.totalorder %s20, 3
    %p109 = scmp.ne.s32.totalorder %s104, %s106
    %p110 = scmp.eq.s32.totalorder %s20, 0
    %p111 = por %p109, %p110
    %p112 = scmp.ne.s32.totalorder %s104, %s106
    %p113 = scmp.eq.s32.totalorder %s25, 3
    %p114 = por %p112, %p113
    %p115 = scmp.ne.s32.totalorder %s106, %s107
    %p116 = scmp.eq.s32.totalorder %s25, 0
    %p117 = por %p115, %p116
    %p118 = scmp.ne.s32.totalorder %s106, %s107
    %p119 = scmp.eq.s32.totalorder %s26, 3
    %p120 = por %p118, %p119
    %p122 = scmp.ne.s32.totalorder %s107, %s121
    %p123 = scmp.eq.s32.totalorder %s26, 0
    %p124 = por %p122, %p123
    %s126 = sadd.s32 %s125, 1
    %p129 = scmp.eq.s32.totalorder %s20, 3
    %p130 = scmp.ne.s32.totalorder %s125, %s127
    %p131 = scmp.eq.s32.totalorder %s20, 0
    %p132 = por %p130, %p131
    %p133 = scmp.ne.s32.totalorder %s125, %s127
    %p134 = scmp.eq.s32.totalorder %s25, 3
    %p135 = por %p133, %p134
    %p136 = scmp.ne.s32.totalorder %s127, %s128
    %p137 = scmp.eq.s32.totalorder %s25, 0
    %p138 = por %p136, %p137
    %p139 = scmp.ne.s32.totalorder %s127, %s128
    %p140 = scmp.eq.s32.totalorder %s26, 3
    %p141 = por %p139, %p140
    %p143 = scmp.ne.s32.totalorder %s128, %s142
    %p144 = scmp.eq.s32.totalorder %s26, 0
    %p145 = por %p143, %p144
    %s147 = sadd.s32 %s146, 1
    %p150 = scmp.eq.s32.totalorder %s20, 3
    %p151 = scmp.ne.s32.totalorder %s146, %s148
    %p152 = scmp.eq.s32.totalorder %s20, 0
    %p153 = por %p151, %p152
    %p154 = scmp.ne.s32.totalorder %s146, %s148
    %p155 = scmp.eq.s32.totalorder %s25, 3
    %p156 = por %p154, %p155
    %p157 = scmp.ne.s32.totalorder %s148, %s149
    %p158 = scmp.eq.s32.totalorder %s25, 0
    %p159 = por %p157, %p158
    %p160 = scmp.ne.s32.totalorder %s148, %s149
    %p161 = scmp.eq.s32.totalorder %s26, 3
    %p162 = por %p160, %p161
    %p164 = scmp.ne.s32.totalorder %s149, %s163
    %p165 = scmp.eq.s32.totalorder %s26, 0
    %p166 = por %p164, %p165
    %s168 = sadd.s32 %s167, 1
    %p171 = scmp.eq.s32.totalorder %s20, 3
    %p172 = scmp.ne.s32.totalorder %s167, %s169
    %p173 = scmp.eq.s32.totalorder %s20, 0
    %p174 = por %p172, %p173
    %p175 = scmp.ne.s32.totalorder %s167, %s169
    %p176 = scmp.eq.s32.totalorder %s25, 3
    %p177 = por %p175, %p176
    %p178 = scmp.ne.s32.totalorder %s169, %s170
    %p179 = scmp.eq.s32.totalorder %s25, 0
    %p180 = por %p178, %p179
    %p181 = scmp.ne.s32.totalorder %s169, %s170
    %p182 = scmp.eq.s32.totalorder %s26, 3
    %p183 = por %p181, %p182
    %p185 = scmp.ne.s32.totalorder %s170, %s184
    %p186 = scmp.eq.s32.totalorder %s26, 0
    %p187 = por %p185, %p186
    %s189 = sadd.s32 %s188, 1
    %p192 = scmp.eq.s32.totalorder %s20, 3
    %p193 = scmp.ne.s32.totalorder %s188, %s190
    %p194 = scmp.eq.s32.totalorder %s20, 0
    %p195 = por %p193, %p194
    %p196 = scmp.ne.s32.totalorder %s188, %s190
    %p197 = scmp.eq.s32.totalorder %s25, 3
    %p198 = por %p196, %p197
    %p199 = scmp.ne.s32.totalorder %s190, %s191
    %p200 = scmp.eq.s32.totalorder %s25, 0
    %p201 = por %p199, %p200
    %p202 = scmp.ne.s32.totalorder %s190, %s191
    %p203 = scmp.eq.s32.totalorder %s26, 3
    %p204 = por %p202, %p203
    %p206 = scmp.ne.s32.totalorder %s191, %s205
    %p207 = scmp.eq.s32.totalorder %s26, 0
    %p208 = por %p206, %p207
    %s210 = sadd.s32 %s209, 1
    %p213 = scmp.eq.s32.totalorder %s20, 3
    %p214 = scmp.ne.s32.totalorder %s209, %s211
    %p215 = scmp.eq.s32.totalorder %s20, 0
    %p216 = por %p214, %p215
    %p217 = scmp.ne.s32.totalorder %s209, %s211
    %p218 = scmp.eq.s32.totalorder %s25, 3
    %p219 = por %p217, %p218
    %p220 = scmp.ne.s32.totalorder %s211, %s212
    %p221 = scmp.eq.s32.totalorder %s25, 0
    %p222 = por %p220, %p221
    %p223 = scmp.ne.s32.totalorder %s211, %s212
    %p224 = scmp.eq.s32.totalorder %s26, 3
    %p225 = por %p223, %p224
    %p227 = scmp.ne.s32.totalorder %s212, %s226
    %p228 = scmp.eq.s32.totalorder %s26, 0
    %p229 = por %p227, %p228
    %s231 = sadd.s32 %s230, 1
    %p234 = scmp.eq.s32.totalorder %s20, 3
    %p235 = scmp.ne.s32.totalorder %s230, %s232
    %p236 = scmp.eq.s32.totalorder %s20, 0
    %p237 = por %p235, %p236
    %p238 = scmp.ne.s32.totalorder %s230, %s232
    %p239 = scmp.eq.s32.totalorder %s25, 3
    %p240 = por %p238, %p239
    %p241 = scmp.ne.s32.totalorder %s232, %s233
    %p242 = scmp.eq.s32.totalorder %s25, 0
    %p243 = por %p241, %p242
    %p244 = scmp.ne.s32.totalorder %s232, %s233
    %p245 = scmp.eq.s32.totalorder %s26, 3
    %p246 = por %p244, %p245
    %p248 = scmp.ne.s32.totalorder %s233, %s247
    %p249 = scmp.eq.s32.totalorder %s26, 0
    %p250 = por %p248, %p249
    %s252 = sadd.s32 %s251, 1
    %p255 = scmp.eq.s32.totalorder %s20, 3
    %p256 = scmp.ne.s32.totalorder %s251, %s253
    %p257 = scmp.eq.s32.totalorder %s20, 0
    %p258 = por %p256, %p257
    %p259 = scmp.ne.s32.totalorder %s251, %s253
    %p260 = scmp.eq.s32.totalorder %s25, 3
    %p261 = por %p259, %p260
    %p262 = scmp.ne.s32.totalorder %s253, %s254
    %p263 = scmp.eq.s32.totalorder %s25, 0
    %p264 = por %p262, %p263
    %p265 = scmp.ne.s32.totalorder %s253, %s254
    %p266 = scmp.eq.s32.totalorder %s26, 3
    %p267 = por %p265, %p266
    %p269 = scmp.ne.s32.totalorder %s254, %s268
    %p270 = scmp.eq.s32.totalorder %s26, 0
    %p271 = por %p269, %p270
    %s273 = sadd.s32 %s272, 1
    %p276 = scmp.eq.s32.totalorder %s20, 3
    %p277 = scmp.ne.s32.totalorder %s272, %s274
    %p278 = scmp.eq.s32.totalorder %s20, 0
    %p279 = por %p277, %p278
    %p280 = scmp.ne.s32.totalorder %s272, %s274
    %p281 = scmp.eq.s32.totalorder %s25, 3
    %p282 = por %p280, %p281
    %p283 = scmp.ne.s32.totalorder %s274, %s275
    %p284 = scmp.eq.s32.totalorder %s25, 0
    %p285 = por %p283, %p284
    %p286 = scmp.ne.s32.totalorder %s274, %s275
    %p287 = scmp.eq.s32.totalorder %s26, 3
    %p288 = por %p286, %p287
    %p290 = scmp.ne.s32.totalorder %s275, %s289
    %p291 = scmp.eq.s32.totalorder %s26, 0
    %p292 = por %p290, %p291
    %s294 = sadd.s32 %s293, 1
    %p297 = scmp.eq.s32.totalorder %s20, 3
    %p298 = scmp.ne.s32.totalorder %s293, %s295
    %p299 = scmp.eq.s32.totalorder %s20, 0
    %p300 = por %p298, %p299
    %p301 = scmp.ne.s32.totalorder %s293, %s295
    %p302 = scmp.eq.s32.totalorder %s25, 3
    %p303 = por %p301, %p302
    %p304 = scmp.ne.s32.totalorder %s295, %s296
    %p305 = scmp.eq.s32.totalorder %s25, 0
    %p306 = por %p304, %p305
    %p307 = scmp.ne.s32.totalorder %s295, %s296
    %p308 = scmp.eq.s32.totalorder %s26, 3
    %p309 = por %p307, %p308
    %p311 = scmp.ne.s32.totalorder %s296, %s310
    %p312 = scmp.eq.s32.totalorder %s26, 0
    %p313 = por %p311, %p312
    %s314 = ssub.s32 %s27, %s39
    %s315 = ssub.s32 %s28, %s35
    %s316 = sor.u32 %s314, %s315
    %p317 = scmp.eq.s32.totalorder %s316, 0
    %s319 = sadd.s32 %s318, 1
    %s320 = scalar_select %p317, %s318, %s319
    %p323 = pneg %p317
    %p324 = scmp.eq.s32.totalorder %s20, 3
    %p325 = por %p323, %p324
    %p326 = scmp.ne.s32.totalorder %s318, %s321
    %p327 = scmp.eq.s32.totalorder %s20, 0
    %p328 = por %p326, %p327
    %p329 = scmp.ne.s32.totalorder %s318, %s321
    %p330 = scmp.eq.s32.totalorder %s25, 3
    %p331 = por %p329, %p330
    %p332 = scmp.ne.s32.totalorder %s321, %s322
    %p333 = scmp.eq.s32.totalorder %s25, 0
    %p334 = por %p332, %p333
    %p335 = scmp.ne.s32.totalorder %s321, %s322
    %p336 = scmp.eq.s32.totalorder %s26, 3
    %p337 = por %p335, %p336
    %p339 = scmp.ne.s32.totalorder %s322, %s338
    %p340 = scmp.eq.s32.totalorder %s26, 0
    %p341 = por %p339, %p340
    %s342 = ssub.s32 %s27, %s39
    %s343 = ssub.s32 %s28, %s35
    %s344 = sor.u32 %s342, %s343
    %p345 = scmp.eq.s32.totalorder %s344, 0
    %s347 = sadd.s32 %s346, 1
    %s348 = scalar_select %p345, %s346, %s347
    %p351 = pneg %p345
    %p352 = scmp.eq.s32.totalorder %s20, 3
    %p353 = por %p351, %p352
    %p354 = scmp.ne.s32.totalorder %s346, %s349
    %p355 = scmp.eq.s32.totalorder %s20, 0
    %p356 = por %p354, %p355
    %p357 = scmp.ne.s32.totalorder %s346, %s349
    %p358 = scmp.eq.s32.totalorder %s25, 3
    %p359 = por %p357, %p358
    %p360 = scmp.ne.s32.totalorder %s349, %s350
    %p361 = scmp.eq.s32.totalorder %s25, 0
    %p362 = por %p360, %p361
    %p363 = scmp.ne.s32.totalorder %s349, %s350
    %p364 = scmp.eq.s32.totalorder %s26, 3
    %p365 = por %p363, %p364
    %p367 = scmp.ne.s32.totalorder %s350, %s366
    %p368 = scmp.eq.s32.totalorder %s26, 0
    %p369 = por %p367, %p368
    %p370 = scmp.le.s32.totalorder 1, %s20
    %p371 = scmp.lt.s32.totalorder %s20, 5
    %p372 = pnand %p370, %p371
    %p373 = pneg %p372
    // Predicated region
    $region9: #{tpu_custom_call.1} parent=5 // pred_check
      _
    $region10: #{tpu_custom_call.1} parent=5 // pred_check_branch
      %375 = sbr.rel (%p372) target = $region12
    $region11: #{tpu_custom_call.1} parent=5 // pred_region
      %s376 = ssub.s32 %s20, 1
      // Predicated region
      $region13: #{tpu_custom_call.1} parent=11 // pred_check
        %p377 = pneg %p117
      $region14: #{tpu_custom_call.1} parent=11 // pred_check_branch
        %379 = sbr.rel (%p377) target = $region16
      $region15: #{tpu_custom_call.1} parent=11 // pred_region
        _
      $region16: #{tpu_custom_call.1} parent=11 // pred_fallthru
        _
      // Predicated region
      $region17: #{tpu_custom_call.1} parent=11 // pred_check
        %p380 = pneg %p138
      $region18: #{tpu_custom_call.1} parent=11 // pred_check_branch
        %382 = sbr.rel (%p380) target = $region20
      $region19: #{tpu_custom_call.1} parent=11 // pred_region
        _
      $region20: #{tpu_custom_call.1} parent=11 // pred_fallthru
        _
      // Predicated region
      $region21: #{tpu_custom_call.1} parent=11 // pred_check
        %p383 = pneg %p159
      $region22: #{tpu_custom_call.1} parent=11 // pred_check_branch
        %385 = sbr.rel (%p383) target = $region24
      $region23: #{tpu_custom_call.1} parent=11 // pred_region
        _
      $region24: #{tpu_custom_call.1} parent=11 // pred_fallthru
        _
      // Predicated region
      $region25: #{tpu_custom_call.1} parent=11 // pred_check
        %p386 = pneg %p180
      $region26: #{tpu_custom_call.1} parent=11 // pred_check_branch
        %388 = sbr.rel (%p386) target = $region28
      $region27: #{tpu_custom_call.1} parent=11 // pred_region
        _
      $region28: #{tpu_custom_call.1} parent=11 // pred_fallthru
        _
      // Predicated region
      $region29: #{tpu_custom_call.1} parent=11 // pred_check
        %p389 = pneg %p201
      $region30: #{tpu_custom_call.1} parent=11 // pred_check_branch
        %391 = sbr.rel (%p389) target = $region32
      $region31: #{tpu_custom_call.1} parent=11 // pred_region
        _
      $region32: #{tpu_custom_call.1} parent=11 // pred_fallthru
        _
      // Predicated region
      $region33: #{tpu_custom_call.1} parent=11 // pred_check
        %p392 = pneg %p222
      $region34: #{tpu_custom_call.1} parent=11 // pred_check_branch
        %394 = sbr.rel (%p392) target = $region36
      $region35: #{tpu_custom_call.1} parent=11 // pred_region
        _
      $region36: #{tpu_custom_call.1} parent=11 // pred_fallthru
        _
      // Predicated region
      $region37: #{tpu_custom_call.1} parent=11 // pred_check
        %p395 = pneg %p243
      $region38: #{tpu_custom_call.1} parent=11 // pred_check_branch
        %397 = sbr.rel (%p395) target = $region40
      $region39: #{tpu_custom_call.1} parent=11 // pred_region
        _
      $region40: #{tpu_custom_call.1} parent=11 // pred_fallthru
        _
      // Predicated region
      $region41: #{tpu_custom_call.1} parent=11 // pred_check
        %p398 = pneg %p264
      $region42: #{tpu_custom_call.1} parent=11 // pred_check_branch
        %400 = sbr.rel (%p398) target = $region44
      $region43: #{tpu_custom_call.1} parent=11 // pred_region
        _
      $region44: #{tpu_custom_call.1} parent=11 // pred_fallthru
        _
      // Predicated region
      $region45: #{tpu_custom_call.1} parent=11 // pred_check
        %p401 = pneg %p285
      $region46: #{tpu_custom_call.1} parent=11 // pred_check_branch
        %403 = sbr.rel (%p401) target = $region48
      $region47: #{tpu_custom_call.1} parent=11 // pred_region
        _
      $region48: #{tpu_custom_call.1} parent=11 // pred_fallthru
        _
      // Predicated region
      $region49: #{tpu_custom_call.1} parent=11 // pred_check
        %p404 = pneg %p306
      $region50: #{tpu_custom_call.1} parent=11 // pred_check_branch
        %406 = sbr.rel (%p404) target = $region52
      $region51: #{tpu_custom_call.1} parent=11 // pred_region
        _
      $region52: #{tpu_custom_call.1} parent=11 // pred_fallthru
        _
    $region12: #{tpu_custom_call.1} parent=5 // pred_fallthru
      _
    %p407 = scmp.lt.s32.totalorder %s20, 4
    // Predicated region
    $region53: #{tpu_custom_call.1} parent=5 // pred_check
      %p408 = pneg %p407
    $region54: #{tpu_custom_call.1} parent=5 // pred_check_branch
      %410 = sbr.rel (%p408) target = $region56
    $region55: #{tpu_custom_call.1} parent=5 // pred_region
      // Predicated region
      $region57: #{tpu_custom_call.1} parent=55 // pred_check
        %p411 = pneg %p54
      $region58: #{tpu_custom_call.1} parent=55 // pred_check_branch
        %413 = sbr.rel (%p411) target = $region60
      $region59: #{tpu_custom_call.1} parent=55 // pred_region
        %s414 = smul.u32 8, %s28
        %p415 = scmp.lt.s32.totalorder %s27, 1
        %s416 = scalar_select %p415, %s27, 1
        %p417 = scmp.lt.s32.totalorder %s414, 15
        %s418 = scalar_select %p417, %s414, 15
        %s419 = smul.addr %s418, 2
        %s420 = smul.addr %s416, 32
        %s421 = sadd.s32 %s419, %s420
        %s422 = smul.addr %s421, 8
        %s423 = scalar_lea.vmem %s0, %s422
        %s424 = smul.u32 8, %s28
      $region60: #{tpu_custom_call.1} parent=55 // pred_fallthru
        _
      // Predicated region
      $region61: #{tpu_custom_call.1} parent=55 // pred_check
        %p425 = pneg %p90
      $region62: #{tpu_custom_call.1} parent=55 // pred_check_branch
        %427 = sbr.rel (%p425) target = $region64
      $region63: #{tpu_custom_call.1} parent=55 // pred_region
        %s428 = sadd.s32 %s28, 1
        %s429 = smul.u32 %s428, 8
        %p430 = scmp.lt.s32.totalorder %s429, 15
        %s431 = scalar_select %p430, %s429, 15
        %p432 = scmp.lt.s32.totalorder %s27, 1
        %s433 = scalar_select %p432, %s27, 1
        %p434 = scmp.lt.s32.totalorder %s431, 15
        %s435 = scalar_select %p434, %s431, 15
        %s436 = smul.addr %s435, 2
        %s437 = smul.addr %s433, 32
        %s438 = sadd.s32 %s436, %s437
        %s439 = smul.addr %s438, 8
        %s440 = scalar_lea.vmem %s1, %s439
        %s441 = sadd.s32 %s28, 1
        %s442 = smul.u32 %s441, 8
        %p443 = scmp.lt.s32.totalorder %s442, 15
        %s444 = scalar_select %p443, %s442, 15
      $region64: #{tpu_custom_call.1} parent=55 // pred_fallthru
        _
    $region56: #{tpu_custom_call.1} parent=5 // pred_fallthru
      _
    %p445 = scmp.le.s32.totalorder 1, %s20
    %p446 = scmp.lt.s32.totalorder %s20, 5
    %p447 = pnand %p445, %p446
    %p448 = pneg %p447
    // Predicated region
    $region65: #{tpu_custom_call.1} parent=5 // pred_check
      _
    $region66: #{tpu_custom_call.1} parent=5 // pred_check_branch
      %450 = sbr.rel (%p447) target = $region68
    $region67: #{tpu_custom_call.1} parent=5 // pred_region
      %s451 = ssub.s32 %s20, 1
      %s452 = smul.u32 8, %s30
      %p453 = scmp.lt.s32.totalorder %s29, 1
      %s454 = scalar_select %p453, %s29, 1
      %p455 = scmp.lt.s32.totalorder %s452, 15
      %s456 = scalar_select %p455, %s452, 15
      %s457 = smul.addr %s456, 2
      %s458 = smul.addr %s454, 32
      %s459 = sadd.s32 %s457, %s458
      %s460 = smul.addr %s459, 8
      %s461 = scalar_lea.vmem %s0, %s460
      %p462 = pneg %p60
      %p463 = pneg %p57
      %s464 = sadd.s32 %s30, 1
      %s465 = smul.u32 %s464, 8
      %p466 = scmp.lt.s32.totalorder %s465, 15
      %s467 = scalar_select %p466, %s465, 15
      %p468 = scmp.lt.s32.totalorder %s29, 1
      %s469 = scalar_select %p468, %s29, 1
      %p470 = scmp.lt.s32.totalorder %s467, 15
      %s471 = scalar_select %p470, %s467, 15
      %s472 = smul.addr %s471, 2
      %s473 = smul.addr %s469, 32
      %s474 = sadd.s32 %s472, %s473
      %s475 = smul.addr %s474, 8
      %s476 = scalar_lea.vmem %s1, %s475
      %p477 = pneg %p96
      %p478 = pneg %p93
      %p479 = pneg %p117
      %p480 = pneg %p114
      %p481 = pneg %p138
      %p482 = pneg %p135
      %p483 = pneg %p159
      %p484 = pneg %p156
      %p485 = pneg %p180
      %p486 = pneg %p177
      %p487 = pneg %p201
      %p488 = pneg %p198
      %p489 = pneg %p222
      %p490 = pneg %p219
      %p491 = pneg %p243
      %p492 = pneg %p240
      %p493 = pneg %p264
      %p494 = pneg %p261
      %p495 = pneg %p285
      %p496 = pneg %p282
      %p497 = pneg %p306
      %p498 = pneg %p303
      %p499 = pneg %p334
      %p500 = pneg %p331
      %s501 = smul.u32 8, %s30
      %p502 = scmp.lt.s32.totalorder %s29, 1
      %s503 = scalar_select %p502, %s29, 1
      %p504 = scmp.lt.s32.totalorder %s501, 15
      %s505 = scalar_select %p504, %s501, 15
      %s506 = smul.addr %s505, 2
      %s507 = smul.addr %s503, 32
      %s508 = sadd.s32 %s506, %s507
      %s509 = smul.addr %s508, 8
      %s510 = scalar_lea.vmem %s12, %s509
      %p511 = pneg %p362
      %p512 = pneg %p359
      %s513 = smul.u32 8, %s30
      %p514 = scmp.lt.s32.totalorder %s29, 1
      %s515 = scalar_select %p514, %s29, 1
      %p516 = scmp.lt.s32.totalorder %s513, 15
      %s517 = scalar_select %p516, %s513, 15
      %s518 = smul.addr %s517, 2
      %s519 = smul.addr %s515, 32
      %s520 = sadd.s32 %s518, %s519
      %s521 = smul.addr %s520, 8
      %s522 = scalar_lea.vmem %s13, %s521
      %s523 = smul.u32 8, %s30
      %p524 = scmp.lt.s32.totalorder %s29, 1
      %s525 = scalar_select %p524, %s29, 1
      %p526 = scmp.lt.s32.totalorder %s523, 15
      %s527 = scalar_select %p526, %s523, 15
      %s528 = smul.addr %s527, 2
      %s529 = smul.addr %s525, 32
      %s530 = sadd.s32 %s528, %s529
      %s531 = smul.addr %s530, 8
      %s532 = scalar_lea.vmem %s0, %s531
      %s533 = smul.u32 8, %s30
      %s534 = sadd.s32 %s30, 1
      %s535 = smul.u32 %s534, 8
      %p536 = scmp.lt.s32.totalorder %s535, 15
      %s537 = scalar_select %p536, %s535, 15
      %p538 = scmp.lt.s32.totalorder %s29, 1
      %s539 = scalar_select %p538, %s29, 1
      %p540 = scmp.lt.s32.totalorder %s537, 15
      %s541 = scalar_select %p540, %s537, 15
      %s542 = smul.addr %s541, 2
      %s543 = smul.addr %s539, 32
      %s544 = sadd.s32 %s542, %s543
      %s545 = smul.addr %s544, 8
      %s546 = scalar_lea.vmem %s1, %s545
      %s547 = sadd.s32 %s30, 1
      %s548 = smul.u32 %s547, 8
      %p549 = scmp.lt.s32.totalorder %s548, 15
      %s550 = scalar_select %p549, %s548, 15
      %s551 = smul.u32 8, %s30
      %p552 = scmp.lt.s32.totalorder %s29, 1
      %s553 = scalar_select %p552, %s29, 1
      %p554 = scmp.lt.s32.totalorder %s551, 15
      %s555 = scalar_select %p554, %s551, 15
      %s556 = smul.addr %s555, 2
      %s557 = smul.addr %s553, 32
      %s558 = sadd.s32 %s556, %s557
      %s559 = smul.addr %s558, 8
      %s560 = scalar_lea.vmem %s12, %s559
      %s561 = smul.u32 8, %s30
      %s562 = smul.u32 8, %s30
      %p563 = scmp.lt.s32.totalorder %s29, 1
      %s564 = scalar_select %p563, %s29, 1
      %p565 = scmp.lt.s32.totalorder %s562, 15
      %s566 = scalar_select %p565, %s562, 15
      %s567 = smul.addr %s566, 2
      %s568 = smul.addr %s564, 32
      %s569 = sadd.s32 %s567, %s568
      %s570 = smul.addr %s569, 8
      %s571 = scalar_lea.vmem %s13, %s570
      %s572 = smul.u32 8, %s30
      %p574 = scmp.eq.s32.totalorder %s30, 0
      // Predicated region
      $region69: #{tpu_custom_call.1} parent=67 // pred_check
        %p575 = pneg %p574
      $region70: #{tpu_custom_call.1} parent=67 // pred_check_branch
        %577 = sbr.rel (%p575) target = $region72
      $region71: #{tpu_custom_call.1} parent=67 // pred_region
        %vm578 = vcmask 11267
        %vm579 = vsmask.f32 7950
        %vm580 = vmand %vm578, %vm579
        %v581 = vld [vmem:[#allocation2] sm:$0x8]
        %v582 = vsel %vm580, 0, %v581
        %583 = vst [vmem:[#allocation2] sm:$0x8] %v582
        %v584 = vld [vmem:[#allocation2 + $0x10] sm:$0x8]
        %v585 = vsel %vm580, 0, %v584
        %586 = vst [vmem:[#allocation2 + $0x10] sm:$0x8] %v585
        %v587 = vld [vmem:[#allocation2 + $0x20] sm:$0x8]
        %v588 = vsel %vm580, 0, %v587
        %589 = vst [vmem:[#allocation2 + $0x20] sm:$0x8] %v588
        %v590 = vld [vmem:[#allocation2 + $0x30] sm:$0x8]
        %v591 = vsel %vm580, 0, %v590
        %592 = vst [vmem:[#allocation2 + $0x30] sm:$0x8] %v591
        %v593 = vld [vmem:[#allocation2 + $0x40] sm:$0x8]
        %v594 = vsel %vm580, 0, %v593
        %595 = vst [vmem:[#allocation2 + $0x40] sm:$0x8] %v594
        %v596 = vld [vmem:[#allocation2 + $0x50] sm:$0x8]
        %v597 = vsel %vm580, 0, %v596
        %598 = vst [vmem:[#allocation2 + $0x50] sm:$0x8] %v597
        %v599 = vld [vmem:[#allocation2 + $0x60] sm:$0x8]
        %v600 = vsel %vm580, 0, %v599
        %601 = vst [vmem:[#allocation2 + $0x60] sm:$0x8] %v600
        %v602 = vld [vmem:[#allocation2 + $0x70] sm:$0x8]
        %v603 = vsel %vm580, 0, %v602
        %604 = vst [vmem:[#allocation2 + $0x70] sm:$0x8] %v603
        %v605 = vld [vmem:[#allocation2 + $0x80] sm:$0x8]
        %v606 = vsel %vm580, 0, %v605
        %607 = vst [vmem:[#allocation2 + $0x80] sm:$0x8] %v606
        %v608 = vld [vmem:[#allocation2 + $0x90] sm:$0x8]
        %v609 = vsel %vm580, 0, %v608
        %610 = vst [vmem:[#allocation2 + $0x90] sm:$0x8] %v609
        %vm611 = vcmask 8192
        %vm612 = vsmask.f32 256
        %vm613 = vmand %vm611, %vm612
        %v614 = vld [vmem:[#allocation2 + $0xc] sm:$0x1]
        %v615 = vsel %vm613, 0, %v614
        %616 = vst [vmem:[#allocation2 + $0xc] sm:$0x1] %v615
        %v617 = vld [vmem:[#allocation2 + $0x1c] sm:$0x1]
        %v618 = vsel %vm613, 0, %v617
        %619 = vst [vmem:[#allocation2 + $0x1c] sm:$0x1] %v618
        %v620 = vld [vmem:[#allocation2 + $0x2c] sm:$0x1]
        %v621 = vsel %vm613, 0, %v620
        %622 = vst [vmem:[#allocation2 + $0x2c] sm:$0x1] %v621
        %v623 = vld [vmem:[#allocation2 + $0x3c] sm:$0x1]
        %v624 = vsel %vm613, 0, %v623
        %625 = vst [vmem:[#allocation2 + $0x3c] sm:$0x1] %v624
        %v626 = vld [vmem:[#allocation2 + $0x4c] sm:$0x1]
        %v627 = vsel %vm613, 0, %v626
        %628 = vst [vmem:[#allocation2 + $0x4c] sm:$0x1] %v627
        %v629 = vld [vmem:[#allocation2 + $0x5c] sm:$0x1]
        %v630 = vsel %vm613, 0, %v629
        %631 = vst [vmem:[#allocation2 + $0x5c] sm:$0x1] %v630
        %v632 = vld [vmem:[#allocation2 + $0x6c] sm:$0x1]
        %v633 = vsel %vm613, 0, %v632
        %634 = vst [vmem:[#allocation2 + $0x6c] sm:$0x1] %v633
        %v635 = vld [vmem:[#allocation2 + $0x7c] sm:$0x1]
        %v636 = vsel %vm613, 0, %v635
        %637 = vst [vmem:[#allocation2 + $0x7c] sm:$0x1] %v636
        %v638 = vld [vmem:[#allocation2 + $0x8c] sm:$0x1]
        %v639 = vsel %vm613, 0, %v638
        %640 = vst [vmem:[#allocation2 + $0x8c] sm:$0x1] %v639
        %v641 = vld [vmem:[#allocation2 + $0x9c] sm:$0x1]
        %v642 = vsel %vm613, 0, %v641
        %643 = vst [vmem:[#allocation2 + $0x9c] sm:$0x1] %v642
      $region72: #{tpu_custom_call.1} parent=67 // pred_fallthru
        _
      %v644 = vld [vmem:[%s2] sm:$0x1]
      %v645 = vld [vmem:[%s3] sm:$0x1]
      %v646 = vld [vmem:[%s532] sm:$0xff]
      %v647 = vld [vmem:[%s532 + $0x8] sm:$0xff]
      %v648 = vld [vmem:[%s532 + $0x10] sm:$0xff]
      %v649 = vld [vmem:[%s532 + $0x18] sm:$0xff]
      %v650 = vld [vmem:[%s532 + $0x20] sm:$0xff]
      %v651 = vld [vmem:[%s532 + $0x28] sm:$0xff]
      %v652 = vld [vmem:[%s532 + $0x30] sm:$0xff]
      %v653 = vld [vmem:[%s532 + $0x38] sm:$0xff]
      %v654 = vld [vmem:[%s532 + $0x40] sm:$0xff]
      %v655 = vld [vmem:[%s532 + $0x48] sm:$0xff]
      %v656 = vld [vmem:[%s532 + $0x50] sm:$0xff]
      %v657 = vld [vmem:[%s532 + $0x58] sm:$0xff]
      %v658 = vld [vmem:[%s532 + $0x60] sm:$0xff]
      %v659 = vld [vmem:[%s532 + $0x68] sm:$0xff]
      %v660 = vld [vmem:[%s532 + $0x70] sm:$0xff]
      %v661 = vld [vmem:[%s532 + $0x78] sm:$0xff]
      %v663 = vlaneseq
      %v664 = vshrl.u32 %v663, 7
      %v665 = vsub.s32 0, %v664
      %v666 = vrot.slane %v644, %v665
      %v668 = vmul.f32 %v646, %v666
      %v669 = vmul.f32 %v647, %v666
      %v670 = vmul.f32 %v648, %v666
      %v671 = vmul.f32 %v649, %v666
      %v672 = vmul.f32 %v650, %v666
      %v673 = vmul.f32 %v651, %v666
      %v674 = vmul.f32 %v652, %v666
      %v675 = vmul.f32 %v653, %v666
      %v676 = vmul.f32 %v654, %v666
      %v677 = vmul.f32 %v655, %v666
      %v678 = vmul.f32 %v656, %v666
      %v679 = vmul.f32 %v657, %v666
      %v680 = vmul.f32 %v658, %v666
      %v681 = vmul.f32 %v659, %v666
      %v682 = vmul.f32 %v660, %v666
      %v683 = vmul.f32 %v661, %v666
      %v685 = vlaneseq
      %v686 = vshrl.u32 %v685, 7
      %v687 = vsub.s32 0, %v686
      %v688 = vrot.slane %v645, %v687
      %v690 = vadd.f32 %v668, %v688
      %v691 = vadd.f32 %v669, %v688
      %v692 = vadd.f32 %v670, %v688
      %v693 = vadd.f32 %v671, %v688
      %v694 = vadd.f32 %v672, %v688
      %v695 = vadd.f32 %v673, %v688
      %v696 = vadd.f32 %v674, %v688
      %v697 = vadd.f32 %v675, %v688
      %v698 = vadd.f32 %v676, %v688
      %v699 = vadd.f32 %v677, %v688
      %v700 = vadd.f32 %v678, %v688
      %v701 = vadd.f32 %v679, %v688
      %v702 = vadd.f32 %v680, %v688
      %v703 = vadd.f32 %v681, %v688
      %v704 = vadd.f32 %v682, %v688
      %v705 = vadd.f32 %v683, %v688
      %v706 = vmax.f32 %v690, 0.0
      %v707 = vmax.f32 %v691, 0.0
      %v708 = vmax.f32 %v692, 0.0
      %v709 = vmax.f32 %v693, 0.0
      %v710 = vmax.f32 %v694, 0.0
      %v711 = vmax.f32 %v695, 0.0
      %v712 = vmax.f32 %v696, 0.0
      %v713 = vmax.f32 %v697, 0.0
      %v714 = vmax.f32 %v698, 0.0
      %v715 = vmax.f32 %v699, 0.0
      %v716 = vmax.f32 %v700, 0.0
      %v717 = vmax.f32 %v701, 0.0
      %v718 = vmax.f32 %v702, 0.0
      %v719 = vmax.f32 %v703, 0.0
      %v720 = vmax.f32 %v704, 0.0
      %v721 = vmax.f32 %v705, 0.0
      %vm722 = vcmask 31744
      %723 = vst.msk [vmem:[%s571] sm:$0xff] %vm722, %v706
      %724 = vst.msk [vmem:[%s571 + $0x8] sm:$0xff] %vm722, %v707
      %725 = vst.msk [vmem:[%s571 + $0x10] sm:$0xff] %vm722, %v708
      %726 = vst.msk [vmem:[%s571 + $0x18] sm:$0xff] %vm722, %v709
      %727 = vst.msk [vmem:[%s571 + $0x20] sm:$0xff] %vm722, %v710
      %728 = vst.msk [vmem:[%s571 + $0x28] sm:$0xff] %vm722, %v711
      %729 = vst.msk [vmem:[%s571 + $0x30] sm:$0xff] %vm722, %v712
      %730 = vst.msk [vmem:[%s571 + $0x38] sm:$0xff] %vm722, %v713
      %731 = vst.msk [vmem:[%s571 + $0x40] sm:$0xff] %vm722, %v714
      %732 = vst.msk [vmem:[%s571 + $0x48] sm:$0xff] %vm722, %v715
      %733 = vst.msk [vmem:[%s571 + $0x50] sm:$0xff] %vm722, %v716
      %734 = vst.msk [vmem:[%s571 + $0x58] sm:$0xff] %vm722, %v717
      %735 = vst.msk [vmem:[%s571 + $0x60] sm:$0xff] %vm722, %v718
      %736 = vst.msk [vmem:[%s571 + $0x68] sm:$0xff] %vm722, %v719
      %737 = vst.msk [vmem:[%s571 + $0x70] sm:$0xff] %vm722, %v720
      %738 = vst.msk [vmem:[%s571 + $0x78] sm:$0xff] %vm722, %v721
      %v739 = vld [vmem:[%s546] sm:$0xff]
      %v740 = vld [vmem:[%s546 + $0x8] sm:$0xff]
      %v741 = vmul.f32 %v739, %v666
      %v742 = vmul.f32 %v740, %v666
      %v743 = vadd.f32 %v741, %v688
      %v744 = vadd.f32 %v742, %v688
      %v745 = vmax.f32 %v743, 0.0
      %v746 = vmax.f32 %v744, 0.0
      %v747 = vpack.c.bf16 %v707, %v706
      %v748 = vpack.c.bf16 %v709, %v708
      %v749 = vpack.c.bf16 %v711, %v710
      %v750 = vpack.c.bf16 %v713, %v712
      %v751 = vpack.c.bf16 %v715, %v714
      %v752 = vpack.c.bf16 %v717, %v716
      %v753 = vpack.c.bf16 %v719, %v718
      %v754 = vpack.c.bf16 %v721, %v720
      %v755 = vpack.c.bf16 %v746, %v745
      %v756 = vld [vmem:[%s5] sm:$0x3]
      %v758 = vsel %vm722, %v747, 0
      %v761 = vsel %vm722, %v748, 0
      %v764 = vsel %vm722, %v749, 0
      %v767 = vsel %vm722, %v750, 0
      %v770 = vsel %vm722, %v751, 0
      %v773 = vsel %vm722, %v752, 0
      %v776 = vsel %vm722, %v753, 0
      %v779 = vsel %vm722, %v754, 0
      %v782 = vsel %vm722, %v755, 0
      %vm784 = vcmask 1041408
      %v786 = vsel %vm784, %v756, 0
      %788 = vmatprep.subr.bf16.mxu0 0
      %789 = vmatpush1.bf16.msra.mxu0 %v786
      %790 = vmatprep.subr.bf16.mxu0 0
      %791 = vmatpush1.bf16.msra.mxu0 0
      %792 = vmatprep.subr.bf16.mxu0 0
      %793 = vmatpush1.bf16.msra.mxu0 0
      %794 = vmatprep.subr.bf16.mxu0 0
      %795 = vmatpush1.bf16.msra.mxu0 0
      %796 = vmatprep.subr.bf16.mxu0 0
      %797 = vmatpush1.bf16.msra.mxu0 0
      %798 = vmatprep.subr.bf16.mxu0 0
      %799 = vmatpush1.bf16.msra.mxu0 0
      %800 = vmatprep.subr.bf16.mxu0 0
      %801 = vmatpush1.bf16.msra.mxu0 0
      %802 = vmatprep.subr.bf16.mxu0 0
      %803 = vmatpush1.bf16.msra.mxu0 0
      %804 = vmatprep.subr.bf16.mxu0 0
      %805 = vmatpush1.bf16.msra.mxu0 0
      %806 = vmatprep.subr.bf16.mxu0 0
      %807 = vmatpush1.bf16.msra.mxu0 0
      %808 = vmatprep.subr.bf16.mxu0 0
      %809 = vmatpush1.bf16.msra.mxu0 0
      %810 = vmatprep.subr.bf16.mxu0 0
      %811 = vmatpush1.bf16.msra.mxu0 0
      %812 = vmatprep.subr.bf16.mxu0 0
      %813 = vmatpush1.bf16.msra.mxu0 0
      %814 = vmatprep.subr.bf16.mxu0 0
      %815 = vmatpush1.bf16.msra.mxu0 0
      %816 = vmatprep.subr.bf16.mxu0 0
      %817 = vmatpush1.bf16.msra.mxu0 0
      %818 = vmatprep.subr.bf16.mxu0 0
      %819 = vmatpush1.bf16.msra.mxu0 0
      %820 = vmatprep.mubr.bf16.mxu0 0
      %821 = vmatmul.mubr.bf16.gmra.mrb[0].mxu0 %v758
      %v822 = vpop.f32.mrb[0].mxu0
      %v823 = vadd.f32 0.0, %v822
      %v824 = vpop.f32.mrb[0].mxu0
      %v825 = vpop.f32.mrb[0].mxu0
      %v826 = vadd.f32 0.0, %v825
      %v827 = vpop.f32.mrb[0].mxu0
      %828 = vmatprep.mubr.bf16.mxu0 0
      %829 = vmatmul.mubr.bf16.gmra.mrb[0].mxu0 %v761
      %v830 = vpop.f32.mrb[0].mxu0
      %v831 = vadd.f32 0.0, %v830
      %v832 = vpop.f32.mrb[0].mxu0
      %v833 = vpop.f32.mrb[0].mxu0
      %v834 = vadd.f32 0.0, %v833
      %v835 = vpop.f32.mrb[0].mxu0
      %836 = vmatprep.mubr.bf16.mxu0 0
      %837 = vmatmul.mubr.bf16.gmra.mrb[0].mxu0 %v764
      %v838 = vpop.f32.mrb[0].mxu0
      %v839 = vadd.f32 0.0, %v838
      %v840 = vpop.f32.mrb[0].mxu0
      %v841 = vpop.f32.mrb[0].mxu0
      %v842 = vadd.f32 0.0, %v841
      %v843 = vpop.f32.mrb[0].mxu0
      %844 = vmatprep.mubr.bf16.mxu0 0
      %845 = vmatmul.mubr.bf16.gmra.mrb[0].mxu0 %v767
      %v846 = vpop.f32.mrb[0].mxu0
      %v847 = vadd.f32 0.0, %v846
      %v848 = vpop.f32.mrb[0].mxu0
      %v849 = vpop.f32.mrb[0].mxu0
      %v850 = vadd.f32 0.0, %v849
      %v851 = vpop.f32.mrb[0].mxu0
      %852 = vmatprep.mubr.bf16.mxu0 0
      %853 = vmatmul.mubr.bf16.gmra.mrb[0].mxu0 %v770
      %v854 = vpop.f32.mrb[0].mxu0
      %v855 = vadd.f32 0.0, %v854
      %v856 = vpop.f32.mrb[0].mxu0
      %v857 = vpop.f32.mrb[0].mxu0
      %v858 = vadd.f32 0.0, %v857
      %v859 = vpop.f32.mrb[0].mxu0
      %860 = vmatprep.mubr.bf16.mxu0 0
      %861 = vmatmul.mubr.bf16.gmra.mrb[0].mxu0 %v773
      %v862 = vpop.f32.mrb[0].mxu0
      %v863 = vadd.f32 0.0, %v862
      %v864 = vpop.f32.mrb[0].mxu0
      %v865 = vpop.f32.mrb[0].mxu0
      %v866 = vadd.f32 0.0, %v865
      %v867 = vpop.f32.mrb[0].mxu0
      %868 = vmatprep.mubr.bf16.mxu0 0
      %869 = vmatmul.mubr.bf16.gmra.mrb[0].mxu0 %v776
      %v870 = vpop.f32.mrb[0].mxu0
      %v871 = vadd.f32 0.0, %v870
      %v872 = vpop.f32.mrb[0].mxu0
      %v873 = vpop.f32.mrb[0].mxu0
      %v874 = vadd.f32 0.0, %v873
      %v875 = vpop.f32.mrb[0].mxu0
      %876 = vmatprep.mubr.bf16.mxu0 0
      %877 = vmatmul.mubr.bf16.gmra.mrb[0].mxu0 %v779
      %v878 = vpop.f32.mrb[0].mxu0
      %v879 = vadd.f32 0.0, %v878
      %v880 = vpop.f32.mrb[0].mxu0
      %v881 = vpop.f32.mrb[0].mxu0
      %v882 = vadd.f32 0.0, %v881
      %v883 = vpop.f32.mrb[0].mxu0
      %884 = vmatprep.mubr.bf16.mxu0 0
      %885 = vmatmul.mubr.bf16.gmra.mrb[0].mxu0 %v782
      %v886 = vpop.f32.mrb[0].mxu0
      %v887 = vadd.f32 0.0, %v886
      %v888 = vpop.f32.mrb[0].mxu0
      %v889 = vpop.f32.mrb[0].mxu0
      %v890 = vadd.f32 0.0, %v889
      %v891 = vpop.f32.mrb[0].mxu0
      %892 = vdwg.mxu0
      %v893 = vld [vmem:[%s6] sm:$0x1]
      %v895 = vlaneseq
      %v896 = vshrl.u32 %v895, 7
      %v897 = vsub.s32 0, %v896
      %v898 = vrot.slane %v893, %v897
      %v900 = vmul.f32 %v823, %v898
      %v901 = vmul.f32 %v826, %v898
      %v902 = vmul.f32 %v831, %v898
      %v903 = vmul.f32 %v834, %v898
      %v904 = vmul.f32 %v839, %v898
      %v905 = vmul.f32 %v842, %v898
      %v906 = vmul.f32 %v847, %v898
      %v907 = vmul.f32 %v850, %v898
      %v908 = vmul.f32 %v855, %v898
      %v909 = vmul.f32 %v858, %v898
      %v910 = vmul.f32 %v863, %v898
      %v911 = vmul.f32 %v866, %v898
      %v912 = vmul.f32 %v871, %v898
      %v913 = vmul.f32 %v874, %v898
      %v914 = vmul.f32 %v879, %v898
      %v915 = vmul.f32 %v882, %v898
      %v916 = vmul.f32 %v887, %v898
      %v917 = vmul.f32 %v890, %v898
      %v918 = vld [vmem:[%s7] sm:$0x1]
      %v920 = vlaneseq
      %v921 = vshrl.u32 %v920, 7
      %v922 = vsub.s32 0, %v921
      %v923 = vrot.slane %v918, %v922
      %v925 = vadd.f32 %v900, %v923
      %v926 = vadd.f32 %v901, %v923
      %v927 = vadd.f32 %v902, %v923
      %v928 = vadd.f32 %v903, %v923
      %v929 = vadd.f32 %v904, %v923
      %v930 = vadd.f32 %v905, %v923
      %v931 = vadd.f32 %v906, %v923
      %v932 = vadd.f32 %v907, %v923
      %v933 = vadd.f32 %v908, %v923
      %v934 = vadd.f32 %v909, %v923
      %v935 = vadd.f32 %v910, %v923
      %v936 = vadd.f32 %v911, %v923
      %v937 = vadd.f32 %v912, %v923
      %v938 = vadd.f32 %v913, %v923
      %v939 = vadd.f32 %v914, %v923
      %v940 = vadd.f32 %v915, %v923
      %v941 = vadd.f32 %v916, %v923
      %v942 = vadd.f32 %v917, %v923
      %v943 = vmax.f32 %v925, 0.0
      %v944 = vmax.f32 %v926, 0.0
      %v945 = vmax.f32 %v927, 0.0
      %v946 = vmax.f32 %v928, 0.0
      %v947 = vmax.f32 %v929, 0.0
      %v948 = vmax.f32 %v930, 0.0
      %v949 = vmax.f32 %v931, 0.0
      %v950 = vmax.f32 %v932, 0.0
      %v951 = vmax.f32 %v933, 0.0
      %v952 = vmax.f32 %v934, 0.0
      %v953 = vmax.f32 %v935, 0.0
      %v954 = vmax.f32 %v936, 0.0
      %v955 = vmax.f32 %v937, 0.0
      %v956 = vmax.f32 %v938, 0.0
      %v957 = vmax.f32 %v939, 0.0
      %v958 = vmax.f32 %v940, 0.0
      %v959 = vmax.f32 %v941, 0.0
      %v960 = vmax.f32 %v942, 0.0
      %v961 = vpack.c.bf16 %v944, %v943
      %v962 = vpack.c.bf16 %v946, %v945
      %v963 = vpack.c.bf16 %v948, %v947
      %v964 = vpack.c.bf16 %v950, %v949
      %v965 = vpack.c.bf16 %v952, %v951
      %v966 = vpack.c.bf16 %v954, %v953
      %v967 = vpack.c.bf16 %v956, %v955
      %v968 = vpack.c.bf16 %v958, %v957
      %v969 = vpack.c.bf16 %v960, %v959
      // Predicated region
      $region73: #{tpu_custom_call.1} parent=67 // pred_check
        %p970 = pneg %p574
      $region74: #{tpu_custom_call.1} parent=67 // pred_check_branch
        %972 = sbr.rel (%p970) target = $region76
      $region75: #{tpu_custom_call.1} parent=67 // pred_region
        %vm973 = vcmask 11264
        %974 = vst.msk [vmem:[#allocation2 + $0x4] sm:$0xf] %vm973, 0
        %975 = vst.msk [vmem:[#allocation2 + $0x8] sm:$0xf] %vm973, 0
      $region76: #{tpu_custom_call.1} parent=67 // pred_fallthru
        _
      %p976 = scmp.gt.s32.totalorder %s30, 0
      // Predicated region
      $region77: #{tpu_custom_call.1} parent=67 // pred_check
        %p977 = pneg %p976
      $region78: #{tpu_custom_call.1} parent=67 // pred_check_branch
        %979 = sbr.rel (%p977) target = $region80
      $region79: #{tpu_custom_call.1} parent=67 // pred_region
        %v980 = vld [vmem:[#allocation3] sm:$0xff]
        %v982 = vunpack.c.l.b16 %v980
        %v983 = vunpack.c.h.b16 %v980
        %v984 = vpack.c.b16 %v982, %v982
        %v985 = vpack.c.b16 %v983, %v983
        %vm988 = vcmask 11264
        %989 = vst.msk [vmem:[#allocation2 + $0x4] sm:$0xf] %vm988, %v984
        %990 = vst.msk [vmem:[#allocation2 + $0x8] sm:$0xf] %vm988, %v985
      $region80: #{tpu_custom_call.1} parent=67 // pred_fallthru
        _
      %v999 = vunpack.c.l.b16 %v961
      %v1000 = vunpack.c.h.b16 %v961
      %v1001 = vunpack.c.l.b16 %v962
      %v1002 = vunpack.c.h.b16 %v962
      %v1003 = vunpack.c.l.b16 %v963
      %v1004 = vunpack.c.h.b16 %v963
      %v1005 = vunpack.c.l.b16 %v964
      %v1006 = vunpack.c.h.b16 %v964
      %v1007 = vunpack.c.l.b16 %v965
      %v1008 = vunpack.c.h.b16 %v965
      %v1009 = vunpack.c.l.b16 %v966
      %v1010 = vunpack.c.h.b16 %v966
      %v1011 = vunpack.c.l.b16 %v967
      %v1012 = vunpack.c.h.b16 %v967
      %v1013 = vunpack.c.l.b16 %v968
      %v1014 = vunpack.c.h.b16 %v968
      %v1015 = vpack.c.b16 %v999, %v999
      %v1016 = vpack.c.b16 %v1000, %v1000
      %v1017 = vpack.c.b16 %v1001, %v1001
      %v1018 = vpack.c.b16 %v1002, %v1002
      %v1019 = vpack.c.b16 %v1003, %v1003
      %v1020 = vpack.c.b16 %v1004, %v1004
      %v1021 = vpack.c.b16 %v1005, %v1005
      %v1022 = vpack.c.b16 %v1006, %v1006
      %v1023 = vpack.c.b16 %v1007, %v1007
      %v1024 = vpack.c.b16 %v1008, %v1008
      %v1025 = vpack.c.b16 %v1009, %v1009
      %v1026 = vpack.c.b16 %v1010, %v1010
      %v1027 = vpack.c.b16 %v1011, %v1011
      %v1028 = vpack.c.b16 %v1012, %v1012
      %v1029 = vpack.c.b16 %v1013, %v1013
      %v1030 = vpack.c.b16 %v1014, %v1014
      %s1047 = scalar_lea.vmem [#allocation2], 16
      %vm1048 = vcmask 11264
      %1049 = vst.msk [vmem:[%s1047 + $0x4] sm:$0xf] %vm1048, %v1015
      %1050 = vst.msk [vmem:[%s1047 + $0x8] sm:$0xf] %vm1048, %v1016
      %1051 = vst.msk [vmem:[%s1047 + $0x14] sm:$0xf] %vm1048, %v1017
      %1052 = vst.msk [vmem:[%s1047 + $0x18] sm:$0xf] %vm1048, %v1018
      %1053 = vst.msk [vmem:[%s1047 + $0x24] sm:$0xf] %vm1048, %v1019
      %1054 = vst.msk [vmem:[%s1047 + $0x28] sm:$0xf] %vm1048, %v1020
      %1055 = vst.msk [vmem:[%s1047 + $0x34] sm:$0xf] %vm1048, %v1021
      %1056 = vst.msk [vmem:[%s1047 + $0x38] sm:$0xf] %vm1048, %v1022
      %1057 = vst.msk [vmem:[%s1047 + $0x44] sm:$0xf] %vm1048, %v1023
      %1058 = vst.msk [vmem:[%s1047 + $0x48] sm:$0xf] %vm1048, %v1024
      %1059 = vst.msk [vmem:[%s1047 + $0x54] sm:$0xf] %vm1048, %v1025
      %1060 = vst.msk [vmem:[%s1047 + $0x58] sm:$0xf] %vm1048, %v1026
      %1061 = vst.msk [vmem:[%s1047 + $0x64] sm:$0xf] %vm1048, %v1027
      %1062 = vst.msk [vmem:[%s1047 + $0x68] sm:$0xf] %vm1048, %v1028
      %1063 = vst.msk [vmem:[%s1047 + $0x74] sm:$0xf] %vm1048, %v1029
      %1064 = vst.msk [vmem:[%s1047 + $0x78] sm:$0xf] %vm1048, %v1030
      %p1065 = scmp.eq.s32.totalorder %s30, 1
      // Predicated region
      $region81: #{tpu_custom_call.1} parent=67 // pred_check
        %p1066 = pneg %p1065
      $region82: #{tpu_custom_call.1} parent=67 // pred_check_branch
        %1068 = sbr.rel (%p1066) target = $region84
      $region83: #{tpu_custom_call.1} parent=67 // pred_region
        %s1069 = scalar_lea.vmem [#allocation2], 144
        %1070 = vst.msk [vmem:[%s1069 + $0x4] sm:$0xf] %vm1048, 0
        %1071 = vst.msk [vmem:[%s1069 + $0x8] sm:$0xf] %vm1048, 0
      $region84: #{tpu_custom_call.1} parent=67 // pred_fallthru
        _
      %p1072 = scmp.lt.s32.totalorder %s30, 1
      // Predicated region
      $region85: #{tpu_custom_call.1} parent=67 // pred_check
        %p1073 = pneg %p1072
      $region86: #{tpu_custom_call.1} parent=67 // pred_check_branch
        %1075 = sbr.rel (%p1073) target = $region88
      $region87: #{tpu_custom_call.1} parent=67 // pred_region
        %v1077 = vunpack.c.l.b16 %v969
        %v1078 = vunpack.c.h.b16 %v969
        %v1079 = vpack.c.b16 %v1077, %v1077
        %v1080 = vpack.c.b16 %v1078, %v1078
        %s1083 = scalar_lea.vmem [#allocation2], 144
        %1084 = vst.msk [vmem:[%s1083 + $0x4] sm:$0xf] %vm1048, %v1079
        %1085 = vst.msk [vmem:[%s1083 + $0x8] sm:$0xf] %vm1048, %v1080
      $region88: #{tpu_custom_call.1} parent=67 // pred_fallthru
        _
      %vm1086 = vcmask 15360
      %1087 = vst.msk [vmem:[#allocation3] sm:$0xff] %vm1086, %v968
      %v1088 = vld [vmem:[#allocation2] sm:$0x8]
      %v1089 = vld [vmem:[#allocation2 + $0x4] sm:$0xf]
      %v1090 = vld [vmem:[#allocation2 + $0x8] sm:$0xf]
      %v1091 = vld [vmem:[#allocation2 + $0x10] sm:$0x8]
      %v1092 = vld [vmem:[#allocation2 + $0x14] sm:$0xf]
      %v1093 = vld [vmem:[#allocation2 + $0x18] sm:$0xf]
      %v1094 = vld [vmem:[#allocation2 + $0x20] sm:$0x8]
      %v1095 = vld [vmem:[#allocation2 + $0x24] sm:$0xf]
      %v1096 = vld [vmem:[#allocation2 + $0x28] sm:$0xf]
      %v1097 = vld [vmem:[#allocation2 + $0x30] sm:$0x8]
      %v1098 = vld [vmem:[#allocation2 + $0x34] sm:$0xf]
      %v1099 = vld [vmem:[#allocation2 + $0x38] sm:$0xf]
      %v1100 = vld [vmem:[#allocation2 + $0x40] sm:$0x8]
      %v1101 = vld [vmem:[#allocation2 + $0x44] sm:$0xf]
      %v1102 = vld [vmem:[#allocation2 + $0x48] sm:$0xf]
      %v1103 = vld [vmem:[#allocation2 + $0x50] sm:$0x8]
      %v1104 = vld [vmem:[#allocation2 + $0x54] sm:$0xf]
      %v1105 = vld [vmem:[#allocation2 + $0x58] sm:$0xf]
      %v1106 = vld [vmem:[#allocation2 + $0x60] sm:$0x8]
      %v1107 = vld [vmem:[#allocation2 + $0x64] sm:$0xf]
      %v1108 = vld [vmem:[#allocation2 + $0x68] sm:$0xf]
      %v1109 = vld [vmem:[#allocation2 + $0x70] sm:$0x8]
      %v1110 = vld [vmem:[#allocation2 + $0x74] sm:$0xf]
      %v1111 = vld [vmem:[#allocation2 + $0x78] sm:$0xf]
      %v1112 = vld [vmem:[#allocation2 + $0xc] sm:$0x1]
      %v1113 = vld [vmem:[#allocation2 + $0x1c] sm:$0x1]
      %v1114 = vld [vmem:[#allocation2 + $0x2c] sm:$0x1]
      %v1115 = vld [vmem:[#allocation2 + $0x3c] sm:$0x1]
      %v1116 = vld [vmem:[#allocation2 + $0x4c] sm:$0x1]
      %v1117 = vld [vmem:[#allocation2 + $0x5c] sm:$0x1]
      %v1118 = vld [vmem:[#allocation2 + $0x6c] sm:$0x1]
      %v1119 = vld [vmem:[#allocation2 + $0x7c] sm:$0x1]
      %v1120 = vld [vmem:[%s1047] sm:$0x8]
      %v1121 = vld [vmem:[%s1047 + $0x4] sm:$0xf]
      %v1122 = vld [vmem:[%s1047 + $0x8] sm:$0xf]
      %v1123 = vld [vmem:[%s1047 + $0x10] sm:$0x8]
      %v1124 = vld [vmem:[%s1047 + $0x14] sm:$0xf]
      %v1125 = vld [vmem:[%s1047 + $0x18] sm:$0xf]
      %v1126 = vld [vmem:[%s1047 + $0x20] sm:$0x8]
      %v1127 = vld [vmem:[%s1047 + $0x24] sm:$0xf]
      %v1128 = vld [vmem:[%s1047 + $0x28] sm:$0xf]
      %v1129 = vld [vmem:[%s1047 + $0x30] sm:$0x8]
      %v1130 = vld [vmem:[%s1047 + $0x34] sm:$0xf]
      %v1131 = vld [vmem:[%s1047 + $0x38] sm:$0xf]
      %v1132 = vld [vmem:[%s1047 + $0x40] sm:$0x8]
      %v1133 = vld [vmem:[%s1047 + $0x44] sm:$0xf]
      %v1134 = vld [vmem:[%s1047 + $0x48] sm:$0xf]
      %v1135 = vld [vmem:[%s1047 + $0x50] sm:$0x8]
      %v1136 = vld [vmem:[%s1047 + $0x54] sm:$0xf]
      %v1137 = vld [vmem:[%s1047 + $0x58] sm:$0xf]
      %v1138 = vld [vmem:[%s1047 + $0x60] sm:$0x8]
      %v1139 = vld [vmem:[%s1047 + $0x64] sm:$0xf]
      %v1140 = vld [vmem:[%s1047 + $0x68] sm:$0xf]
      %v1141 = vld [vmem:[%s1047 + $0x70] sm:$0x8]
      %v1142 = vld [vmem:[%s1047 + $0x74] sm:$0xf]
      %v1143 = vld [vmem:[%s1047 + $0x78] sm:$0xf]
      %v1144 = vld [vmem:[%s1047 + $0xc] sm:$0x1]
      %v1145 = vld [vmem:[%s1047 + $0x1c] sm:$0x1]
      %v1146 = vld [vmem:[%s1047 + $0x2c] sm:$0x1]
      %v1147 = vld [vmem:[%s1047 + $0x3c] sm:$0x1]
      %v1148 = vld [vmem:[%s1047 + $0x4c] sm:$0x1]
      %v1149 = vld [vmem:[%s1047 + $0x5c] sm:$0x1]
      %v1150 = vld [vmem:[%s1047 + $0x6c] sm:$0x1]
      %v1151 = vld [vmem:[%s1047 + $0x7c] sm:$0x1]
      %s1152 = scalar_lea.vmem [#allocation2], 32
      %v1153 = vld [vmem:[%s1152] sm:$0x8]
      %v1154 = vld [vmem:[%s1152 + $0x4] sm:$0xf]
      %v1155 = vld [vmem:[%s1152 + $0x8] sm:$0xf]
      %v1156 = vld [vmem:[%s1152 + $0x10] sm:$0x8]
      %v1157 = vld [vmem:[%s1152 + $0x14] sm:$0xf]
      %v1158 = vld [vmem:[%s1152 + $0x18] sm:$0xf]
      %v1159 = vld [vmem:[%s1152 + $0x20] sm:$0x8]
      %v1160 = vld [vmem:[%s1152 + $0x24] sm:$0xf]
      %v1161 = vld [vmem:[%s1152 + $0x28] sm:$0xf]
      %v1162 = vld [vmem:[%s1152 + $0x30] sm:$0x8]
      %v1163 = vld [vmem:[%s1152 + $0x34] sm:$0xf]
      %v1164 = vld [vmem:[%s1152 + $0x38] sm:$0xf]
      %v1165 = vld [vmem:[%s1152 + $0x40] sm:$0x8]
      %v1166 = vld [vmem:[%s1152 + $0x44] sm:$0xf]
      %v1167 = vld [vmem:[%s1152 + $0x48] sm:$0xf]
      %v1168 = vld [vmem:[%s1152 + $0x50] sm:$0x8]
      %v1169 = vld [vmem:[%s1152 + $0x54] sm:$0xf]
      %v1170 = vld [vmem:[%s1152 + $0x58] sm:$0xf]
      %v1171 = vld [vmem:[%s1152 + $0x60] sm:$0x8]
      %v1172 = vld [vmem:[%s1152 + $0x64] sm:$0xf]
      %v1173 = vld [vmem:[%s1152 + $0x68] sm:$0xf]
      %v1174 = vld [vmem:[%s1152 + $0x70] sm:$0x8]
      %v1175 = vld [vmem:[%s1152 + $0x74] sm:$0xf]
      %v1176 = vld [vmem:[%s1152 + $0x78] sm:$0xf]
      %v1177 = vld [vmem:[%s1152 + $0xc] sm:$0x1]
      %v1178 = vld [vmem:[%s1152 + $0x1c] sm:$0x1]
      %v1179 = vld [vmem:[%s1152 + $0x2c] sm:$0x1]
      %v1180 = vld [vmem:[%s1152 + $0x3c] sm:$0x1]
      %v1181 = vld [vmem:[%s1152 + $0x4c] sm:$0x1]
      %v1182 = vld [vmem:[%s1152 + $0x5c] sm:$0x1]
      %v1183 = vld [vmem:[%s1152 + $0x6c] sm:$0x1]
      %v1184 = vld [vmem:[%s1152 + $0x7c] sm:$0x1]
      %v1209 = vunpack.c.l.b16 %v1088
      %v1210 = vunpack.c.l.b16 %v1089
      %v1211 = vunpack.c.l.b16 %v1090
      %v1212 = vunpack.c.l.b16 %v1091
      %v1213 = vunpack.c.l.b16 %v1092
      %v1214 = vunpack.c.l.b16 %v1093
      %v1215 = vunpack.c.l.b16 %v1094
      %v1216 = vunpack.c.l.b16 %v1095
      %v1217 = vunpack.c.l.b16 %v1096
      %v1218 = vunpack.c.l.b16 %v1097
      %v1219 = vunpack.c.l.b16 %v1098
      %v1220 = vunpack.c.l.b16 %v1099
      %v1221 = vunpack.c.l.b16 %v1100
      %v1222 = vunpack.c.l.b16 %v1101
      %v1223 = vunpack.c.l.b16 %v1102
      %v1224 = vunpack.c.l.b16 %v1103
      %v1225 = vunpack.c.l.b16 %v1104
      %v1226 = vunpack.c.l.b16 %v1105
      %v1227 = vunpack.c.l.b16 %v1106
      %v1228 = vunpack.c.l.b16 %v1107
      %v1229 = vunpack.c.l.b16 %v1108
      %v1230 = vunpack.c.l.b16 %v1109
      %v1231 = vunpack.c.l.b16 %v1110
      %v1232 = vunpack.c.l.b16 %v1111
      %v1233 = vpack.c.b16 %v1210, %v1209
      %v1234 = vpack.c.b16 %v1211, %v1211
      %v1235 = vpack.c.b16 %v1213, %v1212
      %v1236 = vpack.c.b16 %v1214, %v1214
      %v1237 = vpack.c.b16 %v1216, %v1215
      %v1238 = vpack.c.b16 %v1217, %v1217
      %v1239 = vpack.c.b16 %v1219, %v1218
      %v1240 = vpack.c.b16 %v1220, %v1220
      %v1241 = vpack.c.b16 %v1222, %v1221
      %v1242 = vpack.c.b16 %v1223, %v1223
      %v1243 = vpack.c.b16 %v1225, %v1224
      %v1244 = vpack.c.b16 %v1226, %v1226
      %v1245 = vpack.c.b16 %v1228, %v1227
      %v1246 = vpack.c.b16 %v1229, %v1229
      %v1247 = vpack.c.b16 %v1231, %v1230
      %v1248 = vpack.c.b16 %v1232, %v1232
      %v1249 = vpack.c.b16 %v1211, %v1210
      %v1250 = vpack.c.b16 %v1214, %v1213
      %v1251 = vpack.c.b16 %v1217, %v1216
      %v1252 = vpack.c.b16 %v1220, %v1219
      %v1253 = vpack.c.b16 %v1223, %v1222
      %v1254 = vpack.c.b16 %v1226, %v1225
      %v1255 = vpack.c.b16 %v1229, %v1228
      %v1256 = vpack.c.b16 %v1232, %v1231
      %v1258 = vshrl.u32 %v1249, 16
      %v1260 = vrot.slane %v1258, 4
      %v1261 = vshll.u32 %v1249, 16
      %v1263 = vrot.slane %v1261, 5
      %v1264 = vor.u32 %v1260, %v1263
      %v1266 = vshrl.u32 %v1250, 16
      %v1268 = vrot.slane %v1266, 4
      %v1269 = vshll.u32 %v1250, 16
      %v1271 = vrot.slane %v1269, 5
      %v1272 = vor.u32 %v1268, %v1271
      %v1274 = vshrl.u32 %v1251, 16
      %v1276 = vrot.slane %v1274, 4
      %v1277 = vshll.u32 %v1251, 16
      %v1279 = vrot.slane %v1277, 5
      %v1280 = vor.u32 %v1276, %v1279
      %v1282 = vshrl.u32 %v1252, 16
      %v1284 = vrot.slane %v1282, 4
      %v1285 = vshll.u32 %v1252, 16
      %v1287 = vrot.slane %v1285, 5
      %v1288 = vor.u32 %v1284, %v1287
      %v1290 = vshrl.u32 %v1253, 16
      %v1292 = vrot.slane %v1290, 4
      %v1293 = vshll.u32 %v1253, 16
      %v1295 = vrot.slane %v1293, 5
      %v1296 = vor.u32 %v1292, %v1295
      %v1298 = vshrl.u32 %v1254, 16
      %v1300 = vrot.slane %v1298, 4
      %v1301 = vshll.u32 %v1254, 16
      %v1303 = vrot.slane %v1301, 5
      %v1304 = vor.u32 %v1300, %v1303
      %v1306 = vshrl.u32 %v1255, 16
      %v1308 = vrot.slane %v1306, 4
      %v1309 = vshll.u32 %v1255, 16
      %v1311 = vrot.slane %v1309, 5
      %v1312 = vor.u32 %v1308, %v1311
      %v1314 = vshrl.u32 %v1256, 16
      %v1316 = vrot.slane %v1314, 4
      %v1317 = vshll.u32 %v1256, 16
      %v1319 = vrot.slane %v1317, 5
      %v1320 = vor.u32 %v1316, %v1319
      %1321 = vrot.lane.b32.xlu0 %v1264, 2
      %v1322 = vpop.permute.xlu0 %1321
      %1323 = vrot.lane.b32.xlu0 %v1272, 2
      %v1324 = vpop.permute.xlu0 %1323
      %1325 = vrot.lane.b32.xlu0 %v1280, 2
      %v1326 = vpop.permute.xlu0 %1325
      %1327 = vrot.lane.b32.xlu0 %v1288, 2
      %v1328 = vpop.permute.xlu0 %1327
      %1329 = vrot.lane.b32.xlu0 %v1296, 2
      %v1330 = vpop.permute.xlu0 %1329
      %1331 = vrot.lane.b32.xlu0 %v1304, 2
      %v1332 = vpop.permute.xlu0 %1331
      %1333 = vrot.lane.b32.xlu0 %v1312, 2
      %v1334 = vpop.permute.xlu0 %1333
      %1335 = vrot.lane.b32.xlu0 %v1320, 2
      %v1336 = vpop.permute.xlu0 %1335
      %v1345 = vunpack.c.l.b16 %v1112
      %v1346 = vunpack.c.l.b16 %v1113
      %v1347 = vunpack.c.l.b16 %v1114
      %v1348 = vunpack.c.l.b16 %v1115
      %v1349 = vunpack.c.l.b16 %v1116
      %v1350 = vunpack.c.l.b16 %v1117
      %v1351 = vunpack.c.l.b16 %v1118
      %v1352 = vunpack.c.l.b16 %v1119
      %v1353 = vpack.c.b16 %v1345, %v1345
      %v1354 = vpack.c.b16 %v1346, %v1346
      %v1355 = vpack.c.b16 %v1347, %v1347
      %v1356 = vpack.c.b16 %v1348, %v1348
      %v1357 = vpack.c.b16 %v1349, %v1349
      %v1358 = vpack.c.b16 %v1350, %v1350
      %v1359 = vpack.c.b16 %v1351, %v1351
      %v1360 = vpack.c.b16 %v1352, %v1352
      %vm1361 = vcmask 1042432
      %v1362 = vrot.slane %v1249, 5
      %v1363 = vrot.slane %v1353, 5
      %v1364 = vsel %vm1361, %v1362, %v1363
      %v1365 = vrot.slane %v1250, 5
      %v1366 = vrot.slane %v1354, 5
      %v1367 = vsel %vm1361, %v1365, %v1366
      %v1368 = vrot.slane %v1251, 5
      %v1369 = vrot.slane %v1355, 5
      %v1370 = vsel %vm1361, %v1368, %v1369
      %v1371 = vrot.slane %v1252, 5
      %v1372 = vrot.slane %v1356, 5
      %v1373 = vsel %vm1361, %v1371, %v1372
      %v1374 = vrot.slane %v1253, 5
      %v1375 = vrot.slane %v1357, 5
      %v1376 = vsel %vm1361, %v1374, %v1375
      %v1377 = vrot.slane %v1254, 5
      %v1378 = vrot.slane %v1358, 5
      %v1379 = vsel %vm1361, %v1377, %v1378
      %v1380 = vrot.slane %v1255, 5
      %v1381 = vrot.slane %v1359, 5
      %v1382 = vsel %vm1361, %v1380, %v1381
      %v1383 = vrot.slane %v1256, 5
      %v1384 = vrot.slane %v1360, 5
      %v1385 = vsel %vm1361, %v1383, %v1384
      %1386 = vrot.lane.b32.xlu0 %v1362, 4
      %v1387 = vpop.permute.xlu0 %1386
      %1388 = vrot.lane.b32.xlu0 %v1364, 4
      %v1389 = vpop.permute.xlu0 %1388
      %1390 = vrot.lane.b32.xlu0 %v1365, 4
      %v1391 = vpop.permute.xlu0 %1390
      %1392 = vrot.lane.b32.xlu0 %v1367, 4
      %v1393 = vpop.permute.xlu0 %1392
      %1394 = vrot.lane.b32.xlu0 %v1368, 4
      %v1395 = vpop.permute.xlu0 %1394
      %1396 = vrot.lane.b32.xlu0 %v1370, 4
      %v1397 = vpop.permute.xlu0 %1396
      %1398 = vrot.lane.b32.xlu0 %v1371, 4
      %v1399 = vpop.permute.xlu0 %1398
      %1400 = vrot.lane.b32.xlu0 %v1373, 4
      %v1401 = vpop.permute.xlu0 %1400
      %1402 = vrot.lane.b32.xlu0 %v1374, 4
      %v1403 = vpop.permute.xlu0 %1402
      %1404 = vrot.lane.b32.xlu0 %v1376, 4
      %v1405 = vpop.permute.xlu0 %1404
      %1406 = vrot.lane.b32.xlu0 %v1377, 4
      %v1407 = vpop.permute.xlu0 %1406
      %1408 = vrot.lane.b32.xlu0 %v1379, 4
      %v1409 = vpop.permute.xlu0 %1408
      %1410 = vrot.lane.b32.xlu0 %v1380, 4
      %v1411 = vpop.permute.xlu0 %1410
      %1412 = vrot.lane.b32.xlu0 %v1382, 4
      %v1413 = vpop.permute.xlu0 %1412
      %1414 = vrot.lane.b32.xlu0 %v1383, 4
      %v1415 = vpop.permute.xlu0 %1414
      %1416 = vrot.lane.b32.xlu0 %v1385, 4
      %v1417 = vpop.permute.xlu0 %1416
      %v1442 = vunpack.c.l.b16 %v1120
      %v1443 = vunpack.c.l.b16 %v1121
      %v1444 = vunpack.c.l.b16 %v1122
      %v1445 = vunpack.c.l.b16 %v1123
      %v1446 = vunpack.c.l.b16 %v1124
      %v1447 = vunpack.c.l.b16 %v1125
      %v1448 = vunpack.c.l.b16 %v1126
      %v1449 = vunpack.c.l.b16 %v1127
      %v1450 = vunpack.c.l.b16 %v1128
      %v1451 = vunpack.c.l.b16 %v1129
      %v1452 = vunpack.c.l.b16 %v1130
      %v1453 = vunpack.c.l.b16 %v1131
      %v1454 = vunpack.c.l.b16 %v1132
      %v1455 = vunpack.c.l.b16 %v1133
      %v1456 = vunpack.c.l.b16 %v1134
      %v1457 = vunpack.c.l.b16 %v1135
      %v1458 = vunpack.c.l.b16 %v1136
      %v1459 = vunpack.c.l.b16 %v1137
      %v1460 = vunpack.c.l.b16 %v1138
      %v1461 = vunpack.c.l.b16 %v1139
      %v1462 = vunpack.c.l.b16 %v1140
      %v1463 = vunpack.c.l.b16 %v1141
      %v1464 = vunpack.c.l.b16 %v1142
      %v1465 = vunpack.c.l.b16 %v1143
      %v1466 = vpack.c.b16 %v1443, %v1442
      %v1467 = vpack.c.b16 %v1444, %v1444
      %v1468 = vpack.c.b16 %v1446, %v1445
      %v1469 = vpack.c.b16 %v1447, %v1447
      %v1470 = vpack.c.b16 %v1449, %v1448
      %v1471 = vpack.c.b16 %v1450, %v1450
      %v1472 = vpack.c.b16 %v1452, %v1451
      %v1473 = vpack.c.b16 %v1453, %v1453
      %v1474 = vpack.c.b16 %v1455, %v1454
      %v1475 = vpack.c.b16 %v1456, %v1456
      %v1476 = vpack.c.b16 %v1458, %v1457
      %v1477 = vpack.c.b16 %v1459, %v1459
      %v1478 = vpack.c.b16 %v1461, %v1460
      %v1479 = vpack.c.b16 %v1462, %v1462
      %v1480 = vpack.c.b16 %v1464, %v1463
      %v1481 = vpack.c.b16 %v1465, %v1465
      %1482 = vrot.lane.b32.xlu0 %v1466, 6
      %v1483 = vpop.permute.xlu0 %1482
      %1484 = vrot.lane.b32.xlu0 %v1467, 6
      %v1485 = vpop.permute.xlu0 %1484
      %1486 = vrot.lane.b32.xlu0 %v1468, 6
      %v1487 = vpop.permute.xlu0 %1486
      %1488 = vrot.lane.b32.xlu0 %v1469, 6
      %v1489 = vpop.permute.xlu0 %1488
      %1490 = vrot.lane.b32.xlu0 %v1470, 6
      %v1491 = vpop.permute.xlu0 %1490
      %1492 = vrot.lane.b32.xlu0 %v1471, 6
      %v1493 = vpop.permute.xlu0 %1492
      %1494 = vrot.lane.b32.xlu0 %v1472, 6
      %v1495 = vpop.permute.xlu0 %1494
      %1496 = vrot.lane.b32.xlu0 %v1473, 6
      %v1497 = vpop.permute.xlu0 %1496
      %1498 = vrot.lane.b32.xlu0 %v1474, 6
      %v1499 = vpop.permute.xlu0 %1498
      %1500 = vrot.lane.b32.xlu0 %v1475, 6
      %v1501 = vpop.permute.xlu0 %1500
      %1502 = vrot.lane.b32.xlu0 %v1476, 6
      %v1503 = vpop.permute.xlu0 %1502
      %1504 = vrot.lane.b32.xlu0 %v1477, 6
      %v1505 = vpop.permute.xlu0 %1504
      %1506 = vrot.lane.b32.xlu0 %v1478, 6
      %v1507 = vpop.permute.xlu0 %1506
      %1508 = vrot.lane.b32.xlu0 %v1479, 6
      %v1509 = vpop.permute.xlu0 %1508
      %1510 = vrot.lane.b32.xlu0 %v1480, 6
      %v1511 = vpop.permute.xlu0 %1510
      %1512 = vrot.lane.b32.xlu0 %v1481, 6
      %v1513 = vpop.permute.xlu0 %1512
      %v1514 = vpack.c.b16 %v1444, %v1443
      %v1515 = vpack.c.b16 %v1447, %v1446
      %v1516 = vpack.c.b16 %v1450, %v1449
      %v1517 = vpack.c.b16 %v1453, %v1452
      %v1518 = vpack.c.b16 %v1456, %v1455
      %v1519 = vpack.c.b16 %v1459, %v1458
      %v1520 = vpack.c.b16 %v1462, %v1461
      %v1521 = vpack.c.b16 %v1465, %v1464
      %v1523 = vshrl.u32 %v1514, 16
      %v1525 = vrot.slane %v1523, 4
      %v1526 = vshll.u32 %v1514, 16
      %v1528 = vrot.slane %v1526, 5
      %v1529 = vor.u32 %v1525, %v1528
      %v1531 = vshrl.u32 %v1515, 16
      %v1533 = vrot.slane %v1531, 4
      %v1534 = vshll.u32 %v1515, 16
      %v1536 = vrot.slane %v1534, 5
      %v1537 = vor.u32 %v1533, %v1536
      %v1539 = vshrl.u32 %v1516, 16
      %v1541 = vrot.slane %v1539, 4
      %v1542 = vshll.u32 %v1516, 16
      %v1544 = vrot.slane %v1542, 5
      %v1545 = vor.u32 %v1541, %v1544
      %v1547 = vshrl.u32 %v1517, 16
      %v1549 = vrot.slane %v1547, 4
      %v1550 = vshll.u32 %v1517, 16
      %v1552 = vrot.slane %v1550, 5
      %v1553 = vor.u32 %v1549, %v1552
      %v1555 = vshrl.u32 %v1518, 16
      %v1557 = vrot.slane %v1555, 4
      %v1558 = vshll.u32 %v1518, 16
      %v1560 = vrot.slane %v1558, 5
      %v1561 = vor.u32 %v1557, %v1560
      %v1563 = vshrl.u32 %v1519, 16
      %v1565 = vrot.slane %v1563, 4
      %v1566 = vshll.u32 %v1519, 16
      %v1568 = vrot.slane %v1566, 5
      %v1569 = vor.u32 %v1565, %v1568
      %v1571 = vshrl.u32 %v1520, 16
      %v1573 = vrot.slane %v1571, 4
      %v1574 = vshll.u32 %v1520, 16
      %v1576 = vrot.slane %v1574, 5
      %v1577 = vor.u32 %v1573, %v1576
      %v1579 = vshrl.u32 %v1521, 16
      %v1581 = vrot.slane %v1579, 4
      %v1582 = vshll.u32 %v1521, 16
      %v1584 = vrot.slane %v1582, 5
      %v1585 = vor.u32 %v1581, %v1584
      %1586 = vrot.lane.b32.xlu0 %v1529, 8
      %v1587 = vpop.permute.xlu0 %1586
      %1588 = vrot.lane.b32.xlu0 %v1537, 8
      %v1589 = vpop.permute.xlu0 %1588
      %1590 = vrot.lane.b32.xlu0 %v1545, 8
      %v1591 = vpop.permute.xlu0 %1590
      %1592 = vrot.lane.b32.xlu0 %v1553, 8
      %v1593 = vpop.permute.xlu0 %1592
      %1594 = vrot.lane.b32.xlu0 %v1561, 8
      %v1595 = vpop.permute.xlu0 %1594
      %1596 = vrot.lane.b32.xlu0 %v1569, 8
      %v1597 = vpop.permute.xlu0 %1596
      %1598 = vrot.lane.b32.xlu0 %v1577, 8
      %v1599 = vpop.permute.xlu0 %1598
      %1600 = vrot.lane.b32.xlu0 %v1585, 8
      %v1601 = vpop.permute.xlu0 %1600
      %v1610 = vunpack.c.l.b16 %v1144
      %v1611 = vunpack.c.l.b16 %v1145
      %v1612 = vunpack.c.l.b16 %v1146
      %v1613 = vunpack.c.l.b16 %v1147
      %v1614 = vunpack.c.l.b16 %v1148
      %v1615 = vunpack.c.l.b16 %v1149
      %v1616 = vunpack.c.l.b16 %v1150
      %v1617 = vunpack.c.l.b16 %v1151
      %v1618 = vpack.c.b16 %v1610, %v1610
      %v1619 = vpack.c.b16 %v1611, %v1611
      %v1620 = vpack.c.b16 %v1612, %v1612
      %v1621 = vpack.c.b16 %v1613, %v1613
      %v1622 = vpack.c.b16 %v1614, %v1614
      %v1623 = vpack.c.b16 %v1615, %v1615
      %v1624 = vpack.c.b16 %v1616, %v1616
      %v1625 = vpack.c.b16 %v1617, %v1617
      %v1626 = vrot.slane %v1514, 5
      %v1627 = vrot.slane %v1618, 5
      %v1628 = vsel %vm1361, %v1626, %v1627
      %v1629 = vrot.slane %v1515, 5
      %v1630 = vrot.slane %v1619, 5
      %v1631 = vsel %vm1361, %v1629, %v1630
      %v1632 = vrot.slane %v1516, 5
      %v1633 = vrot.slane %v1620, 5
      %v1634 = vsel %vm1361, %v1632, %v1633
      %v1635 = vrot.slane %v1517, 5
      %v1636 = vrot.slane %v1621, 5
      %v1637 = vsel %vm1361, %v1635, %v1636
      %v1638 = vrot.slane %v1518, 5
      %v1639 = vrot.slane %v1622, 5
      %v1640 = vsel %vm1361, %v1638, %v1639
      %v1641 = vrot.slane %v1519, 5
      %v1642 = vrot.slane %v1623, 5
      %v1643 = vsel %vm1361, %v1641, %v1642
      %v1644 = vrot.slane %v1520, 5
      %v1645 = vrot.slane %v1624, 5
      %v1646 = vsel %vm1361, %v1644, %v1645
      %v1647 = vrot.slane %v1521, 5
      %v1648 = vrot.slane %v1625, 5
      %v1649 = vsel %vm1361, %v1647, %v1648
      %1650 = vrot.lane.b32.xlu0 %v1626, 10
      %v1651 = vpop.permute.xlu0 %1650
      %1652 = vrot.lane.b32.xlu0 %v1628, 10
      %v1653 = vpop.permute.xlu0 %1652
      %1654 = vrot.lane.b32.xlu0 %v1629, 10
      %v1655 = vpop.permute.xlu0 %1654
      %1656 = vrot.lane.b32.xlu0 %v1631, 10
      %v1657 = vpop.permute.xlu0 %1656
      %1658 = vrot.lane.b32.xlu0 %v1632, 10
      %v1659 = vpop.permute.xlu0 %1658
      %1660 = vrot.lane.b32.xlu0 %v1634, 10
      %v1661 = vpop.permute.xlu0 %1660
      %1662 = vrot.lane.b32.xlu0 %v1635, 10
      %v1663 = vpop.permute.xlu0 %1662
      %1664 = vrot.lane.b32.xlu0 %v1637, 10
      %v1665 = vpop.permute.xlu0 %1664
      %1666 = vrot.lane.b32.xlu0 %v1638, 10
      %v1667 = vpop.permute.xlu0 %1666
      %1668 = vrot.lane.b32.xlu0 %v1640, 10
      %v1669 = vpop.permute.xlu0 %1668
      %1670 = vrot.lane.b32.xlu0 %v1641, 10
      %v1671 = vpop.permute.xlu0 %1670
      %1672 = vrot.lane.b32.xlu0 %v1643, 10
      %v1673 = vpop.permute.xlu0 %1672
      %1674 = vrot.lane.b32.xlu0 %v1644, 10
      %v1675 = vpop.permute.xlu0 %1674
      %1676 = vrot.lane.b32.xlu0 %v1646, 10
      %v1677 = vpop.permute.xlu0 %1676
      %1678 = vrot.lane.b32.xlu0 %v1647, 10
      %v1679 = vpop.permute.xlu0 %1678
      %1680 = vrot.lane.b32.xlu0 %v1649, 10
      %v1681 = vpop.permute.xlu0 %1680
      %v1706 = vunpack.c.l.b16 %v1153
      %v1707 = vunpack.c.l.b16 %v1154
      %v1708 = vunpack.c.l.b16 %v1155
      %v1709 = vunpack.c.l.b16 %v1156
      %v1710 = vunpack.c.l.b16 %v1157
      %v1711 = vunpack.c.l.b16 %v1158
      %v1712 = vunpack.c.l.b16 %v1159
      %v1713 = vunpack.c.l.b16 %v1160
      %v1714 = vunpack.c.l.b16 %v1161
      %v1715 = vunpack.c.l.b16 %v1162
      %v1716 = vunpack.c.l.b16 %v1163
      %v1717 = vunpack.c.l.b16 %v1164
      %v1718 = vunpack.c.l.b16 %v1165
      %v1719 = vunpack.c.l.b16 %v1166
      %v1720 = vunpack.c.l.b16 %v1167
      %v1721 = vunpack.c.l.b16 %v1168
      %v1722 = vunpack.c.l.b16 %v1169
      %v1723 = vunpack.c.l.b16 %v1170
      %v1724 = vunpack.c.l.b16 %v1171
      %v1725 = vunpack.c.l.b16 %v1172
      %v1726 = vunpack.c.l.b16 %v1173
      %v1727 = vunpack.c.l.b16 %v1174
      %v1728 = vunpack.c.l.b16 %v1175
      %v1729 = vunpack.c.l.b16 %v1176
      %v1730 = vpack.c.b16 %v1707, %v1706
      %v1731 = vpack.c.b16 %v1708, %v1708
      %v1732 = vpack.c.b16 %v1710, %v1709
      %v1733 = vpack.c.b16 %v1711, %v1711
      %v1734 = vpack.c.b16 %v1713, %v1712
      %v1735 = vpack.c.b16 %v1714, %v1714
      %v1736 = vpack.c.b16 %v1716, %v1715
      %v1737 = vpack.c.b16 %v1717, %v1717
      %v1738 = vpack.c.b16 %v1719, %v1718
      %v1739 = vpack.c.b16 %v1720, %v1720
      %v1740 = vpack.c.b16 %v1722, %v1721
      %v1741 = vpack.c.b16 %v1723, %v1723
      %v1742 = vpack.c.b16 %v1725, %v1724
      %v1743 = vpack.c.b16 %v1726, %v1726
      %v1744 = vpack.c.b16 %v1728, %v1727
      %v1745 = vpack.c.b16 %v1729, %v1729
      %1746 = vrot.lane.b32.xlu0 %v1730, 12
      %v1747 = vpop.permute.xlu0 %1746
      %1748 = vrot.lane.b32.xlu0 %v1731, 12
      %v1749 = vpop.permute.xlu0 %1748
      %1750 = vrot.lane.b32.xlu0 %v1732, 12
      %v1751 = vpop.permute.xlu0 %1750
      %1752 = vrot.lane.b32.xlu0 %v1733, 12
      %v1753 = vpop.permute.xlu0 %1752
      %1754 = vrot.lane.b32.xlu0 %v1734, 12
      %v1755 = vpop.permute.xlu0 %1754
      %1756 = vrot.lane.b32.xlu0 %v1735, 12
      %v1757 = vpop.permute.xlu0 %1756
      %1758 = vrot.lane.b32.xlu0 %v1736, 12
      %v1759 = vpop.permute.xlu0 %1758
      %1760 = vrot.lane.b32.xlu0 %v1737, 12
      %v1761 = vpop.permute.xlu0 %1760
      %1762 = vrot.lane.b32.xlu0 %v1738, 12
      %v1763 = vpop.permute.xlu0 %1762
      %1764 = vrot.lane.b32.xlu0 %v1739, 12
      %v1765 = vpop.permute.xlu0 %1764
      %1766 = vrot.lane.b32.xlu0 %v1740, 12
      %v1767 = vpop.permute.xlu0 %1766
      %1768 = vrot.lane.b32.xlu0 %v1741, 12
      %v1769 = vpop.permute.xlu0 %1768
      %1770 = vrot.lane.b32.xlu0 %v1742, 12
      %v1771 = vpop.permute.xlu0 %1770
      %1772 = vrot.lane.b32.xlu0 %v1743, 12
      %v1773 = vpop.permute.xlu0 %1772
      %1774 = vrot.lane.b32.xlu0 %v1744, 12
      %v1775 = vpop.permute.xlu0 %1774
      %1776 = vrot.lane.b32.xlu0 %v1745, 12
      %v1777 = vpop.permute.xlu0 %1776
      %v1778 = vpack.c.b16 %v1708, %v1707
      %v1779 = vpack.c.b16 %v1711, %v1710
      %v1780 = vpack.c.b16 %v1714, %v1713
      %v1781 = vpack.c.b16 %v1717, %v1716
      %v1782 = vpack.c.b16 %v1720, %v1719
      %v1783 = vpack.c.b16 %v1723, %v1722
      %v1784 = vpack.c.b16 %v1726, %v1725
      %v1785 = vpack.c.b16 %v1729, %v1728
      %v1787 = vshrl.u32 %v1778, 16
      %v1789 = vrot.slane %v1787, 4
      %v1790 = vshll.u32 %v1778, 16
      %v1792 = vrot.slane %v1790, 5
      %v1793 = vor.u32 %v1789, %v1792
      %v1795 = vshrl.u32 %v1779, 16
      %v1797 = vrot.slane %v1795, 4
      %v1798 = vshll.u32 %v1779, 16
      %v1800 = vrot.slane %v1798, 5
      %v1801 = vor.u32 %v1797, %v1800
      %v1803 = vshrl.u32 %v1780, 16
      %v1805 = vrot.slane %v1803, 4
      %v1806 = vshll.u32 %v1780, 16
      %v1808 = vrot.slane %v1806, 5
      %v1809 = vor.u32 %v1805, %v1808
      %v1811 = vshrl.u32 %v1781, 16
      %v1813 = vrot.slane %v1811, 4
      %v1814 = vshll.u32 %v1781, 16
      %v1816 = vrot.slane %v1814, 5
      %v1817 = vor.u32 %v1813, %v1816
      %v1819 = vshrl.u32 %v1782, 16
      %v1821 = vrot.slane %v1819, 4
      %v1822 = vshll.u32 %v1782, 16
      %v1824 = vrot.slane %v1822, 5
      %v1825 = vor.u32 %v1821, %v1824
      %v1827 = vshrl.u32 %v1783, 16
      %v1829 = vrot.slane %v1827, 4
      %v1830 = vshll.u32 %v1783, 16
      %v1832 = vrot.slane %v1830, 5
      %v1833 = vor.u32 %v1829, %v1832
      %v1835 = vshrl.u32 %v1784, 16
      %v1837 = vrot.slane %v1835, 4
      %v1838 = vshll.u32 %v1784, 16
      %v1840 = vrot.slane %v1838, 5
      %v1841 = vor.u32 %v1837, %v1840
      %v1843 = vshrl.u32 %v1785, 16
      %v1845 = vrot.slane %v1843, 4
      %v1846 = vshll.u32 %v1785, 16
      %v1848 = vrot.slane %v1846, 5
      %v1849 = vor.u32 %v1845, %v1848
      %1850 = vrot.lane.b32.xlu0 %v1793, 14
      %v1851 = vpop.permute.xlu0 %1850
      %1852 = vrot.lane.b32.xlu0 %v1801, 14
      %v1853 = vpop.permute.xlu0 %1852
      %1854 = vrot.lane.b32.xlu0 %v1809, 14
      %v1855 = vpop.permute.xlu0 %1854
      %1856 = vrot.lane.b32.xlu0 %v1817, 14
      %v1857 = vpop.permute.xlu0 %1856
      %1858 = vrot.lane.b32.xlu0 %v1825, 14
      %v1859 = vpop.permute.xlu0 %1858
      %1860 = vrot.lane.b32.xlu0 %v1833, 14
      %v1861 = vpop.permute.xlu0 %1860
      %1862 = vrot.lane.b32.xlu0 %v1841, 14
      %v1863 = vpop.permute.xlu0 %1862
      %1864 = vrot.lane.b32.xlu0 %v1849, 14
      %v1865 = vpop.permute.xlu0 %1864
      %v1874 = vunpack.c.l.b16 %v1177
      %v1875 = vunpack.c.l.b16 %v1178
      %v1876 = vunpack.c.l.b16 %v1179
      %v1877 = vunpack.c.l.b16 %v1180
      %v1878 = vunpack.c.l.b16 %v1181
      %v1879 = vunpack.c.l.b16 %v1182
      %v1880 = vunpack.c.l.b16 %v1183
      %v1881 = vunpack.c.l.b16 %v1184
      %v1882 = vpack.c.b16 %v1874, %v1874
      %v1883 = vpack.c.b16 %v1875, %v1875
      %v1884 = vpack.c.b16 %v1876, %v1876
      %v1885 = vpack.c.b16 %v1877, %v1877
      %v1886 = vpack.c.b16 %v1878, %v1878
      %v1887 = vpack.c.b16 %v1879, %v1879
      %v1888 = vpack.c.b16 %v1880, %v1880
      %v1889 = vpack.c.b16 %v1881, %v1881
      %v1890 = vrot.slane %v1778, 5
      %v1891 = vrot.slane %v1882, 5
      %v1892 = vsel %vm1361, %v1890, %v1891
      %v1893 = vrot.slane %v1779, 5
      %v1894 = vrot.slane %v1883, 5
      %v1895 = vsel %vm1361, %v1893, %v1894
      %v1896 = vrot.slane %v1780, 5
      %v1897 = vrot.slane %v1884, 5
      %v1898 = vsel %vm1361, %v1896, %v1897
      %v1899 = vrot.slane %v1781, 5
      %v1900 = vrot.slane %v1885, 5
      %v1901 = vsel %vm1361, %v1899, %v1900
      %v1902 = vrot.slane %v1782, 5
      %v1903 = vrot.slane %v1886, 5
      %v1904 = vsel %vm1361, %v1902, %v1903
      %v1905 = vrot.slane %v1783, 5
      %v1906 = vrot.slane %v1887, 5
      %v1907 = vsel %vm1361, %v1905, %v1906
      %v1908 = vrot.slane %v1784, 5
      %v1909 = vrot.slane %v1888, 5
      %v1910 = vsel %vm1361, %v1908, %v1909
      %v1911 = vrot.slane %v1785, 5
      %v1912 = vrot.slane %v1889, 5
      %v1913 = vsel %vm1361, %v1911, %v1912
      %1914 = vrot.lane.b32.xlu0 %v1890, 16
      %v1915 = vpop.permute.xlu0 %1914
      %1916 = vrot.lane.b32.xlu0 %v1892, 16
      %v1917 = vpop.permute.xlu0 %1916
      %1918 = vrot.lane.b32.xlu0 %v1893, 16
      %v1919 = vpop.permute.xlu0 %1918
      %1920 = vrot.lane.b32.xlu0 %v1895, 16
      %v1921 = vpop.permute.xlu0 %1920
      %1922 = vrot.lane.b32.xlu0 %v1896, 16
      %v1923 = vpop.permute.xlu0 %1922
      %1924 = vrot.lane.b32.xlu0 %v1898, 16
      %v1925 = vpop.permute.xlu0 %1924
      %1926 = vrot.lane.b32.xlu0 %v1899, 16
      %v1927 = vpop.permute.xlu0 %1926
      %1928 = vrot.lane.b32.xlu0 %v1901, 16
      %v1929 = vpop.permute.xlu0 %1928
      %1930 = vrot.lane.b32.xlu0 %v1902, 16
      %v1931 = vpop.permute.xlu0 %1930
      %1932 = vrot.lane.b32.xlu0 %v1904, 16
      %v1933 = vpop.permute.xlu0 %1932
      %1934 = vrot.lane.b32.xlu0 %v1905, 16
      %v1935 = vpop.permute.xlu0 %1934
      %1936 = vrot.lane.b32.xlu0 %v1907, 16
      %v1937 = vpop.permute.xlu0 %1936
      %1938 = vrot.lane.b32.xlu0 %v1908, 16
      %v1939 = vpop.permute.xlu0 %1938
      %1940 = vrot.lane.b32.xlu0 %v1910, 16
      %v1941 = vpop.permute.xlu0 %1940
      %1942 = vrot.lane.b32.xlu0 %v1911, 16
      %v1943 = vpop.permute.xlu0 %1942
      %1944 = vrot.lane.b32.xlu0 %v1913, 16
      %v1945 = vpop.permute.xlu0 %1944
      %v1948 = vsel %vm1086, %v1233, %v1322
      %v1950 = vsel %vm1086, %v1234, %v1322
      %v1953 = vsel %vm1086, %v1235, %v1324
      %v1955 = vsel %vm1086, %v1236, %v1324
      %v1958 = vsel %vm1086, %v1237, %v1326
      %v1960 = vsel %vm1086, %v1238, %v1326
      %v1963 = vsel %vm1086, %v1239, %v1328
      %v1965 = vsel %vm1086, %v1240, %v1328
      %v1968 = vsel %vm1086, %v1241, %v1330
      %v1970 = vsel %vm1086, %v1242, %v1330
      %v1973 = vsel %vm1086, %v1243, %v1332
      %v1975 = vsel %vm1086, %v1244, %v1332
      %v1978 = vsel %vm1086, %v1245, %v1334
      %v1980 = vsel %vm1086, %v1246, %v1334
      %v1983 = vsel %vm1086, %v1247, %v1336
      %v1985 = vsel %vm1086, %v1248, %v1336
      %v1987 = vsel %vm722, %v1948, %v1387
      %v1989 = vsel %vm722, %v1950, %v1389
      %v1991 = vsel %vm722, %v1953, %v1391
      %v1993 = vsel %vm722, %v1955, %v1393
      %v1995 = vsel %vm722, %v1958, %v1395
      %v1997 = vsel %vm722, %v1960, %v1397
      %v1999 = vsel %vm722, %v1963, %v1399
      %v2001 = vsel %vm722, %v1965, %v1401
      %v2003 = vsel %vm722, %v1968, %v1403
      %v2005 = vsel %vm722, %v1970, %v1405
      %v2007 = vsel %vm722, %v1973, %v1407
      %v2009 = vsel %vm722, %v1975, %v1409
      %v2011 = vsel %vm722, %v1978, %v1411
      %v2013 = vsel %vm722, %v1980, %v1413
      %v2015 = vsel %vm722, %v1983, %v1415
      %v2017 = vsel %vm722, %v1985, %v1417
      %vm2018 = vcmask 48128
      %v2020 = vsel %vm2018, %v1987, %v1483
      %v2022 = vsel %vm2018, %v1989, %v1485
      %v2024 = vsel %vm2018, %v1991, %v1487
      %v2026 = vsel %vm2018, %v1993, %v1489
      %v2028 = vsel %vm2018, %v1995, %v1491
      %v2030 = vsel %vm2018, %v1997, %v1493
      %v2032 = vsel %vm2018, %v1999, %v1495
      %v2034 = vsel %vm2018, %v2001, %v1497
      %v2036 = vsel %vm2018, %v2003, %v1499
      %v2038 = vsel %vm2018, %v2005, %v1501
      %v2040 = vsel %vm2018, %v2007, %v1503
      %v2042 = vsel %vm2018, %v2009, %v1505
      %v2044 = vsel %vm2018, %v2011, %v1507
      %v2046 = vsel %vm2018, %v2013, %v1509
      %v2048 = vsel %vm2018, %v2015, %v1511
      %v2050 = vsel %vm2018, %v2017, %v1513
      %vm2051 = vcmask 64512
      %v2053 = vsel %vm2051, %v2020, %v1587
      %v2054 = vsel %vm2051, %v2022, %v1587
      %v2056 = vsel %vm2051, %v2024, %v1589
      %v2057 = vsel %vm2051, %v2026, %v1589
      %v2059 = vsel %vm2051, %v2028, %v1591
      %v2060 = vsel %vm2051, %v2030, %v1591
      %v2062 = vsel %vm2051, %v2032, %v1593
      %v2063 = vsel %vm2051, %v2034, %v1593
      %v2065 = vsel %vm2051, %v2036, %v1595
      %v2066 = vsel %vm2051, %v2038, %v1595
      %v2068 = vsel %vm2051, %v2040, %v1597
      %v2069 = vsel %vm2051, %v2042, %v1597
      %v2071 = vsel %vm2051, %v2044, %v1599
      %v2072 = vsel %vm2051, %v2046, %v1599
      %v2074 = vsel %vm2051, %v2048, %v1601
      %v2075 = vsel %vm2051, %v2050, %v1601
      %vm2076 = vcmask 80896
      %v2078 = vsel %vm2076, %v2053, %v1651
      %v2080 = vsel %vm2076, %v2054, %v1653
      %v2082 = vsel %vm2076, %v2056, %v1655
      %v2084 = vsel %vm2076, %v2057, %v1657
      %v2086 = vsel %vm2076, %v2059, %v1659
      %v2088 = vsel %vm2076, %v2060, %v1661
      %v2090 = vsel %vm2076, %v2062, %v1663
      %v2092 = vsel %vm2076, %v2063, %v1665
      %v2094 = vsel %vm2076, %v2065, %v1667
      %v2096 = vsel %vm2076, %v2066, %v1669
      %v2098 = vsel %vm2076, %v2068, %v1671
      %v2100 = vsel %vm2076, %v2069, %v1673
      %v2102 = vsel %vm2076, %v2071, %v1675
      %v2104 = vsel %vm2076, %v2072, %v1677
      %v2106 = vsel %vm2076, %v2074, %v1679
      %v2108 = vsel %vm2076, %v2075, %v1681
      %vm2109 = vcmask 97280
      %v2111 = vsel %vm2109, %v2078, %v1747
      %v2113 = vsel %vm2109, %v2080, %v1749
      %v2115 = vsel %vm2109, %v2082, %v1751
      %v2117 = vsel %vm2109, %v2084, %v1753
      %v2119 = vsel %vm2109, %v2086, %v1755
      %v2121 = vsel %vm2109, %v2088, %v1757
      %v2123 = vsel %vm2109, %v2090, %v1759
      %v2125 = vsel %vm2109, %v2092, %v1761
      %v2127 = vsel %vm2109, %v2094, %v1763
      %v2129 = vsel %vm2109, %v2096, %v1765
      %v2131 = vsel %vm2109, %v2098, %v1767
      %v2133 = vsel %vm2109, %v2100, %v1769
      %v2135 = vsel %vm2109, %v2102, %v1771
      %v2137 = vsel %vm2109, %v2104, %v1773
      %v2139 = vsel %vm2109, %v2106, %v1775
      %v2141 = vsel %vm2109, %v2108, %v1777
      %vm2142 = vcmask 113664
      %v2144 = vsel %vm2142, %v2111, %v1851
      %v2145 = vsel %vm2142, %v2113, %v1851
      %v2147 = vsel %vm2142, %v2115, %v1853
      %v2148 = vsel %vm2142, %v2117, %v1853
      %v2150 = vsel %vm2142, %v2119, %v1855
      %v2151 = vsel %vm2142, %v2121, %v1855
      %v2153 = vsel %vm2142, %v2123, %v1857
      %v2154 = vsel %vm2142, %v2125, %v1857
      %v2156 = vsel %vm2142, %v2127, %v1859
      %v2157 = vsel %vm2142, %v2129, %v1859
      %v2159 = vsel %vm2142, %v2131, %v1861
      %v2160 = vsel %vm2142, %v2133, %v1861
      %v2162 = vsel %vm2142, %v2135, %v1863
      %v2163 = vsel %vm2142, %v2137, %v1863
      %v2165 = vsel %vm2142, %v2139, %v1865
      %v2166 = vsel %vm2142, %v2141, %v1865
      %vm2167 = vcmask 130048
      %v2169 = vsel %vm2167, %v2144, %v1915
      %v2171 = vsel %vm2167, %v2145, %v1917
      %v2173 = vsel %vm2167, %v2147, %v1919
      %v2175 = vsel %vm2167, %v2148, %v1921
      %v2177 = vsel %vm2167, %v2150, %v1923
      %v2179 = vsel %vm2167, %v2151, %v1925
      %v2181 = vsel %vm2167, %v2153, %v1927
      %v2183 = vsel %vm2167, %v2154, %v1929
      %v2185 = vsel %vm2167, %v2156, %v1931
      %v2187 = vsel %vm2167, %v2157, %v1933
      %v2189 = vsel %vm2167, %v2159, %v1935
      %v2191 = vsel %vm2167, %v2160, %v1937
      %v2193 = vsel %vm2167, %v2162, %v1939
      %v2195 = vsel %vm2167, %v2163, %v1941
      %v2197 = vsel %vm2167, %v2165, %v1943
      %v2199 = vsel %vm2167, %v2166, %v1945
      %vm2200 = vsmask.f32 4352
      %v2201 = vshrl.u32 %v2169, 16
      %v2203 = vrot.slane %v2201, 3
      %v2204 = vshll.u32 %v2169, 16
      %v2206 = vrot.slane %v2204, 4
      %v2207 = vor.u32 %v2203, %v2206
      %v2208 = vshrl.u32 %v2171, 16
      %v2210 = vrot.slane %v2208, 3
      %v2211 = vshll.u32 %v2171, 16
      %v2213 = vrot.slane %v2211, 4
      %v2214 = vor.u32 %v2210, %v2213
      %v2215 = vsel %vm2200, %v2207, %v2214
      %v2216 = vshrl.u32 %v2173, 16
      %v2218 = vrot.slane %v2216, 3
      %v2219 = vshll.u32 %v2173, 16
      %v2221 = vrot.slane %v2219, 4
      %v2222 = vor.u32 %v2218, %v2221
      %v2223 = vshrl.u32 %v2175, 16
      %v2225 = vrot.slane %v2223, 3
      %v2226 = vshll.u32 %v2175, 16
      %v2228 = vrot.slane %v2226, 4
      %v2229 = vor.u32 %v2225, %v2228
      %v2230 = vsel %vm2200, %v2222, %v2229
      %v2231 = vshrl.u32 %v2177, 16
      %v2233 = vrot.slane %v2231, 3
      %v2234 = vshll.u32 %v2177, 16
      %v2236 = vrot.slane %v2234, 4
      %v2237 = vor.u32 %v2233, %v2236
      %v2238 = vshrl.u32 %v2179, 16
      %v2240 = vrot.slane %v2238, 3
      %v2241 = vshll.u32 %v2179, 16
      %v2243 = vrot.slane %v2241, 4
      %v2244 = vor.u32 %v2240, %v2243
      %v2245 = vsel %vm2200, %v2237, %v2244
      %v2246 = vshrl.u32 %v2181, 16
      %v2248 = vrot.slane %v2246, 3
      %v2249 = vshll.u32 %v2181, 16
      %v2251 = vrot.slane %v2249, 4
      %v2252 = vor.u32 %v2248, %v2251
      %v2253 = vshrl.u32 %v2183, 16
      %v2255 = vrot.slane %v2253, 3
      %v2256 = vshll.u32 %v2183, 16
      %v2258 = vrot.slane %v2256, 4
      %v2259 = vor.u32 %v2255, %v2258
      %v2260 = vsel %vm2200, %v2252, %v2259
      %v2261 = vshrl.u32 %v2185, 16
      %v2263 = vrot.slane %v2261, 3
      %v2264 = vshll.u32 %v2185, 16
      %v2266 = vrot.slane %v2264, 4
      %v2267 = vor.u32 %v2263, %v2266
      %v2268 = vshrl.u32 %v2187, 16
      %v2270 = vrot.slane %v2268, 3
      %v2271 = vshll.u32 %v2187, 16
      %v2273 = vrot.slane %v2271, 4
      %v2274 = vor.u32 %v2270, %v2273
      %v2275 = vsel %vm2200, %v2267, %v2274
      %v2276 = vshrl.u32 %v2189, 16
      %v2278 = vrot.slane %v2276, 3
      %v2279 = vshll.u32 %v2189, 16
      %v2281 = vrot.slane %v2279, 4
      %v2282 = vor.u32 %v2278, %v2281
      %v2283 = vshrl.u32 %v2191, 16
      %v2285 = vrot.slane %v2283, 3
      %v2286 = vshll.u32 %v2191, 16
      %v2288 = vrot.slane %v2286, 4
      %v2289 = vor.u32 %v2285, %v2288
      %v2290 = vsel %vm2200, %v2282, %v2289
      %v2291 = vshrl.u32 %v2193, 16
      %v2293 = vrot.slane %v2291, 3
      %v2294 = vshll.u32 %v2193, 16
      %v2296 = vrot.slane %v2294, 4
      %v2297 = vor.u32 %v2293, %v2296
      %v2298 = vshrl.u32 %v2195, 16
      %v2300 = vrot.slane %v2298, 3
      %v2301 = vshll.u32 %v2195, 16
      %v2303 = vrot.slane %v2301, 4
      %v2304 = vor.u32 %v2300, %v2303
      %v2305 = vsel %vm2200, %v2297, %v2304
      %v2306 = vshrl.u32 %v2197, 16
      %v2308 = vrot.slane %v2306, 3
      %v2309 = vshll.u32 %v2197, 16
      %v2311 = vrot.slane %v2309, 4
      %v2312 = vor.u32 %v2308, %v2311
      %v2313 = vshrl.u32 %v2199, 16
      %v2315 = vrot.slane %v2313, 3
      %v2316 = vshll.u32 %v2199, 16
      %v2318 = vrot.slane %v2316, 4
      %v2319 = vor.u32 %v2315, %v2318
      %v2320 = vsel %vm2200, %v2312, %v2319
      %v2321 = vld [vmem:[%s8] sm:$0xf]
      %v2322 = vld [vmem:[%s8 + $0x4] sm:$0xf]
      %v2323 = vld [vmem:[%s8 + $0x8] sm:$0x1]
      %v2327 = vunpack.c.l.b16 %v2321
      %v2328 = vunpack.c.l.b16 %v2322
      %v2329 = vunpack.c.l.b16 %v2323
      %v2330 = vpack.c.b16 %v2328, %v2327
      %v2331 = vpack.c.b16 %v2329, %v2329
      %vm2333 = vcmask 146432
      %v2335 = vsel %vm2333, %v2215, 0
      %v2338 = vsel %vm2333, %v2230, 0
      %v2341 = vsel %vm2333, %v2245, 0
      %v2344 = vsel %vm2333, %v2260, 0
      %v2347 = vsel %vm2333, %v2275, 0
      %v2350 = vsel %vm2333, %v2290, 0
      %v2353 = vsel %vm2333, %v2305, 0
      %v2356 = vsel %vm2333, %v2320, 0
      %vm2358 = vcmask 1040384
      %v2360 = vsel %vm2358, %v2331, 0
      %2362 = vmatprep.subr.bf16.mxu0 0
      %2363 = vmatpush1.bf16.msra.mxu0 %v2330
      %2364 = vmatprep.subr.bf16.mxu0 0
      %2365 = vmatpush1.bf16.msra.mxu0 %v2360
      %2366 = vmatprep.subr.bf16.mxu0 0
      %2367 = vmatpush1.bf16.msra.mxu0 0
      %2368 = vmatprep.subr.bf16.mxu0 0
      %2369 = vmatpush1.bf16.msra.mxu0 0
      %2370 = vmatprep.subr.bf16.mxu0 0
      %2371 = vmatpush1.bf16.msra.mxu0 0
      %2372 = vmatprep.subr.bf16.mxu0 0
      %2373 = vmatpush1.bf16.msra.mxu0 0
      %2374 = vmatprep.subr.bf16.mxu0 0
      %2375 = vmatpush1.bf16.msra.mxu0 0
      %2376 = vmatprep.subr.bf16.mxu0 0
      %2377 = vmatpush1.bf16.msra.mxu0 0
      %2378 = vmatprep.subr.bf16.mxu0 0
      %2379 = vmatpush1.bf16.msra.mxu0 0
      %2380 = vmatprep.subr.bf16.mxu0 0
      %2381 = vmatpush1.bf16.msra.mxu0 0
      %2382 = vmatprep.subr.bf16.mxu0 0
      %2383 = vmatpush1.bf16.msra.mxu0 0
      %2384 = vmatprep.subr.bf16.mxu0 0
      %2385 = vmatpush1.bf16.msra.mxu0 0
      %2386 = vmatprep.subr.bf16.mxu0 0
      %2387 = vmatpush1.bf16.msra.mxu0 0
      %2388 = vmatprep.subr.bf16.mxu0 0
      %2389 = vmatpush1.bf16.msra.mxu0 0
      %2390 = vmatprep.subr.bf16.mxu0 0
      %2391 = vmatpush1.bf16.msra.mxu0 0
      %2392 = vmatprep.subr.bf16.mxu0 0
      %2393 = vmatpush1.bf16.msra.mxu0 0
      %2394 = vmatprep.mubr.bf16.mxu0 0
      %2395 = vmatmul.mubr.bf16.gmra.mrb[0].mxu0 %v2335
      %v2396 = vpop.f32.mrb[0].mxu0
      %v2397 = vadd.f32 0.0, %v2396
      %v2398 = vpop.f32.mrb[0].mxu0
      %v2399 = vpop.f32.mrb[0].mxu0
      %v2400 = vadd.f32 0.0, %v2399
      %v2401 = vpop.f32.mrb[0].mxu0
      %2402 = vmatprep.mubr.bf16.mxu0 0
      %2403 = vmatmul.mubr.bf16.gmra.mrb[0].mxu0 %v2338
      %v2404 = vpop.f32.mrb[0].mxu0
      %v2405 = vadd.f32 0.0, %v2404
      %v2406 = vpop.f32.mrb[0].mxu0
      %v2407 = vpop.f32.mrb[0].mxu0
      %v2408 = vadd.f32 0.0, %v2407
      %v2409 = vpop.f32.mrb[0].mxu0
      %2410 = vmatprep.mubr.bf16.mxu0 0
      %2411 = vmatmul.mubr.bf16.gmra.mrb[0].mxu0 %v2341
      %v2412 = vpop.f32.mrb[0].mxu0
      %v2413 = vadd.f32 0.0, %v2412
      %v2414 = vpop.f32.mrb[0].mxu0
      %v2415 = vpop.f32.mrb[0].mxu0
      %v2416 = vadd.f32 0.0, %v2415
      %v2417 = vpop.f32.mrb[0].mxu0
      %2418 = vmatprep.mubr.bf16.mxu0 0
      %2419 = vmatmul.mubr.bf16.gmra.mrb[0].mxu0 %v2344
      %v2420 = vpop.f32.mrb[0].mxu0
      %v2421 = vadd.f32 0.0, %v2420
      %v2422 = vpop.f32.mrb[0].mxu0
      %v2423 = vpop.f32.mrb[0].mxu0
      %v2424 = vadd.f32 0.0, %v2423
      %v2425 = vpop.f32.mrb[0].mxu0
      %2426 = vmatprep.mubr.bf16.mxu0 0
      %2427 = vmatmul.mubr.bf16.gmra.mrb[0].mxu0 %v2347
      %v2428 = vpop.f32.mrb[0].mxu0
      %v2429 = vadd.f32 0.0, %v2428
      %v2430 = vpop.f32.mrb[0].mxu0
      %v2431 = vpop.f32.mrb[0].mxu0
      %v2432 = vadd.f32 0.0, %v2431
      %v2433 = vpop.f32.mrb[0].mxu0
      %2434 = vmatprep.mubr.bf16.mxu0 0
      %2435 = vmatmul.mubr.bf16.gmra.mrb[0].mxu0 %v2350
      %v2436 = vpop.f32.mrb[0].mxu0
      %v2437 = vadd.f32 0.0, %v2436
      %v2438 = vpop.f32.mrb[0].mxu0
      %v2439 = vpop.f32.mrb[0].mxu0
      %v2440 = vadd.f32 0.0, %v2439
      %v2441 = vpop.f32.mrb[0].mxu0
      %2442 = vmatprep.mubr.bf16.mxu0 0
      %2443 = vmatmul.mubr.bf16.gmra.mrb[0].mxu0 %v2353
      %v2444 = vpop.f32.mrb[0].mxu0
      %v2445 = vadd.f32 0.0, %v2444
      %v2446 = vpop.f32.mrb[0].mxu0
      %v2447 = vpop.f32.mrb[0].mxu0
      %v2448 = vadd.f32 0.0, %v2447
      %v2449 = vpop.f32.mrb[0].mxu0
      %2450 = vmatprep.mubr.bf16.mxu0 0
      %2451 = vmatmul.mubr.bf16.gmra.mrb[0].mxu0 %v2356
      %v2452 = vpop.f32.mrb[0].mxu0
      %v2453 = vadd.f32 0.0, %v2452
      %v2454 = vpop.f32.mrb[0].mxu0
      %v2455 = vpop.f32.mrb[0].mxu0
      %v2456 = vadd.f32 0.0, %v2455
      %v2457 = vpop.f32.mrb[0].mxu0
      %2458 = vdwg.mxu0
      %v2459 = vld [vmem:[%s9] sm:$0x1]
      %v2461 = vlaneseq
      %v2462 = vshrl.u32 %v2461, 7
      %v2463 = vsub.s32 0, %v2462
      %v2464 = vrot.slane %v2459, %v2463
      %v2466 = vmul.f32 %v2397, %v2464
      %v2467 = vmul.f32 %v2400, %v2464
      %v2468 = vmul.f32 %v2405, %v2464
      %v2469 = vmul.f32 %v2408, %v2464
      %v2470 = vmul.f32 %v2413, %v2464
      %v2471 = vmul.f32 %v2416, %v2464
      %v2472 = vmul.f32 %v2421, %v2464
      %v2473 = vmul.f32 %v2424, %v2464
      %v2474 = vmul.f32 %v2429, %v2464
      %v2475 = vmul.f32 %v2432, %v2464
      %v2476 = vmul.f32 %v2437, %v2464
      %v2477 = vmul.f32 %v2440, %v2464
      %v2478 = vmul.f32 %v2445, %v2464
      %v2479 = vmul.f32 %v2448, %v2464
      %v2480 = vmul.f32 %v2453, %v2464
      %v2481 = vmul.f32 %v2456, %v2464
      %v2482 = vld [vmem:[%s10] sm:$0x1]
      %v2484 = vlaneseq
      %v2485 = vshrl.u32 %v2484, 7
      %v2486 = vsub.s32 0, %v2485
      %v2487 = vrot.slane %v2482, %v2486
      %v2489 = vadd.f32 %v2466, %v2487
      %v2490 = vadd.f32 %v2467, %v2487
      %v2491 = vadd.f32 %v2468, %v2487
      %v2492 = vadd.f32 %v2469, %v2487
      %v2493 = vadd.f32 %v2470, %v2487
      %v2494 = vadd.f32 %v2471, %v2487
      %v2495 = vadd.f32 %v2472, %v2487
      %v2496 = vadd.f32 %v2473, %v2487
      %v2497 = vadd.f32 %v2474, %v2487
      %v2498 = vadd.f32 %v2475, %v2487
      %v2499 = vadd.f32 %v2476, %v2487
      %v2500 = vadd.f32 %v2477, %v2487
      %v2501 = vadd.f32 %v2478, %v2487
      %v2502 = vadd.f32 %v2479, %v2487
      %v2503 = vadd.f32 %v2480, %v2487
      %v2504 = vadd.f32 %v2481, %v2487
      %v2505 = vmax.f32 %v2489, 0.0
      %v2506 = vmax.f32 %v2490, 0.0
      %v2507 = vmax.f32 %v2491, 0.0
      %v2508 = vmax.f32 %v2492, 0.0
      %v2509 = vmax.f32 %v2493, 0.0
      %v2510 = vmax.f32 %v2494, 0.0
      %v2511 = vmax.f32 %v2495, 0.0
      %v2512 = vmax.f32 %v2496, 0.0
      %v2513 = vmax.f32 %v2497, 0.0
      %v2514 = vmax.f32 %v2498, 0.0
      %v2515 = vmax.f32 %v2499, 0.0
      %v2516 = vmax.f32 %v2500, 0.0
      %v2517 = vmax.f32 %v2501, 0.0
      %v2518 = vmax.f32 %v2502, 0.0
      %v2519 = vmax.f32 %v2503, 0.0
      %v2520 = vmax.f32 %v2504, 0.0
      %v2521 = vpack.c.bf16 %v2506, %v2505
      %v2522 = vpack.c.bf16 %v2508, %v2507
      %v2523 = vpack.c.bf16 %v2510, %v2509
      %v2524 = vpack.c.bf16 %v2512, %v2511
      %v2525 = vpack.c.bf16 %v2514, %v2513
      %v2526 = vpack.c.bf16 %v2516, %v2515
      %v2527 = vpack.c.bf16 %v2518, %v2517
      %v2528 = vpack.c.bf16 %v2520, %v2519
      %v2529 = vld [vmem:[%s11] sm:$0x3]
      %v2531 = vsel %vm722, %v2521, 0
      %v2534 = vsel %vm722, %v2522, 0
      %v2537 = vsel %vm722, %v2523, 0
      %v2540 = vsel %vm722, %v2524, 0
      %v2543 = vsel %vm722, %v2525, 0
      %v2546 = vsel %vm722, %v2526, 0
      %v2549 = vsel %vm722, %v2527, 0
      %v2552 = vsel %vm722, %v2528, 0
      %v2555 = vsel %vm784, %v2529, 0
      %2557 = vmatprep.subr.bf16.mxu0 0
      %2558 = vmatpush1.bf16.msra.mxu0 %v2555
      %2559 = vmatprep.subr.bf16.mxu0 0
      %2560 = vmatpush1.bf16.msra.mxu0 0
      %2561 = vmatprep.subr.bf16.mxu0 0
      %2562 = vmatpush1.bf16.msra.mxu0 0
      %2563 = vmatprep.subr.bf16.mxu0 0
      %2564 = vmatpush1.bf16.msra.mxu0 0
      %2565 = vmatprep.subr.bf16.mxu0 0
      %2566 = vmatpush1.bf16.msra.mxu0 0
      %2567 = vmatprep.subr.bf16.mxu0 0
      %2568 = vmatpush1.bf16.msra.mxu0 0
      %2569 = vmatprep.subr.bf16.mxu0 0
      %2570 = vmatpush1.bf16.msra.mxu0 0
      %2571 = vmatprep.subr.bf16.mxu0 0
      %2572 = vmatpush1.bf16.msra.mxu0 0
      %2573 = vmatprep.subr.bf16.mxu0 0
      %2574 = vmatpush1.bf16.msra.mxu0 0
      %2575 = vmatprep.subr.bf16.mxu0 0
      %2576 = vmatpush1.bf16.msra.mxu0 0
      %2577 = vmatprep.subr.bf16.mxu0 0
      %2578 = vmatpush1.bf16.msra.mxu0 0
      %2579 = vmatprep.subr.bf16.mxu0 0
      %2580 = vmatpush1.bf16.msra.mxu0 0
      %2581 = vmatprep.subr.bf16.mxu0 0
      %2582 = vmatpush1.bf16.msra.mxu0 0
      %2583 = vmatprep.subr.bf16.mxu0 0
      %2584 = vmatpush1.bf16.msra.mxu0 0
      %2585 = vmatprep.subr.bf16.mxu0 0
      %2586 = vmatpush1.bf16.msra.mxu0 0
      %2587 = vmatprep.subr.bf16.mxu0 0
      %2588 = vmatpush1.bf16.msra.mxu0 0
      %2589 = vmatprep.mubr.bf16.mxu0 0
      %2590 = vmatmul.mubr.bf16.gmra.mrb[0].mxu0 %v2531
      %v2591 = vpop.f32.mrb[0].mxu0
      %v2592 = vadd.f32 0.0, %v2591
      %v2593 = vpop.f32.mrb[0].mxu0
      %v2594 = vpop.f32.mrb[0].mxu0
      %v2595 = vadd.f32 0.0, %v2594
      %v2596 = vpop.f32.mrb[0].mxu0
      %2597 = vmatprep.mubr.bf16.mxu0 0
      %2598 = vmatmul.mubr.bf16.gmra.mrb[0].mxu0 %v2534
      %v2599 = vpop.f32.mrb[0].mxu0
      %v2600 = vadd.f32 0.0, %v2599
      %v2601 = vpop.f32.mrb[0].mxu0
      %v2602 = vpop.f32.mrb[0].mxu0
      %v2603 = vadd.f32 0.0, %v2602
      %v2604 = vpop.f32.mrb[0].mxu0
      %2605 = vmatprep.mubr.bf16.mxu0 0
      %2606 = vmatmul.mubr.bf16.gmra.mrb[0].mxu0 %v2537
      %v2607 = vpop.f32.mrb[0].mxu0
      %v2608 = vadd.f32 0.0, %v2607
      %v2609 = vpop.f32.mrb[0].mxu0
      %v2610 = vpop.f32.mrb[0].mxu0
      %v2611 = vadd.f32 0.0, %v2610
      %v2612 = vpop.f32.mrb[0].mxu0
      %2613 = vmatprep.mubr.bf16.mxu0 0
      %2614 = vmatmul.mubr.bf16.gmra.mrb[0].mxu0 %v2540
      %v2615 = vpop.f32.mrb[0].mxu0
      %v2616 = vadd.f32 0.0, %v2615
      %v2617 = vpop.f32.mrb[0].mxu0
      %v2618 = vpop.f32.mrb[0].mxu0
      %v2619 = vadd.f32 0.0, %v2618
      %v2620 = vpop.f32.mrb[0].mxu0
      %2621 = vmatprep.mubr.bf16.mxu0 0
      %2622 = vmatmul.mubr.bf16.gmra.mrb[0].mxu0 %v2543
      %v2623 = vpop.f32.mrb[0].mxu0
      %v2624 = vadd.f32 0.0, %v2623
      %v2625 = vpop.f32.mrb[0].mxu0
      %v2626 = vpop.f32.mrb[0].mxu0
      %v2627 = vadd.f32 0.0, %v2626
      %v2628 = vpop.f32.mrb[0].mxu0
      %2629 = vmatprep.mubr.bf16.mxu0 0
      %2630 = vmatmul.mubr.bf16.gmra.mrb[0].mxu0 %v2546
      %v2631 = vpop.f32.mrb[0].mxu0
      %v2632 = vadd.f32 0.0, %v2631
      %v2633 = vpop.f32.mrb[0].mxu0
      %v2634 = vpop.f32.mrb[0].mxu0
      %v2635 = vadd.f32 0.0, %v2634
      %v2636 = vpop.f32.mrb[0].mxu0
      %2637 = vmatprep.mubr.bf16.mxu0 0
      %2638 = vmatmul.mubr.bf16.gmra.mrb[0].mxu0 %v2549
      %v2639 = vpop.f32.mrb[0].mxu0
      %v2640 = vadd.f32 0.0, %v2639
      %v2641 = vpop.f32.mrb[0].mxu0
      %v2642 = vpop.f32.mrb[0].mxu0
      %v2643 = vadd.f32 0.0, %v2642
      %v2644 = vpop.f32.mrb[0].mxu0
      %2645 = vmatprep.mubr.bf16.mxu0 0
      %2646 = vmatmul.mubr.bf16.gmra.mrb[0].mxu0 %v2552
      %v2647 = vpop.f32.mrb[0].mxu0
      %v2648 = vadd.f32 0.0, %v2647
      %v2649 = vpop.f32.mrb[0].mxu0
      %v2650 = vpop.f32.mrb[0].mxu0
      %v2651 = vadd.f32 0.0, %v2650
      %v2652 = vpop.f32.mrb[0].mxu0
      %2653 = vdwg.mxu0
      %v2654 = vld [vmem:[%s4] sm:$0x3]
      %v2656 = vsel %vm784, %v2654, 0
      %2658 = vmatprep.subr.bf16.mxu0 0
      %2659 = vmatpush1.bf16.msra.mxu0 %v2656
      %2660 = vmatprep.subr.bf16.mxu0 0
      %2661 = vmatpush1.bf16.msra.mxu0 0
      %2662 = vmatprep.subr.bf16.mxu0 0
      %2663 = vmatpush1.bf16.msra.mxu0 0
      %2664 = vmatprep.subr.bf16.mxu0 0
      %2665 = vmatpush1.bf16.msra.mxu0 0
      %2666 = vmatprep.subr.bf16.mxu0 0
      %2667 = vmatpush1.bf16.msra.mxu0 0
      %2668 = vmatprep.subr.bf16.mxu0 0
      %2669 = vmatpush1.bf16.msra.mxu0 0
      %2670 = vmatprep.subr.bf16.mxu0 0
      %2671 = vmatpush1.bf16.msra.mxu0 0
      %2672 = vmatprep.subr.bf16.mxu0 0
      %2673 = vmatpush1.bf16.msra.mxu0 0
      %2674 = vmatprep.subr.bf16.mxu0 0
      %2675 = vmatpush1.bf16.msra.mxu0 0
      %2676 = vmatprep.subr.bf16.mxu0 0
      %2677 = vmatpush1.bf16.msra.mxu0 0
      %2678 = vmatprep.subr.bf16.mxu0 0
      %2679 = vmatpush1.bf16.msra.mxu0 0
      %2680 = vmatprep.subr.bf16.mxu0 0
      %2681 = vmatpush1.bf16.msra.mxu0 0
      %2682 = vmatprep.subr.bf16.mxu0 0
      %2683 = vmatpush1.bf16.msra.mxu0 0
      %2684 = vmatprep.subr.bf16.mxu0 0
      %2685 = vmatpush1.bf16.msra.mxu0 0
      %2686 = vmatprep.subr.bf16.mxu0 0
      %2687 = vmatpush1.bf16.msra.mxu0 0
      %2688 = vmatprep.subr.bf16.mxu0 0
      %2689 = vmatpush1.bf16.msra.mxu0 0
      %2690 = vmatprep.mubr.bf16.mxu0 0
      %2691 = vmatmul.mubr.bf16.gmra.mrb[0].mxu0 %v758
      %v2692 = vpop.f32.mrb[0].mxu0
      %v2693 = vadd.f32 %v2592, %v2692
      %v2694 = vpop.f32.mrb[0].mxu0
      %v2695 = vpop.f32.mrb[0].mxu0
      %v2696 = vadd.f32 %v2595, %v2695
      %v2697 = vpop.f32.mrb[0].mxu0
      %2698 = vmatprep.mubr.bf16.mxu0 0
      %2699 = vmatmul.mubr.bf16.gmra.mrb[0].mxu0 %v761
      %v2700 = vpop.f32.mrb[0].mxu0
      %v2701 = vadd.f32 %v2600, %v2700
      %v2702 = vpop.f32.mrb[0].mxu0
      %v2703 = vpop.f32.mrb[0].mxu0
      %v2704 = vadd.f32 %v2603, %v2703
      %v2705 = vpop.f32.mrb[0].mxu0
      %2706 = vmatprep.mubr.bf16.mxu0 0
      %2707 = vmatmul.mubr.bf16.gmra.mrb[0].mxu0 %v764
      %v2708 = vpop.f32.mrb[0].mxu0
      %v2709 = vadd.f32 %v2608, %v2708
      %v2710 = vpop.f32.mrb[0].mxu0
      %v2711 = vpop.f32.mrb[0].mxu0
      %v2712 = vadd.f32 %v2611, %v2711
      %v2713 = vpop.f32.mrb[0].mxu0
      %2714 = vmatprep.mubr.bf16.mxu0 0
      %2715 = vmatmul.mubr.bf16.gmra.mrb[0].mxu0 %v767
      %v2716 = vpop.f32.mrb[0].mxu0
      %v2717 = vadd.f32 %v2616, %v2716
      %v2718 = vpop.f32.mrb[0].mxu0
      %v2719 = vpop.f32.mrb[0].mxu0
      %v2720 = vadd.f32 %v2619, %v2719
      %v2721 = vpop.f32.mrb[0].mxu0
      %2722 = vmatprep.mubr.bf16.mxu0 0
      %2723 = vmatmul.mubr.bf16.gmra.mrb[0].mxu0 %v770
      %v2724 = vpop.f32.mrb[0].mxu0
      %v2725 = vadd.f32 %v2624, %v2724
      %v2726 = vpop.f32.mrb[0].mxu0
      %v2727 = vpop.f32.mrb[0].mxu0
      %v2728 = vadd.f32 %v2627, %v2727
      %v2729 = vpop.f32.mrb[0].mxu0
      %2730 = vmatprep.mubr.bf16.mxu0 0
      %2731 = vmatmul.mubr.bf16.gmra.mrb[0].mxu0 %v773
      %v2732 = vpop.f32.mrb[0].mxu0
      %v2733 = vadd.f32 %v2632, %v2732
      %v2734 = vpop.f32.mrb[0].mxu0
      %v2735 = vpop.f32.mrb[0].mxu0
      %v2736 = vadd.f32 %v2635, %v2735
      %v2737 = vpop.f32.mrb[0].mxu0
      %2738 = vmatprep.mubr.bf16.mxu0 0
      %2739 = vmatmul.mubr.bf16.gmra.mrb[0].mxu0 %v776
      %v2740 = vpop.f32.mrb[0].mxu0
      %v2741 = vadd.f32 %v2640, %v2740
      %v2742 = vpop.f32.mrb[0].mxu0
      %v2743 = vpop.f32.mrb[0].mxu0
      %v2744 = vadd.f32 %v2643, %v2743
      %v2745 = vpop.f32.mrb[0].mxu0
      %2746 = vmatprep.mubr.bf16.mxu0 0
      %2747 = vmatmul.mubr.bf16.gmra.mrb[0].mxu0 %v779
      %v2748 = vpop.f32.mrb[0].mxu0
      %v2749 = vadd.f32 %v2648, %v2748
      %v2750 = vpop.f32.mrb[0].mxu0
      %v2751 = vpop.f32.mrb[0].mxu0
      %v2752 = vadd.f32 %v2651, %v2751
      %v2753 = vpop.f32.mrb[0].mxu0
      %2754 = vdwg.mxu0
      %2755 = vst.msk [vmem:[%s560] sm:$0xff] %vm2051, %v2693
      %2756 = vst.msk [vmem:[%s560 + $0x8] sm:$0xff] %vm2051, %v2696
      %2757 = vst.msk [vmem:[%s560 + $0x10] sm:$0xff] %vm2051, %v2701
      %2758 = vst.msk [vmem:[%s560 + $0x18] sm:$0xff] %vm2051, %v2704
      %2759 = vst.msk [vmem:[%s560 + $0x20] sm:$0xff] %vm2051, %v2709
      %2760 = vst.msk [vmem:[%s560 + $0x28] sm:$0xff] %vm2051, %v2712
      %2761 = vst.msk [vmem:[%s560 + $0x30] sm:$0xff] %vm2051, %v2717
      %2762 = vst.msk [vmem:[%s560 + $0x38] sm:$0xff] %vm2051, %v2720
      %2763 = vst.msk [vmem:[%s560 + $0x40] sm:$0xff] %vm2051, %v2725
      %2764 = vst.msk [vmem:[%s560 + $0x48] sm:$0xff] %vm2051, %v2728
      %2765 = vst.msk [vmem:[%s560 + $0x50] sm:$0xff] %vm2051, %v2733
      %2766 = vst.msk [vmem:[%s560 + $0x58] sm:$0xff] %vm2051, %v2736
      %2767 = vst.msk [vmem:[%s560 + $0x60] sm:$0xff] %vm2051, %v2741
      %2768 = vst.msk [vmem:[%s560 + $0x68] sm:$0xff] %vm2051, %v2744
      %2769 = vst.msk [vmem:[%s560 + $0x70] sm:$0xff] %vm2051, %v2749
      %2770 = vst.msk [vmem:[%s560 + $0x78] sm:$0xff] %vm2051, %v2752
      %s2771 = smul.u32 8, %s30
      %p2772 = scmp.lt.s32.totalorder %s29, 1
      %s2773 = scalar_select %p2772, %s29, 1
      %p2774 = scmp.lt.s32.totalorder %s2771, 15
      %s2775 = scalar_select %p2774, %s2771, 15
      %s2776 = smul.addr %s2775, 2
      %s2777 = smul.addr %s2773, 32
      %s2778 = sadd.s32 %s2776, %s2777
      %s2779 = smul.addr %s2778, 8
      %s2780 = scalar_lea.vmem %s12, %s2779
      %s2781 = smul.u32 8, %s30
      %p2782 = scmp.lt.s32.totalorder %s29, 1
      %s2783 = scalar_select %p2782, %s29, 1
      %p2784 = scmp.lt.s32.totalorder %s2781, 15
      %s2785 = scalar_select %p2784, %s2781, 15
      %s2786 = smul.addr %s2785, 2
      %s2787 = smul.addr %s2783, 32
      %s2788 = sadd.s32 %s2786, %s2787
      %s2789 = smul.addr %s2788, 8
      %s2790 = scalar_lea.vmem %s13, %s2789
      // Predicated region
      $region89: #{tpu_custom_call.1} parent=67 // pred_check
        %p2791 = pneg %p331
      $region90: #{tpu_custom_call.1} parent=67 // pred_check_branch
        %2793 = sbr.rel (%p2791) target = $region92
      $region91: #{tpu_custom_call.1} parent=67 // pred_region
        %s2794 = smul.u32 8, %s30
      $region92: #{tpu_custom_call.1} parent=67 // pred_fallthru
        _
      // Predicated region
      $region93: #{tpu_custom_call.1} parent=67 // pred_check
        %p2795 = pneg %p359
      $region94: #{tpu_custom_call.1} parent=67 // pred_check_branch
        %2797 = sbr.rel (%p2795) target = $region96
      $region95: #{tpu_custom_call.1} parent=67 // pred_region
        %s2798 = smul.u32 8, %s30
      $region96: #{tpu_custom_call.1} parent=67 // pred_fallthru
        _
    $region68: #{tpu_custom_call.1} parent=5 // pred_fallthru
      _
    %p2799 = scmp.le.s32.totalorder 2, %s20
    // Predicated region
    $region97: #{tpu_custom_call.1} parent=5 // pred_check
      %p2800 = pneg %p2799
    $region98: #{tpu_custom_call.1} parent=5 // pred_check_branch
      %2802 = sbr.rel (%p2800) target = $region100
    $region99: #{tpu_custom_call.1} parent=5 // pred_region
      %s2803 = ssub.s32 %s20, 2
      // Predicated region
      $region101: #{tpu_custom_call.1} parent=99 // pred_check
        %p2804 = pneg %p337
      $region102: #{tpu_custom_call.1} parent=99 // pred_check_branch
        %2806 = sbr.rel (%p2804) target = $region104
      $region103: #{tpu_custom_call.1} parent=99 // pred_region
        %s2807 = smul.u32 8, %s32
        %p2808 = scmp.lt.s32.totalorder %s31, 1
        %s2809 = scalar_select %p2808, %s31, 1
        %p2810 = scmp.lt.s32.totalorder %s2807, 15
        %s2811 = scalar_select %p2810, %s2807, 15
        %s2812 = smul.addr %s2811, 2
        %s2813 = smul.addr %s2809, 32
        %s2814 = sadd.s32 %s2812, %s2813
        %s2815 = smul.addr %s2814, 8
        %s2816 = scalar_lea.vmem %s12, %s2815
      $region104: #{tpu_custom_call.1} parent=99 // pred_fallthru
        _
      // Predicated region
      $region105: #{tpu_custom_call.1} parent=99 // pred_check
        %p2817 = pneg %p365
      $region106: #{tpu_custom_call.1} parent=99 // pred_check_branch
        %2819 = sbr.rel (%p2817) target = $region108
      $region107: #{tpu_custom_call.1} parent=99 // pred_region
        %s2820 = smul.u32 8, %s32
        %p2821 = scmp.lt.s32.totalorder %s31, 1
        %s2822 = scalar_select %p2821, %s31, 1
        %p2823 = scmp.lt.s32.totalorder %s2820, 15
        %s2824 = scalar_select %p2823, %s2820, 15
        %s2825 = smul.addr %s2824, 2
        %s2826 = smul.addr %s2822, 32
        %s2827 = sadd.s32 %s2825, %s2826
        %s2828 = smul.addr %s2827, 8
        %s2829 = scalar_lea.vmem %s13, %s2828
      $region108: #{tpu_custom_call.1} parent=99 // pred_fallthru
        _
    $region100: #{tpu_custom_call.1} parent=5 // pred_fallthru
      _
  $region6: #{tpu_custom_call.1} parent=0 // loop_footer
    %s24 = sadd.s32 1, %s20
  $region7: #{tpu_custom_call.1} parent=0 // loop_footer_branch
    %19 = sbr.rel target = $region3
  $region8: #{tpu_custom_call.1} parent=0 // loop_exit
    _

// kernel: tpu_custom_call.1
$region0: #{tpu_custom_call.1}
  #allocation0 [shape = 'u32[]', space=smem, size = 0x4, offset = 0x4, fixed_abs, tag = 'smem constant byte address 0x4 - core index']
  #allocation1 [shape = 'u32[144,128]{1,0:T(1,128)}', space=vmem, size = 0x12000, scoped, tag = 'internal scratch']
  #allocation2 [shape = 'f32[10,25,2]{2,1,0:T(8,128)}', space=vmem, size = 0x28000, scoped, tag = 'scratch operand']
  #allocation3 [shape = 'f32[1,16,2]{2,1,0:T(8,128)}', space=vmem, size = 0x2000, scoped, tag = 'scratch operand']
  %s0 = inlined_call_operand.vmem [shape: f32[2,16,16,4], index: 0, kind: input, shape index: {}]
  %s1 = inlined_call_operand.vmem [shape: f32[2,16,16,4], index: 1, kind: input, shape index: {}]
  %s2 = inlined_call_operand.vmem [shape: f32[1,4], index: 2, kind: input, shape index: {}]
  %s3 = inlined_call_operand.vmem [shape: f32[1,4], index: 3, kind: input, shape index: {}]
  %s4 = inlined_call_operand.vmem [shape: bf16[4,8], index: 4, kind: input, shape index: {}]
  %s5 = inlined_call_operand.vmem [shape: bf16[4,2], index: 5, kind: input, shape index: {}]
  %s6 = inlined_call_operand.vmem [shape: f32[1,2], index: 6, kind: input, shape index: {}]
  %s7 = inlined_call_operand.vmem [shape: f32[1,2], index: 7, kind: input, shape index: {}]
  %s8 = inlined_call_operand.vmem [shape: bf16[18,4], index: 8, kind: input, shape index: {}]
  %s9 = inlined_call_operand.vmem [shape: f32[1,4], index: 9, kind: input, shape index: {}]
  %s10 = inlined_call_operand.vmem [shape: f32[1,4], index: 10, kind: input, shape index: {}]
  %s11 = inlined_call_operand.vmem [shape: bf16[4,8], index: 11, kind: input, shape index: {}]
  %s12 = inlined_call_operand.vmem [shape: f32[2,16,16,8], index: 12, kind: output, shape index: {0}]
  %s13 = inlined_call_operand.vmem [shape: f32[2,16,16,4], index: 13, kind: output, shape index: {1}]
  %14 = xla_tuple %s12, %s13
  %s15 = sld [smem:[#allocation0]]
  $region109: #{tpu_custom_call.1} parent=0
    _
  %s17 = ssub.s32 1, %s15
  %s18 = scalar_select 0, %s17, %s15
  loop: start=0, step=1, limit=6
  $region2: #{tpu_custom_call.1} parent=0 // loop_pre_header
    _
  $region3: #{tpu_custom_call.1} parent=0 // loop_header
    %s20 = sphi 0, %s24
    %p21 = scmp.ge.s32.totalorder %s20, 6
    %s27 = sphi 0, %s39
    %s28 = sphi 0, %s35
    %s29 = sphi 0, %s27
    %s30 = sphi 0, %s28
    %s31 = sphi 0, %s29
    %s32 = sphi 0, %s30
    %s44 = sphi 0, %s46
    %s47 = sphi 0, %s44
    %s48 = sphi 0, %s47
    %s64 = sphi 0, %s48
    %s80 = sphi 0, %s82
    %s83 = sphi 0, %s80
    %s84 = sphi 0, %s83
    %s100 = sphi 0, %s84
    %s104 = sphi 0, %s104
    %s106 = sphi 0, %s104
    %s107 = sphi 0, %s106
    %s121 = sphi 0, %s107
    %s125 = sphi 0, %s125
    %s127 = sphi 0, %s125
    %s128 = sphi 0, %s127
    %s142 = sphi 0, %s128
    %s146 = sphi 0, %s146
    %s148 = sphi 0, %s146
    %s149 = sphi 0, %s148
    %s163 = sphi 0, %s149
    %s167 = sphi 0, %s167
    %s169 = sphi 0, %s167
    %s170 = sphi 0, %s169
    %s184 = sphi 0, %s170
    %s188 = sphi 0, %s188
    %s190 = sphi 0, %s188
    %s191 = sphi 0, %s190
    %s205 = sphi 0, %s191
    %s209 = sphi 0, %s209
    %s211 = sphi 0, %s209
    %s212 = sphi 0, %s211
    %s226 = sphi 0, %s212
    %s230 = sphi 0, %s230
    %s232 = sphi 0, %s230
    %s233 = sphi 0, %s232
    %s247 = sphi 0, %s233
    %s251 = sphi 0, %s251
    %s253 = sphi 0, %s251
    %s254 = sphi 0, %s253
    %s268 = sphi 0, %s254
    %s272 = sphi 0, %s272
    %s274 = sphi 0, %s272
    %s275 = sphi 0, %s274
    %s289 = sphi 0, %s275
    %s293 = sphi 0, %s293
    %s295 = sphi 0, %s293
    %s296 = sphi 0, %s295
    %s310 = sphi 0, %s296
    %s318 = sphi 0, %s320
    %s321 = sphi 0, %s318
    %s322 = sphi 0, %s321
    %s338 = sphi 0, %s322
    %s346 = sphi 0, %s348
    %s349 = sphi 0, %s346
    %s350 = sphi 0, %s349
    %s366 = sphi 0, %s350
  $region4: #{tpu_custom_call.1} parent=0 // loop_header_branch
    %23 = sbr.rel (%p21) target = $region8
  $region5: #{tpu_custom_call.1} parent=0 // loop_body
    %s25 = ssub.s32 %s20, 1
    %s26 = ssub.s32 %s20, 2
    %s33 = sadd.s32 1, %s28
    %p34 = scmp.ge.s32.totalorder %s33, 2
    %s35 = scalar_select %p34, 0, %s33
    %s36 = sadd.s32 1, %s27
    %s37 = scalar_select %p34, %s36, %s27
    %p38 = scmp.ge.s32.totalorder %s37, 2
    %s39 = scalar_select %p38, 0, %s37
    %s40 = ssub.s32 %s27, %s39
    %s41 = ssub.s32 %s28, %s35
    %s42 = sor.u32 %s40, %s41
    %p43 = scmp.eq.s32.totalorder %s42, 0
    %s45 = sadd.s32 %s44, 1
    %s46 = scalar_select %p43, %s44, %s45
    %p49 = pneg %p43
    %p50 = scmp.eq.s32.totalorder %s20, 3
    %p51 = por %p49, %p50
    %p52 = scmp.ne.s32.totalorder %s44, %s47
    %p53 = scmp.eq.s32.totalorder %s20, 0
    %p54 = por %p52, %p53
    %p55 = scmp.ne.s32.totalorder %s44, %s47
    %p56 = scmp.eq.s32.totalorder %s25, 3
    %p57 = por %p55, %p56
    %p58 = scmp.ne.s32.totalorder %s47, %s48
    %p59 = scmp.eq.s32.totalorder %s25, 0
    %p60 = por %p58, %p59
    %p61 = scmp.ne.s32.totalorder %s47, %s48
    %p62 = scmp.eq.s32.totalorder %s26, 3
    %p63 = por %p61, %p62
    %p65 = scmp.ne.s32.totalorder %s48, %s64
    %p66 = scmp.eq.s32.totalorder %s26, 0
    %p67 = por %p65, %p66
    %s68 = sadd.s32 %s28, 1
    %s69 = smul.u32 %s68, 8
    %p70 = scmp.lt.s32.totalorder %s69, 15
    %s71 = scalar_select %p70, %s69, 15
    %s72 = sadd.s32 %s35, 1
    %s73 = smul.u32 %s72, 8
    %p74 = scmp.lt.s32.totalorder %s73, 15
    %s75 = scalar_select %p74, %s73, 15
    %s76 = ssub.s32 %s27, %s39
    %s77 = ssub.s32 %s71, %s75
    %s78 = sor.u32 %s76, %s77
    %p79 = scmp.eq.s32.totalorder %s78, 0
    %s81 = sadd.s32 %s80, 1
    %s82 = scalar_select %p79, %s80, %s81
    %p85 = pneg %p79
    %p86 = scmp.eq.s32.totalorder %s20, 3
    %p87 = por %p85, %p86
    %p88 = scmp.ne.s32.totalorder %s80, %s83
    %p89 = scmp.eq.s32.totalorder %s20, 0
    %p90 = por %p88, %p89
    %p91 = scmp.ne.s32.totalorder %s80, %s83
    %p92 = scmp.eq.s32.totalorder %s25, 3
    %p93 = por %p91, %p92
    %p94 = scmp.ne.s32.totalorder %s83, %s84
    %p95 = scmp.eq.s32.totalorder %s25, 0
    %p96 = por %p94, %p95
    %p97 = scmp.ne.s32.totalorder %s83, %s84
    %p98 = scmp.eq.s32.totalorder %s26, 3
    %p99 = por %p97, %p98
    %p101 = scmp.ne.s32.totalorder %s84, %s100
    %p102 = scmp.eq.s32.totalorder %s26, 0
    %p103 = por %p101, %p102
    %s105 = sadd.s32 %s104, 1
    %p108 = scmp.eq.s32.totalorder %s20, 3
    %p109 = scmp.ne.s32.totalorder %s104, %s106
    %p110 = scmp.eq.s32.totalorder %s20, 0
    %p111 = por %p109, %p110
    %p112 = scmp.ne.s32.totalorder %s104, %s106
    %p113 = scmp.eq.s32.totalorder %s25, 3
    %p114 = por %p112, %p113
    %p115 = scmp.ne.s32.totalorder %s106, %s107
    %p116 = scmp.eq.s32.totalorder %s25, 0
    %p117 = por %p115, %p116
    %p118 = scmp.ne.s32.totalorder %s106, %s107
    %p119 = scmp.eq.s32.totalorder %s26, 3
    %p120 = por %p118, %p119
    %p122 = scmp.ne.s32.totalorder %s107, %s121
    %p123 = scmp.eq.s32.totalorder %s26, 0
    %p124 = por %p122, %p123
    %s126 = sadd.s32 %s125, 1
    %p129 = scmp.eq.s32.totalorder %s20, 3
    %p130 = scmp.ne.s32.totalorder %s125, %s127
    %p131 = scmp.eq.s32.totalorder %s20, 0
    %p132 = por %p130, %p131
    %p133 = scmp.ne.s32.totalorder %s125, %s127
    %p134 = scmp.eq.s32.totalorder %s25, 3
    %p135 = por %p133, %p134
    %p136 = scmp.ne.s32.totalorder %s127, %s128
    %p137 = scmp.eq.s32.totalorder %s25, 0
    %p138 = por %p136, %p137
    %p139 = scmp.ne.s32.totalorder %s127, %s128
    %p140 = scmp.eq.s32.totalorder %s26, 3
    %p141 = por %p139, %p140
    %p143 = scmp.ne.s32.totalorder %s128, %s142
    %p144 = scmp.eq.s32.totalorder %s26, 0
    %p145 = por %p143, %p144
    %s147 = sadd.s32 %s146, 1
    %p150 = scmp.eq.s32.totalorder %s20, 3
    %p151 = scmp.ne.s32.totalorder %s146, %s148
    %p152 = scmp.eq.s32.totalorder %s20, 0
    %p153 = por %p151, %p152
    %p154 = scmp.ne.s32.totalorder %s146, %s148
    %p155 = scmp.eq.s32.totalorder %s25, 3
    %p156 = por %p154, %p155
    %p157 = scmp.ne.s32.totalorder %s148, %s149
    %p158 = scmp.eq.s32.totalorder %s25, 0
    %p159 = por %p157, %p158
    %p160 = scmp.ne.s32.totalorder %s148, %s149
    %p161 = scmp.eq.s32.totalorder %s26, 3
    %p162 = por %p160, %p161
    %p164 = scmp.ne.s32.totalorder %s149, %s163
    %p165 = scmp.eq.s32.totalorder %s26, 0
    %p166 = por %p164, %p165
    %s168 = sadd.s32 %s167, 1
    %p171 = scmp.eq.s32.totalorder %s20, 3
    %p172 = scmp.ne.s32.totalorder %s167, %s169
    %p173 = scmp.eq.s32.totalorder %s20, 0
    %p174 = por %p172, %p173
    %p175 = scmp.ne.s32.totalorder %s167, %s169
    %p176 = scmp.eq.s32.totalorder %s25, 3
    %p177 = por %p175, %p176
    %p178 = scmp.ne.s32.totalorder %s169, %s170
    %p179 = scmp.eq.s32.totalorder %s25, 0
    %p180 = por %p178, %p179
    %p181 = scmp.ne.s32.totalorder %s169, %s170
    %p182 = scmp.eq.s32.totalorder %s26, 3
    %p183 = por %p181, %p182
    %p185 = scmp.ne.s32.totalorder %s170, %s184
    %p186 = scmp.eq.s32.totalorder %s26, 0
    %p187 = por %p185, %p186
    %s189 = sadd.s32 %s188, 1
    %p192 = scmp.eq.s32.totalorder %s20, 3
    %p193 = scmp.ne.s32.totalorder %s188, %s190
    %p194 = scmp.eq.s32.totalorder %s20, 0
    %p195 = por %p193, %p194
    %p196 = scmp.ne.s32.totalorder %s188, %s190
    %p197 = scmp.eq.s32.totalorder %s25, 3
    %p198 = por %p196, %p197
    %p199 = scmp.ne.s32.totalorder %s190, %s191
    %p200 = scmp.eq.s32.totalorder %s25, 0
    %p201 = por %p199, %p200
    %p202 = scmp.ne.s32.totalorder %s190, %s191
    %p203 = scmp.eq.s32.totalorder %s26, 3
    %p204 = por %p202, %p203
    %p206 = scmp.ne.s32.totalorder %s191, %s205
    %p207 = scmp.eq.s32.totalorder %s26, 0
    %p208 = por %p206, %p207
    %s210 = sadd.s32 %s209, 1
    %p213 = scmp.eq.s32.totalorder %s20, 3
    %p214 = scmp.ne.s32.totalorder %s209, %s211
    %p215 = scmp.eq.s32.totalorder %s20, 0
    %p216 = por %p214, %p215
    %p217 = scmp.ne.s32.totalorder %s209, %s211
    %p218 = scmp.eq.s32.totalorder %s25, 3
    %p219 = por %p217, %p218
    %p220 = scmp.ne.s32.totalorder %s211, %s212
    %p221 = scmp.eq.s32.totalorder %s25, 0
    %p222 = por %p220, %p221
    %p223 = scmp.ne.s32.totalorder %s211, %s212
    %p224 = scmp.eq.s32.totalorder %s26, 3
    %p225 = por %p223, %p224
    %p227 = scmp.ne.s32.totalorder %s212, %s226
    %p228 = scmp.eq.s32.totalorder %s26, 0
    %p229 = por %p227, %p228
    %s231 = sadd.s32 %s230, 1
    %p234 = scmp.eq.s32.totalorder %s20, 3
    %p235 = scmp.ne.s32.totalorder %s230, %s232
    %p236 = scmp.eq.s32.totalorder %s20, 0
    %p237 = por %p235, %p236
    %p238 = scmp.ne.s32.totalorder %s230, %s232
    %p239 = scmp.eq.s32.totalorder %s25, 3
    %p240 = por %p238, %p239
    %p241 = scmp.ne.s32.totalorder %s232, %s233
    %p242 = scmp.eq.s32.totalorder %s25, 0
    %p243 = por %p241, %p242
    %p244 = scmp.ne.s32.totalorder %s232, %s233
    %p245 = scmp.eq.s32.totalorder %s26, 3
    %p246 = por %p244, %p245
    %p248 = scmp.ne.s32.totalorder %s233, %s247
    %p249 = scmp.eq.s32.totalorder %s26, 0
    %p250 = por %p248, %p249
    %s252 = sadd.s32 %s251, 1
    %p255 = scmp.eq.s32.totalorder %s20, 3
    %p256 = scmp.ne.s32.totalorder %s251, %s253
    %p257 = scmp.eq.s32.totalorder %s20, 0
    %p258 = por %p256, %p257
    %p259 = scmp.ne.s32.totalorder %s251, %s253
    %p260 = scmp.eq.s32.totalorder %s25, 3
    %p261 = por %p259, %p260
    %p262 = scmp.ne.s32.totalorder %s253, %s254
    %p263 = scmp.eq.s32.totalorder %s25, 0
    %p264 = por %p262, %p263
    %p265 = scmp.ne.s32.totalorder %s253, %s254
    %p266 = scmp.eq.s32.totalorder %s26, 3
    %p267 = por %p265, %p266
    %p269 = scmp.ne.s32.totalorder %s254, %s268
    %p270 = scmp.eq.s32.totalorder %s26, 0
    %p271 = por %p269, %p270
    %s273 = sadd.s32 %s272, 1
    %p276 = scmp.eq.s32.totalorder %s20, 3
    %p277 = scmp.ne.s32.totalorder %s272, %s274
    %p278 = scmp.eq.s32.totalorder %s20, 0
    %p279 = por %p277, %p278
    %p280 = scmp.ne.s32.totalorder %s272, %s274
    %p281 = scmp.eq.s32.totalorder %s25, 3
    %p282 = por %p280, %p281
    %p283 = scmp.ne.s32.totalorder %s274, %s275
    %p284 = scmp.eq.s32.totalorder %s25, 0
    %p285 = por %p283, %p284
    %p286 = scmp.ne.s32.totalorder %s274, %s275
    %p287 = scmp.eq.s32.totalorder %s26, 3
    %p288 = por %p286, %p287
    %p290 = scmp.ne.s32.totalorder %s275, %s289
    %p291 = scmp.eq.s32.totalorder %s26, 0
    %p292 = por %p290, %p291
    %s294 = sadd.s32 %s293, 1
    %p297 = scmp.eq.s32.totalorder %s20, 3
    %p298 = scmp.ne.s32.totalorder %s293, %s295
    %p299 = scmp.eq.s32.totalorder %s20, 0
    %p300 = por %p298, %p299
    %p301 = scmp.ne.s32.totalorder %s293, %s295
    %p302 = scmp.eq.s32.totalorder %s25, 3
    %p303 = por %p301, %p302
    %p304 = scmp.ne.s32.totalorder %s295, %s296
    %p305 = scmp.eq.s32.totalorder %s25, 0
    %p306 = por %p304, %p305
    %p307 = scmp.ne.s32.totalorder %s295, %s296
    %p308 = scmp.eq.s32.totalorder %s26, 3
    %p309 = por %p307, %p308
    %p311 = scmp.ne.s32.totalorder %s296, %s310
    %p312 = scmp.eq.s32.totalorder %s26, 0
    %p313 = por %p311, %p312
    %s314 = ssub.s32 %s27, %s39
    %s315 = ssub.s32 %s28, %s35
    %s316 = sor.u32 %s314, %s315
    %p317 = scmp.eq.s32.totalorder %s316, 0
    %s319 = sadd.s32 %s318, 1
    %s320 = scalar_select %p317, %s318, %s319
    %p323 = pneg %p317
    %p324 = scmp.eq.s32.totalorder %s20, 3
    %p325 = por %p323, %p324
    %p326 = scmp.ne.s32.totalorder %s318, %s321
    %p327 = scmp.eq.s32.totalorder %s20, 0
    %p328 = por %p326, %p327
    %p329 = scmp.ne.s32.totalorder %s318, %s321
    %p330 = scmp.eq.s32.totalorder %s25, 3
    %p331 = por %p329, %p330
    %p332 = scmp.ne.s32.totalorder %s321, %s322
    %p333 = scmp.eq.s32.totalorder %s25, 0
    %p334 = por %p332, %p333
    %p335 = scmp.ne.s32.totalorder %s321, %s322
    %p336 = scmp.eq.s32.totalorder %s26, 3
    %p337 = por %p335, %p336
    %p339 = scmp.ne.s32.totalorder %s322, %s338
    %p340 = scmp.eq.s32.totalorder %s26, 0
    %p341 = por %p339, %p340
    %s342 = ssub.s32 %s27, %s39
    %s343 = ssub.s32 %s28, %s35
    %s344 = sor.u32 %s342, %s343
    %p345 = scmp.eq.s32.totalorder %s344, 0
    %s347 = sadd.s32 %s346, 1
    %s348 = scalar_select %p345, %s346, %s347
    %p351 = pneg %p345
    %p352 = scmp.eq.s32.totalorder %s20, 3
    %p353 = por %p351, %p352
    %p354 = scmp.ne.s32.totalorder %s346, %s349
    %p355 = scmp.eq.s32.totalorder %s20, 0
    %p356 = por %p354, %p355
    %p357 = scmp.ne.s32.totalorder %s346, %s349
    %p358 = scmp.eq.s32.totalorder %s25, 3
    %p359 = por %p357, %p358
    %p360 = scmp.ne.s32.totalorder %s349, %s350
    %p361 = scmp.eq.s32.totalorder %s25, 0
    %p362 = por %p360, %p361
    %p363 = scmp.ne.s32.totalorder %s349, %s350
    %p364 = scmp.eq.s32.totalorder %s26, 3
    %p365 = por %p363, %p364
    %p367 = scmp.ne.s32.totalorder %s350, %s366
    %p368 = scmp.eq.s32.totalorder %s26, 0
    %p369 = por %p367, %p368
    %p370 = scmp.le.s32.totalorder 1, %s20
    %p371 = scmp.lt.s32.totalorder %s20, 5
    %p372 = pnand %p370, %p371
    %p373 = pneg %p372
    // Predicated region
    $region9: #{tpu_custom_call.1} parent=5 // pred_check
      _
    $region10: #{tpu_custom_call.1} parent=5 // pred_check_branch
      %375 = sbr.rel (%p372) target = $region12
    $region11: #{tpu_custom_call.1} parent=5 // pred_region
      %s376 = ssub.s32 %s20, 1
      // Predicated region
      $region13: #{tpu_custom_call.1} parent=11 // pred_check
        %p377 = pneg %p117
      $region14: #{tpu_custom_call.1} parent=11 // pred_check_branch
        %379 = sbr.rel (%p377) target = $region16
      $region15: #{tpu_custom_call.1} parent=11 // pred_region
        _
      $region16: #{tpu_custom_call.1} parent=11 // pred_fallthru
        _
      // Predicated region
      $region17: #{tpu_custom_call.1} parent=11 // pred_check
        %p380 = pneg %p138
      $region18: #{tpu_custom_call.1} parent=11 // pred_check_branch
        %382 = sbr.rel (%p380) target = $region20
      $region19: #{tpu_custom_call.1} parent=11 // pred_region
        _
      $region20: #{tpu_custom_call.1} parent=11 // pred_fallthru
        _
      // Predicated region
      $region21: #{tpu_custom_call.1} parent=11 // pred_check
        %p383 = pneg %p159
      $region22: #{tpu_custom_call.1} parent=11 // pred_check_branch
        %385 = sbr.rel (%p383) target = $region24
      $region23: #{tpu_custom_call.1} parent=11 // pred_region
        _
      $region24: #{tpu_custom_call.1} parent=11 // pred_fallthru
        _
      // Predicated region
      $region25: #{tpu_custom_call.1} parent=11 // pred_check
        %p386 = pneg %p180
      $region26: #{tpu_custom_call.1} parent=11 // pred_check_branch
        %388 = sbr.rel (%p386) target = $region28
      $region27: #{tpu_custom_call.1} parent=11 // pred_region
        _
      $region28: #{tpu_custom_call.1} parent=11 // pred_fallthru
        _
      // Predicated region
      $region29: #{tpu_custom_call.1} parent=11 // pred_check
        %p389 = pneg %p201
      $region30: #{tpu_custom_call.1} parent=11 // pred_check_branch
        %391 = sbr.rel (%p389) target = $region32
      $region31: #{tpu_custom_call.1} parent=11 // pred_region
        _
      $region32: #{tpu_custom_call.1} parent=11 // pred_fallthru
        _
      // Predicated region
      $region33: #{tpu_custom_call.1} parent=11 // pred_check
        %p392 = pneg %p222
      $region34: #{tpu_custom_call.1} parent=11 // pred_check_branch
        %394 = sbr.rel (%p392) target = $region36
      $region35: #{tpu_custom_call.1} parent=11 // pred_region
        _
      $region36: #{tpu_custom_call.1} parent=11 // pred_fallthru
        _
      // Predicated region
      $region37: #{tpu_custom_call.1} parent=11 // pred_check
        %p395 = pneg %p243
      $region38: #{tpu_custom_call.1} parent=11 // pred_check_branch
        %397 = sbr.rel (%p395) target = $region40
      $region39: #{tpu_custom_call.1} parent=11 // pred_region
        _
      $region40: #{tpu_custom_call.1} parent=11 // pred_fallthru
        _
      // Predicated region
      $region41: #{tpu_custom_call.1} parent=11 // pred_check
        %p398 = pneg %p264
      $region42: #{tpu_custom_call.1} parent=11 // pred_check_branch
        %400 = sbr.rel (%p398) target = $region44
      $region43: #{tpu_custom_call.1} parent=11 // pred_region
        _
      $region44: #{tpu_custom_call.1} parent=11 // pred_fallthru
        _
      // Predicated region
      $region45: #{tpu_custom_call.1} parent=11 // pred_check
        %p401 = pneg %p285
      $region46: #{tpu_custom_call.1} parent=11 // pred_check_branch
        %403 = sbr.rel (%p401) target = $region48
      $region47: #{tpu_custom_call.1} parent=11 // pred_region
        _
      $region48: #{tpu_custom_call.1} parent=11 // pred_fallthru
        _
      // Predicated region
      $region49: #{tpu_custom_call.1} parent=11 // pred_check
        %p404 = pneg %p306
      $region50: #{tpu_custom_call.1} parent=11 // pred_check_branch
        %406 = sbr.rel (%p404) target = $region52
      $region51: #{tpu_custom_call.1} parent=11 // pred_region
        _
      $region52: #{tpu_custom_call.1} parent=11 // pred_fallthru
        _
    $region12: #{tpu_custom_call.1} parent=5 // pred_fallthru
      _
    %p407 = scmp.lt.s32.totalorder %s20, 4
    // Predicated region
    $region53: #{tpu_custom_call.1} parent=5 // pred_check
      %p408 = pneg %p407
    $region54: #{tpu_custom_call.1} parent=5 // pred_check_branch
      %410 = sbr.rel (%p408) target = $region56
    $region55: #{tpu_custom_call.1} parent=5 // pred_region
      // Predicated region
      $region57: #{tpu_custom_call.1} parent=55 // pred_check
        %p411 = pneg %p54
      $region58: #{tpu_custom_call.1} parent=55 // pred_check_branch
        %413 = sbr.rel (%p411) target = $region60
      $region59: #{tpu_custom_call.1} parent=55 // pred_region
        %s414 = smul.u32 8, %s28
        %p415 = scmp.lt.s32.totalorder %s27, 1
        %s416 = scalar_select %p415, %s27, 1
        %p417 = scmp.lt.s32.totalorder %s414, 15
        %s418 = scalar_select %p417, %s414, 15
        %s419 = smul.addr %s418, 2
        %s420 = smul.addr %s416, 32
        %s421 = sadd.s32 %s419, %s420
        %s422 = smul.addr %s421, 8
        %s423 = scalar_lea.vmem %s0, %s422
        %s424 = smul.u32 8, %s28
      $region60: #{tpu_custom_call.1} parent=55 // pred_fallthru
        _
      // Predicated region
      $region61: #{tpu_custom_call.1} parent=55 // pred_check
        %p425 = pneg %p90
      $region62: #{tpu_custom_call.1} parent=55 // pred_check_branch
        %427 = sbr.rel (%p425) target = $region64
      $region63: #{tpu_custom_call.1} parent=55 // pred_region
        %s428 = sadd.s32 %s28, 1
        %s429 = smul.u32 %s428, 8
        %p430 = scmp.lt.s32.totalorder %s429, 15
        %s431 = scalar_select %p430, %s429, 15
        %p432 = scmp.lt.s32.totalorder %s27, 1
        %s433 = scalar_select %p432, %s27, 1
        %p434 = scmp.lt.s32.totalorder %s431, 15
        %s435 = scalar_select %p434, %s431, 15
        %s436 = smul.addr %s435, 2
        %s437 = smul.addr %s433, 32
        %s438 = sadd.s32 %s436, %s437
        %s439 = smul.addr %s438, 8
        %s440 = scalar_lea.vmem %s1, %s439
        %s441 = sadd.s32 %s28, 1
        %s442 = smul.u32 %s441, 8
        %p443 = scmp.lt.s32.totalorder %s442, 15
        %s444 = scalar_select %p443, %s442, 15
      $region64: #{tpu_custom_call.1} parent=55 // pred_fallthru
        _
    $region56: #{tpu_custom_call.1} parent=5 // pred_fallthru
      _
    %p445 = scmp.le.s32.totalorder 1, %s20
    %p446 = scmp.lt.s32.totalorder %s20, 5
    %p447 = pnand %p445, %p446
    %p448 = pneg %p447
    // Predicated region
    $region65: #{tpu_custom_call.1} parent=5 // pred_check
      _
    $region66: #{tpu_custom_call.1} parent=5 // pred_check_branch
      %450 = sbr.rel (%p447) target = $region68
    $region67: #{tpu_custom_call.1} parent=5 // pred_region
      %s451 = ssub.s32 %s20, 1
      %s452 = smul.u32 8, %s30
      %p453 = scmp.lt.s32.totalorder %s29, 1
      %s454 = scalar_select %p453, %s29, 1
      %p455 = scmp.lt.s32.totalorder %s452, 15
      %s456 = scalar_select %p455, %s452, 15
      %s457 = smul.addr %s456, 2
      %s458 = smul.addr %s454, 32
      %s459 = sadd.s32 %s457, %s458
      %s460 = smul.addr %s459, 8
      %s461 = scalar_lea.vmem %s0, %s460
      %p462 = pneg %p60
      %p463 = pneg %p57
      %s464 = sadd.s32 %s30, 1
      %s465 = smul.u32 %s464, 8
      %p466 = scmp.lt.s32.totalorder %s465, 15
      %s467 = scalar_select %p466, %s465, 15
      %p468 = scmp.lt.s32.totalorder %s29, 1
      %s469 = scalar_select %p468, %s29, 1
      %p470 = scmp.lt.s32.totalorder %s467, 15
      %s471 = scalar_select %p470, %s467, 15
      %s472 = smul.addr %s471, 2
      %s473 = smul.addr %s469, 32
      %s474 = sadd.s32 %s472, %s473
      %s475 = smul.addr %s474, 8
      %s476 = scalar_lea.vmem %s1, %s475
      %p477 = pneg %p96
      %p478 = pneg %p93
      %p479 = pneg %p117
      %p480 = pneg %p114
      %p481 = pneg %p138
      %p482 = pneg %p135
      %p483 = pneg %p159
      %p484 = pneg %p156
      %p485 = pneg %p180
      %p486 = pneg %p177
      %p487 = pneg %p201
      %p488 = pneg %p198
      %p489 = pneg %p222
      %p490 = pneg %p219
      %p491 = pneg %p243
      %p492 = pneg %p240
      %p493 = pneg %p264
      %p494 = pneg %p261
      %p495 = pneg %p285
      %p496 = pneg %p282
      %p497 = pneg %p306
      %p498 = pneg %p303
      %p499 = pneg %p334
      %p500 = pneg %p331
      %s501 = smul.u32 8, %s30
      %p502 = scmp.lt.s32.totalorder %s29, 1
      %s503 = scalar_select %p502, %s29, 1
      %p504 = scmp.lt.s32.totalorder %s501, 15
      %s505 = scalar_select %p504, %s501, 15
      %s506 = smul.addr %s505, 2
      %s507 = smul.addr %s503, 32
      %s508 = sadd.s32 %s506, %s507
      %s509 = smul.addr %s508, 8
      %s510 = scalar_lea.vmem %s12, %s509
      %p511 = pneg %p362
      %p512 = pneg %p359
      %s513 = smul.u32 8, %s30
      %p514 = scmp.lt.s32.totalorder %s29, 1
      %s515 = scalar_select %p514, %s29, 1
      %p516 = scmp.lt.s32.totalorder %s513, 15
      %s517 = scalar_select %p516, %s513, 15
      %s518 = smul.addr %s517, 2
      %s519 = smul.addr %s515, 32
      %s520 = sadd.s32 %s518, %s519
      %s521 = smul.addr %s520, 8
      %s522 = scalar_lea.vmem %s13, %s521
      %s523 = smul.u32 8, %s30
      %p524 = scmp.lt.s32.totalorder %s29, 1
      %s525 = scalar_select %p524, %s29, 1
      %p526 = scmp.lt.s32.totalorder %s523, 15
      %s527 = scalar_select %p526, %s523, 15
      %s528 = smul.addr %s527, 2
      %s529 = smul.addr %s525, 32
      %s530 = sadd.s32 %s528, %s529
      %s531 = smul.addr %s530, 8
      %s532 = scalar_lea.vmem %s0, %s531
      %s533 = smul.u32 8, %s30
      %s534 = sadd.s32 %s30, 1
      %s535 = smul.u32 %s534, 8
      %p536 = scmp.lt.s32.totalorder %s535, 15
      %s537 = scalar_select %p536, %s535, 15
      %p538 = scmp.lt.s32.totalorder %s29, 1
      %s539 = scalar_select %p538, %s29, 1
      %p540 = scmp.lt.s32.totalorder %s537, 15
      %s541 = scalar_select %p540, %s537, 15
      %s542 = smul.addr %s541, 2
      %s543 = smul.addr %s539, 32
      %s544 = sadd.s32 %s542, %s543
      %s545 = smul.addr %s544, 8
      %s546 = scalar_lea.vmem %s1, %s545
      %s547 = sadd.s32 %s30, 1
      %s548 = smul.u32 %s547, 8
      %p549 = scmp.lt.s32.totalorder %s548, 15
      %s550 = scalar_select %p549, %s548, 15
      %s551 = smul.u32 8, %s30
      %p552 = scmp.lt.s32.totalorder %s29, 1
      %s553 = scalar_select %p552, %s29, 1
      %p554 = scmp.lt.s32.totalorder %s551, 15
      %s555 = scalar_select %p554, %s551, 15
      %s556 = smul.addr %s555, 2
      %s557 = smul.addr %s553, 32
      %s558 = sadd.s32 %s556, %s557
      %s559 = smul.addr %s558, 8
      %s560 = scalar_lea.vmem %s12, %s559
      %s561 = smul.u32 8, %s30
      %s562 = smul.u32 8, %s30
      %p563 = scmp.lt.s32.totalorder %s29, 1
      %s564 = scalar_select %p563, %s29, 1
      %p565 = scmp.lt.s32.totalorder %s562, 15
      %s566 = scalar_select %p565, %s562, 15
      %s567 = smul.addr %s566, 2
      %s568 = smul.addr %s564, 32
      %s569 = sadd.s32 %s567, %s568
      %s570 = smul.addr %s569, 8
      %s571 = scalar_lea.vmem %s13, %s570
      %s572 = smul.u32 8, %s30
      %p574 = scmp.eq.s32.totalorder %s30, 0
      // Predicated region
      $region69: #{tpu_custom_call.1} parent=67 // pred_check
        %p575 = pneg %p574
      $region70: #{tpu_custom_call.1} parent=67 // pred_check_branch
        %577 = sbr.rel (%p575) target = $region72
      $region71: #{tpu_custom_call.1} parent=67 // pred_region
        %vm578 = vcmask 8192
        %579 = vst.msk [vmem:[#allocation2 + $0x7] sm:$0x1] %vm578, 0.0
        %580 = vst.msk [vmem:[#allocation2 + $0x27] sm:$0x1] %vm578, 0.0
        %581 = vst.msk [vmem:[#allocation2 + $0x47] sm:$0x1] %vm578, 0.0
        %582 = vst.msk [vmem:[#allocation2 + $0x67] sm:$0x1] %vm578, 0.0
        %583 = vst.msk [vmem:[#allocation2 + $0x87] sm:$0x1] %vm578, 0.0
        %584 = vst.msk [vmem:[#allocation2 + $0xa7] sm:$0x1] %vm578, 0.0
        %585 = vst.msk [vmem:[#allocation2 + $0xc7] sm:$0x1] %vm578, 0.0
        %586 = vst.msk [vmem:[#allocation2 + $0xe7] sm:$0x1] %vm578, 0.0
        %587 = vst.msk [vmem:[#allocation2 + $0x107] sm:$0x1] %vm578, 0.0
        %588 = vst.msk [vmem:[#allocation2 + $0x127] sm:$0x1] %vm578, 0.0
        %589 = vst.msk [vmem:[#allocation2 + $0x18] sm:$0x1] %vm578, 0.0
        %590 = vst.msk [vmem:[#allocation2 + $0x38] sm:$0x1] %vm578, 0.0
        %591 = vst.msk [vmem:[#allocation2 + $0x58] sm:$0x1] %vm578, 0.0
        %592 = vst.msk [vmem:[#allocation2 + $0x78] sm:$0x1] %vm578, 0.0
        %593 = vst.msk [vmem:[#allocation2 + $0x98] sm:$0x1] %vm578, 0.0
        %594 = vst.msk [vmem:[#allocation2 + $0xb8] sm:$0x1] %vm578, 0.0
        %595 = vst.msk [vmem:[#allocation2 + $0xd8] sm:$0x1] %vm578, 0.0
        %596 = vst.msk [vmem:[#allocation2 + $0xf8] sm:$0x1] %vm578, 0.0
        %597 = vst.msk [vmem:[#allocation2 + $0x118] sm:$0x1] %vm578, 0.0
        %598 = vst.msk [vmem:[#allocation2 + $0x138] sm:$0x1] %vm578, 0.0
      $region72: #{tpu_custom_call.1} parent=67 // pred_fallthru
        _
      %v599 = vld [vmem:[%s2] sm:$0x1]
      %v600 = vld [vmem:[%s3] sm:$0x1]
      %v601 = vld [vmem:[%s532] sm:$0xff]
      %v602 = vld [vmem:[%s532 + $0x8] sm:$0xff]
      %v603 = vld [vmem:[%s532 + $0x10] sm:$0xff]
      %v604 = vld [vmem:[%s532 + $0x18] sm:$0xff]
      %v605 = vld [vmem:[%s532 + $0x20] sm:$0xff]
      %v606 = vld [vmem:[%s532 + $0x28] sm:$0xff]
      %v607 = vld [vmem:[%s532 + $0x30] sm:$0xff]
      %v608 = vld [vmem:[%s532 + $0x38] sm:$0xff]
      %v609 = vld [vmem:[%s532 + $0x40] sm:$0xff]
      %v610 = vld [vmem:[%s532 + $0x48] sm:$0xff]
      %v611 = vld [vmem:[%s532 + $0x50] sm:$0xff]
      %v612 = vld [vmem:[%s532 + $0x58] sm:$0xff]
      %v613 = vld [vmem:[%s532 + $0x60] sm:$0xff]
      %v614 = vld [vmem:[%s532 + $0x68] sm:$0xff]
      %v615 = vld [vmem:[%s532 + $0x70] sm:$0xff]
      %v616 = vld [vmem:[%s532 + $0x78] sm:$0xff]
      %v618 = vlaneseq
      %v619 = vshrl.u32 %v618, 7
      %v620 = vsub.s32 0, %v619
      %v621 = vrot.slane %v599, %v620
      %v623 = vmul.f32 %v601, %v621
      %v624 = vmul.f32 %v602, %v621
      %v625 = vmul.f32 %v603, %v621
      %v626 = vmul.f32 %v604, %v621
      %v627 = vmul.f32 %v605, %v621
      %v628 = vmul.f32 %v606, %v621
      %v629 = vmul.f32 %v607, %v621
      %v630 = vmul.f32 %v608, %v621
      %v631 = vmul.f32 %v609, %v621
      %v632 = vmul.f32 %v610, %v621
      %v633 = vmul.f32 %v611, %v621
      %v634 = vmul.f32 %v612, %v621
      %v635 = vmul.f32 %v613, %v621
      %v636 = vmul.f32 %v614, %v621
      %v637 = vmul.f32 %v615, %v621
      %v638 = vmul.f32 %v616, %v621
      %v640 = vlaneseq
      %v641 = vshrl.u32 %v640, 7
      %v642 = vsub.s32 0, %v641
      %v643 = vrot.slane %v600, %v642
      %v645 = vadd.f32 %v623, %v643
      %v646 = vadd.f32 %v624, %v643
      %v647 = vadd.f32 %v625, %v643
      %v648 = vadd.f32 %v626, %v643
      %v649 = vadd.f32 %v627, %v643
      %v650 = vadd.f32 %v628, %v643
      %v651 = vadd.f32 %v629, %v643
      %v652 = vadd.f32 %v630, %v643
      %v653 = vadd.f32 %v631, %v643
      %v654 = vadd.f32 %v632, %v643
      %v655 = vadd.f32 %v633, %v643
      %v656 = vadd.f32 %v634, %v643
      %v657 = vadd.f32 %v635, %v643
      %v658 = vadd.f32 %v636, %v643
      %v659 = vadd.f32 %v637, %v643
      %v660 = vadd.f32 %v638, %v643
      %v661 = vmax.f32 %v645, 0.0
      %v662 = vmax.f32 %v646, 0.0
      %v663 = vmax.f32 %v647, 0.0
      %v664 = vmax.f32 %v648, 0.0
      %v665 = vmax.f32 %v649, 0.0
      %v666 = vmax.f32 %v650, 0.0
      %v667 = vmax.f32 %v651, 0.0
      %v668 = vmax.f32 %v652, 0.0
      %v669 = vmax.f32 %v653, 0.0
      %v670 = vmax.f32 %v654, 0.0
      %v671 = vmax.f32 %v655, 0.0
      %v672 = vmax.f32 %v656, 0.0
      %v673 = vmax.f32 %v657, 0.0
      %v674 = vmax.f32 %v658, 0.0
      %v675 = vmax.f32 %v659, 0.0
      %v676 = vmax.f32 %v660, 0.0
      %vm677 = vcmask 31744
      %678 = vst.msk [vmem:[%s571] sm:$0xff] %vm677, %v661
      %679 = vst.msk [vmem:[%s571 + $0x8] sm:$0xff] %vm677, %v662
      %680 = vst.msk [vmem:[%s571 + $0x10] sm:$0xff] %vm677, %v663
      %681 = vst.msk [vmem:[%s571 + $0x18] sm:$0xff] %vm677, %v664
      %682 = vst.msk [vmem:[%s571 + $0x20] sm:$0xff] %vm677, %v665
      %683 = vst.msk [vmem:[%s571 + $0x28] sm:$0xff] %vm677, %v666
      %684 = vst.msk [vmem:[%s571 + $0x30] sm:$0xff] %vm677, %v667
      %685 = vst.msk [vmem:[%s571 + $0x38] sm:$0xff] %vm677, %v668
      %686 = vst.msk [vmem:[%s571 + $0x40] sm:$0xff] %vm677, %v669
      %687 = vst.msk [vmem:[%s571 + $0x48] sm:$0xff] %vm677, %v670
      %688 = vst.msk [vmem:[%s571 + $0x50] sm:$0xff] %vm677, %v671
      %689 = vst.msk [vmem:[%s571 + $0x58] sm:$0xff] %vm677, %v672
      %690 = vst.msk [vmem:[%s571 + $0x60] sm:$0xff] %vm677, %v673
      %691 = vst.msk [vmem:[%s571 + $0x68] sm:$0xff] %vm677, %v674
      %692 = vst.msk [vmem:[%s571 + $0x70] sm:$0xff] %vm677, %v675
      %693 = vst.msk [vmem:[%s571 + $0x78] sm:$0xff] %vm677, %v676
      %v694 = vld [vmem:[%s546] sm:$0xff]
      %v695 = vld [vmem:[%s546 + $0x8] sm:$0xff]
      %v696 = vmul.f32 %v694, %v621
      %v697 = vmul.f32 %v695, %v621
      %v698 = vadd.f32 %v696, %v643
      %v699 = vadd.f32 %v697, %v643
      %v700 = vmax.f32 %v698, 0.0
      %v701 = vmax.f32 %v699, 0.0
      %v702 = vpack.c.bf16 %v662, %v661
      %v703 = vpack.c.bf16 %v664, %v663
      %v704 = vpack.c.bf16 %v666, %v665
      %v705 = vpack.c.bf16 %v668, %v667
      %v706 = vpack.c.bf16 %v670, %v669
      %v707 = vpack.c.bf16 %v672, %v671
      %v708 = vpack.c.bf16 %v674, %v673
      %v709 = vpack.c.bf16 %v676, %v675
      %v710 = vpack.c.bf16 %v701, %v700
      %v711 = vld [vmem:[%s5] sm:$0x3]
      %v713 = vsel %vm677, %v702, 0
      %v716 = vsel %vm677, %v703, 0
      %v719 = vsel %vm677, %v704, 0
      %v722 = vsel %vm677, %v705, 0
      %v725 = vsel %vm677, %v706, 0
      %v728 = vsel %vm677, %v707, 0
      %v731 = vsel %vm677, %v708, 0
      %v734 = vsel %vm677, %v709, 0
      %v737 = vsel %vm677, %v710, 0
      %vm739 = vcmask 1041408
      %v741 = vsel %vm739, %v711, 0
      %743 = vmatprep.subr.bf16.mxu0 0
      %744 = vmatpush1.bf16.msra.mxu0 %v741
      %745 = vmatprep.subr.bf16.mxu0 0
      %746 = vmatpush1.bf16.msra.mxu0 0
      %747 = vmatprep.subr.bf16.mxu0 0
      %748 = vmatpush1.bf16.msra.mxu0 0
      %749 = vmatprep.subr.bf16.mxu0 0
      %750 = vmatpush1.bf16.msra.mxu0 0
      %751 = vmatprep.subr.bf16.mxu0 0
      %752 = vmatpush1.bf16.msra.mxu0 0
      %753 = vmatprep.subr.bf16.mxu0 0
      %754 = vmatpush1.bf16.msra.mxu0 0
      %755 = vmatprep.subr.bf16.mxu0 0
      %756 = vmatpush1.bf16.msra.mxu0 0
      %757 = vmatprep.subr.bf16.mxu0 0
      %758 = vmatpush1.bf16.msra.mxu0 0
      %759 = vmatprep.subr.bf16.mxu0 0
      %760 = vmatpush1.bf16.msra.mxu0 0
      %761 = vmatprep.subr.bf16.mxu0 0
      %762 = vmatpush1.bf16.msra.mxu0 0
      %763 = vmatprep.subr.bf16.mxu0 0
      %764 = vmatpush1.bf16.msra.mxu0 0
      %765 = vmatprep.subr.bf16.mxu0 0
      %766 = vmatpush1.bf16.msra.mxu0 0
      %767 = vmatprep.subr.bf16.mxu0 0
      %768 = vmatpush1.bf16.msra.mxu0 0
      %769 = vmatprep.subr.bf16.mxu0 0
      %770 = vmatpush1.bf16.msra.mxu0 0
      %771 = vmatprep.subr.bf16.mxu0 0
      %772 = vmatpush1.bf16.msra.mxu0 0
      %773 = vmatprep.subr.bf16.mxu0 0
      %774 = vmatpush1.bf16.msra.mxu0 0
      %775 = vmatprep.mubr.bf16.mxu0 0
      %776 = vmatmul.mubr.bf16.gmra.mrb[0].mxu0 %v713
      %v777 = vpop.f32.mrb[0].mxu0
      %v778 = vadd.f32 0.0, %v777
      %v779 = vpop.f32.mrb[0].mxu0
      %v780 = vpop.f32.mrb[0].mxu0
      %v781 = vadd.f32 0.0, %v780
      %v782 = vpop.f32.mrb[0].mxu0
      %783 = vmatprep.mubr.bf16.mxu0 0
      %784 = vmatmul.mubr.bf16.gmra.mrb[0].mxu0 %v716
      %v785 = vpop.f32.mrb[0].mxu0
      %v786 = vadd.f32 0.0, %v785
      %v787 = vpop.f32.mrb[0].mxu0
      %v788 = vpop.f32.mrb[0].mxu0
      %v789 = vadd.f32 0.0, %v788
      %v790 = vpop.f32.mrb[0].mxu0
      %791 = vmatprep.mubr.bf16.mxu0 0
      %792 = vmatmul.mubr.bf16.gmra.mrb[0].mxu0 %v719
      %v793 = vpop.f32.mrb[0].mxu0
      %v794 = vadd.f32 0.0, %v793
      %v795 = vpop.f32.mrb[0].mxu0
      %v796 = vpop.f32.mrb[0].mxu0
      %v797 = vadd.f32 0.0, %v796
      %v798 = vpop.f32.mrb[0].mxu0
      %799 = vmatprep.mubr.bf16.mxu0 0
      %800 = vmatmul.mubr.bf16.gmra.mrb[0].mxu0 %v722
      %v801 = vpop.f32.mrb[0].mxu0
      %v802 = vadd.f32 0.0, %v801
      %v803 = vpop.f32.mrb[0].mxu0
      %v804 = vpop.f32.mrb[0].mxu0
      %v805 = vadd.f32 0.0, %v804
      %v806 = vpop.f32.mrb[0].mxu0
      %807 = vmatprep.mubr.bf16.mxu0 0
      %808 = vmatmul.mubr.bf16.gmra.mrb[0].mxu0 %v725
      %v809 = vpop.f32.mrb[0].mxu0
      %v810 = vadd.f32 0.0, %v809
      %v811 = vpop.f32.mrb[0].mxu0
      %v812 = vpop.f32.mrb[0].mxu0
      %v813 = vadd.f32 0.0, %v812
      %v814 = vpop.f32.mrb[0].mxu0
      %815 = vmatprep.mubr.bf16.mxu0 0
      %816 = vmatmul.mubr.bf16.gmra.mrb[0].mxu0 %v728
      %v817 = vpop.f32.mrb[0].mxu0
      %v818 = vadd.f32 0.0, %v817
      %v819 = vpop.f32.mrb[0].mxu0
      %v820 = vpop.f32.mrb[0].mxu0
      %v821 = vadd.f32 0.0, %v820
      %v822 = vpop.f32.mrb[0].mxu0
      %823 = vmatprep.mubr.bf16.mxu0 0
      %824 = vmatmul.mubr.bf16.gmra.mrb[0].mxu0 %v731
      %v825 = vpop.f32.mrb[0].mxu0
      %v826 = vadd.f32 0.0, %v825
      %v827 = vpop.f32.mrb[0].mxu0
      %v828 = vpop.f32.mrb[0].mxu0
      %v829 = vadd.f32 0.0, %v828
      %v830 = vpop.f32.mrb[0].mxu0
      %831 = vmatprep.mubr.bf16.mxu0 0
      %832 = vmatmul.mubr.bf16.gmra.mrb[0].mxu0 %v734
      %v833 = vpop.f32.mrb[0].mxu0
      %v834 = vadd.f32 0.0, %v833
      %v835 = vpop.f32.mrb[0].mxu0
      %v836 = vpop.f32.mrb[0].mxu0
      %v837 = vadd.f32 0.0, %v836
      %v838 = vpop.f32.mrb[0].mxu0
      %839 = vmatprep.mubr.bf16.mxu0 0
      %840 = vmatmul.mubr.bf16.gmra.mrb[0].mxu0 %v737
      %v841 = vpop.f32.mrb[0].mxu0
      %v842 = vadd.f32 0.0, %v841
      %v843 = vpop.f32.mrb[0].mxu0
      %v844 = vpop.f32.mrb[0].mxu0
      %v845 = vadd.f32 0.0, %v844
      %v846 = vpop.f32.mrb[0].mxu0
      %847 = vdwg.mxu0
      %v848 = vld [vmem:[%s6] sm:$0x1]
      %v850 = vlaneseq
      %v851 = vshrl.u32 %v850, 7
      %v852 = vsub.s32 0, %v851
      %v853 = vrot.slane %v848, %v852
      %v855 = vmul.f32 %v778, %v853
      %v856 = vmul.f32 %v781, %v853
      %v857 = vmul.f32 %v786, %v853
      %v858 = vmul.f32 %v789, %v853
      %v859 = vmul.f32 %v794, %v853
      %v860 = vmul.f32 %v797, %v853
      %v861 = vmul.f32 %v802, %v853
      %v862 = vmul.f32 %v805, %v853
      %v863 = vmul.f32 %v810, %v853
      %v864 = vmul.f32 %v813, %v853
      %v865 = vmul.f32 %v818, %v853
      %v866 = vmul.f32 %v821, %v853
      %v867 = vmul.f32 %v826, %v853
      %v868 = vmul.f32 %v829, %v853
      %v869 = vmul.f32 %v834, %v853
      %v870 = vmul.f32 %v837, %v853
      %v871 = vmul.f32 %v842, %v853
      %v872 = vmul.f32 %v845, %v853
      %v873 = vld [vmem:[%s7] sm:$0x1]
      %v875 = vlaneseq
      %v876 = vshrl.u32 %v875, 7
      %v877 = vsub.s32 0, %v876
      %v878 = vrot.slane %v873, %v877
      %v880 = vadd.f32 %v855, %v878
      %v881 = vadd.f32 %v856, %v878
      %v882 = vadd.f32 %v857, %v878
      %v883 = vadd.f32 %v858, %v878
      %v884 = vadd.f32 %v859, %v878
      %v885 = vadd.f32 %v860, %v878
      %v886 = vadd.f32 %v861, %v878
      %v887 = vadd.f32 %v862, %v878
      %v888 = vadd.f32 %v863, %v878
      %v889 = vadd.f32 %v864, %v878
      %v890 = vadd.f32 %v865, %v878
      %v891 = vadd.f32 %v866, %v878
      %v892 = vadd.f32 %v867, %v878
      %v893 = vadd.f32 %v868, %v878
      %v894 = vadd.f32 %v869, %v878
      %v895 = vadd.f32 %v870, %v878
      %v896 = vadd.f32 %v871, %v878
      %v897 = vadd.f32 %v872, %v878
      %v898 = vmax.f32 %v880, 0.0
      %v899 = vmax.f32 %v881, 0.0
      %v900 = vmax.f32 %v882, 0.0
      %v901 = vmax.f32 %v883, 0.0
      %v902 = vmax.f32 %v884, 0.0
      %v903 = vmax.f32 %v885, 0.0
      %v904 = vmax.f32 %v886, 0.0
      %v905 = vmax.f32 %v887, 0.0
      %v906 = vmax.f32 %v888, 0.0
      %v907 = vmax.f32 %v889, 0.0
      %v908 = vmax.f32 %v890, 0.0
      %v909 = vmax.f32 %v891, 0.0
      %v910 = vmax.f32 %v892, 0.0
      %v911 = vmax.f32 %v893, 0.0
      %v912 = vmax.f32 %v894, 0.0
      %v913 = vmax.f32 %v895, 0.0
      %v914 = vmax.f32 %v896, 0.0
      %v915 = vmax.f32 %v897, 0.0
      %v916 = vpack.c.bf16 %v899, %v898
      %v917 = vpack.c.bf16 %v901, %v900
      %v918 = vpack.c.bf16 %v903, %v902
      %v919 = vpack.c.bf16 %v905, %v904
      %v920 = vpack.c.bf16 %v907, %v906
      %v921 = vpack.c.bf16 %v909, %v908
      %v922 = vpack.c.bf16 %v911, %v910
      %v923 = vpack.c.bf16 %v913, %v912
      %v924 = vpack.c.bf16 %v915, %v914
      // Predicated region
      $region73: #{tpu_custom_call.1} parent=67 // pred_check
        %p925 = pneg %p574
      $region74: #{tpu_custom_call.1} parent=67 // pred_check_branch
        %927 = sbr.rel (%p925) target = $region76
      $region75: #{tpu_custom_call.1} parent=67 // pred_region
        %vm928 = vcmask 15360
        %929 = vst.msk [vmem:[#allocation2 + $0x8] sm:$0xff] %vm928, 0.0
        %930 = vst.msk [vmem:[#allocation2 + $0x10] sm:$0xff] %vm928, 0.0
      $region76: #{tpu_custom_call.1} parent=67 // pred_fallthru
        _
      %p931 = scmp.gt.s32.totalorder %s30, 0
      // Predicated region
      $region77: #{tpu_custom_call.1} parent=67 // pred_check
        %p932 = pneg %p931
      $region78: #{tpu_custom_call.1} parent=67 // pred_check_branch
        %934 = sbr.rel (%p932) target = $region80
      $region79: #{tpu_custom_call.1} parent=67 // pred_region
        %v935 = vld [vmem:[#allocation3] sm:$0xff]
        %v936 = vld [vmem:[#allocation3 + $0x8] sm:$0xff]
        %vm937 = vcmask 15360
        %938 = vst.msk [vmem:[#allocation2 + $0x8] sm:$0xff] %vm937, %v935
        %939 = vst.msk [vmem:[#allocation2 + $0x10] sm:$0xff] %vm937, %v936
      $region80: #{tpu_custom_call.1} parent=67 // pred_fallthru
        _
      %v940 = vunpack.c.l.bf16 %v916
      %v941 = vunpack.c.h.bf16 %v916
      %v942 = vunpack.c.l.bf16 %v917
      %v943 = vunpack.c.h.bf16 %v917
      %v944 = vunpack.c.l.bf16 %v918
      %v945 = vunpack.c.h.bf16 %v918
      %v946 = vunpack.c.l.bf16 %v919
      %v947 = vunpack.c.h.bf16 %v919
      %v948 = vunpack.c.l.bf16 %v920
      %v949 = vunpack.c.h.bf16 %v920
      %v950 = vunpack.c.l.bf16 %v921
      %v951 = vunpack.c.h.bf16 %v921
      %v952 = vunpack.c.l.bf16 %v922
      %v953 = vunpack.c.h.bf16 %v922
      %v954 = vunpack.c.l.bf16 %v923
      %v955 = vunpack.c.h.bf16 %v923
      %s956 = scalar_lea.vmem [#allocation2], 32
      %vm957 = vcmask 15360
      %958 = vst.msk [vmem:[%s956 + $0x8] sm:$0xff] %vm957, %v940
      %959 = vst.msk [vmem:[%s956 + $0x10] sm:$0xff] %vm957, %v941
      %960 = vst.msk [vmem:[%s956 + $0x28] sm:$0xff] %vm957, %v942
      %961 = vst.msk [vmem:[%s956 + $0x30] sm:$0xff] %vm957, %v943
      %962 = vst.msk [vmem:[%s956 + $0x48] sm:$0xff] %vm957, %v944
      %963 = vst.msk [vmem:[%s956 + $0x50] sm:$0xff] %vm957, %v945
      %964 = vst.msk [vmem:[%s956 + $0x68] sm:$0xff] %vm957, %v946
      %965 = vst.msk [vmem:[%s956 + $0x70] sm:$0xff] %vm957, %v947
      %966 = vst.msk [vmem:[%s956 + $0x88] sm:$0xff] %vm957, %v948
      %967 = vst.msk [vmem:[%s956 + $0x90] sm:$0xff] %vm957, %v949
      %968 = vst.msk [vmem:[%s956 + $0xa8] sm:$0xff] %vm957, %v950
      %969 = vst.msk [vmem:[%s956 + $0xb0] sm:$0xff] %vm957, %v951
      %970 = vst.msk [vmem:[%s956 + $0xc8] sm:$0xff] %vm957, %v952
      %971 = vst.msk [vmem:[%s956 + $0xd0] sm:$0xff] %vm957, %v953
      %972 = vst.msk [vmem:[%s956 + $0xe8] sm:$0xff] %vm957, %v954
      %973 = vst.msk [vmem:[%s956 + $0xf0] sm:$0xff] %vm957, %v955
      %p974 = scmp.eq.s32.totalorder %s30, 1
      // Predicated region
      $region81: #{tpu_custom_call.1} parent=67 // pred_check
        %p975 = pneg %p974
      $region82: #{tpu_custom_call.1} parent=67 // pred_check_branch
        %977 = sbr.rel (%p975) target = $region84
      $region83: #{tpu_custom_call.1} parent=67 // pred_region
        %s978 = scalar_lea.vmem [#allocation2], 288
        %979 = vst.msk [vmem:[%s978 + $0x8] sm:$0xff] %vm957, 0.0
        %980 = vst.msk [vmem:[%s978 + $0x10] sm:$0xff] %vm957, 0.0
      $region84: #{tpu_custom_call.1} parent=67 // pred_fallthru
        _
      %p981 = scmp.lt.s32.totalorder %s30, 1
      // Predicated region
      $region85: #{tpu_custom_call.1} parent=67 // pred_check
        %p982 = pneg %p981
      $region86: #{tpu_custom_call.1} parent=67 // pred_check_branch
        %984 = sbr.rel (%p982) target = $region88
      $region87: #{tpu_custom_call.1} parent=67 // pred_region
        %v985 = vunpack.c.l.bf16 %v924
        %v986 = vunpack.c.h.bf16 %v924
        %s987 = scalar_lea.vmem [#allocation2], 288
        %988 = vst.msk [vmem:[%s987 + $0x8] sm:$0xff] %vm957, %v985
        %989 = vst.msk [vmem:[%s987 + $0x10] sm:$0xff] %vm957, %v986
      $region88: #{tpu_custom_call.1} parent=67 // pred_fallthru
        _
      %990 = vst.msk [vmem:[#allocation3] sm:$0xff] %vm957, %v954
      %991 = vst.msk [vmem:[#allocation3 + $0x8] sm:$0xff] %vm957, %v955
      %v992 = vld [vmem:[#allocation2 + $0x7] sm:$0xff]
      %v993 = vld [vmem:[#allocation2 + $0xf] sm:$0xff]
      %v994 = vld [vmem:[#allocation2 + $0x27] sm:$0xff]
      %v995 = vld [vmem:[#allocation2 + $0x2f] sm:$0xff]
      %v996 = vld [vmem:[#allocation2 + $0x47] sm:$0xff]
      %v997 = vld [vmem:[#allocation2 + $0x4f] sm:$0xff]
      %v998 = vld [vmem:[#allocation2 + $0x67] sm:$0xff]
      %v999 = vld [vmem:[#allocation2 + $0x6f] sm:$0xff]
      %v1000 = vld [vmem:[#allocation2 + $0x87] sm:$0xff]
      %v1001 = vld [vmem:[#allocation2 + $0x8f] sm:$0xff]
      %v1002 = vld [vmem:[#allocation2 + $0xa7] sm:$0xff]
      %v1003 = vld [vmem:[#allocation2 + $0xaf] sm:$0xff]
      %v1004 = vld [vmem:[#allocation2 + $0xc7] sm:$0xff]
      %v1005 = vld [vmem:[#allocation2 + $0xcf] sm:$0xff]
      %v1006 = vld [vmem:[#allocation2 + $0xe7] sm:$0xff]
      %v1007 = vld [vmem:[#allocation2 + $0xef] sm:$0xff]
      %v1008 = vpack.c.bf16 %v993, %v992
      %v1009 = vpack.c.bf16 %v995, %v994
      %v1010 = vpack.c.bf16 %v997, %v996
      %v1011 = vpack.c.bf16 %v999, %v998
      %v1012 = vpack.c.bf16 %v1001, %v1000
      %v1013 = vpack.c.bf16 %v1003, %v1002
      %v1014 = vpack.c.bf16 %v1005, %v1004
      %v1015 = vpack.c.bf16 %v1007, %v1006
      %v1016 = vld [vmem:[#allocation2 + $0x8] sm:$0xff]
      %v1017 = vld [vmem:[#allocation2 + $0x10] sm:$0xff]
      %v1018 = vld [vmem:[#allocation2 + $0x28] sm:$0xff]
      %v1019 = vld [vmem:[#allocation2 + $0x30] sm:$0xff]
      %v1020 = vld [vmem:[#allocation2 + $0x48] sm:$0xff]
      %v1021 = vld [vmem:[#allocation2 + $0x50] sm:$0xff]
      %v1022 = vld [vmem:[#allocation2 + $0x68] sm:$0xff]
      %v1023 = vld [vmem:[#allocation2 + $0x70] sm:$0xff]
      %v1024 = vld [vmem:[#allocation2 + $0x88] sm:$0xff]
      %v1025 = vld [vmem:[#allocation2 + $0x90] sm:$0xff]
      %v1026 = vld [vmem:[#allocation2 + $0xa8] sm:$0xff]
      %v1027 = vld [vmem:[#allocation2 + $0xb0] sm:$0xff]
      %v1028 = vld [vmem:[#allocation2 + $0xc8] sm:$0xff]
      %v1029 = vld [vmem:[#allocation2 + $0xd0] sm:$0xff]
      %v1030 = vld [vmem:[#allocation2 + $0xe8] sm:$0xff]
      %v1031 = vld [vmem:[#allocation2 + $0xf0] sm:$0xff]
      %v1032 = vpack.c.bf16 %v1017, %v1016
      %v1033 = vpack.c.bf16 %v1019, %v1018
      %v1034 = vpack.c.bf16 %v1021, %v1020
      %v1035 = vpack.c.bf16 %v1023, %v1022
      %v1036 = vpack.c.bf16 %v1025, %v1024
      %v1037 = vpack.c.bf16 %v1027, %v1026
      %v1038 = vpack.c.bf16 %v1029, %v1028
      %v1039 = vpack.c.bf16 %v1031, %v1030
      %v1040 = vld [vmem:[#allocation2 + $0x9] sm:$0xff]
      %v1041 = vld [vmem:[#allocation2 + $0x11] sm:$0xff]
      %v1042 = vld [vmem:[#allocation2 + $0x29] sm:$0xff]
      %v1043 = vld [vmem:[#allocation2 + $0x31] sm:$0xff]
      %v1044 = vld [vmem:[#allocation2 + $0x49] sm:$0xff]
      %v1045 = vld [vmem:[#allocation2 + $0x51] sm:$0xff]
      %v1046 = vld [vmem:[#allocation2 + $0x69] sm:$0xff]
      %v1047 = vld [vmem:[#allocation2 + $0x71] sm:$0xff]
      %v1048 = vld [vmem:[#allocation2 + $0x89] sm:$0xff]
      %v1049 = vld [vmem:[#allocation2 + $0x91] sm:$0xff]
      %v1050 = vld [vmem:[#allocation2 + $0xa9] sm:$0xff]
      %v1051 = vld [vmem:[#allocation2 + $0xb1] sm:$0xff]
      %v1052 = vld [vmem:[#allocation2 + $0xc9] sm:$0xff]
      %v1053 = vld [vmem:[#allocation2 + $0xd1] sm:$0xff]
      %v1054 = vld [vmem:[#allocation2 + $0xe9] sm:$0xff]
      %v1055 = vld [vmem:[#allocation2 + $0xf1] sm:$0xff]
      %v1056 = vpack.c.bf16 %v1041, %v1040
      %v1057 = vpack.c.bf16 %v1043, %v1042
      %v1058 = vpack.c.bf16 %v1045, %v1044
      %v1059 = vpack.c.bf16 %v1047, %v1046
      %v1060 = vpack.c.bf16 %v1049, %v1048
      %v1061 = vpack.c.bf16 %v1051, %v1050
      %v1062 = vpack.c.bf16 %v1053, %v1052
      %v1063 = vpack.c.bf16 %v1055, %v1054
      %v1064 = vld [vmem:[%s956 + $0x7] sm:$0xff]
      %v1065 = vld [vmem:[%s956 + $0xf] sm:$0xff]
      %v1066 = vld [vmem:[%s956 + $0x27] sm:$0xff]
      %v1067 = vld [vmem:[%s956 + $0x2f] sm:$0xff]
      %v1068 = vld [vmem:[%s956 + $0x47] sm:$0xff]
      %v1069 = vld [vmem:[%s956 + $0x4f] sm:$0xff]
      %v1070 = vld [vmem:[%s956 + $0x67] sm:$0xff]
      %v1071 = vld [vmem:[%s956 + $0x6f] sm:$0xff]
      %v1072 = vld [vmem:[%s956 + $0x87] sm:$0xff]
      %v1073 = vld [vmem:[%s956 + $0x8f] sm:$0xff]
      %v1074 = vld [vmem:[%s956 + $0xa7] sm:$0xff]
      %v1075 = vld [vmem:[%s956 + $0xaf] sm:$0xff]
      %v1076 = vld [vmem:[%s956 + $0xc7] sm:$0xff]
      %v1077 = vld [vmem:[%s956 + $0xcf] sm:$0xff]
      %v1078 = vld [vmem:[%s956 + $0xe7] sm:$0xff]
      %v1079 = vld [vmem:[%s956 + $0xef] sm:$0xff]
      %v1080 = vpack.c.bf16 %v1065, %v1064
      %v1081 = vpack.c.bf16 %v1067, %v1066
      %v1082 = vpack.c.bf16 %v1069, %v1068
      %v1083 = vpack.c.bf16 %v1071, %v1070
      %v1084 = vpack.c.bf16 %v1073, %v1072
      %v1085 = vpack.c.bf16 %v1075, %v1074
      %v1086 = vpack.c.bf16 %v1077, %v1076
      %v1087 = vpack.c.bf16 %v1079, %v1078
      %v1088 = vld [vmem:[%s956 + $0x8] sm:$0xff]
      %v1089 = vld [vmem:[%s956 + $0x10] sm:$0xff]
      %v1090 = vld [vmem:[%s956 + $0x28] sm:$0xff]
      %v1091 = vld [vmem:[%s956 + $0x30] sm:$0xff]
      %v1092 = vld [vmem:[%s956 + $0x48] sm:$0xff]
      %v1093 = vld [vmem:[%s956 + $0x50] sm:$0xff]
      %v1094 = vld [vmem:[%s956 + $0x68] sm:$0xff]
      %v1095 = vld [vmem:[%s956 + $0x70] sm:$0xff]
      %v1096 = vld [vmem:[%s956 + $0x88] sm:$0xff]
      %v1097 = vld [vmem:[%s956 + $0x90] sm:$0xff]
      %v1098 = vld [vmem:[%s956 + $0xa8] sm:$0xff]
      %v1099 = vld [vmem:[%s956 + $0xb0] sm:$0xff]
      %v1100 = vld [vmem:[%s956 + $0xc8] sm:$0xff]
      %v1101 = vld [vmem:[%s956 + $0xd0] sm:$0xff]
      %v1102 = vld [vmem:[%s956 + $0xe8] sm:$0xff]
      %v1103 = vld [vmem:[%s956 + $0xf0] sm:$0xff]
      %v1104 = vpack.c.bf16 %v1089, %v1088
      %v1105 = vpack.c.bf16 %v1091, %v1090
      %v1106 = vpack.c.bf16 %v1093, %v1092
      %v1107 = vpack.c.bf16 %v1095, %v1094
      %v1108 = vpack.c.bf16 %v1097, %v1096
      %v1109 = vpack.c.bf16 %v1099, %v1098
      %v1110 = vpack.c.bf16 %v1101, %v1100
      %v1111 = vpack.c.bf16 %v1103, %v1102
      %v1112 = vld [vmem:[%s956 + $0x9] sm:$0xff]
      %v1113 = vld [vmem:[%s956 + $0x11] sm:$0xff]
      %v1114 = vld [vmem:[%s956 + $0x29] sm:$0xff]
      %v1115 = vld [vmem:[%s956 + $0x31] sm:$0xff]
      %v1116 = vld [vmem:[%s956 + $0x49] sm:$0xff]
      %v1117 = vld [vmem:[%s956 + $0x51] sm:$0xff]
      %v1118 = vld [vmem:[%s956 + $0x69] sm:$0xff]
      %v1119 = vld [vmem:[%s956 + $0x71] sm:$0xff]
      %v1120 = vld [vmem:[%s956 + $0x89] sm:$0xff]
      %v1121 = vld [vmem:[%s956 + $0x91] sm:$0xff]
      %v1122 = vld [vmem:[%s956 + $0xa9] sm:$0xff]
      %v1123 = vld [vmem:[%s956 + $0xb1] sm:$0xff]
      %v1124 = vld [vmem:[%s956 + $0xc9] sm:$0xff]
      %v1125 = vld [vmem:[%s956 + $0xd1] sm:$0xff]
      %v1126 = vld [vmem:[%s956 + $0xe9] sm:$0xff]
      %v1127 = vld [vmem:[%s956 + $0xf1] sm:$0xff]
      %v1128 = vpack.c.bf16 %v1113, %v1112
      %v1129 = vpack.c.bf16 %v1115, %v1114
      %v1130 = vpack.c.bf16 %v1117, %v1116
      %v1131 = vpack.c.bf16 %v1119, %v1118
      %v1132 = vpack.c.bf16 %v1121, %v1120
      %v1133 = vpack.c.bf16 %v1123, %v1122
      %v1134 = vpack.c.bf16 %v1125, %v1124
      %v1135 = vpack.c.bf16 %v1127, %v1126
      %s1136 = scalar_lea.vmem [#allocation2], 64
      %v1137 = vld [vmem:[%s1136 + $0x7] sm:$0xff]
      %v1138 = vld [vmem:[%s1136 + $0xf] sm:$0xff]
      %v1139 = vld [vmem:[%s1136 + $0x27] sm:$0xff]
      %v1140 = vld [vmem:[%s1136 + $0x2f] sm:$0xff]
      %v1141 = vld [vmem:[%s1136 + $0x47] sm:$0xff]
      %v1142 = vld [vmem:[%s1136 + $0x4f] sm:$0xff]
      %v1143 = vld [vmem:[%s1136 + $0x67] sm:$0xff]
      %v1144 = vld [vmem:[%s1136 + $0x6f] sm:$0xff]
      %v1145 = vld [vmem:[%s1136 + $0x87] sm:$0xff]
      %v1146 = vld [vmem:[%s1136 + $0x8f] sm:$0xff]
      %v1147 = vld [vmem:[%s1136 + $0xa7] sm:$0xff]
      %v1148 = vld [vmem:[%s1136 + $0xaf] sm:$0xff]
      %v1149 = vld [vmem:[%s1136 + $0xc7] sm:$0xff]
      %v1150 = vld [vmem:[%s1136 + $0xcf] sm:$0xff]
      %v1151 = vld [vmem:[%s1136 + $0xe7] sm:$0xff]
      %v1152 = vld [vmem:[%s1136 + $0xef] sm:$0xff]
      %v1153 = vpack.c.bf16 %v1138, %v1137
      %v1154 = vpack.c.bf16 %v1140, %v1139
      %v1155 = vpack.c.bf16 %v1142, %v1141
      %v1156 = vpack.c.bf16 %v1144, %v1143
      %v1157 = vpack.c.bf16 %v1146, %v1145
      %v1158 = vpack.c.bf16 %v1148, %v1147
      %v1159 = vpack.c.bf16 %v1150, %v1149
      %v1160 = vpack.c.bf16 %v1152, %v1151
      %v1161 = vld [vmem:[%s1136 + $0x8] sm:$0xff]
      %v1162 = vld [vmem:[%s1136 + $0x10] sm:$0xff]
      %v1163 = vld [vmem:[%s1136 + $0x28] sm:$0xff]
      %v1164 = vld [vmem:[%s1136 + $0x30] sm:$0xff]
      %v1165 = vld [vmem:[%s1136 + $0x48] sm:$0xff]
      %v1166 = vld [vmem:[%s1136 + $0x50] sm:$0xff]
      %v1167 = vld [vmem:[%s1136 + $0x68] sm:$0xff]
      %v1168 = vld [vmem:[%s1136 + $0x70] sm:$0xff]
      %v1169 = vld [vmem:[%s1136 + $0x88] sm:$0xff]
      %v1170 = vld [vmem:[%s1136 + $0x90] sm:$0xff]
      %v1171 = vld [vmem:[%s1136 + $0xa8] sm:$0xff]
      %v1172 = vld [vmem:[%s1136 + $0xb0] sm:$0xff]
      %v1173 = vld [vmem:[%s1136 + $0xc8] sm:$0xff]
      %v1174 = vld [vmem:[%s1136 + $0xd0] sm:$0xff]
      %v1175 = vld [vmem:[%s1136 + $0xe8] sm:$0xff]
      %v1176 = vld [vmem:[%s1136 + $0xf0] sm:$0xff]
      %v1177 = vpack.c.bf16 %v1162, %v1161
      %v1178 = vpack.c.bf16 %v1164, %v1163
      %v1179 = vpack.c.bf16 %v1166, %v1165
      %v1180 = vpack.c.bf16 %v1168, %v1167
      %v1181 = vpack.c.bf16 %v1170, %v1169
      %v1182 = vpack.c.bf16 %v1172, %v1171
      %v1183 = vpack.c.bf16 %v1174, %v1173
      %v1184 = vpack.c.bf16 %v1176, %v1175
      %v1185 = vld [vmem:[%s1136 + $0x9] sm:$0xff]
      %v1186 = vld [vmem:[%s1136 + $0x11] sm:$0xff]
      %v1187 = vld [vmem:[%s1136 + $0x29] sm:$0xff]
      %v1188 = vld [vmem:[%s1136 + $0x31] sm:$0xff]
      %v1189 = vld [vmem:[%s1136 + $0x49] sm:$0xff]
      %v1190 = vld [vmem:[%s1136 + $0x51] sm:$0xff]
      %v1191 = vld [vmem:[%s1136 + $0x69] sm:$0xff]
      %v1192 = vld [vmem:[%s1136 + $0x71] sm:$0xff]
      %v1193 = vld [vmem:[%s1136 + $0x89] sm:$0xff]
      %v1194 = vld [vmem:[%s1136 + $0x91] sm:$0xff]
      %v1195 = vld [vmem:[%s1136 + $0xa9] sm:$0xff]
      %v1196 = vld [vmem:[%s1136 + $0xb1] sm:$0xff]
      %v1197 = vld [vmem:[%s1136 + $0xc9] sm:$0xff]
      %v1198 = vld [vmem:[%s1136 + $0xd1] sm:$0xff]
      %v1199 = vld [vmem:[%s1136 + $0xe9] sm:$0xff]
      %v1200 = vld [vmem:[%s1136 + $0xf1] sm:$0xff]
      %v1201 = vpack.c.bf16 %v1186, %v1185
      %v1202 = vpack.c.bf16 %v1188, %v1187
      %v1203 = vpack.c.bf16 %v1190, %v1189
      %v1204 = vpack.c.bf16 %v1192, %v1191
      %v1205 = vpack.c.bf16 %v1194, %v1193
      %v1206 = vpack.c.bf16 %v1196, %v1195
      %v1207 = vpack.c.bf16 %v1198, %v1197
      %v1208 = vpack.c.bf16 %v1200, %v1199
      %1217 = vrot.lane.b32.xlu0 %v1032, 2
      %v1218 = vpop.permute.xlu0 %1217
      %1219 = vrot.lane.b32.xlu0 %v1033, 2
      %v1220 = vpop.permute.xlu0 %1219
      %1221 = vrot.lane.b32.xlu0 %v1034, 2
      %v1222 = vpop.permute.xlu0 %1221
      %1223 = vrot.lane.b32.xlu0 %v1035, 2
      %v1224 = vpop.permute.xlu0 %1223
      %1225 = vrot.lane.b32.xlu0 %v1036, 2
      %v1226 = vpop.permute.xlu0 %1225
      %1227 = vrot.lane.b32.xlu0 %v1037, 2
      %v1228 = vpop.permute.xlu0 %1227
      %1229 = vrot.lane.b32.xlu0 %v1038, 2
      %v1230 = vpop.permute.xlu0 %1229
      %1231 = vrot.lane.b32.xlu0 %v1039, 2
      %v1232 = vpop.permute.xlu0 %1231
      %1241 = vrot.lane.b32.xlu0 %v1056, 4
      %v1242 = vpop.permute.xlu0 %1241
      %1243 = vrot.lane.b32.xlu0 %v1057, 4
      %v1244 = vpop.permute.xlu0 %1243
      %1245 = vrot.lane.b32.xlu0 %v1058, 4
      %v1246 = vpop.permute.xlu0 %1245
      %1247 = vrot.lane.b32.xlu0 %v1059, 4
      %v1248 = vpop.permute.xlu0 %1247
      %1249 = vrot.lane.b32.xlu0 %v1060, 4
      %v1250 = vpop.permute.xlu0 %1249
      %1251 = vrot.lane.b32.xlu0 %v1061, 4
      %v1252 = vpop.permute.xlu0 %1251
      %1253 = vrot.lane.b32.xlu0 %v1062, 4
      %v1254 = vpop.permute.xlu0 %1253
      %1255 = vrot.lane.b32.xlu0 %v1063, 4
      %v1256 = vpop.permute.xlu0 %1255
      %1265 = vrot.lane.b32.xlu0 %v1080, 6
      %v1266 = vpop.permute.xlu0 %1265
      %1267 = vrot.lane.b32.xlu0 %v1081, 6
      %v1268 = vpop.permute.xlu0 %1267
      %1269 = vrot.lane.b32.xlu0 %v1082, 6
      %v1270 = vpop.permute.xlu0 %1269
      %1271 = vrot.lane.b32.xlu0 %v1083, 6
      %v1272 = vpop.permute.xlu0 %1271
      %1273 = vrot.lane.b32.xlu0 %v1084, 6
      %v1274 = vpop.permute.xlu0 %1273
      %1275 = vrot.lane.b32.xlu0 %v1085, 6
      %v1276 = vpop.permute.xlu0 %1275
      %1277 = vrot.lane.b32.xlu0 %v1086, 6
      %v1278 = vpop.permute.xlu0 %1277
      %1279 = vrot.lane.b32.xlu0 %v1087, 6
      %v1280 = vpop.permute.xlu0 %1279
      %1289 = vrot.lane.b32.xlu0 %v1104, 8
      %v1290 = vpop.permute.xlu0 %1289
      %1291 = vrot.lane.b32.xlu0 %v1105, 8
      %v1292 = vpop.permute.xlu0 %1291
      %1293 = vrot.lane.b32.xlu0 %v1106, 8
      %v1294 = vpop.permute.xlu0 %1293
      %1295 = vrot.lane.b32.xlu0 %v1107, 8
      %v1296 = vpop.permute.xlu0 %1295
      %1297 = vrot.lane.b32.xlu0 %v1108, 8
      %v1298 = vpop.permute.xlu0 %1297
      %1299 = vrot.lane.b32.xlu0 %v1109, 8
      %v1300 = vpop.permute.xlu0 %1299
      %1301 = vrot.lane.b32.xlu0 %v1110, 8
      %v1302 = vpop.permute.xlu0 %1301
      %1303 = vrot.lane.b32.xlu0 %v1111, 8
      %v1304 = vpop.permute.xlu0 %1303
      %1313 = vrot.lane.b32.xlu0 %v1128, 10
      %v1314 = vpop.permute.xlu0 %1313
      %1315 = vrot.lane.b32.xlu0 %v1129, 10
      %v1316 = vpop.permute.xlu0 %1315
      %1317 = vrot.lane.b32.xlu0 %v1130, 10
      %v1318 = vpop.permute.xlu0 %1317
      %1319 = vrot.lane.b32.xlu0 %v1131, 10
      %v1320 = vpop.permute.xlu0 %1319
      %1321 = vrot.lane.b32.xlu0 %v1132, 10
      %v1322 = vpop.permute.xlu0 %1321
      %1323 = vrot.lane.b32.xlu0 %v1133, 10
      %v1324 = vpop.permute.xlu0 %1323
      %1325 = vrot.lane.b32.xlu0 %v1134, 10
      %v1326 = vpop.permute.xlu0 %1325
      %1327 = vrot.lane.b32.xlu0 %v1135, 10
      %v1328 = vpop.permute.xlu0 %1327
      %1337 = vrot.lane.b32.xlu0 %v1153, 12
      %v1338 = vpop.permute.xlu0 %1337
      %1339 = vrot.lane.b32.xlu0 %v1154, 12
      %v1340 = vpop.permute.xlu0 %1339
      %1341 = vrot.lane.b32.xlu0 %v1155, 12
      %v1342 = vpop.permute.xlu0 %1341
      %1343 = vrot.lane.b32.xlu0 %v1156, 12
      %v1344 = vpop.permute.xlu0 %1343
      %1345 = vrot.lane.b32.xlu0 %v1157, 12
      %v1346 = vpop.permute.xlu0 %1345
      %1347 = vrot.lane.b32.xlu0 %v1158, 12
      %v1348 = vpop.permute.xlu0 %1347
      %1349 = vrot.lane.b32.xlu0 %v1159, 12
      %v1350 = vpop.permute.xlu0 %1349
      %1351 = vrot.lane.b32.xlu0 %v1160, 12
      %v1352 = vpop.permute.xlu0 %1351
      %1361 = vrot.lane.b32.xlu0 %v1177, 14
      %v1362 = vpop.permute.xlu0 %1361
      %1363 = vrot.lane.b32.xlu0 %v1178, 14
      %v1364 = vpop.permute.xlu0 %1363
      %1365 = vrot.lane.b32.xlu0 %v1179, 14
      %v1366 = vpop.permute.xlu0 %1365
      %1367 = vrot.lane.b32.xlu0 %v1180, 14
      %v1368 = vpop.permute.xlu0 %1367
      %1369 = vrot.lane.b32.xlu0 %v1181, 14
      %v1370 = vpop.permute.xlu0 %1369
      %1371 = vrot.lane.b32.xlu0 %v1182, 14
      %v1372 = vpop.permute.xlu0 %1371
      %1373 = vrot.lane.b32.xlu0 %v1183, 14
      %v1374 = vpop.permute.xlu0 %1373
      %1375 = vrot.lane.b32.xlu0 %v1184, 14
      %v1376 = vpop.permute.xlu0 %1375
      %1385 = vrot.lane.b32.xlu0 %v1201, 16
      %v1386 = vpop.permute.xlu0 %1385
      %1387 = vrot.lane.b32.xlu0 %v1202, 16
      %v1388 = vpop.permute.xlu0 %1387
      %1389 = vrot.lane.b32.xlu0 %v1203, 16
      %v1390 = vpop.permute.xlu0 %1389
      %1391 = vrot.lane.b32.xlu0 %v1204, 16
      %v1392 = vpop.permute.xlu0 %1391
      %1393 = vrot.lane.b32.xlu0 %v1205, 16
      %v1394 = vpop.permute.xlu0 %1393
      %1395 = vrot.lane.b32.xlu0 %v1206, 16
      %v1396 = vpop.permute.xlu0 %1395
      %1397 = vrot.lane.b32.xlu0 %v1207, 16
      %v1398 = vpop.permute.xlu0 %1397
      %1399 = vrot.lane.b32.xlu0 %v1208, 16
      %v1400 = vpop.permute.xlu0 %1399
      %v1403 = vsel %vm957, %v1008, %v1218
      %v1406 = vsel %vm957, %v1009, %v1220
      %v1409 = vsel %vm957, %v1010, %v1222
      %v1412 = vsel %vm957, %v1011, %v1224
      %v1415 = vsel %vm957, %v1012, %v1226
      %v1418 = vsel %vm957, %v1013, %v1228
      %v1421 = vsel %vm957, %v1014, %v1230
      %v1424 = vsel %vm957, %v1015, %v1232
      %v1426 = vsel %vm677, %v1403, %v1242
      %v1428 = vsel %vm677, %v1406, %v1244
      %v1430 = vsel %vm677, %v1409, %v1246
      %v1432 = vsel %vm677, %v1412, %v1248
      %v1434 = vsel %vm677, %v1415, %v1250
      %v1436 = vsel %vm677, %v1418, %v1252
      %v1438 = vsel %vm677, %v1421, %v1254
      %v1440 = vsel %vm677, %v1424, %v1256
      %vm1441 = vcmask 48128
      %v1443 = vsel %vm1441, %v1426, %v1266
      %v1445 = vsel %vm1441, %v1428, %v1268
      %v1447 = vsel %vm1441, %v1430, %v1270
      %v1449 = vsel %vm1441, %v1432, %v1272
      %v1451 = vsel %vm1441, %v1434, %v1274
      %v1453 = vsel %vm1441, %v1436, %v1276
      %v1455 = vsel %vm1441, %v1438, %v1278
      %v1457 = vsel %vm1441, %v1440, %v1280
      %vm1458 = vcmask 64512
      %v1460 = vsel %vm1458, %v1443, %v1290
      %v1462 = vsel %vm1458, %v1445, %v1292
      %v1464 = vsel %vm1458, %v1447, %v1294
      %v1466 = vsel %vm1458, %v1449, %v1296
      %v1468 = vsel %vm1458, %v1451, %v1298
      %v1470 = vsel %vm1458, %v1453, %v1300
      %v1472 = vsel %vm1458, %v1455, %v1302
      %v1474 = vsel %vm1458, %v1457, %v1304
      %vm1475 = vcmask 80896
      %v1477 = vsel %vm1475, %v1460, %v1314
      %v1479 = vsel %vm1475, %v1462, %v1316
      %v1481 = vsel %vm1475, %v1464, %v1318
      %v1483 = vsel %vm1475, %v1466, %v1320
      %v1485 = vsel %vm1475, %v1468, %v1322
      %v1487 = vsel %vm1475, %v1470, %v1324
      %v1489 = vsel %vm1475, %v1472, %v1326
      %v1491 = vsel %vm1475, %v1474, %v1328
      %vm1492 = vcmask 97280
      %v1494 = vsel %vm1492, %v1477, %v1338
      %v1496 = vsel %vm1492, %v1479, %v1340
      %v1498 = vsel %vm1492, %v1481, %v1342
      %v1500 = vsel %vm1492, %v1483, %v1344
      %v1502 = vsel %vm1492, %v1485, %v1346
      %v1504 = vsel %vm1492, %v1487, %v1348
      %v1506 = vsel %vm1492, %v1489, %v1350
      %v1508 = vsel %vm1492, %v1491, %v1352
      %vm1509 = vcmask 113664
      %v1511 = vsel %vm1509, %v1494, %v1362
      %v1513 = vsel %vm1509, %v1496, %v1364
      %v1515 = vsel %vm1509, %v1498, %v1366
      %v1517 = vsel %vm1509, %v1500, %v1368
      %v1519 = vsel %vm1509, %v1502, %v1370
      %v1521 = vsel %vm1509, %v1504, %v1372
      %v1523 = vsel %vm1509, %v1506, %v1374
      %v1525 = vsel %vm1509, %v1508, %v1376
      %vm1526 = vcmask 130048
      %v1528 = vsel %vm1526, %v1511, %v1386
      %v1530 = vsel %vm1526, %v1513, %v1388
      %v1532 = vsel %vm1526, %v1515, %v1390
      %v1534 = vsel %vm1526, %v1517, %v1392
      %v1536 = vsel %vm1526, %v1519, %v1394
      %v1538 = vsel %vm1526, %v1521, %v1396
      %v1540 = vsel %vm1526, %v1523, %v1398
      %v1542 = vsel %vm1526, %v1525, %v1400
      %v1543 = vld [vmem:[%s8] sm:$0xf]
      %v1544 = vld [vmem:[%s8 + $0x4] sm:$0xf]
      %v1545 = vld [vmem:[%s8 + $0x8] sm:$0x1]
      %v1549 = vunpack.c.l.b16 %v1543
      %v1550 = vunpack.c.l.b16 %v1544
      %v1551 = vunpack.c.l.b16 %v1545
      %v1552 = vpack.c.b16 %v1550, %v1549
      %v1553 = vpack.c.b16 %v1551, %v1551
      %vm1555 = vcmask 146432
      %v1556 = vsel %vm1555, %v1528, 0
      %v1558 = vsel %vm1555, %v1530, 0
      %v1560 = vsel %vm1555, %v1532, 0
      %v1562 = vsel %vm1555, %v1534, 0
      %v1564 = vsel %vm1555, %v1536, 0
      %v1566 = vsel %vm1555, %v1538, 0
      %v1568 = vsel %vm1555, %v1540, 0
      %v1570 = vsel %vm1555, %v1542, 0
      %vm1572 = vcmask 1040384
      %v1574 = vsel %vm1572, %v1553, 0
      %1576 = vmatprep.subr.bf16.mxu0 0
      %1577 = vmatpush1.bf16.msra.mxu0 %v1552
      %1578 = vmatprep.subr.bf16.mxu0 0
      %1579 = vmatpush1.bf16.msra.mxu0 %v1574
      %1580 = vmatprep.subr.bf16.mxu0 0
      %1581 = vmatpush1.bf16.msra.mxu0 0
      %1582 = vmatprep.subr.bf16.mxu0 0
      %1583 = vmatpush1.bf16.msra.mxu0 0
      %1584 = vmatprep.subr.bf16.mxu0 0
      %1585 = vmatpush1.bf16.msra.mxu0 0
      %1586 = vmatprep.subr.bf16.mxu0 0
      %1587 = vmatpush1.bf16.msra.mxu0 0
      %1588 = vmatprep.subr.bf16.mxu0 0
      %1589 = vmatpush1.bf16.msra.mxu0 0
      %1590 = vmatprep.subr.bf16.mxu0 0
      %1591 = vmatpush1.bf16.msra.mxu0 0
      %1592 = vmatprep.subr.bf16.mxu0 0
      %1593 = vmatpush1.bf16.msra.mxu0 0
      %1594 = vmatprep.subr.bf16.mxu0 0
      %1595 = vmatpush1.bf16.msra.mxu0 0
      %1596 = vmatprep.subr.bf16.mxu0 0
      %1597 = vmatpush1.bf16.msra.mxu0 0
      %1598 = vmatprep.subr.bf16.mxu0 0
      %1599 = vmatpush1.bf16.msra.mxu0 0
      %1600 = vmatprep.subr.bf16.mxu0 0
      %1601 = vmatpush1.bf16.msra.mxu0 0
      %1602 = vmatprep.subr.bf16.mxu0 0
      %1603 = vmatpush1.bf16.msra.mxu0 0
      %1604 = vmatprep.subr.bf16.mxu0 0
      %1605 = vmatpush1.bf16.msra.mxu0 0
      %1606 = vmatprep.subr.bf16.mxu0 0
      %1607 = vmatpush1.bf16.msra.mxu0 0
      %1608 = vmatprep.mubr.bf16.mxu0 0
      %1609 = vmatmul.mubr.bf16.gmra.mrb[0].mxu0 %v1556
      %v1610 = vpop.f32.mrb[0].mxu0
      %v1611 = vadd.f32 0.0, %v1610
      %v1612 = vpop.f32.mrb[0].mxu0
      %v1613 = vpop.f32.mrb[0].mxu0
      %v1614 = vadd.f32 0.0, %v1613
      %v1615 = vpop.f32.mrb[0].mxu0
      %1616 = vmatprep.mubr.bf16.mxu0 0
      %1617 = vmatmul.mubr.bf16.gmra.mrb[0].mxu0 %v1558
      %v1618 = vpop.f32.mrb[0].mxu0
      %v1619 = vadd.f32 0.0, %v1618
      %v1620 = vpop.f32.mrb[0].mxu0
      %v1621 = vpop.f32.mrb[0].mxu0
      %v1622 = vadd.f32 0.0, %v1621
      %v1623 = vpop.f32.mrb[0].mxu0
      %1624 = vmatprep.mubr.bf16.mxu0 0
      %1625 = vmatmul.mubr.bf16.gmra.mrb[0].mxu0 %v1560
      %v1626 = vpop.f32.mrb[0].mxu0
      %v1627 = vadd.f32 0.0, %v1626
      %v1628 = vpop.f32.mrb[0].mxu0
      %v1629 = vpop.f32.mrb[0].mxu0
      %v1630 = vadd.f32 0.0, %v1629
      %v1631 = vpop.f32.mrb[0].mxu0
      %1632 = vmatprep.mubr.bf16.mxu0 0
      %1633 = vmatmul.mubr.bf16.gmra.mrb[0].mxu0 %v1562
      %v1634 = vpop.f32.mrb[0].mxu0
      %v1635 = vadd.f32 0.0, %v1634
      %v1636 = vpop.f32.mrb[0].mxu0
      %v1637 = vpop.f32.mrb[0].mxu0
      %v1638 = vadd.f32 0.0, %v1637
      %v1639 = vpop.f32.mrb[0].mxu0
      %1640 = vmatprep.mubr.bf16.mxu0 0
      %1641 = vmatmul.mubr.bf16.gmra.mrb[0].mxu0 %v1564
      %v1642 = vpop.f32.mrb[0].mxu0
      %v1643 = vadd.f32 0.0, %v1642
      %v1644 = vpop.f32.mrb[0].mxu0
      %v1645 = vpop.f32.mrb[0].mxu0
      %v1646 = vadd.f32 0.0, %v1645
      %v1647 = vpop.f32.mrb[0].mxu0
      %1648 = vmatprep.mubr.bf16.mxu0 0
      %1649 = vmatmul.mubr.bf16.gmra.mrb[0].mxu0 %v1566
      %v1650 = vpop.f32.mrb[0].mxu0
      %v1651 = vadd.f32 0.0, %v1650
      %v1652 = vpop.f32.mrb[0].mxu0
      %v1653 = vpop.f32.mrb[0].mxu0
      %v1654 = vadd.f32 0.0, %v1653
      %v1655 = vpop.f32.mrb[0].mxu0
      %1656 = vmatprep.mubr.bf16.mxu0 0
      %1657 = vmatmul.mubr.bf16.gmra.mrb[0].mxu0 %v1568
      %v1658 = vpop.f32.mrb[0].mxu0
      %v1659 = vadd.f32 0.0, %v1658
      %v1660 = vpop.f32.mrb[0].mxu0
      %v1661 = vpop.f32.mrb[0].mxu0
      %v1662 = vadd.f32 0.0, %v1661
      %v1663 = vpop.f32.mrb[0].mxu0
      %1664 = vmatprep.mubr.bf16.mxu0 0
      %1665 = vmatmul.mubr.bf16.gmra.mrb[0].mxu0 %v1570
      %v1666 = vpop.f32.mrb[0].mxu0
      %v1667 = vadd.f32 0.0, %v1666
      %v1668 = vpop.f32.mrb[0].mxu0
      %v1669 = vpop.f32.mrb[0].mxu0
      %v1670 = vadd.f32 0.0, %v1669
      %v1671 = vpop.f32.mrb[0].mxu0
      %1672 = vdwg.mxu0
      %v1673 = vld [vmem:[%s9] sm:$0x1]
      %v1675 = vlaneseq
      %v1676 = vshrl.u32 %v1675, 7
      %v1677 = vsub.s32 0, %v1676
      %v1678 = vrot.slane %v1673, %v1677
      %v1680 = vmul.f32 %v1611, %v1678
      %v1681 = vmul.f32 %v1614, %v1678
      %v1682 = vmul.f32 %v1619, %v1678
      %v1683 = vmul.f32 %v1622, %v1678
      %v1684 = vmul.f32 %v1627, %v1678
      %v1685 = vmul.f32 %v1630, %v1678
      %v1686 = vmul.f32 %v1635, %v1678
      %v1687 = vmul.f32 %v1638, %v1678
      %v1688 = vmul.f32 %v1643, %v1678
      %v1689 = vmul.f32 %v1646, %v1678
      %v1690 = vmul.f32 %v1651, %v1678
      %v1691 = vmul.f32 %v1654, %v1678
      %v1692 = vmul.f32 %v1659, %v1678
      %v1693 = vmul.f32 %v1662, %v1678
      %v1694 = vmul.f32 %v1667, %v1678
      %v1695 = vmul.f32 %v1670, %v1678
      %v1696 = vld [vmem:[%s10] sm:$0x1]
      %v1698 = vlaneseq
      %v1699 = vshrl.u32 %v1698, 7
      %v1700 = vsub.s32 0, %v1699
      %v1701 = vrot.slane %v1696, %v1700
      %v1703 = vadd.f32 %v1680, %v1701
      %v1704 = vadd.f32 %v1681, %v1701
      %v1705 = vadd.f32 %v1682, %v1701
      %v1706 = vadd.f32 %v1683, %v1701
      %v1707 = vadd.f32 %v1684, %v1701
      %v1708 = vadd.f32 %v1685, %v1701
      %v1709 = vadd.f32 %v1686, %v1701
      %v1710 = vadd.f32 %v1687, %v1701
      %v1711 = vadd.f32 %v1688, %v1701
      %v1712 = vadd.f32 %v1689, %v1701
      %v1713 = vadd.f32 %v1690, %v1701
      %v1714 = vadd.f32 %v1691, %v1701
      %v1715 = vadd.f32 %v1692, %v1701
      %v1716 = vadd.f32 %v1693, %v1701
      %v1717 = vadd.f32 %v1694, %v1701
      %v1718 = vadd.f32 %v1695, %v1701
      %v1719 = vmax.f32 %v1703, 0.0
      %v1720 = vmax.f32 %v1704, 0.0
      %v1721 = vmax.f32 %v1705, 0.0
      %v1722 = vmax.f32 %v1706, 0.0
      %v1723 = vmax.f32 %v1707, 0.0
      %v1724 = vmax.f32 %v1708, 0.0
      %v1725 = vmax.f32 %v1709, 0.0
      %v1726 = vmax.f32 %v1710, 0.0
      %v1727 = vmax.f32 %v1711, 0.0
      %v1728 = vmax.f32 %v1712, 0.0
      %v1729 = vmax.f32 %v1713, 0.0
      %v1730 = vmax.f32 %v1714, 0.0
      %v1731 = vmax.f32 %v1715, 0.0
      %v1732 = vmax.f32 %v1716, 0.0
      %v1733 = vmax.f32 %v1717, 0.0
      %v1734 = vmax.f32 %v1718, 0.0
      %v1735 = vpack.c.bf16 %v1720, %v1719
      %v1736 = vpack.c.bf16 %v1722, %v1721
      %v1737 = vpack.c.bf16 %v1724, %v1723
      %v1738 = vpack.c.bf16 %v1726, %v1725
      %v1739 = vpack.c.bf16 %v1728, %v1727
      %v1740 = vpack.c.bf16 %v1730, %v1729
      %v1741 = vpack.c.bf16 %v1732, %v1731
      %v1742 = vpack.c.bf16 %v1734, %v1733
      %v1743 = vld [vmem:[%s11] sm:$0x3]
      %v1745 = vsel %vm677, %v1735, 0
      %v1748 = vsel %vm677, %v1736, 0
      %v1751 = vsel %vm677, %v1737, 0
      %v1754 = vsel %vm677, %v1738, 0
      %v1757 = vsel %vm677, %v1739, 0
      %v1760 = vsel %vm677, %v1740, 0
      %v1763 = vsel %vm677, %v1741, 0
      %v1766 = vsel %vm677, %v1742, 0
      %v1769 = vsel %vm739, %v1743, 0
      %1771 = vmatprep.subr.bf16.mxu0 0
      %1772 = vmatpush1.bf16.msra.mxu0 %v1769
      %1773 = vmatprep.subr.bf16.mxu0 0
      %1774 = vmatpush1.bf16.msra.mxu0 0
      %1775 = vmatprep.subr.bf16.mxu0 0
      %1776 = vmatpush1.bf16.msra.mxu0 0
      %1777 = vmatprep.subr.bf16.mxu0 0
      %1778 = vmatpush1.bf16.msra.mxu0 0
      %1779 = vmatprep.subr.bf16.mxu0 0
      %1780 = vmatpush1.bf16.msra.mxu0 0
      %1781 = vmatprep.subr.bf16.mxu0 0
      %1782 = vmatpush1.bf16.msra.mxu0 0
      %1783 = vmatprep.subr.bf16.mxu0 0
      %1784 = vmatpush1.bf16.msra.mxu0 0
      %1785 = vmatprep.subr.bf16.mxu0 0
      %1786 = vmatpush1.bf16.msra.mxu0 0
      %1787 = vmatprep.subr.bf16.mxu0 0
      %1788 = vmatpush1.bf16.msra.mxu0 0
      %1789 = vmatprep.subr.bf16.mxu0 0
      %1790 = vmatpush1.bf16.msra.mxu0 0
      %1791 = vmatprep.subr.bf16.mxu0 0
      %1792 = vmatpush1.bf16.msra.mxu0 0
      %1793 = vmatprep.subr.bf16.mxu0 0
      %1794 = vmatpush1.bf16.msra.mxu0 0
      %1795 = vmatprep.subr.bf16.mxu0 0
      %1796 = vmatpush1.bf16.msra.mxu0 0
      %1797 = vmatprep.subr.bf16.mxu0 0
      %1798 = vmatpush1.bf16.msra.mxu0 0
      %1799 = vmatprep.subr.bf16.mxu0 0
      %1800 = vmatpush1.bf16.msra.mxu0 0
      %1801 = vmatprep.subr.bf16.mxu0 0
      %1802 = vmatpush1.bf16.msra.mxu0 0
      %1803 = vmatprep.mubr.bf16.mxu0 0
      %1804 = vmatmul.mubr.bf16.gmra.mrb[0].mxu0 %v1745
      %v1805 = vpop.f32.mrb[0].mxu0
      %v1806 = vadd.f32 0.0, %v1805
      %v1807 = vpop.f32.mrb[0].mxu0
      %v1808 = vpop.f32.mrb[0].mxu0
      %v1809 = vadd.f32 0.0, %v1808
      %v1810 = vpop.f32.mrb[0].mxu0
      %1811 = vmatprep.mubr.bf16.mxu0 0
      %1812 = vmatmul.mubr.bf16.gmra.mrb[0].mxu0 %v1748
      %v1813 = vpop.f32.mrb[0].mxu0
      %v1814 = vadd.f32 0.0, %v1813
      %v1815 = vpop.f32.mrb[0].mxu0
      %v1816 = vpop.f32.mrb[0].mxu0
      %v1817 = vadd.f32 0.0, %v1816
      %v1818 = vpop.f32.mrb[0].mxu0
      %1819 = vmatprep.mubr.bf16.mxu0 0
      %1820 = vmatmul.mubr.bf16.gmra.mrb[0].mxu0 %v1751
      %v1821 = vpop.f32.mrb[0].mxu0
      %v1822 = vadd.f32 0.0, %v1821
      %v1823 = vpop.f32.mrb[0].mxu0
      %v1824 = vpop.f32.mrb[0].mxu0
      %v1825 = vadd.f32 0.0, %v1824
      %v1826 = vpop.f32.mrb[0].mxu0
      %1827 = vmatprep.mubr.bf16.mxu0 0
      %1828 = vmatmul.mubr.bf16.gmra.mrb[0].mxu0 %v1754
      %v1829 = vpop.f32.mrb[0].mxu0
      %v1830 = vadd.f32 0.0, %v1829
      %v1831 = vpop.f32.mrb[0].mxu0
      %v1832 = vpop.f32.mrb[0].mxu0
      %v1833 = vadd.f32 0.0, %v1832
      %v1834 = vpop.f32.mrb[0].mxu0
      %1835 = vmatprep.mubr.bf16.mxu0 0
      %1836 = vmatmul.mubr.bf16.gmra.mrb[0].mxu0 %v1757
      %v1837 = vpop.f32.mrb[0].mxu0
      %v1838 = vadd.f32 0.0, %v1837
      %v1839 = vpop.f32.mrb[0].mxu0
      %v1840 = vpop.f32.mrb[0].mxu0
      %v1841 = vadd.f32 0.0, %v1840
      %v1842 = vpop.f32.mrb[0].mxu0
      %1843 = vmatprep.mubr.bf16.mxu0 0
      %1844 = vmatmul.mubr.bf16.gmra.mrb[0].mxu0 %v1760
      %v1845 = vpop.f32.mrb[0].mxu0
      %v1846 = vadd.f32 0.0, %v1845
      %v1847 = vpop.f32.mrb[0].mxu0
      %v1848 = vpop.f32.mrb[0].mxu0
      %v1849 = vadd.f32 0.0, %v1848
      %v1850 = vpop.f32.mrb[0].mxu0
      %1851 = vmatprep.mubr.bf16.mxu0 0
      %1852 = vmatmul.mubr.bf16.gmra.mrb[0].mxu0 %v1763
      %v1853 = vpop.f32.mrb[0].mxu0
      %v1854 = vadd.f32 0.0, %v1853
      %v1855 = vpop.f32.mrb[0].mxu0
      %v1856 = vpop.f32.mrb[0].mxu0
      %v1857 = vadd.f32 0.0, %v1856
      %v1858 = vpop.f32.mrb[0].mxu0
      %1859 = vmatprep.mubr.bf16.mxu0 0
      %1860 = vmatmul.mubr.bf16.gmra.mrb[0].mxu0 %v1766
      %v1861 = vpop.f32.mrb[0].mxu0
      %v1862 = vadd.f32 0.0, %v1861
      %v1863 = vpop.f32.mrb[0].mxu0
      %v1864 = vpop.f32.mrb[0].mxu0
      %v1865 = vadd.f32 0.0, %v1864
      %v1866 = vpop.f32.mrb[0].mxu0
      %1867 = vdwg.mxu0
      %v1868 = vld [vmem:[%s4] sm:$0x3]
      %v1870 = vsel %vm739, %v1868, 0
      %1872 = vmatprep.subr.bf16.mxu0 0
      %1873 = vmatpush1.bf16.msra.mxu0 %v1870
      %1874 = vmatprep.subr.bf16.mxu0 0
      %1875 = vmatpush1.bf16.msra.mxu0 0
      %1876 = vmatprep.subr.bf16.mxu0 0
      %1877 = vmatpush1.bf16.msra.mxu0 0
      %1878 = vmatprep.subr.bf16.mxu0 0
      %1879 = vmatpush1.bf16.msra.mxu0 0
      %1880 = vmatprep.subr.bf16.mxu0 0
      %1881 = vmatpush1.bf16.msra.mxu0 0
      %1882 = vmatprep.subr.bf16.mxu0 0
      %1883 = vmatpush1.bf16.msra.mxu0 0
      %1884 = vmatprep.subr.bf16.mxu0 0
      %1885 = vmatpush1.bf16.msra.mxu0 0
      %1886 = vmatprep.subr.bf16.mxu0 0
      %1887 = vmatpush1.bf16.msra.mxu0 0
      %1888 = vmatprep.subr.bf16.mxu0 0
      %1889 = vmatpush1.bf16.msra.mxu0 0
      %1890 = vmatprep.subr.bf16.mxu0 0
      %1891 = vmatpush1.bf16.msra.mxu0 0
      %1892 = vmatprep.subr.bf16.mxu0 0
      %1893 = vmatpush1.bf16.msra.mxu0 0
      %1894 = vmatprep.subr.bf16.mxu0 0
      %1895 = vmatpush1.bf16.msra.mxu0 0
      %1896 = vmatprep.subr.bf16.mxu0 0
      %1897 = vmatpush1.bf16.msra.mxu0 0
      %1898 = vmatprep.subr.bf16.mxu0 0
      %1899 = vmatpush1.bf16.msra.mxu0 0
      %1900 = vmatprep.subr.bf16.mxu0 0
      %1901 = vmatpush1.bf16.msra.mxu0 0
      %1902 = vmatprep.subr.bf16.mxu0 0
      %1903 = vmatpush1.bf16.msra.mxu0 0
      %1904 = vmatprep.mubr.bf16.mxu0 0
      %1905 = vmatmul.mubr.bf16.gmra.mrb[0].mxu0 %v713
      %v1906 = vpop.f32.mrb[0].mxu0
      %v1907 = vadd.f32 %v1806, %v1906
      %v1908 = vpop.f32.mrb[0].mxu0
      %v1909 = vpop.f32.mrb[0].mxu0
      %v1910 = vadd.f32 %v1809, %v1909
      %v1911 = vpop.f32.mrb[0].mxu0
      %1912 = vmatprep.mubr.bf16.mxu0 0
      %1913 = vmatmul.mubr.bf16.gmra.mrb[0].mxu0 %v716
      %v1914 = vpop.f32.mrb[0].mxu0
      %v1915 = vadd.f32 %v1814, %v1914
      %v1916 = vpop.f32.mrb[0].mxu0
      %v1917 = vpop.f32.mrb[0].mxu0
      %v1918 = vadd.f32 %v1817, %v1917
      %v1919 = vpop.f32.mrb[0].mxu0
      %1920 = vmatprep.mubr.bf16.mxu0 0
      %1921 = vmatmul.mubr.bf16.gmra.mrb[0].mxu0 %v719
      %v1922 = vpop.f32.mrb[0].mxu0
      %v1923 = vadd.f32 %v1822, %v1922
      %v1924 = vpop.f32.mrb[0].mxu0
      %v1925 = vpop.f32.mrb[0].mxu0
      %v1926 = vadd.f32 %v1825, %v1925
      %v1927 = vpop.f32.mrb[0].mxu0
      %1928 = vmatprep.mubr.bf16.mxu0 0
      %1929 = vmatmul.mubr.bf16.gmra.mrb[0].mxu0 %v722
      %v1930 = vpop.f32.mrb[0].mxu0
      %v1931 = vadd.f32 %v1830, %v1930
      %v1932 = vpop.f32.mrb[0].mxu0
      %v1933 = vpop.f32.mrb[0].mxu0
      %v1934 = vadd.f32 %v1833, %v1933
      %v1935 = vpop.f32.mrb[0].mxu0
      %1936 = vmatprep.mubr.bf16.mxu0 0
      %1937 = vmatmul.mubr.bf16.gmra.mrb[0].mxu0 %v725
      %v1938 = vpop.f32.mrb[0].mxu0
      %v1939 = vadd.f32 %v1838, %v1938
      %v1940 = vpop.f32.mrb[0].mxu0
      %v1941 = vpop.f32.mrb[0].mxu0
      %v1942 = vadd.f32 %v1841, %v1941
      %v1943 = vpop.f32.mrb[0].mxu0
      %1944 = vmatprep.mubr.bf16.mxu0 0
      %1945 = vmatmul.mubr.bf16.gmra.mrb[0].mxu0 %v728
      %v1946 = vpop.f32.mrb[0].mxu0
      %v1947 = vadd.f32 %v1846, %v1946
      %v1948 = vpop.f32.mrb[0].mxu0
      %v1949 = vpop.f32.mrb[0].mxu0
      %v1950 = vadd.f32 %v1849, %v1949
      %v1951 = vpop.f32.mrb[0].mxu0
      %1952 = vmatprep.mubr.bf16.mxu0 0
      %1953 = vmatmul.mubr.bf16.gmra.mrb[0].mxu0 %v731
      %v1954 = vpop.f32.mrb[0].mxu0
      %v1955 = vadd.f32 %v1854, %v1954
      %v1956 = vpop.f32.mrb[0].mxu0
      %v1957 = vpop.f32.mrb[0].mxu0
      %v1958 = vadd.f32 %v1857, %v1957
      %v1959 = vpop.f32.mrb[0].mxu0
      %1960 = vmatprep.mubr.bf16.mxu0 0
      %1961 = vmatmul.mubr.bf16.gmra.mrb[0].mxu0 %v734
      %v1962 = vpop.f32.mrb[0].mxu0
      %v1963 = vadd.f32 %v1862, %v1962
      %v1964 = vpop.f32.mrb[0].mxu0
      %v1965 = vpop.f32.mrb[0].mxu0
      %v1966 = vadd.f32 %v1865, %v1965
      %v1967 = vpop.f32.mrb[0].mxu0
      %1968 = vdwg.mxu0
      %1969 = vst.msk [vmem:[%s560] sm:$0xff] %vm1458, %v1907
      %1970 = vst.msk [vmem:[%s560 + $0x8] sm:$0xff] %vm1458, %v1910
      %1971 = vst.msk [vmem:[%s560 + $0x10] sm:$0xff] %vm1458, %v1915
      %1972 = vst.msk [vmem:[%s560 + $0x18] sm:$0xff] %vm1458, %v1918
      %1973 = vst.msk [vmem:[%s560 + $0x20] sm:$0xff] %vm1458, %v1923
      %1974 = vst.msk [vmem:[%s560 + $0x28] sm:$0xff] %vm1458, %v1926
      %1975 = vst.msk [vmem:[%s560 + $0x30] sm:$0xff] %vm1458, %v1931
      %1976 = vst.msk [vmem:[%s560 + $0x38] sm:$0xff] %vm1458, %v1934
      %1977 = vst.msk [vmem:[%s560 + $0x40] sm:$0xff] %vm1458, %v1939
      %1978 = vst.msk [vmem:[%s560 + $0x48] sm:$0xff] %vm1458, %v1942
      %1979 = vst.msk [vmem:[%s560 + $0x50] sm:$0xff] %vm1458, %v1947
      %1980 = vst.msk [vmem:[%s560 + $0x58] sm:$0xff] %vm1458, %v1950
      %1981 = vst.msk [vmem:[%s560 + $0x60] sm:$0xff] %vm1458, %v1955
      %1982 = vst.msk [vmem:[%s560 + $0x68] sm:$0xff] %vm1458, %v1958
      %1983 = vst.msk [vmem:[%s560 + $0x70] sm:$0xff] %vm1458, %v1963
      %1984 = vst.msk [vmem:[%s560 + $0x78] sm:$0xff] %vm1458, %v1966
      %s1985 = smul.u32 8, %s30
      %p1986 = scmp.lt.s32.totalorder %s29, 1
      %s1987 = scalar_select %p1986, %s29, 1
      %p1988 = scmp.lt.s32.totalorder %s1985, 15
      %s1989 = scalar_select %p1988, %s1985, 15
      %s1990 = smul.addr %s1989, 2
      %s1991 = smul.addr %s1987, 32
      %s1992 = sadd.s32 %s1990, %s1991
      %s1993 = smul.addr %s1992, 8
      %s1994 = scalar_lea.vmem %s12, %s1993
      %s1995 = smul.u32 8, %s30
      %p1996 = scmp.lt.s32.totalorder %s29, 1
      %s1997 = scalar_select %p1996, %s29, 1
      %p1998 = scmp.lt.s32.totalorder %s1995, 15
      %s1999 = scalar_select %p1998, %s1995, 15
      %s2000 = smul.addr %s1999, 2
      %s2001 = smul.addr %s1997, 32
      %s2002 = sadd.s32 %s2000, %s2001
      %s2003 = smul.addr %s2002, 8
      %s2004 = scalar_lea.vmem %s13, %s2003
      // Predicated region
      $region89: #{tpu_custom_call.1} parent=67 // pred_check
        %p2005 = pneg %p331
      $region90: #{tpu_custom_call.1} parent=67 // pred_check_branch
        %2007 = sbr.rel (%p2005) target = $region92
      $region91: #{tpu_custom_call.1} parent=67 // pred_region
        %s2008 = smul.u32 8, %s30
      $region92: #{tpu_custom_call.1} parent=67 // pred_fallthru
        _
      // Predicated region
      $region93: #{tpu_custom_call.1} parent=67 // pred_check
        %p2009 = pneg %p359
      $region94: #{tpu_custom_call.1} parent=67 // pred_check_branch
        %2011 = sbr.rel (%p2009) target = $region96
      $region95: #{tpu_custom_call.1} parent=67 // pred_region
        %s2012 = smul.u32 8, %s30
      $region96: #{tpu_custom_call.1} parent=67 // pred_fallthru
        _
    $region68: #{tpu_custom_call.1} parent=5 // pred_fallthru
      _
    %p2013 = scmp.le.s32.totalorder 2, %s20
    // Predicated region
    $region97: #{tpu_custom_call.1} parent=5 // pred_check
      %p2014 = pneg %p2013
    $region98: #{tpu_custom_call.1} parent=5 // pred_check_branch
      %2016 = sbr.rel (%p2014) target = $region100
    $region99: #{tpu_custom_call.1} parent=5 // pred_region
      %s2017 = ssub.s32 %s20, 2
      // Predicated region
      $region101: #{tpu_custom_call.1} parent=99 // pred_check
        %p2018 = pneg %p337
      $region102: #{tpu_custom_call.1} parent=99 // pred_check_branch
        %2020 = sbr.rel (%p2018) target = $region104
      $region103: #{tpu_custom_call.1} parent=99 // pred_region
        %s2021 = smul.u32 8, %s32
        %p2022 = scmp.lt.s32.totalorder %s31, 1
        %s2023 = scalar_select %p2022, %s31, 1
        %p2024 = scmp.lt.s32.totalorder %s2021, 15
        %s2025 = scalar_select %p2024, %s2021, 15
        %s2026 = smul.addr %s2025, 2
        %s2027 = smul.addr %s2023, 32
        %s2028 = sadd.s32 %s2026, %s2027
        %s2029 = smul.addr %s2028, 8
        %s2030 = scalar_lea.vmem %s12, %s2029
      $region104: #{tpu_custom_call.1} parent=99 // pred_fallthru
        _
      // Predicated region
      $region105: #{tpu_custom_call.1} parent=99 // pred_check
        %p2031 = pneg %p365
      $region106: #{tpu_custom_call.1} parent=99 // pred_check_branch
        %2033 = sbr.rel (%p2031) target = $region108
      $region107: #{tpu_custom_call.1} parent=99 // pred_region
        %s2034 = smul.u32 8, %s32
        %p2035 = scmp.lt.s32.totalorder %s31, 1
        %s2036 = scalar_select %p2035, %s31, 1
        %p2037 = scmp.lt.s32.totalorder %s2034, 15
        %s2038 = scalar_select %p2037, %s2034, 15
        %s2039 = smul.addr %s2038, 2
        %s2040 = smul.addr %s2036, 32
        %s2041 = sadd.s32 %s2039, %s2040
        %s2042 = smul.addr %s2041, 8
        %s2043 = scalar_lea.vmem %s13, %s2042
      $region108: #{tpu_custom_call.1} parent=99 // pred_fallthru
        _
    $region100: #{tpu_custom_call.1} parent=5 // pred_fallthru
      _
  $region6: #{tpu_custom_call.1} parent=0 // loop_footer
    %s24 = sadd.s32 1, %s20
  $region7: #{tpu_custom_call.1} parent=0 // loop_footer_branch
    %19 = sbr.rel target = $region3
  $region8: #{tpu_custom_call.1} parent=0 // loop_exit
    _

// kernel: tpu_custom_call.1
$region0: #{tpu_custom_call.1}
  #allocation0 [shape = 'u32[]', space=smem, size = 0x4, offset = 0x4, fixed_abs, tag = 'smem constant byte address 0x4 - core index']
  #allocation1 [shape = 'u32[144,128]{1,0:T(1,128)}', space=vmem, size = 0x12000, scoped, tag = 'internal scratch']
  #allocation2 [shape = 'f32[10,25,2]{2,1,0:T(8,128)}', space=vmem, size = 0x28000, scoped, tag = 'scratch operand']
  #allocation3 [shape = 'f32[1,16,2]{2,1,0:T(8,128)}', space=vmem, size = 0x2000, scoped, tag = 'scratch operand']
  %s0 = inlined_call_operand.vmem [shape: f32[2,16,16,4], index: 0, kind: input, shape index: {}]
  %s1 = inlined_call_operand.vmem [shape: f32[2,16,16,4], index: 1, kind: input, shape index: {}]
  %s2 = inlined_call_operand.vmem [shape: f32[1,4], index: 2, kind: input, shape index: {}]
  %s3 = inlined_call_operand.vmem [shape: f32[1,4], index: 3, kind: input, shape index: {}]
  %s4 = inlined_call_operand.vmem [shape: bf16[4,8], index: 4, kind: input, shape index: {}]
  %s5 = inlined_call_operand.vmem [shape: bf16[4,2], index: 5, kind: input, shape index: {}]
  %s6 = inlined_call_operand.vmem [shape: f32[1,2], index: 6, kind: input, shape index: {}]
  %s7 = inlined_call_operand.vmem [shape: f32[1,2], index: 7, kind: input, shape index: {}]
  %s8 = inlined_call_operand.vmem [shape: bf16[18,4], index: 8, kind: input, shape index: {}]
  %s9 = inlined_call_operand.vmem [shape: f32[1,4], index: 9, kind: input, shape index: {}]
  %s10 = inlined_call_operand.vmem [shape: f32[1,4], index: 10, kind: input, shape index: {}]
  %s11 = inlined_call_operand.vmem [shape: bf16[4,8], index: 11, kind: input, shape index: {}]
  %s12 = inlined_call_operand.vmem [shape: f32[2,16,16,8], index: 12, kind: output, shape index: {0}]
  %s13 = inlined_call_operand.vmem [shape: f32[2,16,16,4], index: 13, kind: output, shape index: {1}]
  %14 = xla_tuple %s12, %s13
  %s15 = sld [smem:[#allocation0]]
  $region109: #{tpu_custom_call.1} parent=0
    _
  %s17 = ssub.s32 1, %s15
  %s18 = scalar_select 0, %s17, %s15
  loop: start=0, step=1, limit=6
  $region2: #{tpu_custom_call.1} parent=0 // loop_pre_header
    _
  $region3: #{tpu_custom_call.1} parent=0 // loop_header
    %s20 = sphi 0, %s24
    %p21 = scmp.ge.s32.totalorder %s20, 6
    %s27 = sphi 0, %s39
    %s28 = sphi 0, %s35
    %s29 = sphi 0, %s27
    %s30 = sphi 0, %s28
    %s31 = sphi 0, %s29
    %s32 = sphi 0, %s30
    %s44 = sphi 0, %s46
    %s47 = sphi 0, %s44
    %s48 = sphi 0, %s47
    %s64 = sphi 0, %s48
    %s80 = sphi 0, %s82
    %s83 = sphi 0, %s80
    %s84 = sphi 0, %s83
    %s100 = sphi 0, %s84
    %s104 = sphi 0, %s104
    %s106 = sphi 0, %s104
    %s107 = sphi 0, %s106
    %s121 = sphi 0, %s107
    %s125 = sphi 0, %s125
    %s127 = sphi 0, %s125
    %s128 = sphi 0, %s127
    %s142 = sphi 0, %s128
    %s146 = sphi 0, %s146
    %s148 = sphi 0, %s146
    %s149 = sphi 0, %s148
    %s163 = sphi 0, %s149
    %s167 = sphi 0, %s167
    %s169 = sphi 0, %s167
    %s170 = sphi 0, %s169
    %s184 = sphi 0, %s170
    %s188 = sphi 0, %s188
    %s190 = sphi 0, %s188
    %s191 = sphi 0, %s190
    %s205 = sphi 0, %s191
    %s209 = sphi 0, %s209
    %s211 = sphi 0, %s209
    %s212 = sphi 0, %s211
    %s226 = sphi 0, %s212
    %s230 = sphi 0, %s230
    %s232 = sphi 0, %s230
    %s233 = sphi 0, %s232
    %s247 = sphi 0, %s233
    %s251 = sphi 0, %s251
    %s253 = sphi 0, %s251
    %s254 = sphi 0, %s253
    %s268 = sphi 0, %s254
    %s272 = sphi 0, %s272
    %s274 = sphi 0, %s272
    %s275 = sphi 0, %s274
    %s289 = sphi 0, %s275
    %s293 = sphi 0, %s293
    %s295 = sphi 0, %s293
    %s296 = sphi 0, %s295
    %s310 = sphi 0, %s296
    %s318 = sphi 0, %s320
    %s321 = sphi 0, %s318
    %s322 = sphi 0, %s321
    %s338 = sphi 0, %s322
    %s346 = sphi 0, %s348
    %s349 = sphi 0, %s346
    %s350 = sphi 0, %s349
    %s366 = sphi 0, %s350
  $region4: #{tpu_custom_call.1} parent=0 // loop_header_branch
    %23 = sbr.rel (%p21) target = $region8
  $region5: #{tpu_custom_call.1} parent=0 // loop_body
    %s25 = ssub.s32 %s20, 1
    %s26 = ssub.s32 %s20, 2
    %s33 = sadd.s32 1, %s28
    %p34 = scmp.ge.s32.totalorder %s33, 2
    %s35 = scalar_select %p34, 0, %s33
    %s36 = sadd.s32 1, %s27
    %s37 = scalar_select %p34, %s36, %s27
    %p38 = scmp.ge.s32.totalorder %s37, 2
    %s39 = scalar_select %p38, 0, %s37
    %s40 = ssub.s32 %s27, %s39
    %s41 = ssub.s32 %s28, %s35
    %s42 = sor.u32 %s40, %s41
    %p43 = scmp.eq.s32.totalorder %s42, 0
    %s45 = sadd.s32 %s44, 1
    %s46 = scalar_select %p43, %s44, %s45
    %p49 = pneg %p43
    %p50 = scmp.eq.s32.totalorder %s20, 3
    %p51 = por %p49, %p50
    %p52 = scmp.ne.s32.totalorder %s44, %s47
    %p53 = scmp.eq.s32.totalorder %s20, 0
    %p54 = por %p52, %p53
    %p55 = scmp.ne.s32.totalorder %s44, %s47
    %p56 = scmp.eq.s32.totalorder %s25, 3
    %p57 = por %p55, %p56
    %p58 = scmp.ne.s32.totalorder %s47, %s48
    %p59 = scmp.eq.s32.totalorder %s25, 0
    %p60 = por %p58, %p59
    %p61 = scmp.ne.s32.totalorder %s47, %s48
    %p62 = scmp.eq.s32.totalorder %s26, 3
    %p63 = por %p61, %p62
    %p65 = scmp.ne.s32.totalorder %s48, %s64
    %p66 = scmp.eq.s32.totalorder %s26, 0
    %p67 = por %p65, %p66
    %s68 = sadd.s32 %s28, 1
    %s69 = smul.u32 %s68, 8
    %p70 = scmp.lt.s32.totalorder %s69, 15
    %s71 = scalar_select %p70, %s69, 15
    %s72 = sadd.s32 %s35, 1
    %s73 = smul.u32 %s72, 8
    %p74 = scmp.lt.s32.totalorder %s73, 15
    %s75 = scalar_select %p74, %s73, 15
    %s76 = ssub.s32 %s27, %s39
    %s77 = ssub.s32 %s71, %s75
    %s78 = sor.u32 %s76, %s77
    %p79 = scmp.eq.s32.totalorder %s78, 0
    %s81 = sadd.s32 %s80, 1
    %s82 = scalar_select %p79, %s80, %s81
    %p85 = pneg %p79
    %p86 = scmp.eq.s32.totalorder %s20, 3
    %p87 = por %p85, %p86
    %p88 = scmp.ne.s32.totalorder %s80, %s83
    %p89 = scmp.eq.s32.totalorder %s20, 0
    %p90 = por %p88, %p89
    %p91 = scmp.ne.s32.totalorder %s80, %s83
    %p92 = scmp.eq.s32.totalorder %s25, 3
    %p93 = por %p91, %p92
    %p94 = scmp.ne.s32.totalorder %s83, %s84
    %p95 = scmp.eq.s32.totalorder %s25, 0
    %p96 = por %p94, %p95
    %p97 = scmp.ne.s32.totalorder %s83, %s84
    %p98 = scmp.eq.s32.totalorder %s26, 3
    %p99 = por %p97, %p98
    %p101 = scmp.ne.s32.totalorder %s84, %s100
    %p102 = scmp.eq.s32.totalorder %s26, 0
    %p103 = por %p101, %p102
    %s105 = sadd.s32 %s104, 1
    %p108 = scmp.eq.s32.totalorder %s20, 3
    %p109 = scmp.ne.s32.totalorder %s104, %s106
    %p110 = scmp.eq.s32.totalorder %s20, 0
    %p111 = por %p109, %p110
    %p112 = scmp.ne.s32.totalorder %s104, %s106
    %p113 = scmp.eq.s32.totalorder %s25, 3
    %p114 = por %p112, %p113
    %p115 = scmp.ne.s32.totalorder %s106, %s107
    %p116 = scmp.eq.s32.totalorder %s25, 0
    %p117 = por %p115, %p116
    %p118 = scmp.ne.s32.totalorder %s106, %s107
    %p119 = scmp.eq.s32.totalorder %s26, 3
    %p120 = por %p118, %p119
    %p122 = scmp.ne.s32.totalorder %s107, %s121
    %p123 = scmp.eq.s32.totalorder %s26, 0
    %p124 = por %p122, %p123
    %s126 = sadd.s32 %s125, 1
    %p129 = scmp.eq.s32.totalorder %s20, 3
    %p130 = scmp.ne.s32.totalorder %s125, %s127
    %p131 = scmp.eq.s32.totalorder %s20, 0
    %p132 = por %p130, %p131
    %p133 = scmp.ne.s32.totalorder %s125, %s127
    %p134 = scmp.eq.s32.totalorder %s25, 3
    %p135 = por %p133, %p134
    %p136 = scmp.ne.s32.totalorder %s127, %s128
    %p137 = scmp.eq.s32.totalorder %s25, 0
    %p138 = por %p136, %p137
    %p139 = scmp.ne.s32.totalorder %s127, %s128
    %p140 = scmp.eq.s32.totalorder %s26, 3
    %p141 = por %p139, %p140
    %p143 = scmp.ne.s32.totalorder %s128, %s142
    %p144 = scmp.eq.s32.totalorder %s26, 0
    %p145 = por %p143, %p144
    %s147 = sadd.s32 %s146, 1
    %p150 = scmp.eq.s32.totalorder %s20, 3
    %p151 = scmp.ne.s32.totalorder %s146, %s148
    %p152 = scmp.eq.s32.totalorder %s20, 0
    %p153 = por %p151, %p152
    %p154 = scmp.ne.s32.totalorder %s146, %s148
    %p155 = scmp.eq.s32.totalorder %s25, 3
    %p156 = por %p154, %p155
    %p157 = scmp.ne.s32.totalorder %s148, %s149
    %p158 = scmp.eq.s32.totalorder %s25, 0
    %p159 = por %p157, %p158
    %p160 = scmp.ne.s32.totalorder %s148, %s149
    %p161 = scmp.eq.s32.totalorder %s26, 3
    %p162 = por %p160, %p161
    %p164 = scmp.ne.s32.totalorder %s149, %s163
    %p165 = scmp.eq.s32.totalorder %s26, 0
    %p166 = por %p164, %p165
    %s168 = sadd.s32 %s167, 1
    %p171 = scmp.eq.s32.totalorder %s20, 3
    %p172 = scmp.ne.s32.totalorder %s167, %s169
    %p173 = scmp.eq.s32.totalorder %s20, 0
    %p174 = por %p172, %p173
    %p175 = scmp.ne.s32.totalorder %s167, %s169
    %p176 = scmp.eq.s32.totalorder %s25, 3
    %p177 = por %p175, %p176
    %p178 = scmp.ne.s32.totalorder %s169, %s170
    %p179 = scmp.eq.s32.totalorder %s25, 0
    %p180 = por %p178, %p179
    %p181 = scmp.ne.s32.totalorder %s169, %s170
    %p182 = scmp.eq.s32.totalorder %s26, 3
    %p183 = por %p181, %p182
    %p185 = scmp.ne.s32.totalorder %s170, %s184
    %p186 = scmp.eq.s32.totalorder %s26, 0
    %p187 = por %p185, %p186
    %s189 = sadd.s32 %s188, 1
    %p192 = scmp.eq.s32.totalorder %s20, 3
    %p193 = scmp.ne.s32.totalorder %s188, %s190
    %p194 = scmp.eq.s32.totalorder %s20, 0
    %p195 = por %p193, %p194
    %p196 = scmp.ne.s32.totalorder %s188, %s190
    %p197 = scmp.eq.s32.totalorder %s25, 3
    %p198 = por %p196, %p197
    %p199 = scmp.ne.s32.totalorder %s190, %s191
    %p200 = scmp.eq.s32.totalorder %s25, 0
    %p201 = por %p199, %p200
    %p202 = scmp.ne.s32.totalorder %s190, %s191
    %p203 = scmp.eq.s32.totalorder %s26, 3
    %p204 = por %p202, %p203
    %p206 = scmp.ne.s32.totalorder %s191, %s205
    %p207 = scmp.eq.s32.totalorder %s26, 0
    %p208 = por %p206, %p207
    %s210 = sadd.s32 %s209, 1
    %p213 = scmp.eq.s32.totalorder %s20, 3
    %p214 = scmp.ne.s32.totalorder %s209, %s211
    %p215 = scmp.eq.s32.totalorder %s20, 0
    %p216 = por %p214, %p215
    %p217 = scmp.ne.s32.totalorder %s209, %s211
    %p218 = scmp.eq.s32.totalorder %s25, 3
    %p219 = por %p217, %p218
    %p220 = scmp.ne.s32.totalorder %s211, %s212
    %p221 = scmp.eq.s32.totalorder %s25, 0
    %p222 = por %p220, %p221
    %p223 = scmp.ne.s32.totalorder %s211, %s212
    %p224 = scmp.eq.s32.totalorder %s26, 3
    %p225 = por %p223, %p224
    %p227 = scmp.ne.s32.totalorder %s212, %s226
    %p228 = scmp.eq.s32.totalorder %s26, 0
    %p229 = por %p227, %p228
    %s231 = sadd.s32 %s230, 1
    %p234 = scmp.eq.s32.totalorder %s20, 3
    %p235 = scmp.ne.s32.totalorder %s230, %s232
    %p236 = scmp.eq.s32.totalorder %s20, 0
    %p237 = por %p235, %p236
    %p238 = scmp.ne.s32.totalorder %s230, %s232
    %p239 = scmp.eq.s32.totalorder %s25, 3
    %p240 = por %p238, %p239
    %p241 = scmp.ne.s32.totalorder %s232, %s233
    %p242 = scmp.eq.s32.totalorder %s25, 0
    %p243 = por %p241, %p242
    %p244 = scmp.ne.s32.totalorder %s232, %s233
    %p245 = scmp.eq.s32.totalorder %s26, 3
    %p246 = por %p244, %p245
    %p248 = scmp.ne.s32.totalorder %s233, %s247
    %p249 = scmp.eq.s32.totalorder %s26, 0
    %p250 = por %p248, %p249
    %s252 = sadd.s32 %s251, 1
    %p255 = scmp.eq.s32.totalorder %s20, 3
    %p256 = scmp.ne.s32.totalorder %s251, %s253
    %p257 = scmp.eq.s32.totalorder %s20, 0
    %p258 = por %p256, %p257
    %p259 = scmp.ne.s32.totalorder %s251, %s253
    %p260 = scmp.eq.s32.totalorder %s25, 3
    %p261 = por %p259, %p260
    %p262 = scmp.ne.s32.totalorder %s253, %s254
    %p263 = scmp.eq.s32.totalorder %s25, 0
    %p264 = por %p262, %p263
    %p265 = scmp.ne.s32.totalorder %s253, %s254
    %p266 = scmp.eq.s32.totalorder %s26, 3
    %p267 = por %p265, %p266
    %p269 = scmp.ne.s32.totalorder %s254, %s268
    %p270 = scmp.eq.s32.totalorder %s26, 0
    %p271 = por %p269, %p270
    %s273 = sadd.s32 %s272, 1
    %p276 = scmp.eq.s32.totalorder %s20, 3
    %p277 = scmp.ne.s32.totalorder %s272, %s274
    %p278 = scmp.eq.s32.totalorder %s20, 0
    %p279 = por %p277, %p278
    %p280 = scmp.ne.s32.totalorder %s272, %s274
    %p281 = scmp.eq.s32.totalorder %s25, 3
    %p282 = por %p280, %p281
    %p283 = scmp.ne.s32.totalorder %s274, %s275
    %p284 = scmp.eq.s32.totalorder %s25, 0
    %p285 = por %p283, %p284
    %p286 = scmp.ne.s32.totalorder %s274, %s275
    %p287 = scmp.eq.s32.totalorder %s26, 3
    %p288 = por %p286, %p287
    %p290 = scmp.ne.s32.totalorder %s275, %s289
    %p291 = scmp.eq.s32.totalorder %s26, 0
    %p292 = por %p290, %p291
    %s294 = sadd.s32 %s293, 1
    %p297 = scmp.eq.s32.totalorder %s20, 3
    %p298 = scmp.ne.s32.totalorder %s293, %s295
    %p299 = scmp.eq.s32.totalorder %s20, 0
    %p300 = por %p298, %p299
    %p301 = scmp.ne.s32.totalorder %s293, %s295
    %p302 = scmp.eq.s32.totalorder %s25, 3
    %p303 = por %p301, %p302
    %p304 = scmp.ne.s32.totalorder %s295, %s296
    %p305 = scmp.eq.s32.totalorder %s25, 0
    %p306 = por %p304, %p305
    %p307 = scmp.ne.s32.totalorder %s295, %s296
    %p308 = scmp.eq.s32.totalorder %s26, 3
    %p309 = por %p307, %p308
    %p311 = scmp.ne.s32.totalorder %s296, %s310
    %p312 = scmp.eq.s32.totalorder %s26, 0
    %p313 = por %p311, %p312
    %s314 = ssub.s32 %s27, %s39
    %s315 = ssub.s32 %s28, %s35
    %s316 = sor.u32 %s314, %s315
    %p317 = scmp.eq.s32.totalorder %s316, 0
    %s319 = sadd.s32 %s318, 1
    %s320 = scalar_select %p317, %s318, %s319
    %p323 = pneg %p317
    %p324 = scmp.eq.s32.totalorder %s20, 3
    %p325 = por %p323, %p324
    %p326 = scmp.ne.s32.totalorder %s318, %s321
    %p327 = scmp.eq.s32.totalorder %s20, 0
    %p328 = por %p326, %p327
    %p329 = scmp.ne.s32.totalorder %s318, %s321
    %p330 = scmp.eq.s32.totalorder %s25, 3
    %p331 = por %p329, %p330
    %p332 = scmp.ne.s32.totalorder %s321, %s322
    %p333 = scmp.eq.s32.totalorder %s25, 0
    %p334 = por %p332, %p333
    %p335 = scmp.ne.s32.totalorder %s321, %s322
    %p336 = scmp.eq.s32.totalorder %s26, 3
    %p337 = por %p335, %p336
    %p339 = scmp.ne.s32.totalorder %s322, %s338
    %p340 = scmp.eq.s32.totalorder %s26, 0
    %p341 = por %p339, %p340
    %s342 = ssub.s32 %s27, %s39
    %s343 = ssub.s32 %s28, %s35
    %s344 = sor.u32 %s342, %s343
    %p345 = scmp.eq.s32.totalorder %s344, 0
    %s347 = sadd.s32 %s346, 1
    %s348 = scalar_select %p345, %s346, %s347
    %p351 = pneg %p345
    %p352 = scmp.eq.s32.totalorder %s20, 3
    %p353 = por %p351, %p352
    %p354 = scmp.ne.s32.totalorder %s346, %s349
    %p355 = scmp.eq.s32.totalorder %s20, 0
    %p356 = por %p354, %p355
    %p357 = scmp.ne.s32.totalorder %s346, %s349
    %p358 = scmp.eq.s32.totalorder %s25, 3
    %p359 = por %p357, %p358
    %p360 = scmp.ne.s32.totalorder %s349, %s350
    %p361 = scmp.eq.s32.totalorder %s25, 0
    %p362 = por %p360, %p361
    %p363 = scmp.ne.s32.totalorder %s349, %s350
    %p364 = scmp.eq.s32.totalorder %s26, 3
    %p365 = por %p363, %p364
    %p367 = scmp.ne.s32.totalorder %s350, %s366
    %p368 = scmp.eq.s32.totalorder %s26, 0
    %p369 = por %p367, %p368
    %p370 = scmp.le.s32.totalorder 1, %s20
    %p371 = scmp.lt.s32.totalorder %s20, 5
    %p372 = pnand %p370, %p371
    %p373 = pneg %p372
    // Predicated region
    $region9: #{tpu_custom_call.1} parent=5 // pred_check
      _
    $region10: #{tpu_custom_call.1} parent=5 // pred_check_branch
      %375 = sbr.rel (%p372) target = $region12
    $region11: #{tpu_custom_call.1} parent=5 // pred_region
      %s376 = ssub.s32 %s20, 1
      // Predicated region
      $region13: #{tpu_custom_call.1} parent=11 // pred_check
        %p377 = pneg %p117
      $region14: #{tpu_custom_call.1} parent=11 // pred_check_branch
        %379 = sbr.rel (%p377) target = $region16
      $region15: #{tpu_custom_call.1} parent=11 // pred_region
        _
      $region16: #{tpu_custom_call.1} parent=11 // pred_fallthru
        _
      // Predicated region
      $region17: #{tpu_custom_call.1} parent=11 // pred_check
        %p380 = pneg %p138
      $region18: #{tpu_custom_call.1} parent=11 // pred_check_branch
        %382 = sbr.rel (%p380) target = $region20
      $region19: #{tpu_custom_call.1} parent=11 // pred_region
        _
      $region20: #{tpu_custom_call.1} parent=11 // pred_fallthru
        _
      // Predicated region
      $region21: #{tpu_custom_call.1} parent=11 // pred_check
        %p383 = pneg %p159
      $region22: #{tpu_custom_call.1} parent=11 // pred_check_branch
        %385 = sbr.rel (%p383) target = $region24
      $region23: #{tpu_custom_call.1} parent=11 // pred_region
        _
      $region24: #{tpu_custom_call.1} parent=11 // pred_fallthru
        _
      // Predicated region
      $region25: #{tpu_custom_call.1} parent=11 // pred_check
        %p386 = pneg %p180
      $region26: #{tpu_custom_call.1} parent=11 // pred_check_branch
        %388 = sbr.rel (%p386) target = $region28
      $region27: #{tpu_custom_call.1} parent=11 // pred_region
        _
      $region28: #{tpu_custom_call.1} parent=11 // pred_fallthru
        _
      // Predicated region
      $region29: #{tpu_custom_call.1} parent=11 // pred_check
        %p389 = pneg %p201
      $region30: #{tpu_custom_call.1} parent=11 // pred_check_branch
        %391 = sbr.rel (%p389) target = $region32
      $region31: #{tpu_custom_call.1} parent=11 // pred_region
        _
      $region32: #{tpu_custom_call.1} parent=11 // pred_fallthru
        _
      // Predicated region
      $region33: #{tpu_custom_call.1} parent=11 // pred_check
        %p392 = pneg %p222
      $region34: #{tpu_custom_call.1} parent=11 // pred_check_branch
        %394 = sbr.rel (%p392) target = $region36
      $region35: #{tpu_custom_call.1} parent=11 // pred_region
        _
      $region36: #{tpu_custom_call.1} parent=11 // pred_fallthru
        _
      // Predicated region
      $region37: #{tpu_custom_call.1} parent=11 // pred_check
        %p395 = pneg %p243
      $region38: #{tpu_custom_call.1} parent=11 // pred_check_branch
        %397 = sbr.rel (%p395) target = $region40
      $region39: #{tpu_custom_call.1} parent=11 // pred_region
        _
      $region40: #{tpu_custom_call.1} parent=11 // pred_fallthru
        _
      // Predicated region
      $region41: #{tpu_custom_call.1} parent=11 // pred_check
        %p398 = pneg %p264
      $region42: #{tpu_custom_call.1} parent=11 // pred_check_branch
        %400 = sbr.rel (%p398) target = $region44
      $region43: #{tpu_custom_call.1} parent=11 // pred_region
        _
      $region44: #{tpu_custom_call.1} parent=11 // pred_fallthru
        _
      // Predicated region
      $region45: #{tpu_custom_call.1} parent=11 // pred_check
        %p401 = pneg %p285
      $region46: #{tpu_custom_call.1} parent=11 // pred_check_branch
        %403 = sbr.rel (%p401) target = $region48
      $region47: #{tpu_custom_call.1} parent=11 // pred_region
        _
      $region48: #{tpu_custom_call.1} parent=11 // pred_fallthru
        _
      // Predicated region
      $region49: #{tpu_custom_call.1} parent=11 // pred_check
        %p404 = pneg %p306
      $region50: #{tpu_custom_call.1} parent=11 // pred_check_branch
        %406 = sbr.rel (%p404) target = $region52
      $region51: #{tpu_custom_call.1} parent=11 // pred_region
        _
      $region52: #{tpu_custom_call.1} parent=11 // pred_fallthru
        _
    $region12: #{tpu_custom_call.1} parent=5 // pred_fallthru
      _
    %p407 = scmp.lt.s32.totalorder %s20, 4
    // Predicated region
    $region53: #{tpu_custom_call.1} parent=5 // pred_check
      %p408 = pneg %p407
    $region54: #{tpu_custom_call.1} parent=5 // pred_check_branch
      %410 = sbr.rel (%p408) target = $region56
    $region55: #{tpu_custom_call.1} parent=5 // pred_region
      // Predicated region
      $region57: #{tpu_custom_call.1} parent=55 // pred_check
        %p411 = pneg %p54
      $region58: #{tpu_custom_call.1} parent=55 // pred_check_branch
        %413 = sbr.rel (%p411) target = $region60
      $region59: #{tpu_custom_call.1} parent=55 // pred_region
        %s414 = smul.u32 8, %s28
        %p415 = scmp.lt.s32.totalorder %s27, 1
        %s416 = scalar_select %p415, %s27, 1
        %p417 = scmp.lt.s32.totalorder %s414, 15
        %s418 = scalar_select %p417, %s414, 15
        %s419 = smul.addr %s418, 2
        %s420 = smul.addr %s416, 32
        %s421 = sadd.s32 %s419, %s420
        %s422 = smul.addr %s421, 8
        %s423 = scalar_lea.vmem %s0, %s422
        %s424 = smul.u32 8, %s28
      $region60: #{tpu_custom_call.1} parent=55 // pred_fallthru
        _
      // Predicated region
      $region61: #{tpu_custom_call.1} parent=55 // pred_check
        %p425 = pneg %p90
      $region62: #{tpu_custom_call.1} parent=55 // pred_check_branch
        %427 = sbr.rel (%p425) target = $region64
      $region63: #{tpu_custom_call.1} parent=55 // pred_region
        %s428 = sadd.s32 %s28, 1
        %s429 = smul.u32 %s428, 8
        %p430 = scmp.lt.s32.totalorder %s429, 15
        %s431 = scalar_select %p430, %s429, 15
        %p432 = scmp.lt.s32.totalorder %s27, 1
        %s433 = scalar_select %p432, %s27, 1
        %p434 = scmp.lt.s32.totalorder %s431, 15
        %s435 = scalar_select %p434, %s431, 15
        %s436 = smul.addr %s435, 2
        %s437 = smul.addr %s433, 32
        %s438 = sadd.s32 %s436, %s437
        %s439 = smul.addr %s438, 8
        %s440 = scalar_lea.vmem %s1, %s439
        %s441 = sadd.s32 %s28, 1
        %s442 = smul.u32 %s441, 8
        %p443 = scmp.lt.s32.totalorder %s442, 15
        %s444 = scalar_select %p443, %s442, 15
      $region64: #{tpu_custom_call.1} parent=55 // pred_fallthru
        _
    $region56: #{tpu_custom_call.1} parent=5 // pred_fallthru
      _
    %p445 = scmp.le.s32.totalorder 1, %s20
    %p446 = scmp.lt.s32.totalorder %s20, 5
    %p447 = pnand %p445, %p446
    %p448 = pneg %p447
    // Predicated region
    $region65: #{tpu_custom_call.1} parent=5 // pred_check
      _
    $region66: #{tpu_custom_call.1} parent=5 // pred_check_branch
      %450 = sbr.rel (%p447) target = $region68
    $region67: #{tpu_custom_call.1} parent=5 // pred_region
      %s451 = ssub.s32 %s20, 1
      %s452 = smul.u32 8, %s30
      %p453 = scmp.lt.s32.totalorder %s29, 1
      %s454 = scalar_select %p453, %s29, 1
      %p455 = scmp.lt.s32.totalorder %s452, 15
      %s456 = scalar_select %p455, %s452, 15
      %s457 = smul.addr %s456, 2
      %s458 = smul.addr %s454, 32
      %s459 = sadd.s32 %s457, %s458
      %s460 = smul.addr %s459, 8
      %s461 = scalar_lea.vmem %s0, %s460
      %p462 = pneg %p60
      %p463 = pneg %p57
      %s464 = sadd.s32 %s30, 1
      %s465 = smul.u32 %s464, 8
      %p466 = scmp.lt.s32.totalorder %s465, 15
      %s467 = scalar_select %p466, %s465, 15
      %p468 = scmp.lt.s32.totalorder %s29, 1
      %s469 = scalar_select %p468, %s29, 1
      %p470 = scmp.lt.s32.totalorder %s467, 15
      %s471 = scalar_select %p470, %s467, 15
      %s472 = smul.addr %s471, 2
      %s473 = smul.addr %s469, 32
      %s474 = sadd.s32 %s472, %s473
      %s475 = smul.addr %s474, 8
      %s476 = scalar_lea.vmem %s1, %s475
      %p477 = pneg %p96
      %p478 = pneg %p93
      %p479 = pneg %p117
      %p480 = pneg %p114
      %p481 = pneg %p138
      %p482 = pneg %p135
      %p483 = pneg %p159
      %p484 = pneg %p156
      %p485 = pneg %p180
      %p486 = pneg %p177
      %p487 = pneg %p201
      %p488 = pneg %p198
      %p489 = pneg %p222
      %p490 = pneg %p219
      %p491 = pneg %p243
      %p492 = pneg %p240
      %p493 = pneg %p264
      %p494 = pneg %p261
      %p495 = pneg %p285
      %p496 = pneg %p282
      %p497 = pneg %p306
      %p498 = pneg %p303
      %p499 = pneg %p334
      %p500 = pneg %p331
      %s501 = smul.u32 8, %s30
      %p502 = scmp.lt.s32.totalorder %s29, 1
      %s503 = scalar_select %p502, %s29, 1
      %p504 = scmp.lt.s32.totalorder %s501, 15
      %s505 = scalar_select %p504, %s501, 15
      %s506 = smul.addr %s505, 2
      %s507 = smul.addr %s503, 32
      %s508 = sadd.s32 %s506, %s507
      %s509 = smul.addr %s508, 8
      %s510 = scalar_lea.vmem %s12, %s509
      %p511 = pneg %p362
      %p512 = pneg %p359
      %s513 = smul.u32 8, %s30
      %p514 = scmp.lt.s32.totalorder %s29, 1
      %s515 = scalar_select %p514, %s29, 1
      %p516 = scmp.lt.s32.totalorder %s513, 15
      %s517 = scalar_select %p516, %s513, 15
      %s518 = smul.addr %s517, 2
      %s519 = smul.addr %s515, 32
      %s520 = sadd.s32 %s518, %s519
      %s521 = smul.addr %s520, 8
      %s522 = scalar_lea.vmem %s13, %s521
      %s523 = smul.u32 8, %s30
      %p524 = scmp.lt.s32.totalorder %s29, 1
      %s525 = scalar_select %p524, %s29, 1
      %p526 = scmp.lt.s32.totalorder %s523, 15
      %s527 = scalar_select %p526, %s523, 15
      %s528 = smul.addr %s527, 2
      %s529 = smul.addr %s525, 32
      %s530 = sadd.s32 %s528, %s529
      %s531 = smul.addr %s530, 8
      %s532 = scalar_lea.vmem %s0, %s531
      %s533 = smul.u32 8, %s30
      %s534 = sadd.s32 %s30, 1
      %s535 = smul.u32 %s534, 8
      %p536 = scmp.lt.s32.totalorder %s535, 15
      %s537 = scalar_select %p536, %s535, 15
      %p538 = scmp.lt.s32.totalorder %s29, 1
      %s539 = scalar_select %p538, %s29, 1
      %p540 = scmp.lt.s32.totalorder %s537, 15
      %s541 = scalar_select %p540, %s537, 15
      %s542 = smul.addr %s541, 2
      %s543 = smul.addr %s539, 32
      %s544 = sadd.s32 %s542, %s543
      %s545 = smul.addr %s544, 8
      %s546 = scalar_lea.vmem %s1, %s545
      %s547 = sadd.s32 %s30, 1
      %s548 = smul.u32 %s547, 8
      %p549 = scmp.lt.s32.totalorder %s548, 15
      %s550 = scalar_select %p549, %s548, 15
      %s551 = smul.u32 8, %s30
      %p552 = scmp.lt.s32.totalorder %s29, 1
      %s553 = scalar_select %p552, %s29, 1
      %p554 = scmp.lt.s32.totalorder %s551, 15
      %s555 = scalar_select %p554, %s551, 15
      %s556 = smul.addr %s555, 2
      %s557 = smul.addr %s553, 32
      %s558 = sadd.s32 %s556, %s557
      %s559 = smul.addr %s558, 8
      %s560 = scalar_lea.vmem %s12, %s559
      %s561 = smul.u32 8, %s30
      %s562 = smul.u32 8, %s30
      %p563 = scmp.lt.s32.totalorder %s29, 1
      %s564 = scalar_select %p563, %s29, 1
      %p565 = scmp.lt.s32.totalorder %s562, 15
      %s566 = scalar_select %p565, %s562, 15
      %s567 = smul.addr %s566, 2
      %s568 = smul.addr %s564, 32
      %s569 = sadd.s32 %s567, %s568
      %s570 = smul.addr %s569, 8
      %s571 = scalar_lea.vmem %s13, %s570
      %s572 = smul.u32 8, %s30
      %p574 = scmp.eq.s32.totalorder %s30, 0
      // Predicated region
      $region69: #{tpu_custom_call.1} parent=67 // pred_check
        %p575 = pneg %p574
      $region70: #{tpu_custom_call.1} parent=67 // pred_check_branch
        %577 = sbr.rel (%p575) target = $region72
      $region71: #{tpu_custom_call.1} parent=67 // pred_region
        %vm578 = vcmask 8192
        %579 = vst.msk [vmem:[#allocation2 + $0x7] sm:$0x1] %vm578, 0.0
        %580 = vst.msk [vmem:[#allocation2 + $0x27] sm:$0x1] %vm578, 0.0
        %581 = vst.msk [vmem:[#allocation2 + $0x47] sm:$0x1] %vm578, 0.0
        %582 = vst.msk [vmem:[#allocation2 + $0x67] sm:$0x1] %vm578, 0.0
        %583 = vst.msk [vmem:[#allocation2 + $0x87] sm:$0x1] %vm578, 0.0
        %584 = vst.msk [vmem:[#allocation2 + $0xa7] sm:$0x1] %vm578, 0.0
        %585 = vst.msk [vmem:[#allocation2 + $0xc7] sm:$0x1] %vm578, 0.0
        %586 = vst.msk [vmem:[#allocation2 + $0xe7] sm:$0x1] %vm578, 0.0
        %587 = vst.msk [vmem:[#allocation2 + $0x107] sm:$0x1] %vm578, 0.0
        %588 = vst.msk [vmem:[#allocation2 + $0x127] sm:$0x1] %vm578, 0.0
        %589 = vst.msk [vmem:[#allocation2 + $0x18] sm:$0x1] %vm578, 0.0
        %590 = vst.msk [vmem:[#allocation2 + $0x38] sm:$0x1] %vm578, 0.0
        %591 = vst.msk [vmem:[#allocation2 + $0x58] sm:$0x1] %vm578, 0.0
        %592 = vst.msk [vmem:[#allocation2 + $0x78] sm:$0x1] %vm578, 0.0
        %593 = vst.msk [vmem:[#allocation2 + $0x98] sm:$0x1] %vm578, 0.0
        %594 = vst.msk [vmem:[#allocation2 + $0xb8] sm:$0x1] %vm578, 0.0
        %595 = vst.msk [vmem:[#allocation2 + $0xd8] sm:$0x1] %vm578, 0.0
        %596 = vst.msk [vmem:[#allocation2 + $0xf8] sm:$0x1] %vm578, 0.0
        %597 = vst.msk [vmem:[#allocation2 + $0x118] sm:$0x1] %vm578, 0.0
        %598 = vst.msk [vmem:[#allocation2 + $0x138] sm:$0x1] %vm578, 0.0
      $region72: #{tpu_custom_call.1} parent=67 // pred_fallthru
        _
      %v599 = vld [vmem:[%s2] sm:$0x1]
      %v600 = vld [vmem:[%s3] sm:$0x1]
      %v601 = vld [vmem:[%s532] sm:$0xff]
      %v602 = vld [vmem:[%s532 + $0x8] sm:$0xff]
      %v603 = vld [vmem:[%s532 + $0x10] sm:$0xff]
      %v604 = vld [vmem:[%s532 + $0x18] sm:$0xff]
      %v605 = vld [vmem:[%s532 + $0x20] sm:$0xff]
      %v606 = vld [vmem:[%s532 + $0x28] sm:$0xff]
      %v607 = vld [vmem:[%s532 + $0x30] sm:$0xff]
      %v608 = vld [vmem:[%s532 + $0x38] sm:$0xff]
      %v609 = vld [vmem:[%s532 + $0x40] sm:$0xff]
      %v610 = vld [vmem:[%s532 + $0x48] sm:$0xff]
      %v611 = vld [vmem:[%s532 + $0x50] sm:$0xff]
      %v612 = vld [vmem:[%s532 + $0x58] sm:$0xff]
      %v613 = vld [vmem:[%s532 + $0x60] sm:$0xff]
      %v614 = vld [vmem:[%s532 + $0x68] sm:$0xff]
      %v615 = vld [vmem:[%s532 + $0x70] sm:$0xff]
      %v616 = vld [vmem:[%s532 + $0x78] sm:$0xff]
      %v618 = vlaneseq
      %v619 = vshrl.u32 %v618, 7
      %v620 = vsub.s32 0, %v619
      %v621 = vrot.slane %v599, %v620
      %v623 = vmul.f32 %v601, %v621
      %v624 = vmul.f32 %v602, %v621
      %v625 = vmul.f32 %v603, %v621
      %v626 = vmul.f32 %v604, %v621
      %v627 = vmul.f32 %v605, %v621
      %v628 = vmul.f32 %v606, %v621
      %v629 = vmul.f32 %v607, %v621
      %v630 = vmul.f32 %v608, %v621
      %v631 = vmul.f32 %v609, %v621
      %v632 = vmul.f32 %v610, %v621
      %v633 = vmul.f32 %v611, %v621
      %v634 = vmul.f32 %v612, %v621
      %v635 = vmul.f32 %v613, %v621
      %v636 = vmul.f32 %v614, %v621
      %v637 = vmul.f32 %v615, %v621
      %v638 = vmul.f32 %v616, %v621
      %v640 = vlaneseq
      %v641 = vshrl.u32 %v640, 7
      %v642 = vsub.s32 0, %v641
      %v643 = vrot.slane %v600, %v642
      %v645 = vadd.f32 %v623, %v643
      %v646 = vadd.f32 %v624, %v643
      %v647 = vadd.f32 %v625, %v643
      %v648 = vadd.f32 %v626, %v643
      %v649 = vadd.f32 %v627, %v643
      %v650 = vadd.f32 %v628, %v643
      %v651 = vadd.f32 %v629, %v643
      %v652 = vadd.f32 %v630, %v643
      %v653 = vadd.f32 %v631, %v643
      %v654 = vadd.f32 %v632, %v643
      %v655 = vadd.f32 %v633, %v643
      %v656 = vadd.f32 %v634, %v643
      %v657 = vadd.f32 %v635, %v643
      %v658 = vadd.f32 %v636, %v643
      %v659 = vadd.f32 %v637, %v643
      %v660 = vadd.f32 %v638, %v643
      %v661 = vmax.f32 %v645, 0.0
      %v662 = vmax.f32 %v646, 0.0
      %v663 = vmax.f32 %v647, 0.0
      %v664 = vmax.f32 %v648, 0.0
      %v665 = vmax.f32 %v649, 0.0
      %v666 = vmax.f32 %v650, 0.0
      %v667 = vmax.f32 %v651, 0.0
      %v668 = vmax.f32 %v652, 0.0
      %v669 = vmax.f32 %v653, 0.0
      %v670 = vmax.f32 %v654, 0.0
      %v671 = vmax.f32 %v655, 0.0
      %v672 = vmax.f32 %v656, 0.0
      %v673 = vmax.f32 %v657, 0.0
      %v674 = vmax.f32 %v658, 0.0
      %v675 = vmax.f32 %v659, 0.0
      %v676 = vmax.f32 %v660, 0.0
      %vm677 = vcmask 31744
      %678 = vst.msk [vmem:[%s571] sm:$0xff] %vm677, %v661
      %679 = vst.msk [vmem:[%s571 + $0x8] sm:$0xff] %vm677, %v662
      %680 = vst.msk [vmem:[%s571 + $0x10] sm:$0xff] %vm677, %v663
      %681 = vst.msk [vmem:[%s571 + $0x18] sm:$0xff] %vm677, %v664
      %682 = vst.msk [vmem:[%s571 + $0x20] sm:$0xff] %vm677, %v665
      %683 = vst.msk [vmem:[%s571 + $0x28] sm:$0xff] %vm677, %v666
      %684 = vst.msk [vmem:[%s571 + $0x30] sm:$0xff] %vm677, %v667
      %685 = vst.msk [vmem:[%s571 + $0x38] sm:$0xff] %vm677, %v668
      %686 = vst.msk [vmem:[%s571 + $0x40] sm:$0xff] %vm677, %v669
      %687 = vst.msk [vmem:[%s571 + $0x48] sm:$0xff] %vm677, %v670
      %688 = vst.msk [vmem:[%s571 + $0x50] sm:$0xff] %vm677, %v671
      %689 = vst.msk [vmem:[%s571 + $0x58] sm:$0xff] %vm677, %v672
      %690 = vst.msk [vmem:[%s571 + $0x60] sm:$0xff] %vm677, %v673
      %691 = vst.msk [vmem:[%s571 + $0x68] sm:$0xff] %vm677, %v674
      %692 = vst.msk [vmem:[%s571 + $0x70] sm:$0xff] %vm677, %v675
      %693 = vst.msk [vmem:[%s571 + $0x78] sm:$0xff] %vm677, %v676
      %v694 = vld [vmem:[%s546] sm:$0xff]
      %v695 = vld [vmem:[%s546 + $0x8] sm:$0xff]
      %v696 = vmul.f32 %v694, %v621
      %v697 = vmul.f32 %v695, %v621
      %v698 = vadd.f32 %v696, %v643
      %v699 = vadd.f32 %v697, %v643
      %v700 = vmax.f32 %v698, 0.0
      %v701 = vmax.f32 %v699, 0.0
      %v702 = vpack.c.bf16 %v662, %v661
      %v703 = vpack.c.bf16 %v664, %v663
      %v704 = vpack.c.bf16 %v666, %v665
      %v705 = vpack.c.bf16 %v668, %v667
      %v706 = vpack.c.bf16 %v670, %v669
      %v707 = vpack.c.bf16 %v672, %v671
      %v708 = vpack.c.bf16 %v674, %v673
      %v709 = vpack.c.bf16 %v676, %v675
      %v710 = vpack.c.bf16 %v701, %v700
      %v711 = vld [vmem:[%s5] sm:$0x3]
      %v713 = vsel %vm677, %v702, 0
      %v716 = vsel %vm677, %v703, 0
      %v719 = vsel %vm677, %v704, 0
      %v722 = vsel %vm677, %v705, 0
      %v725 = vsel %vm677, %v706, 0
      %v728 = vsel %vm677, %v707, 0
      %v731 = vsel %vm677, %v708, 0
      %v734 = vsel %vm677, %v709, 0
      %v737 = vsel %vm677, %v710, 0
      %vm739 = vcmask 1041408
      %v741 = vsel %vm739, %v711, 0
      %743 = vmatprep.subr.bf16.mxu0 0
      %744 = vmatpush1.bf16.msra.mxu0 %v741
      %745 = vmatprep.subr.bf16.mxu0 0
      %746 = vmatpush1.bf16.msra.mxu0 0
      %747 = vmatprep.subr.bf16.mxu0 0
      %748 = vmatpush1.bf16.msra.mxu0 0
      %749 = vmatprep.subr.bf16.mxu0 0
      %750 = vmatpush1.bf16.msra.mxu0 0
      %751 = vmatprep.subr.bf16.mxu0 0
      %752 = vmatpush1.bf16.msra.mxu0 0
      %753 = vmatprep.subr.bf16.mxu0 0
      %754 = vmatpush1.bf16.msra.mxu0 0
      %755 = vmatprep.subr.bf16.mxu0 0
      %756 = vmatpush1.bf16.msra.mxu0 0
      %757 = vmatprep.subr.bf16.mxu0 0
      %758 = vmatpush1.bf16.msra.mxu0 0
      %759 = vmatprep.subr.bf16.mxu0 0
      %760 = vmatpush1.bf16.msra.mxu0 0
      %761 = vmatprep.subr.bf16.mxu0 0
      %762 = vmatpush1.bf16.msra.mxu0 0
      %763 = vmatprep.subr.bf16.mxu0 0
      %764 = vmatpush1.bf16.msra.mxu0 0
      %765 = vmatprep.subr.bf16.mxu0 0
      %766 = vmatpush1.bf16.msra.mxu0 0
      %767 = vmatprep.subr.bf16.mxu0 0
      %768 = vmatpush1.bf16.msra.mxu0 0
      %769 = vmatprep.subr.bf16.mxu0 0
      %770 = vmatpush1.bf16.msra.mxu0 0
      %771 = vmatprep.subr.bf16.mxu0 0
      %772 = vmatpush1.bf16.msra.mxu0 0
      %773 = vmatprep.subr.bf16.mxu0 0
      %774 = vmatpush1.bf16.msra.mxu0 0
      %775 = vmatprep.mubr.bf16.mxu0 0
      %776 = vmatmul.mubr.bf16.gmra.mrb[0].mxu0 %v713
      %v777 = vpop.f32.mrb[0].mxu0
      %v778 = vadd.f32 0.0, %v777
      %v779 = vpop.f32.mrb[0].mxu0
      %v780 = vpop.f32.mrb[0].mxu0
      %v781 = vadd.f32 0.0, %v780
      %v782 = vpop.f32.mrb[0].mxu0
      %783 = vmatprep.mubr.bf16.mxu0 0
      %784 = vmatmul.mubr.bf16.gmra.mrb[0].mxu0 %v716
      %v785 = vpop.f32.mrb[0].mxu0
      %v786 = vadd.f32 0.0, %v785
      %v787 = vpop.f32.mrb[0].mxu0
      %v788 = vpop.f32.mrb[0].mxu0
      %v789 = vadd.f32 0.0, %v788
      %v790 = vpop.f32.mrb[0].mxu0
      %791 = vmatprep.mubr.bf16.mxu0 0
      %792 = vmatmul.mubr.bf16.gmra.mrb[0].mxu0 %v719
      %v793 = vpop.f32.mrb[0].mxu0
      %v794 = vadd.f32 0.0, %v793
      %v795 = vpop.f32.mrb[0].mxu0
      %v796 = vpop.f32.mrb[0].mxu0
      %v797 = vadd.f32 0.0, %v796
      %v798 = vpop.f32.mrb[0].mxu0
      %799 = vmatprep.mubr.bf16.mxu0 0
      %800 = vmatmul.mubr.bf16.gmra.mrb[0].mxu0 %v722
      %v801 = vpop.f32.mrb[0].mxu0
      %v802 = vadd.f32 0.0, %v801
      %v803 = vpop.f32.mrb[0].mxu0
      %v804 = vpop.f32.mrb[0].mxu0
      %v805 = vadd.f32 0.0, %v804
      %v806 = vpop.f32.mrb[0].mxu0
      %807 = vmatprep.mubr.bf16.mxu0 0
      %808 = vmatmul.mubr.bf16.gmra.mrb[0].mxu0 %v725
      %v809 = vpop.f32.mrb[0].mxu0
      %v810 = vadd.f32 0.0, %v809
      %v811 = vpop.f32.mrb[0].mxu0
      %v812 = vpop.f32.mrb[0].mxu0
      %v813 = vadd.f32 0.0, %v812
      %v814 = vpop.f32.mrb[0].mxu0
      %815 = vmatprep.mubr.bf16.mxu0 0
      %816 = vmatmul.mubr.bf16.gmra.mrb[0].mxu0 %v728
      %v817 = vpop.f32.mrb[0].mxu0
      %v818 = vadd.f32 0.0, %v817
      %v819 = vpop.f32.mrb[0].mxu0
      %v820 = vpop.f32.mrb[0].mxu0
      %v821 = vadd.f32 0.0, %v820
      %v822 = vpop.f32.mrb[0].mxu0
      %823 = vmatprep.mubr.bf16.mxu0 0
      %824 = vmatmul.mubr.bf16.gmra.mrb[0].mxu0 %v731
      %v825 = vpop.f32.mrb[0].mxu0
      %v826 = vadd.f32 0.0, %v825
      %v827 = vpop.f32.mrb[0].mxu0
      %v828 = vpop.f32.mrb[0].mxu0
      %v829 = vadd.f32 0.0, %v828
      %v830 = vpop.f32.mrb[0].mxu0
      %831 = vmatprep.mubr.bf16.mxu0 0
      %832 = vmatmul.mubr.bf16.gmra.mrb[0].mxu0 %v734
      %v833 = vpop.f32.mrb[0].mxu0
      %v834 = vadd.f32 0.0, %v833
      %v835 = vpop.f32.mrb[0].mxu0
      %v836 = vpop.f32.mrb[0].mxu0
      %v837 = vadd.f32 0.0, %v836
      %v838 = vpop.f32.mrb[0].mxu0
      %839 = vmatprep.mubr.bf16.mxu0 0
      %840 = vmatmul.mubr.bf16.gmra.mrb[0].mxu0 %v737
      %v841 = vpop.f32.mrb[0].mxu0
      %v842 = vadd.f32 0.0, %v841
      %v843 = vpop.f32.mrb[0].mxu0
      %v844 = vpop.f32.mrb[0].mxu0
      %v845 = vadd.f32 0.0, %v844
      %v846 = vpop.f32.mrb[0].mxu0
      %847 = vdwg.mxu0
      %v848 = vld [vmem:[%s6] sm:$0x1]
      %v850 = vlaneseq
      %v851 = vshrl.u32 %v850, 7
      %v852 = vsub.s32 0, %v851
      %v853 = vrot.slane %v848, %v852
      %v855 = vmul.f32 %v778, %v853
      %v856 = vmul.f32 %v781, %v853
      %v857 = vmul.f32 %v786, %v853
      %v858 = vmul.f32 %v789, %v853
      %v859 = vmul.f32 %v794, %v853
      %v860 = vmul.f32 %v797, %v853
      %v861 = vmul.f32 %v802, %v853
      %v862 = vmul.f32 %v805, %v853
      %v863 = vmul.f32 %v810, %v853
      %v864 = vmul.f32 %v813, %v853
      %v865 = vmul.f32 %v818, %v853
      %v866 = vmul.f32 %v821, %v853
      %v867 = vmul.f32 %v826, %v853
      %v868 = vmul.f32 %v829, %v853
      %v869 = vmul.f32 %v834, %v853
      %v870 = vmul.f32 %v837, %v853
      %v871 = vmul.f32 %v842, %v853
      %v872 = vmul.f32 %v845, %v853
      %v873 = vld [vmem:[%s7] sm:$0x1]
      %v875 = vlaneseq
      %v876 = vshrl.u32 %v875, 7
      %v877 = vsub.s32 0, %v876
      %v878 = vrot.slane %v873, %v877
      %v880 = vadd.f32 %v855, %v878
      %v881 = vadd.f32 %v856, %v878
      %v882 = vadd.f32 %v857, %v878
      %v883 = vadd.f32 %v858, %v878
      %v884 = vadd.f32 %v859, %v878
      %v885 = vadd.f32 %v860, %v878
      %v886 = vadd.f32 %v861, %v878
      %v887 = vadd.f32 %v862, %v878
      %v888 = vadd.f32 %v863, %v878
      %v889 = vadd.f32 %v864, %v878
      %v890 = vadd.f32 %v865, %v878
      %v891 = vadd.f32 %v866, %v878
      %v892 = vadd.f32 %v867, %v878
      %v893 = vadd.f32 %v868, %v878
      %v894 = vadd.f32 %v869, %v878
      %v895 = vadd.f32 %v870, %v878
      %v896 = vadd.f32 %v871, %v878
      %v897 = vadd.f32 %v872, %v878
      %v898 = vmax.f32 %v880, 0.0
      %v899 = vmax.f32 %v881, 0.0
      %v900 = vmax.f32 %v882, 0.0
      %v901 = vmax.f32 %v883, 0.0
      %v902 = vmax.f32 %v884, 0.0
      %v903 = vmax.f32 %v885, 0.0
      %v904 = vmax.f32 %v886, 0.0
      %v905 = vmax.f32 %v887, 0.0
      %v906 = vmax.f32 %v888, 0.0
      %v907 = vmax.f32 %v889, 0.0
      %v908 = vmax.f32 %v890, 0.0
      %v909 = vmax.f32 %v891, 0.0
      %v910 = vmax.f32 %v892, 0.0
      %v911 = vmax.f32 %v893, 0.0
      %v912 = vmax.f32 %v894, 0.0
      %v913 = vmax.f32 %v895, 0.0
      %v914 = vmax.f32 %v896, 0.0
      %v915 = vmax.f32 %v897, 0.0
      %v916 = vpack.c.bf16 %v899, %v898
      %v917 = vpack.c.bf16 %v901, %v900
      %v918 = vpack.c.bf16 %v903, %v902
      %v919 = vpack.c.bf16 %v905, %v904
      %v920 = vpack.c.bf16 %v907, %v906
      %v921 = vpack.c.bf16 %v909, %v908
      %v922 = vpack.c.bf16 %v911, %v910
      %v923 = vpack.c.bf16 %v913, %v912
      %v924 = vpack.c.bf16 %v915, %v914
      // Predicated region
      $region73: #{tpu_custom_call.1} parent=67 // pred_check
        %p925 = pneg %p574
      $region74: #{tpu_custom_call.1} parent=67 // pred_check_branch
        %927 = sbr.rel (%p925) target = $region76
      $region75: #{tpu_custom_call.1} parent=67 // pred_region
        %vm928 = vcmask 15360
        %929 = vst.msk [vmem:[#allocation2 + $0x8] sm:$0xff] %vm928, 0.0
        %930 = vst.msk [vmem:[#allocation2 + $0x10] sm:$0xff] %vm928, 0.0
      $region76: #{tpu_custom_call.1} parent=67 // pred_fallthru
        _
      %p931 = scmp.gt.s32.totalorder %s30, 0
      // Predicated region
      $region77: #{tpu_custom_call.1} parent=67 // pred_check
        %p932 = pneg %p931
      $region78: #{tpu_custom_call.1} parent=67 // pred_check_branch
        %934 = sbr.rel (%p932) target = $region80
      $region79: #{tpu_custom_call.1} parent=67 // pred_region
        %v935 = vld [vmem:[#allocation3] sm:$0xff]
        %v936 = vld [vmem:[#allocation3 + $0x8] sm:$0xff]
        %vm937 = vcmask 15360
        %938 = vst.msk [vmem:[#allocation2 + $0x8] sm:$0xff] %vm937, %v935
        %939 = vst.msk [vmem:[#allocation2 + $0x10] sm:$0xff] %vm937, %v936
      $region80: #{tpu_custom_call.1} parent=67 // pred_fallthru
        _
      %v940 = vunpack.c.l.bf16 %v916
      %v941 = vunpack.c.h.bf16 %v916
      %v942 = vunpack.c.l.bf16 %v917
      %v943 = vunpack.c.h.bf16 %v917
      %v944 = vunpack.c.l.bf16 %v918
      %v945 = vunpack.c.h.bf16 %v918
      %v946 = vunpack.c.l.bf16 %v919
      %v947 = vunpack.c.h.bf16 %v919
      %v948 = vunpack.c.l.bf16 %v920
      %v949 = vunpack.c.h.bf16 %v920
      %v950 = vunpack.c.l.bf16 %v921
      %v951 = vunpack.c.h.bf16 %v921
      %v952 = vunpack.c.l.bf16 %v922
      %v953 = vunpack.c.h.bf16 %v922
      %v954 = vunpack.c.l.bf16 %v923
      %v955 = vunpack.c.h.bf16 %v923
      %s956 = scalar_lea.vmem [#allocation2], 32
      %vm957 = vcmask 15360
      %958 = vst.msk [vmem:[%s956 + $0x8] sm:$0xff] %vm957, %v940
      %959 = vst.msk [vmem:[%s956 + $0x10] sm:$0xff] %vm957, %v941
      %960 = vst.msk [vmem:[%s956 + $0x28] sm:$0xff] %vm957, %v942
      %961 = vst.msk [vmem:[%s956 + $0x30] sm:$0xff] %vm957, %v943
      %962 = vst.msk [vmem:[%s956 + $0x48] sm:$0xff] %vm957, %v944
      %963 = vst.msk [vmem:[%s956 + $0x50] sm:$0xff] %vm957, %v945
      %964 = vst.msk [vmem:[%s956 + $0x68] sm:$0xff] %vm957, %v946
      %965 = vst.msk [vmem:[%s956 + $0x70] sm:$0xff] %vm957, %v947
      %966 = vst.msk [vmem:[%s956 + $0x88] sm:$0xff] %vm957, %v948
      %967 = vst.msk [vmem:[%s956 + $0x90] sm:$0xff] %vm957, %v949
      %968 = vst.msk [vmem:[%s956 + $0xa8] sm:$0xff] %vm957, %v950
      %969 = vst.msk [vmem:[%s956 + $0xb0] sm:$0xff] %vm957, %v951
      %970 = vst.msk [vmem:[%s956 + $0xc8] sm:$0xff] %vm957, %v952
      %971 = vst.msk [vmem:[%s956 + $0xd0] sm:$0xff] %vm957, %v953
      %972 = vst.msk [vmem:[%s956 + $0xe8] sm:$0xff] %vm957, %v954
      %973 = vst.msk [vmem:[%s956 + $0xf0] sm:$0xff] %vm957, %v955
      %p974 = scmp.eq.s32.totalorder %s30, 1
      // Predicated region
      $region81: #{tpu_custom_call.1} parent=67 // pred_check
        %p975 = pneg %p974
      $region82: #{tpu_custom_call.1} parent=67 // pred_check_branch
        %977 = sbr.rel (%p975) target = $region84
      $region83: #{tpu_custom_call.1} parent=67 // pred_region
        %s978 = scalar_lea.vmem [#allocation2], 288
        %979 = vst.msk [vmem:[%s978 + $0x8] sm:$0xff] %vm957, 0.0
        %980 = vst.msk [vmem:[%s978 + $0x10] sm:$0xff] %vm957, 0.0
      $region84: #{tpu_custom_call.1} parent=67 // pred_fallthru
        _
      %p981 = scmp.lt.s32.totalorder %s30, 1
      // Predicated region
      $region85: #{tpu_custom_call.1} parent=67 // pred_check
        %p982 = pneg %p981
      $region86: #{tpu_custom_call.1} parent=67 // pred_check_branch
        %984 = sbr.rel (%p982) target = $region88
      $region87: #{tpu_custom_call.1} parent=67 // pred_region
        %v985 = vunpack.c.l.bf16 %v924
        %v986 = vunpack.c.h.bf16 %v924
        %s987 = scalar_lea.vmem [#allocation2], 288
        %988 = vst.msk [vmem:[%s987 + $0x8] sm:$0xff] %vm957, %v985
        %989 = vst.msk [vmem:[%s987 + $0x10] sm:$0xff] %vm957, %v986
      $region88: #{tpu_custom_call.1} parent=67 // pred_fallthru
        _
      %990 = vst.msk [vmem:[#allocation3] sm:$0xff] %vm957, %v954
      %991 = vst.msk [vmem:[#allocation3 + $0x8] sm:$0xff] %vm957, %v955
      %v992 = vld [vmem:[#allocation2 + $0x7] sm:$0xff]
      %v993 = vld [vmem:[#allocation2 + $0xf] sm:$0xff]
      %v994 = vld [vmem:[#allocation2 + $0x27] sm:$0xff]
      %v995 = vld [vmem:[#allocation2 + $0x2f] sm:$0xff]
      %v996 = vld [vmem:[#allocation2 + $0x47] sm:$0xff]
      %v997 = vld [vmem:[#allocation2 + $0x4f] sm:$0xff]
      %v998 = vld [vmem:[#allocation2 + $0x67] sm:$0xff]
      %v999 = vld [vmem:[#allocation2 + $0x6f] sm:$0xff]
      %v1000 = vld [vmem:[#allocation2 + $0x87] sm:$0xff]
      %v1001 = vld [vmem:[#allocation2 + $0x8f] sm:$0xff]
      %v1002 = vld [vmem:[#allocation2 + $0xa7] sm:$0xff]
      %v1003 = vld [vmem:[#allocation2 + $0xaf] sm:$0xff]
      %v1004 = vld [vmem:[#allocation2 + $0xc7] sm:$0xff]
      %v1005 = vld [vmem:[#allocation2 + $0xcf] sm:$0xff]
      %v1006 = vld [vmem:[#allocation2 + $0xe7] sm:$0xff]
      %v1007 = vld [vmem:[#allocation2 + $0xef] sm:$0xff]
      %v1008 = vpack.c.bf16 %v993, %v992
      %v1009 = vpack.c.bf16 %v995, %v994
      %v1010 = vpack.c.bf16 %v997, %v996
      %v1011 = vpack.c.bf16 %v999, %v998
      %v1012 = vpack.c.bf16 %v1001, %v1000
      %v1013 = vpack.c.bf16 %v1003, %v1002
      %v1014 = vpack.c.bf16 %v1005, %v1004
      %v1015 = vpack.c.bf16 %v1007, %v1006
      %v1016 = vld [vmem:[#allocation2 + $0x8] sm:$0xff]
      %v1017 = vld [vmem:[#allocation2 + $0x10] sm:$0xff]
      %v1018 = vld [vmem:[#allocation2 + $0x28] sm:$0xff]
      %v1019 = vld [vmem:[#allocation2 + $0x30] sm:$0xff]
      %v1020 = vld [vmem:[#allocation2 + $0x48] sm:$0xff]
      %v1021 = vld [vmem:[#allocation2 + $0x50] sm:$0xff]
      %v1022 = vld [vmem:[#allocation2 + $0x68] sm:$0xff]
      %v1023 = vld [vmem:[#allocation2 + $0x70] sm:$0xff]
      %v1024 = vld [vmem:[#allocation2 + $0x88] sm:$0xff]
      %v1025 = vld [vmem:[#allocation2 + $0x90] sm:$0xff]
      %v1026 = vld [vmem:[#allocation2 + $0xa8] sm:$0xff]
      %v1027 = vld [vmem:[#allocation2 + $0xb0] sm:$0xff]
      %v1028 = vld [vmem:[#allocation2 + $0xc8] sm:$0xff]
      %v1029 = vld [vmem:[#allocation2 + $0xd0] sm:$0xff]
      %v1030 = vld [vmem:[#allocation2 + $0xe8] sm:$0xff]
      %v1031 = vld [vmem:[#allocation2 + $0xf0] sm:$0xff]
      %v1032 = vpack.c.bf16 %v1017, %v1016
      %v1033 = vpack.c.bf16 %v1019, %v1018
      %v1034 = vpack.c.bf16 %v1021, %v1020
      %v1035 = vpack.c.bf16 %v1023, %v1022
      %v1036 = vpack.c.bf16 %v1025, %v1024
      %v1037 = vpack.c.bf16 %v1027, %v1026
      %v1038 = vpack.c.bf16 %v1029, %v1028
      %v1039 = vpack.c.bf16 %v1031, %v1030
      %v1040 = vld [vmem:[#allocation2 + $0x9] sm:$0xff]
      %v1041 = vld [vmem:[#allocation2 + $0x11] sm:$0xff]
      %v1042 = vld [vmem:[#allocation2 + $0x29] sm:$0xff]
      %v1043 = vld [vmem:[#allocation2 + $0x31] sm:$0xff]
      %v1044 = vld [vmem:[#allocation2 + $0x49] sm:$0xff]
      %v1045 = vld [vmem:[#allocation2 + $0x51] sm:$0xff]
      %v1046 = vld [vmem:[#allocation2 + $0x69] sm:$0xff]
      %v1047 = vld [vmem:[#allocation2 + $0x71] sm:$0xff]
      %v1048 = vld [vmem:[#allocation2 + $0x89] sm:$0xff]
      %v1049 = vld [vmem:[#allocation2 + $0x91] sm:$0xff]
      %v1050 = vld [vmem:[#allocation2 + $0xa9] sm:$0xff]
      %v1051 = vld [vmem:[#allocation2 + $0xb1] sm:$0xff]
      %v1052 = vld [vmem:[#allocation2 + $0xc9] sm:$0xff]
      %v1053 = vld [vmem:[#allocation2 + $0xd1] sm:$0xff]
      %v1054 = vld [vmem:[#allocation2 + $0xe9] sm:$0xff]
      %v1055 = vld [vmem:[#allocation2 + $0xf1] sm:$0xff]
      %v1056 = vpack.c.bf16 %v1041, %v1040
      %v1057 = vpack.c.bf16 %v1043, %v1042
      %v1058 = vpack.c.bf16 %v1045, %v1044
      %v1059 = vpack.c.bf16 %v1047, %v1046
      %v1060 = vpack.c.bf16 %v1049, %v1048
      %v1061 = vpack.c.bf16 %v1051, %v1050
      %v1062 = vpack.c.bf16 %v1053, %v1052
      %v1063 = vpack.c.bf16 %v1055, %v1054
      %v1064 = vld [vmem:[%s956 + $0x7] sm:$0xff]
      %v1065 = vld [vmem:[%s956 + $0xf] sm:$0xff]
      %v1066 = vld [vmem:[%s956 + $0x27] sm:$0xff]
      %v1067 = vld [vmem:[%s956 + $0x2f] sm:$0xff]
      %v1068 = vld [vmem:[%s956 + $0x47] sm:$0xff]
      %v1069 = vld [vmem:[%s956 + $0x4f] sm:$0xff]
      %v1070 = vld [vmem:[%s956 + $0x67] sm:$0xff]
      %v1071 = vld [vmem:[%s956 + $0x6f] sm:$0xff]
      %v1072 = vld [vmem:[%s956 + $0x87] sm:$0xff]
      %v1073 = vld [vmem:[%s956 + $0x8f] sm:$0xff]
      %v1074 = vld [vmem:[%s956 + $0xa7] sm:$0xff]
      %v1075 = vld [vmem:[%s956 + $0xaf] sm:$0xff]
      %v1076 = vld [vmem:[%s956 + $0xc7] sm:$0xff]
      %v1077 = vld [vmem:[%s956 + $0xcf] sm:$0xff]
      %v1078 = vld [vmem:[%s956 + $0xe7] sm:$0xff]
      %v1079 = vld [vmem:[%s956 + $0xef] sm:$0xff]
      %v1080 = vpack.c.bf16 %v1065, %v1064
      %v1081 = vpack.c.bf16 %v1067, %v1066
      %v1082 = vpack.c.bf16 %v1069, %v1068
      %v1083 = vpack.c.bf16 %v1071, %v1070
      %v1084 = vpack.c.bf16 %v1073, %v1072
      %v1085 = vpack.c.bf16 %v1075, %v1074
      %v1086 = vpack.c.bf16 %v1077, %v1076
      %v1087 = vpack.c.bf16 %v1079, %v1078
      %v1088 = vld [vmem:[%s956 + $0x8] sm:$0xff]
      %v1089 = vld [vmem:[%s956 + $0x10] sm:$0xff]
      %v1090 = vld [vmem:[%s956 + $0x28] sm:$0xff]
      %v1091 = vld [vmem:[%s956 + $0x30] sm:$0xff]
      %v1092 = vld [vmem:[%s956 + $0x48] sm:$0xff]
      %v1093 = vld [vmem:[%s956 + $0x50] sm:$0xff]
      %v1094 = vld [vmem:[%s956 + $0x68] sm:$0xff]
      %v1095 = vld [vmem:[%s956 + $0x70] sm:$0xff]
      %v1096 = vld [vmem:[%s956 + $0x88] sm:$0xff]
      %v1097 = vld [vmem:[%s956 + $0x90] sm:$0xff]
      %v1098 = vld [vmem:[%s956 + $0xa8] sm:$0xff]
      %v1099 = vld [vmem:[%s956 + $0xb0] sm:$0xff]
      %v1100 = vld [vmem:[%s956 + $0xc8] sm:$0xff]
      %v1101 = vld [vmem:[%s956 + $0xd0] sm:$0xff]
      %v1102 = vld [vmem:[%s956 + $0xe8] sm:$0xff]
      %v1103 = vld [vmem:[%s956 + $0xf0] sm:$0xff]
      %v1104 = vpack.c.bf16 %v1089, %v1088
      %v1105 = vpack.c.bf16 %v1091, %v1090
      %v1106 = vpack.c.bf16 %v1093, %v1092
      %v1107 = vpack.c.bf16 %v1095, %v1094
      %v1108 = vpack.c.bf16 %v1097, %v1096
      %v1109 = vpack.c.bf16 %v1099, %v1098
      %v1110 = vpack.c.bf16 %v1101, %v1100
      %v1111 = vpack.c.bf16 %v1103, %v1102
      %v1112 = vld [vmem:[%s956 + $0x9] sm:$0xff]
      %v1113 = vld [vmem:[%s956 + $0x11] sm:$0xff]
      %v1114 = vld [vmem:[%s956 + $0x29] sm:$0xff]
      %v1115 = vld [vmem:[%s956 + $0x31] sm:$0xff]
      %v1116 = vld [vmem:[%s956 + $0x49] sm:$0xff]
      %v1117 = vld [vmem:[%s956 + $0x51] sm:$0xff]
      %v1118 = vld [vmem:[%s956 + $0x69] sm:$0xff]
      %v1119 = vld [vmem:[%s956 + $0x71] sm:$0xff]
      %v1120 = vld [vmem:[%s956 + $0x89] sm:$0xff]
      %v1121 = vld [vmem:[%s956 + $0x91] sm:$0xff]
      %v1122 = vld [vmem:[%s956 + $0xa9] sm:$0xff]
      %v1123 = vld [vmem:[%s956 + $0xb1] sm:$0xff]
      %v1124 = vld [vmem:[%s956 + $0xc9] sm:$0xff]
      %v1125 = vld [vmem:[%s956 + $0xd1] sm:$0xff]
      %v1126 = vld [vmem:[%s956 + $0xe9] sm:$0xff]
      %v1127 = vld [vmem:[%s956 + $0xf1] sm:$0xff]
      %v1128 = vpack.c.bf16 %v1113, %v1112
      %v1129 = vpack.c.bf16 %v1115, %v1114
      %v1130 = vpack.c.bf16 %v1117, %v1116
      %v1131 = vpack.c.bf16 %v1119, %v1118
      %v1132 = vpack.c.bf16 %v1121, %v1120
      %v1133 = vpack.c.bf16 %v1123, %v1122
      %v1134 = vpack.c.bf16 %v1125, %v1124
      %v1135 = vpack.c.bf16 %v1127, %v1126
      %s1136 = scalar_lea.vmem [#allocation2], 64
      %v1137 = vld [vmem:[%s1136 + $0x7] sm:$0xff]
      %v1138 = vld [vmem:[%s1136 + $0xf] sm:$0xff]
      %v1139 = vld [vmem:[%s1136 + $0x27] sm:$0xff]
      %v1140 = vld [vmem:[%s1136 + $0x2f] sm:$0xff]
      %v1141 = vld [vmem:[%s1136 + $0x47] sm:$0xff]
      %v1142 = vld [vmem:[%s1136 + $0x4f] sm:$0xff]
      %v1143 = vld [vmem:[%s1136 + $0x67] sm:$0xff]
      %v1144 = vld [vmem:[%s1136 + $0x6f] sm:$0xff]
      %v1145 = vld [vmem:[%s1136 + $0x87] sm:$0xff]
      %v1146 = vld [vmem:[%s1136 + $0x8f] sm:$0xff]
      %v1147 = vld [vmem:[%s1136 + $0xa7] sm:$0xff]
      %v1148 = vld [vmem:[%s1136 + $0xaf] sm:$0xff]
      %v1149 = vld [vmem:[%s1136 + $0xc7] sm:$0xff]
      %v1150 = vld [vmem:[%s1136 + $0xcf] sm:$0xff]
      %v1151 = vld [vmem:[%s1136 + $0xe7] sm:$0xff]
      %v1152 = vld [vmem:[%s1136 + $0xef] sm:$0xff]
      %v1153 = vpack.c.bf16 %v1138, %v1137
      %v1154 = vpack.c.bf16 %v1140, %v1139
      %v1155 = vpack.c.bf16 %v1142, %v1141
      %v1156 = vpack.c.bf16 %v1144, %v1143
      %v1157 = vpack.c.bf16 %v1146, %v1145
      %v1158 = vpack.c.bf16 %v1148, %v1147
      %v1159 = vpack.c.bf16 %v1150, %v1149
      %v1160 = vpack.c.bf16 %v1152, %v1151
      %v1161 = vld [vmem:[%s1136 + $0x8] sm:$0xff]
      %v1162 = vld [vmem:[%s1136 + $0x10] sm:$0xff]
      %v1163 = vld [vmem:[%s1136 + $0x28] sm:$0xff]
      %v1164 = vld [vmem:[%s1136 + $0x30] sm:$0xff]
      %v1165 = vld [vmem:[%s1136 + $0x48] sm:$0xff]
      %v1166 = vld [vmem:[%s1136 + $0x50] sm:$0xff]
      %v1167 = vld [vmem:[%s1136 + $0x68] sm:$0xff]
      %v1168 = vld [vmem:[%s1136 + $0x70] sm:$0xff]
      %v1169 = vld [vmem:[%s1136 + $0x88] sm:$0xff]
      %v1170 = vld [vmem:[%s1136 + $0x90] sm:$0xff]
      %v1171 = vld [vmem:[%s1136 + $0xa8] sm:$0xff]
      %v1172 = vld [vmem:[%s1136 + $0xb0] sm:$0xff]
      %v1173 = vld [vmem:[%s1136 + $0xc8] sm:$0xff]
      %v1174 = vld [vmem:[%s1136 + $0xd0] sm:$0xff]
      %v1175 = vld [vmem:[%s1136 + $0xe8] sm:$0xff]
      %v1176 = vld [vmem:[%s1136 + $0xf0] sm:$0xff]
      %v1177 = vpack.c.bf16 %v1162, %v1161
      %v1178 = vpack.c.bf16 %v1164, %v1163
      %v1179 = vpack.c.bf16 %v1166, %v1165
      %v1180 = vpack.c.bf16 %v1168, %v1167
      %v1181 = vpack.c.bf16 %v1170, %v1169
      %v1182 = vpack.c.bf16 %v1172, %v1171
      %v1183 = vpack.c.bf16 %v1174, %v1173
      %v1184 = vpack.c.bf16 %v1176, %v1175
      %v1185 = vld [vmem:[%s1136 + $0x9] sm:$0xff]
      %v1186 = vld [vmem:[%s1136 + $0x11] sm:$0xff]
      %v1187 = vld [vmem:[%s1136 + $0x29] sm:$0xff]
      %v1188 = vld [vmem:[%s1136 + $0x31] sm:$0xff]
      %v1189 = vld [vmem:[%s1136 + $0x49] sm:$0xff]
      %v1190 = vld [vmem:[%s1136 + $0x51] sm:$0xff]
      %v1191 = vld [vmem:[%s1136 + $0x69] sm:$0xff]
      %v1192 = vld [vmem:[%s1136 + $0x71] sm:$0xff]
      %v1193 = vld [vmem:[%s1136 + $0x89] sm:$0xff]
      %v1194 = vld [vmem:[%s1136 + $0x91] sm:$0xff]
      %v1195 = vld [vmem:[%s1136 + $0xa9] sm:$0xff]
      %v1196 = vld [vmem:[%s1136 + $0xb1] sm:$0xff]
      %v1197 = vld [vmem:[%s1136 + $0xc9] sm:$0xff]
      %v1198 = vld [vmem:[%s1136 + $0xd1] sm:$0xff]
      %v1199 = vld [vmem:[%s1136 + $0xe9] sm:$0xff]
      %v1200 = vld [vmem:[%s1136 + $0xf1] sm:$0xff]
      %v1201 = vpack.c.bf16 %v1186, %v1185
      %v1202 = vpack.c.bf16 %v1188, %v1187
      %v1203 = vpack.c.bf16 %v1190, %v1189
      %v1204 = vpack.c.bf16 %v1192, %v1191
      %v1205 = vpack.c.bf16 %v1194, %v1193
      %v1206 = vpack.c.bf16 %v1196, %v1195
      %v1207 = vpack.c.bf16 %v1198, %v1197
      %v1208 = vpack.c.bf16 %v1200, %v1199
      %1217 = vrot.lane.b32.xlu0 %v1032, 2
      %v1218 = vpop.permute.xlu0 %1217
      %1219 = vrot.lane.b32.xlu0 %v1033, 2
      %v1220 = vpop.permute.xlu0 %1219
      %1221 = vrot.lane.b32.xlu0 %v1034, 2
      %v1222 = vpop.permute.xlu0 %1221
      %1223 = vrot.lane.b32.xlu0 %v1035, 2
      %v1224 = vpop.permute.xlu0 %1223
      %1225 = vrot.lane.b32.xlu0 %v1036, 2
      %v1226 = vpop.permute.xlu0 %1225
      %1227 = vrot.lane.b32.xlu0 %v1037, 2
      %v1228 = vpop.permute.xlu0 %1227
      %1229 = vrot.lane.b32.xlu0 %v1038, 2
      %v1230 = vpop.permute.xlu0 %1229
      %1231 = vrot.lane.b32.xlu0 %v1039, 2
      %v1232 = vpop.permute.xlu0 %1231
      %1241 = vrot.lane.b32.xlu0 %v1056, 4
      %v1242 = vpop.permute.xlu0 %1241
      %1243 = vrot.lane.b32.xlu0 %v1057, 4
      %v1244 = vpop.permute.xlu0 %1243
      %1245 = vrot.lane.b32.xlu0 %v1058, 4
      %v1246 = vpop.permute.xlu0 %1245
      %1247 = vrot.lane.b32.xlu0 %v1059, 4
      %v1248 = vpop.permute.xlu0 %1247
      %1249 = vrot.lane.b32.xlu0 %v1060, 4
      %v1250 = vpop.permute.xlu0 %1249
      %1251 = vrot.lane.b32.xlu0 %v1061, 4
      %v1252 = vpop.permute.xlu0 %1251
      %1253 = vrot.lane.b32.xlu0 %v1062, 4
      %v1254 = vpop.permute.xlu0 %1253
      %1255 = vrot.lane.b32.xlu0 %v1063, 4
      %v1256 = vpop.permute.xlu0 %1255
      %1265 = vrot.lane.b32.xlu0 %v1080, 6
      %v1266 = vpop.permute.xlu0 %1265
      %1267 = vrot.lane.b32.xlu0 %v1081, 6
      %v1268 = vpop.permute.xlu0 %1267
      %1269 = vrot.lane.b32.xlu0 %v1082, 6
      %v1270 = vpop.permute.xlu0 %1269
      %1271 = vrot.lane.b32.xlu0 %v1083, 6
      %v1272 = vpop.permute.xlu0 %1271
      %1273 = vrot.lane.b32.xlu0 %v1084, 6
      %v1274 = vpop.permute.xlu0 %1273
      %1275 = vrot.lane.b32.xlu0 %v1085, 6
      %v1276 = vpop.permute.xlu0 %1275
      %1277 = vrot.lane.b32.xlu0 %v1086, 6
      %v1278 = vpop.permute.xlu0 %1277
      %1279 = vrot.lane.b32.xlu0 %v1087, 6
      %v1280 = vpop.permute.xlu0 %1279
      %1289 = vrot.lane.b32.xlu0 %v1104, 8
      %v1290 = vpop.permute.xlu0 %1289
      %1291 = vrot.lane.b32.xlu0 %v1105, 8
      %v1292 = vpop.permute.xlu0 %1291
      %1293 = vrot.lane.b32.xlu0 %v1106, 8
      %v1294 = vpop.permute.xlu0 %1293
      %1295 = vrot.lane.b32.xlu0 %v1107, 8
      %v1296 = vpop.permute.xlu0 %1295
      %1297 = vrot.lane.b32.xlu0 %v1108, 8
      %v1298 = vpop.permute.xlu0 %1297
      %1299 = vrot.lane.b32.xlu0 %v1109, 8
      %v1300 = vpop.permute.xlu0 %1299
      %1301 = vrot.lane.b32.xlu0 %v1110, 8
      %v1302 = vpop.permute.xlu0 %1301
      %1303 = vrot.lane.b32.xlu0 %v1111, 8
      %v1304 = vpop.permute.xlu0 %1303
      %1313 = vrot.lane.b32.xlu0 %v1128, 10
      %v1314 = vpop.permute.xlu0 %1313
      %1315 = vrot.lane.b32.xlu0 %v1129, 10
      %v1316 = vpop.permute.xlu0 %1315
      %1317 = vrot.lane.b32.xlu0 %v1130, 10
      %v1318 = vpop.permute.xlu0 %1317
      %1319 = vrot.lane.b32.xlu0 %v1131, 10
      %v1320 = vpop.permute.xlu0 %1319
      %1321 = vrot.lane.b32.xlu0 %v1132, 10
      %v1322 = vpop.permute.xlu0 %1321
      %1323 = vrot.lane.b32.xlu0 %v1133, 10
      %v1324 = vpop.permute.xlu0 %1323
      %1325 = vrot.lane.b32.xlu0 %v1134, 10
      %v1326 = vpop.permute.xlu0 %1325
      %1327 = vrot.lane.b32.xlu0 %v1135, 10
      %v1328 = vpop.permute.xlu0 %1327
      %1337 = vrot.lane.b32.xlu0 %v1153, 12
      %v1338 = vpop.permute.xlu0 %1337
      %1339 = vrot.lane.b32.xlu0 %v1154, 12
      %v1340 = vpop.permute.xlu0 %1339
      %1341 = vrot.lane.b32.xlu0 %v1155, 12
      %v1342 = vpop.permute.xlu0 %1341
      %1343 = vrot.lane.b32.xlu0 %v1156, 12
      %v1344 = vpop.permute.xlu0 %1343
      %1345 = vrot.lane.b32.xlu0 %v1157, 12
      %v1346 = vpop.permute.xlu0 %1345
      %1347 = vrot.lane.b32.xlu0 %v1158, 12
      %v1348 = vpop.permute.xlu0 %1347
      %1349 = vrot.lane.b32.xlu0 %v1159, 12
      %v1350 = vpop.permute.xlu0 %1349
      %1351 = vrot.lane.b32.xlu0 %v1160, 12
      %v1352 = vpop.permute.xlu0 %1351
      %1361 = vrot.lane.b32.xlu0 %v1177, 14
      %v1362 = vpop.permute.xlu0 %1361
      %1363 = vrot.lane.b32.xlu0 %v1178, 14
      %v1364 = vpop.permute.xlu0 %1363
      %1365 = vrot.lane.b32.xlu0 %v1179, 14
      %v1366 = vpop.permute.xlu0 %1365
      %1367 = vrot.lane.b32.xlu0 %v1180, 14
      %v1368 = vpop.permute.xlu0 %1367
      %1369 = vrot.lane.b32.xlu0 %v1181, 14
      %v1370 = vpop.permute.xlu0 %1369
      %1371 = vrot.lane.b32.xlu0 %v1182, 14
      %v1372 = vpop.permute.xlu0 %1371
      %1373 = vrot.lane.b32.xlu0 %v1183, 14
      %v1374 = vpop.permute.xlu0 %1373
      %1375 = vrot.lane.b32.xlu0 %v1184, 14
      %v1376 = vpop.permute.xlu0 %1375
      %1385 = vrot.lane.b32.xlu0 %v1201, 16
      %v1386 = vpop.permute.xlu0 %1385
      %1387 = vrot.lane.b32.xlu0 %v1202, 16
      %v1388 = vpop.permute.xlu0 %1387
      %1389 = vrot.lane.b32.xlu0 %v1203, 16
      %v1390 = vpop.permute.xlu0 %1389
      %1391 = vrot.lane.b32.xlu0 %v1204, 16
      %v1392 = vpop.permute.xlu0 %1391
      %1393 = vrot.lane.b32.xlu0 %v1205, 16
      %v1394 = vpop.permute.xlu0 %1393
      %1395 = vrot.lane.b32.xlu0 %v1206, 16
      %v1396 = vpop.permute.xlu0 %1395
      %1397 = vrot.lane.b32.xlu0 %v1207, 16
      %v1398 = vpop.permute.xlu0 %1397
      %1399 = vrot.lane.b32.xlu0 %v1208, 16
      %v1400 = vpop.permute.xlu0 %1399
      %v1403 = vsel %vm957, %v1008, %v1218
      %v1406 = vsel %vm957, %v1009, %v1220
      %v1409 = vsel %vm957, %v1010, %v1222
      %v1412 = vsel %vm957, %v1011, %v1224
      %v1415 = vsel %vm957, %v1012, %v1226
      %v1418 = vsel %vm957, %v1013, %v1228
      %v1421 = vsel %vm957, %v1014, %v1230
      %v1424 = vsel %vm957, %v1015, %v1232
      %v1426 = vsel %vm677, %v1403, %v1242
      %v1428 = vsel %vm677, %v1406, %v1244
      %v1430 = vsel %vm677, %v1409, %v1246
      %v1432 = vsel %vm677, %v1412, %v1248
      %v1434 = vsel %vm677, %v1415, %v1250
      %v1436 = vsel %vm677, %v1418, %v1252
      %v1438 = vsel %vm677, %v1421, %v1254
      %v1440 = vsel %vm677, %v1424, %v1256
      %vm1441 = vcmask 48128
      %v1443 = vsel %vm1441, %v1426, %v1266
      %v1445 = vsel %vm1441, %v1428, %v1268
      %v1447 = vsel %vm1441, %v1430, %v1270
      %v1449 = vsel %vm1441, %v1432, %v1272
      %v1451 = vsel %vm1441, %v1434, %v1274
      %v1453 = vsel %vm1441, %v1436, %v1276
      %v1455 = vsel %vm1441, %v1438, %v1278
      %v1457 = vsel %vm1441, %v1440, %v1280
      %vm1458 = vcmask 64512
      %v1460 = vsel %vm1458, %v1443, %v1290
      %v1462 = vsel %vm1458, %v1445, %v1292
      %v1464 = vsel %vm1458, %v1447, %v1294
      %v1466 = vsel %vm1458, %v1449, %v1296
      %v1468 = vsel %vm1458, %v1451, %v1298
      %v1470 = vsel %vm1458, %v1453, %v1300
      %v1472 = vsel %vm1458, %v1455, %v1302
      %v1474 = vsel %vm1458, %v1457, %v1304
      %vm1475 = vcmask 80896
      %v1477 = vsel %vm1475, %v1460, %v1314
      %v1479 = vsel %vm1475, %v1462, %v1316
      %v1481 = vsel %vm1475, %v1464, %v1318
      %v1483 = vsel %vm1475, %v1466, %v1320
      %v1485 = vsel %vm1475, %v1468, %v1322
      %v1487 = vsel %vm1475, %v1470, %v1324
      %v1489 = vsel %vm1475, %v1472, %v1326
      %v1491 = vsel %vm1475, %v1474, %v1328
      %vm1492 = vcmask 97280
      %v1494 = vsel %vm1492, %v1477, %v1338
      %v1496 = vsel %vm1492, %v1479, %v1340
      %v1498 = vsel %vm1492, %v1481, %v1342
      %v1500 = vsel %vm1492, %v1483, %v1344
      %v1502 = vsel %vm1492, %v1485, %v1346
      %v1504 = vsel %vm1492, %v1487, %v1348
      %v1506 = vsel %vm1492, %v1489, %v1350
      %v1508 = vsel %vm1492, %v1491, %v1352
      %vm1509 = vcmask 113664
      %v1511 = vsel %vm1509, %v1494, %v1362
      %v1513 = vsel %vm1509, %v1496, %v1364
      %v1515 = vsel %vm1509, %v1498, %v1366
      %v1517 = vsel %vm1509, %v1500, %v1368
      %v1519 = vsel %vm1509, %v1502, %v1370
      %v1521 = vsel %vm1509, %v1504, %v1372
      %v1523 = vsel %vm1509, %v1506, %v1374
      %v1525 = vsel %vm1509, %v1508, %v1376
      %vm1526 = vcmask 130048
      %v1528 = vsel %vm1526, %v1511, %v1386
      %v1530 = vsel %vm1526, %v1513, %v1388
      %v1532 = vsel %vm1526, %v1515, %v1390
      %v1534 = vsel %vm1526, %v1517, %v1392
      %v1536 = vsel %vm1526, %v1519, %v1394
      %v1538 = vsel %vm1526, %v1521, %v1396
      %v1540 = vsel %vm1526, %v1523, %v1398
      %v1542 = vsel %vm1526, %v1525, %v1400
      %v1543 = vld [vmem:[%s8] sm:$0xf]
      %v1544 = vld [vmem:[%s8 + $0x4] sm:$0xf]
      %v1545 = vld [vmem:[%s8 + $0x8] sm:$0x1]
      %v1549 = vunpack.c.l.b16 %v1543
      %v1550 = vunpack.c.l.b16 %v1544
      %v1551 = vunpack.c.l.b16 %v1545
      %v1552 = vpack.c.b16 %v1550, %v1549
      %v1553 = vpack.c.b16 %v1551, %v1551
      %vm1555 = vcmask 146432
      %v1556 = vsel %vm1555, %v1528, 0
      %v1558 = vsel %vm1555, %v1530, 0
      %v1560 = vsel %vm1555, %v1532, 0
      %v1562 = vsel %vm1555, %v1534, 0
      %v1564 = vsel %vm1555, %v1536, 0
      %v1566 = vsel %vm1555, %v1538, 0
      %v1568 = vsel %vm1555, %v1540, 0
      %v1570 = vsel %vm1555, %v1542, 0
      %vm1572 = vcmask 1040384
      %v1574 = vsel %vm1572, %v1553, 0
      %1576 = vmatprep.subr.bf16.mxu0 0
      %1577 = vmatpush1.bf16.msra.mxu0 %v1552
      %1578 = vmatprep.subr.bf16.mxu0 0
      %1579 = vmatpush1.bf16.msra.mxu0 %v1574
      %1580 = vmatprep.subr.bf16.mxu0 0
      %1581 = vmatpush1.bf16.msra.mxu0 0
      %1582 = vmatprep.subr.bf16.mxu0 0
      %1583 = vmatpush1.bf16.msra.mxu0 0
      %1584 = vmatprep.subr.bf16.mxu0 0
      %1585 = vmatpush1.bf16.msra.mxu0 0
      %1586 = vmatprep.subr.bf16.mxu0 0
      %1587 = vmatpush1.bf16.msra.mxu0 0
      %1588 = vmatprep.subr.bf16.mxu0 0
      %1589 = vmatpush1.bf16.msra.mxu0 0
      %1590 = vmatprep.subr.bf16.mxu0 0
      %1591 = vmatpush1.bf16.msra.mxu0 0
      %1592 = vmatprep.subr.bf16.mxu0 0
      %1593 = vmatpush1.bf16.msra.mxu0 0
      %1594 = vmatprep.subr.bf16.mxu0 0
      %1595 = vmatpush1.bf16.msra.mxu0 0
      %1596 = vmatprep.subr.bf16.mxu0 0
      %1597 = vmatpush1.bf16.msra.mxu0 0
      %1598 = vmatprep.subr.bf16.mxu0 0
      %1599 = vmatpush1.bf16.msra.mxu0 0
      %1600 = vmatprep.subr.bf16.mxu0 0
      %1601 = vmatpush1.bf16.msra.mxu0 0
      %1602 = vmatprep.subr.bf16.mxu0 0
      %1603 = vmatpush1.bf16.msra.mxu0 0
      %1604 = vmatprep.subr.bf16.mxu0 0
      %1605 = vmatpush1.bf16.msra.mxu0 0
      %1606 = vmatprep.subr.bf16.mxu0 0
      %1607 = vmatpush1.bf16.msra.mxu0 0
      %1608 = vmatprep.mubr.bf16.mxu0 0
      %1609 = vmatmul.mubr.bf16.gmra.mrb[0].mxu0 %v1556
      %v1610 = vpop.f32.mrb[0].mxu0
      %v1611 = vadd.f32 0.0, %v1610
      %v1612 = vpop.f32.mrb[0].mxu0
      %v1613 = vpop.f32.mrb[0].mxu0
      %v1614 = vadd.f32 0.0, %v1613
      %v1615 = vpop.f32.mrb[0].mxu0
      %1616 = vmatprep.mubr.bf16.mxu0 0
      %1617 = vmatmul.mubr.bf16.gmra.mrb[0].mxu0 %v1558
      %v1618 = vpop.f32.mrb[0].mxu0
      %v1619 = vadd.f32 0.0, %v1618
      %v1620 = vpop.f32.mrb[0].mxu0
      %v1621 = vpop.f32.mrb[0].mxu0
      %v1622 = vadd.f32 0.0, %v1621
      %v1623 = vpop.f32.mrb[0].mxu0
      %1624 = vmatprep.mubr.bf16.mxu0 0
      %1625 = vmatmul.mubr.bf16.gmra.mrb[0].mxu0 %v1560
      %v1626 = vpop.f32.mrb[0].mxu0
      %v1627 = vadd.f32 0.0, %v1626
      %v1628 = vpop.f32.mrb[0].mxu0
      %v1629 = vpop.f32.mrb[0].mxu0
      %v1630 = vadd.f32 0.0, %v1629
      %v1631 = vpop.f32.mrb[0].mxu0
      %1632 = vmatprep.mubr.bf16.mxu0 0
      %1633 = vmatmul.mubr.bf16.gmra.mrb[0].mxu0 %v1562
      %v1634 = vpop.f32.mrb[0].mxu0
      %v1635 = vadd.f32 0.0, %v1634
      %v1636 = vpop.f32.mrb[0].mxu0
      %v1637 = vpop.f32.mrb[0].mxu0
      %v1638 = vadd.f32 0.0, %v1637
      %v1639 = vpop.f32.mrb[0].mxu0
      %1640 = vmatprep.mubr.bf16.mxu0 0
      %1641 = vmatmul.mubr.bf16.gmra.mrb[0].mxu0 %v1564
      %v1642 = vpop.f32.mrb[0].mxu0
      %v1643 = vadd.f32 0.0, %v1642
      %v1644 = vpop.f32.mrb[0].mxu0
      %v1645 = vpop.f32.mrb[0].mxu0
      %v1646 = vadd.f32 0.0, %v1645
      %v1647 = vpop.f32.mrb[0].mxu0
      %1648 = vmatprep.mubr.bf16.mxu0 0
      %1649 = vmatmul.mubr.bf16.gmra.mrb[0].mxu0 %v1566
      %v1650 = vpop.f32.mrb[0].mxu0
      %v1651 = vadd.f32 0.0, %v1650
      %v1652 = vpop.f32.mrb[0].mxu0
      %v1653 = vpop.f32.mrb[0].mxu0
      %v1654 = vadd.f32 0.0, %v1653
      %v1655 = vpop.f32.mrb[0].mxu0
      %1656 = vmatprep.mubr.bf16.mxu0 0
      %1657 = vmatmul.mubr.bf16.gmra.mrb[0].mxu0 %v1568
      %v1658 = vpop.f32.mrb[0].mxu0
      %v1659 = vadd.f32 0.0, %v1658
      %v1660 = vpop.f32.mrb[0].mxu0
      %v1661 = vpop.f32.mrb[0].mxu0
      %v1662 = vadd.f32 0.0, %v1661
      %v1663 = vpop.f32.mrb[0].mxu0
      %1664 = vmatprep.mubr.bf16.mxu0 0
      %1665 = vmatmul.mubr.bf16.gmra.mrb[0].mxu0 %v1570
      %v1666 = vpop.f32.mrb[0].mxu0
      %v1667 = vadd.f32 0.0, %v1666
      %v1668 = vpop.f32.mrb[0].mxu0
      %v1669 = vpop.f32.mrb[0].mxu0
      %v1670 = vadd.f32 0.0, %v1669
      %v1671 = vpop.f32.mrb[0].mxu0
      %1672 = vdwg.mxu0
      %v1673 = vld [vmem:[%s9] sm:$0x1]
      %v1675 = vlaneseq
      %v1676 = vshrl.u32 %v1675, 7
      %v1677 = vsub.s32 0, %v1676
      %v1678 = vrot.slane %v1673, %v1677
      %v1680 = vmul.f32 %v1611, %v1678
      %v1681 = vmul.f32 %v1614, %v1678
      %v1682 = vmul.f32 %v1619, %v1678
      %v1683 = vmul.f32 %v1622, %v1678
      %v1684 = vmul.f32 %v1627, %v1678
      %v1685 = vmul.f32 %v1630, %v1678
      %v1686 = vmul.f32 %v1635, %v1678
      %v1687 = vmul.f32 %v1638, %v1678
      %v1688 = vmul.f32 %v1643, %v1678
      %v1689 = vmul.f32 %v1646, %v1678
      %v1690 = vmul.f32 %v1651, %v1678
      %v1691 = vmul.f32 %v1654, %v1678
      %v1692 = vmul.f32 %v1659, %v1678
      %v1693 = vmul.f32 %v1662, %v1678
      %v1694 = vmul.f32 %v1667, %v1678
      %v1695 = vmul.f32 %v1670, %v1678
      %v1696 = vld [vmem:[%s10] sm:$0x1]
      %v1698 = vlaneseq
      %v1699 = vshrl.u32 %v1698, 7
      %v1700 = vsub.s32 0, %v1699
      %v1701 = vrot.slane %v1696, %v1700
      %v1703 = vadd.f32 %v1680, %v1701
      %v1704 = vadd.f32 %v1681, %v1701
      %v1705 = vadd.f32 %v1682, %v1701
      %v1706 = vadd.f32 %v1683, %v1701
      %v1707 = vadd.f32 %v1684, %v1701
      %v1708 = vadd.f32 %v1685, %v1701
      %v1709 = vadd.f32 %v1686, %v1701
      %v1710 = vadd.f32 %v1687, %v1701
      %v1711 = vadd.f32 %v1688, %v1701
      %v1712 = vadd.f32 %v1689, %v1701
      %v1713 = vadd.f32 %v1690, %v1701
      %v1714 = vadd.f32 %v1691, %v1701
      %v1715 = vadd.f32 %v1692, %v1701
      %v1716 = vadd.f32 %v1693, %v1701
      %v1717 = vadd.f32 %v1694, %v1701
      %v1718 = vadd.f32 %v1695, %v1701
      %v1719 = vmax.f32 %v1703, 0.0
      %v1720 = vmax.f32 %v1704, 0.0
      %v1721 = vmax.f32 %v1705, 0.0
      %v1722 = vmax.f32 %v1706, 0.0
      %v1723 = vmax.f32 %v1707, 0.0
      %v1724 = vmax.f32 %v1708, 0.0
      %v1725 = vmax.f32 %v1709, 0.0
      %v1726 = vmax.f32 %v1710, 0.0
      %v1727 = vmax.f32 %v1711, 0.0
      %v1728 = vmax.f32 %v1712, 0.0
      %v1729 = vmax.f32 %v1713, 0.0
      %v1730 = vmax.f32 %v1714, 0.0
      %v1731 = vmax.f32 %v1715, 0.0
      %v1732 = vmax.f32 %v1716, 0.0
      %v1733 = vmax.f32 %v1717, 0.0
      %v1734 = vmax.f32 %v1718, 0.0
      %v1735 = vpack.c.bf16 %v1720, %v1719
      %v1736 = vpack.c.bf16 %v1722, %v1721
      %v1737 = vpack.c.bf16 %v1724, %v1723
      %v1738 = vpack.c.bf16 %v1726, %v1725
      %v1739 = vpack.c.bf16 %v1728, %v1727
      %v1740 = vpack.c.bf16 %v1730, %v1729
      %v1741 = vpack.c.bf16 %v1732, %v1731
      %v1742 = vpack.c.bf16 %v1734, %v1733
      %v1743 = vld [vmem:[%s11] sm:$0x3]
      %v1745 = vsel %vm677, %v1735, 0
      %v1748 = vsel %vm677, %v1736, 0
      %v1751 = vsel %vm677, %v1737, 0
      %v1754 = vsel %vm677, %v1738, 0
      %v1757 = vsel %vm677, %v1739, 0
      %v1760 = vsel %vm677, %v1740, 0
      %v1763 = vsel %vm677, %v1741, 0
      %v1766 = vsel %vm677, %v1742, 0
      %v1769 = vsel %vm739, %v1743, 0
      %1771 = vmatprep.subr.bf16.mxu0 0
      %1772 = vmatpush1.bf16.msra.mxu0 %v1769
      %1773 = vmatprep.subr.bf16.mxu0 0
      %1774 = vmatpush1.bf16.msra.mxu0 0
      %1775 = vmatprep.subr.bf16.mxu0 0
      %1776 = vmatpush1.bf16.msra.mxu0 0
      %1777 = vmatprep.subr.bf16.mxu0 0
      %1778 = vmatpush1.bf16.msra.mxu0 0
      %1779 = vmatprep.subr.bf16.mxu0 0
      %1780 = vmatpush1.bf16.msra.mxu0 0
      %1781 = vmatprep.subr.bf16.mxu0 0
      %1782 = vmatpush1.bf16.msra.mxu0 0
      %1783 = vmatprep.subr.bf16.mxu0 0
      %1784 = vmatpush1.bf16.msra.mxu0 0
      %1785 = vmatprep.subr.bf16.mxu0 0
      %1786 = vmatpush1.bf16.msra.mxu0 0
      %1787 = vmatprep.subr.bf16.mxu0 0
      %1788 = vmatpush1.bf16.msra.mxu0 0
      %1789 = vmatprep.subr.bf16.mxu0 0
      %1790 = vmatpush1.bf16.msra.mxu0 0
      %1791 = vmatprep.subr.bf16.mxu0 0
      %1792 = vmatpush1.bf16.msra.mxu0 0
      %1793 = vmatprep.subr.bf16.mxu0 0
      %1794 = vmatpush1.bf16.msra.mxu0 0
      %1795 = vmatprep.subr.bf16.mxu0 0
      %1796 = vmatpush1.bf16.msra.mxu0 0
      %1797 = vmatprep.subr.bf16.mxu0 0
      %1798 = vmatpush1.bf16.msra.mxu0 0
      %1799 = vmatprep.subr.bf16.mxu0 0
      %1800 = vmatpush1.bf16.msra.mxu0 0
      %1801 = vmatprep.subr.bf16.mxu0 0
      %1802 = vmatpush1.bf16.msra.mxu0 0
      %1803 = vmatprep.mubr.bf16.mxu0 0
      %1804 = vmatmul.mubr.bf16.gmra.mrb[0].mxu0 %v1745
      %v1805 = vpop.f32.mrb[0].mxu0
      %v1806 = vadd.f32 0.0, %v1805
      %v1807 = vpop.f32.mrb[0].mxu0
      %v1808 = vpop.f32.mrb[0].mxu0
      %v1809 = vadd.f32 0.0, %v1808
      %v1810 = vpop.f32.mrb[0].mxu0
      %1811 = vmatprep.mubr.bf16.mxu0 0
      %1812 = vmatmul.mubr.bf16.gmra.mrb[0].mxu0 %v1748
      %v1813 = vpop.f32.mrb[0].mxu0
      %v1814 = vadd.f32 0.0, %v1813
      %v1815 = vpop.f32.mrb[0].mxu0
      %v1816 = vpop.f32.mrb[0].mxu0
      %v1817 = vadd.f32 0.0, %v1816
      %v1818 = vpop.f32.mrb[0].mxu0
      %1819 = vmatprep.mubr.bf16.mxu0 0
      %1820 = vmatmul.mubr.bf16.gmra.mrb[0].mxu0 %v1751
      %v1821 = vpop.f32.mrb[0].mxu0
      %v1822 = vadd.f32 0.0, %v1821
      %v1823 = vpop.f32.mrb[0].mxu0
      %v1824 = vpop.f32.mrb[0].mxu0
      %v1825 = vadd.f32 0.0, %v1824
      %v1826 = vpop.f32.mrb[0].mxu0
      %1827 = vmatprep.mubr.bf16.mxu0 0
      %1828 = vmatmul.mubr.bf16.gmra.mrb[0].mxu0 %v1754
      %v1829 = vpop.f32.mrb[0].mxu0
      %v1830 = vadd.f32 0.0, %v1829
      %v1831 = vpop.f32.mrb[0].mxu0
      %v1832 = vpop.f32.mrb[0].mxu0
      %v1833 = vadd.f32 0.0, %v1832
      %v1834 = vpop.f32.mrb[0].mxu0
      %1835 = vmatprep.mubr.bf16.mxu0 0
      %1836 = vmatmul.mubr.bf16.gmra.mrb[0].mxu0 %v1757
      %v1837 = vpop.f32.mrb[0].mxu0
      %v1838 = vadd.f32 0.0, %v1837
      %v1839 = vpop.f32.mrb[0].mxu0
      %v1840 = vpop.f32.mrb[0].mxu0
      %v1841 = vadd.f32 0.0, %v1840
      %v1842 = vpop.f32.mrb[0].mxu0
      %1843 = vmatprep.mubr.bf16.mxu0 0
      %1844 = vmatmul.mubr.bf16.gmra.mrb[0].mxu0 %v1760
      %v1845 = vpop.f32.mrb[0].mxu0
      %v1846 = vadd.f32 0.0, %v1845
      %v1847 = vpop.f32.mrb[0].mxu0
      %v1848 = vpop.f32.mrb[0].mxu0
      %v1849 = vadd.f32 0.0, %v1848
      %v1850 = vpop.f32.mrb[0].mxu0
      %1851 = vmatprep.mubr.bf16.mxu0 0
      %1852 = vmatmul.mubr.bf16.gmra.mrb[0].mxu0 %v1763
      %v1853 = vpop.f32.mrb[0].mxu0
      %v1854 = vadd.f32 0.0, %v1853
      %v1855 = vpop.f32.mrb[0].mxu0
      %v1856 = vpop.f32.mrb[0].mxu0
      %v1857 = vadd.f32 0.0, %v1856
      %v1858 = vpop.f32.mrb[0].mxu0
      %1859 = vmatprep.mubr.bf16.mxu0 0
      %1860 = vmatmul.mubr.bf16.gmra.mrb[0].mxu0 %v1766
      %v1861 = vpop.f32.mrb[0].mxu0
      %v1862 = vadd.f32 0.0, %v1861
      %v1863 = vpop.f32.mrb[0].mxu0
      %v1864 = vpop.f32.mrb[0].mxu0
      %v1865 = vadd.f32 0.0, %v1864
      %v1866 = vpop.f32.mrb[0].mxu0
      %1867 = vdwg.mxu0
      %v1868 = vld [vmem:[%s4] sm:$0x3]
      %v1870 = vsel %vm739, %v1868, 0
      %1872 = vmatprep.subr.bf16.mxu0 0
      %1873 = vmatpush1.bf16.msra.mxu0 %v1870
      %1874 = vmatprep.subr.bf16.mxu0 0
      %1875 = vmatpush1.bf16.msra.mxu0 0
      %1876 = vmatprep.subr.bf16.mxu0 0
      %1877 = vmatpush1.bf16.msra.mxu0 0
      %1878 = vmatprep.subr.bf16.mxu0 0
      %1879 = vmatpush1.bf16.msra.mxu0 0
      %1880 = vmatprep.subr.bf16.mxu0 0
      %1881 = vmatpush1.bf16.msra.mxu0 0
      %1882 = vmatprep.subr.bf16.mxu0 0
      %1883 = vmatpush1.bf16.msra.mxu0 0
      %1884 = vmatprep.subr.bf16.mxu0 0
      %1885 = vmatpush1.bf16.msra.mxu0 0
      %1886 = vmatprep.subr.bf16.mxu0 0
      %1887 = vmatpush1.bf16.msra.mxu0 0
      %1888 = vmatprep.subr.bf16.mxu0 0
      %1889 = vmatpush1.bf16.msra.mxu0 0
      %1890 = vmatprep.subr.bf16.mxu0 0
      %1891 = vmatpush1.bf16.msra.mxu0 0
      %1892 = vmatprep.subr.bf16.mxu0 0
      %1893 = vmatpush1.bf16.msra.mxu0 0
      %1894 = vmatprep.subr.bf16.mxu0 0
      %1895 = vmatpush1.bf16.msra.mxu0 0
      %1896 = vmatprep.subr.bf16.mxu0 0
      %1897 = vmatpush1.bf16.msra.mxu0 0
      %1898 = vmatprep.subr.bf16.mxu0 0
      %1899 = vmatpush1.bf16.msra.mxu0 0
      %1900 = vmatprep.subr.bf16.mxu0 0
      %1901 = vmatpush1.bf16.msra.mxu0 0
      %1902 = vmatprep.subr.bf16.mxu0 0
      %1903 = vmatpush1.bf16.msra.mxu0 0
      %1904 = vmatprep.mubr.bf16.mxu0 0
      %1905 = vmatmul.mubr.bf16.gmra.mrb[0].mxu0 %v713
      %v1906 = vpop.f32.mrb[0].mxu0
      %v1907 = vadd.f32 %v1806, %v1906
      %v1908 = vpop.f32.mrb[0].mxu0
      %v1909 = vpop.f32.mrb[0].mxu0
      %v1910 = vadd.f32 %v1809, %v1909
      %v1911 = vpop.f32.mrb[0].mxu0
      %1912 = vmatprep.mubr.bf16.mxu0 0
      %1913 = vmatmul.mubr.bf16.gmra.mrb[0].mxu0 %v716
      %v1914 = vpop.f32.mrb[0].mxu0
      %v1915 = vadd.f32 %v1814, %v1914
      %v1916 = vpop.f32.mrb[0].mxu0
      %v1917 = vpop.f32.mrb[0].mxu0
      %v1918 = vadd.f32 %v1817, %v1917
      %v1919 = vpop.f32.mrb[0].mxu0
      %1920 = vmatprep.mubr.bf16.mxu0 0
      %1921 = vmatmul.mubr.bf16.gmra.mrb[0].mxu0 %v719
      %v1922 = vpop.f32.mrb[0].mxu0
      %v1923 = vadd.f32 %v1822, %v1922
      %v1924 = vpop.f32.mrb[0].mxu0
      %v1925 = vpop.f32.mrb[0].mxu0
      %v1926 = vadd.f32 %v1825, %v1925
      %v1927 = vpop.f32.mrb[0].mxu0
      %1928 = vmatprep.mubr.bf16.mxu0 0
      %1929 = vmatmul.mubr.bf16.gmra.mrb[0].mxu0 %v722
      %v1930 = vpop.f32.mrb[0].mxu0
      %v1931 = vadd.f32 %v1830, %v1930
      %v1932 = vpop.f32.mrb[0].mxu0
      %v1933 = vpop.f32.mrb[0].mxu0
      %v1934 = vadd.f32 %v1833, %v1933
      %v1935 = vpop.f32.mrb[0].mxu0
      %1936 = vmatprep.mubr.bf16.mxu0 0
      %1937 = vmatmul.mubr.bf16.gmra.mrb[0].mxu0 %v725
      %v1938 = vpop.f32.mrb[0].mxu0
      %v1939 = vadd.f32 %v1838, %v1938
      %v1940 = vpop.f32.mrb[0].mxu0
      %v1941 = vpop.f32.mrb[0].mxu0
      %v1942 = vadd.f32 %v1841, %v1941
      %v1943 = vpop.f32.mrb[0].mxu0
      %1944 = vmatprep.mubr.bf16.mxu0 0
      %1945 = vmatmul.mubr.bf16.gmra.mrb[0].mxu0 %v728
      %v1946 = vpop.f32.mrb[0].mxu0
      %v1947 = vadd.f32 %v1846, %v1946
      %v1948 = vpop.f32.mrb[0].mxu0
      %v1949 = vpop.f32.mrb[0].mxu0
      %v1950 = vadd.f32 %v1849, %v1949
      %v1951 = vpop.f32.mrb[0].mxu0
      %1952 = vmatprep.mubr.bf16.mxu0 0
      %1953 = vmatmul.mubr.bf16.gmra.mrb[0].mxu0 %v731
      %v1954 = vpop.f32.mrb[0].mxu0
      %v1955 = vadd.f32 %v1854, %v1954
      %v1956 = vpop.f32.mrb[0].mxu0
      %v1957 = vpop.f32.mrb[0].mxu0
      %v1958 = vadd.f32 %v1857, %v1957
      %v1959 = vpop.f32.mrb[0].mxu0
      %1960 = vmatprep.mubr.bf16.mxu0 0
      %1961 = vmatmul.mubr.bf16.gmra.mrb[0].mxu0 %v734
      %v1962 = vpop.f32.mrb[0].mxu0
      %v1963 = vadd.f32 %v1862, %v1962
      %v1964 = vpop.f32.mrb[0].mxu0
      %v1965 = vpop.f32.mrb[0].mxu0
      %v1966 = vadd.f32 %v1865, %v1965
      %v1967 = vpop.f32.mrb[0].mxu0
      %1968 = vdwg.mxu0
      %1969 = vst.msk [vmem:[%s560] sm:$0xff] %vm1458, %v1907
      %1970 = vst.msk [vmem:[%s560 + $0x8] sm:$0xff] %vm1458, %v1910
      %1971 = vst.msk [vmem:[%s560 + $0x10] sm:$0xff] %vm1458, %v1915
      %1972 = vst.msk [vmem:[%s560 + $0x18] sm:$0xff] %vm1458, %v1918
      %1973 = vst.msk [vmem:[%s560 + $0x20] sm:$0xff] %vm1458, %v1923
      %1974 = vst.msk [vmem:[%s560 + $0x28] sm:$0xff] %vm1458, %v1926
      %1975 = vst.msk [vmem:[%s560 + $0x30] sm:$0xff] %vm1458, %v1931
      %1976 = vst.msk [vmem:[%s560 + $0x38] sm:$0xff] %vm1458, %v1934
      %1977 = vst.msk [vmem:[%s560 + $0x40] sm:$0xff] %vm1458, %v1939
      %1978 = vst.msk [vmem:[%s560 + $0x48] sm:$0xff] %vm1458, %v1942
      %1979 = vst.msk [vmem:[%s560 + $0x50] sm:$0xff] %vm1458, %v1947
      %1980 = vst.msk [vmem:[%s560 + $0x58] sm:$0xff] %vm1458, %v1950
      %1981 = vst.msk [vmem:[%s560 + $0x60] sm:$0xff] %vm1458, %v1955
      %1982 = vst.msk [vmem:[%s560 + $0x68] sm:$0xff] %vm1458, %v1958
      %1983 = vst.msk [vmem:[%s560 + $0x70] sm:$0xff] %vm1458, %v1963
      %1984 = vst.msk [vmem:[%s560 + $0x78] sm:$0xff] %vm1458, %v1966
      %s1985 = smul.u32 8, %s30
      %p1986 = scmp.lt.s32.totalorder %s29, 1
      %s1987 = scalar_select %p1986, %s29, 1
      %p1988 = scmp.lt.s32.totalorder %s1985, 15
      %s1989 = scalar_select %p1988, %s1985, 15
      %s1990 = smul.addr %s1989, 2
      %s1991 = smul.addr %s1987, 32
      %s1992 = sadd.s32 %s1990, %s1991
      %s1993 = smul.addr %s1992, 8
      %s1994 = scalar_lea.vmem %s12, %s1993
      %s1995 = smul.u32 8, %s30
      %p1996 = scmp.lt.s32.totalorder %s29, 1
      %s1997 = scalar_select %p1996, %s29, 1
      %p1998 = scmp.lt.s32.totalorder %s1995, 15
      %s1999 = scalar_select %p1998, %s1995, 15
      %s2000 = smul.addr %s1999, 2
      %s2001 = smul.addr %s1997, 32
      %s2002 = sadd.s32 %s2000, %s2001
      %s2003 = smul.addr %s2002, 8
      %s2004 = scalar_lea.vmem %s13, %s2003
      // Predicated region
      $region89: #{tpu_custom_call.1} parent=67 // pred_check
        %p2005 = pneg %p331
      $region90: #{tpu_custom_call.1} parent=67 // pred_check_branch
        %2007 = sbr.rel (%p2005) target = $region92
      $region91: #{tpu_custom_call.1} parent=67 // pred_region
        %s2008 = smul.u32 8, %s30
      $region92: #{tpu_custom_call.1} parent=67 // pred_fallthru
        _
      // Predicated region
      $region93: #{tpu_custom_call.1} parent=67 // pred_check
        %p2009 = pneg %p359
      $region94: #{tpu_custom_call.1} parent=67 // pred_check_branch
        %2011 = sbr.rel (%p2009) target = $region96
      $region95: #{tpu_custom_call.1} parent=67 // pred_region
        %s2012 = smul.u32 8, %s30
      $region96: #{tpu_custom_call.1} parent=67 // pred_fallthru
        _
    $region68: #{tpu_custom_call.1} parent=5 // pred_fallthru
      _
    %p2013 = scmp.le.s32.totalorder 2, %s20
    // Predicated region
    $region97: #{tpu_custom_call.1} parent=5 // pred_check
      %p2014 = pneg %p2013
    $region98: #{tpu_custom_call.1} parent=5 // pred_check_branch
      %2016 = sbr.rel (%p2014) target = $region100
    $region99: #{tpu_custom_call.1} parent=5 // pred_region
      %s2017 = ssub.s32 %s20, 2
      // Predicated region
      $region101: #{tpu_custom_call.1} parent=99 // pred_check
        %p2018 = pneg %p337
      $region102: #{tpu_custom_call.1} parent=99 // pred_check_branch
        %2020 = sbr.rel (%p2018) target = $region104
      $region103: #{tpu_custom_call.1} parent=99 // pred_region
        %s2021 = smul.u32 8, %s32
        %p2022 = scmp.lt.s32.totalorder %s31, 1
        %s2023 = scalar_select %p2022, %s31, 1
        %p2024 = scmp.lt.s32.totalorder %s2021, 15
        %s2025 = scalar_select %p2024, %s2021, 15
        %s2026 = smul.addr %s2025, 2
        %s2027 = smul.addr %s2023, 32
        %s2028 = sadd.s32 %s2026, %s2027
        %s2029 = smul.addr %s2028, 8
        %s2030 = scalar_lea.vmem %s12, %s2029
      $region104: #{tpu_custom_call.1} parent=99 // pred_fallthru
        _
      // Predicated region
      $region105: #{tpu_custom_call.1} parent=99 // pred_check
        %p2031 = pneg %p365
      $region106: #{tpu_custom_call.1} parent=99 // pred_check_branch
        %2033 = sbr.rel (%p2031) target = $region108
      $region107: #{tpu_custom_call.1} parent=99 // pred_region
        %s2034 = smul.u32 8, %s32
        %p2035 = scmp.lt.s32.totalorder %s31, 1
        %s2036 = scalar_select %p2035, %s31, 1
        %p2037 = scmp.lt.s32.totalorder %s2034, 15
        %s2038 = scalar_select %p2037, %s2034, 15
        %s2039 = smul.addr %s2038, 2
        %s2040 = smul.addr %s2036, 32
        %s2041 = sadd.s32 %s2039, %s2040
        %s2042 = smul.addr %s2041, 8
        %s2043 = scalar_lea.vmem %s13, %s2042
      $region108: #{tpu_custom_call.1} parent=99 // pred_fallthru
        _
    $region100: #{tpu_custom_call.1} parent=5 // pred_fallthru
      _
  $region6: #{tpu_custom_call.1} parent=0 // loop_footer
    %s24 = sadd.s32 1, %s20
  $region7: #{tpu_custom_call.1} parent=0 // loop_footer_branch
    %19 = sbr.rel target = $region3
  $region8: #{tpu_custom_call.1} parent=0 // loop_exit
    _

</llo_original>
